<compile_context>
chip_gen: v6e
topology: v6e:2x2x1
jax: 0.10.0
libtpu: 0.0.40
codegen_flags: <defaults>
</compile_context>

<pallas_src>
import jax
import jax.numpy as jnp
from jax.experimental import pallas as pl
from jax.experimental.pallas import tpu as pltpu


HID1, HID2, HID3 = 256, 512, 1024
OUT_FEATURES = 784        # 28 * 28
OUT_PADDED = 896          # 7 * 128 -> lane-dense final matmul + output store
TM_MAX = 512              # MXU-fill target per review (256-512 rows)


def _round_up(n, m):
    return ((n + m - 1) // m) * m


def _leaky_relu(x, slope=0.2):
    return jnp.where(x > 0, x, slope * x)


def generator_kernel(x_ref,
                     w1_ref, b1_ref,
                     w2_ref, b2_ref,
                     w3_ref, b3_ref,
                     w4_ref, b4_ref,
                     o_ref):
    """One batch tile: 4 MXU matmuls (bf16 operands, f32 accum) + VPU activations.

    LeakyReLU/Tanh run in f32 (v5e-safe); hidden activations are immediately
    re-cast to bf16 so the wide intermediates don't spill f32 vregs to VMEM.
    """
    h = jnp.dot(x_ref[...].astype(jnp.bfloat16), w1_ref[...],
                preferred_element_type=jnp.float32) + b1_ref[...]
    h = _leaky_relu(h).astype(jnp.bfloat16)
    h = jnp.dot(h, w2_ref[...], preferred_element_type=jnp.float32) + b2_ref[...]
    h = _leaky_relu(h).astype(jnp.bfloat16)
    h = jnp.dot(h, w3_ref[...], preferred_element_type=jnp.float32) + b3_ref[...]
    h = _leaky_relu(h).astype(jnp.bfloat16)
    h = jnp.dot(h, w4_ref[...], preferred_element_type=jnp.float32) + b4_ref[...]
    o_ref[...] = jnp.tanh(h)


def init_generator_params(key, latent_dim):
    """PyTorch nn.Linear default init: U(-1/sqrt(fan_in), 1/sqrt(fan_in)).

    Weights are stored bf16 (halves weight DMA); biases stay f32. The last
    layer is zero-padded from 784 to 896 output features (sliced off in the
    wrapper).
    """
    dims = [(latent_dim, HID1), (HID1, HID2), (HID2, HID3), (HID3, OUT_FEATURES)]
    params = []
    keys = jax.random.split(key, 2 * len(dims))
    for i, (fan_in, fan_out) in enumerate(dims):
        bound = 1.0 / (fan_in ** 0.5)
        w = jax.random.uniform(keys[2 * i], (fan_in, fan_out),
                               minval=-bound, maxval=bound, dtype=jnp.float32)
        b = jax.random.uniform(keys[2 * i + 1], (1, fan_out),
                               minval=-bound, maxval=bound, dtype=jnp.float32)
        if fan_out == OUT_FEATURES:
            w = jnp.pad(w, ((0, 0), (0, OUT_PADDED - OUT_FEATURES)))
            b = jnp.pad(b, ((0, 0), (0, OUT_PADDED - OUT_FEATURES)))
        params += [w.astype(jnp.bfloat16), b]
    return params


def _choose_tm(B):
    """Pick the batch tile size TM.

    * <=16 rows: one tile (rounded to a sublane multiple) - nothing to split.
    * otherwise: split into >=2 grid steps (both v7x TensorCores engage via the
      'parallel' batch axis), capped at TM_MAX=512 so large batches run
      256-512 row tiles that fill the v6e/v7x 256-wide MXU and amortize the
      per-step grid overhead.
    """
    B8 = _round_up(B, 8)
    if B8 <= 16:
        return B8
    return min(TM_MAX, _round_up(pl.cdiv(B8, 2), 8))


def generator_forward(x, params):
    """MNIST Generator forward. x: (B, latent) f32 -> (B, 1, 28, 28) f32."""
    B, latent = x.shape

    TM = _choose_tm(B)
    B_pad = _round_up(B, TM)
    if B_pad != B:
        x = jnp.pad(x, ((0, B_pad - B), (0, 0)))

    grid = (B_pad // TM,)
    row_map = lambda i: (i, 0)     # batch-tiled arrays
    const_map = lambda i: (0, 0)   # weights/biases: VMEM-resident across steps

    weight_bytes = sum(int(p.size) * p.dtype.itemsize for p in params)
    cost = pl.CostEstimate(
        flops=2 * B_pad * (latent * HID1 + HID1 * HID2 + HID2 * HID3 + HID3 * OUT_PADDED),
        transcendentals=B_pad * OUT_PADDED,
        bytes_accessed=B_pad * latent * 4 + weight_bytes + B_pad * OUT_PADDED * 4,
    )

    def run(single_buffer_weights):
        # Constant-index weights/biases only need one VMEM buffer: halves their
        # footprint and rules out per-step weight re-DMA by construction.
        wkw = {"pipeline_mode": pl.Buffered(1)} if single_buffer_weights else {}
        in_specs = [pl.BlockSpec((TM, latent), row_map)]
        for p in params:
            in_specs.append(pl.BlockSpec(p.shape, const_map, **wkw))
        return pl.pallas_call(
            generator_kernel,
            out_shape=jax.ShapeDtypeStruct((B_pad, OUT_PADDED), jnp.float32),
            grid=grid,
            in_specs=in_specs,
            out_specs=pl.BlockSpec((TM, OUT_PADDED), row_map),
            compiler_params=pltpu.CompilerParams(
                dimension_semantics=("parallel",),
                vmem_limit_bytes=32 << 20,
            ),
            cost_estimate=cost,
        )(x, *params)

    try:
        out = run(True)
    except Exception:
        # Fallback for JAX versions without BlockSpec pipeline_mode support;
        # the constant index_map alone still keeps the weights VMEM-resident
        # (a genuine kernel bug would re-raise from this path unchanged).
        out = run(False)

    # NOTE(perf): this slice + reshape is a separate XLA copy of the output
    # (~2x output HBM traffic). Consumers that can accept the padded
    # (B_pad, 896) layout should take `out` directly; the module contract is
    # (B, 1, 28, 28), so we depad here to keep forward semantics.
    return out[:B, :OUT_FEATURES].reshape(-1, 1, 28, 28)


# TODO(synk): the non-MNIST ConvTranspose2d/BatchNorm branch of the reference
# module uses undefined globals (out_channels_g, in_channels) and is not
# implemented.

if __name__ == "__main__":
    key = jax.random.PRNGKey(0)
    latent_dim = 32

    k_params, k_x = jax.random.split(key)
    params = init_generator_params(k_params, latent_dim)

    # Pure-JAX reference replicating the kernel's math (bf16 weights/operands,
    # f32 accumulation, f32 activations) so tolerances stay tight.
    def ref(x, p):
        w1, b1, w2, b2, w3, b3, w4, b4 = p

        def lin(h, w, b):
            return jnp.dot(h.astype(jnp.bfloat16), w,
                           preferred_element_type=jnp.float32) + b

        h = _leaky_relu(lin(x, w1, b1)).astype(jnp.bfloat16)
        h = _leaky_relu(lin(h, w2, b2)).astype(jnp.bfloat16)
        h = _leaky_relu(lin(h, w3, b3)).astype(jnp.bfloat16)
        h = jnp.tanh(lin(h, w4, b4))
        return h[:, :OUT_FEATURES].reshape(-1, 1, 28, 28)

    # batch=8: single-tile path; batch=40: multi-step grid + row-padding path.
    for batch in (8, 40):
        k_x, k_use = jax.random.split(k_x)
        x = jax.random.normal(k_use, (batch, latent_dim), dtype=jnp.float32)

        out = generator_forward(x, params)
        out = jax.block_until_ready(out)

        assert out.shape == (batch, 1, 28, 28), out.shape
        assert out.dtype == jnp.float32

        ref_out = ref(x, params)
        max_err = float(jnp.max(jnp.abs(out - ref_out)))
        assert jnp.allclose(out, ref_out, atol=1e-3, rtol=1e-3), (batch, max_err)

    print("KERNEL_OK")
</pallas_src>

<mosaic_0001>
module attributes {stable_mosaic.version = 11 : i64} {
  func.func @generator_kernel(%arg0: i32, %arg1: memref<8x32xf32, #tpu.memory_space<vmem>>, %arg2: memref<32x256xbf16, #tpu.memory_space<vmem>>, %arg3: memref<1x256xf32, #tpu.memory_space<vmem>>, %arg4: memref<256x512xbf16, #tpu.memory_space<vmem>>, %arg5: memref<1x512xf32, #tpu.memory_space<vmem>>, %arg6: memref<512x1024xbf16, #tpu.memory_space<vmem>>, %arg7: memref<1x1024xf32, #tpu.memory_space<vmem>>, %arg8: memref<1024x896xbf16, #tpu.memory_space<vmem>>, %arg9: memref<1x896xf32, #tpu.memory_space<vmem>>, %arg10: memref<8x896xf32, #tpu.memory_space<vmem>>) attributes {dimension_semantics = [#tpu.dimension_semantics<parallel>], iteration_bounds = array<i64: 1>, scalar_prefetch = 0 : i64, scratch_operands = 0 : i64, tpu.core_type = #tpu.core_type<tc>, window_params = [{transform_indices = @transform_0, window_bounds = array<i64: 8, 32>}, {pipeline_mode = #tpu.pipeline_mode<synchronous>, transform_indices = @transform_1, window_bounds = array<i64: 32, 256>}, {pipeline_mode = #tpu.pipeline_mode<synchronous>, transform_indices = @transform_2, window_bounds = array<i64: 1, 256>}, {pipeline_mode = #tpu.pipeline_mode<synchronous>, transform_indices = @transform_3, window_bounds = array<i64: 256, 512>}, {pipeline_mode = #tpu.pipeline_mode<synchronous>, transform_indices = @transform_4, window_bounds = array<i64: 1, 512>}, {pipeline_mode = #tpu.pipeline_mode<synchronous>, transform_indices = @transform_5, window_bounds = array<i64: 512, 1024>}, {pipeline_mode = #tpu.pipeline_mode<synchronous>, transform_indices = @transform_6, window_bounds = array<i64: 1, 1024>}, {pipeline_mode = #tpu.pipeline_mode<synchronous>, transform_indices = @transform_7, window_bounds = array<i64: 1024, 896>}, {pipeline_mode = #tpu.pipeline_mode<synchronous>, transform_indices = @transform_8, window_bounds = array<i64: 1, 896>}, {transform_indices = @transform_9, window_bounds = array<i64: 8, 896>}]} {
    %c0 = arith.constant 0 : index
    %c0_0 = arith.constant 0 : index
    %0 = vector.load %arg1[%c0, %c0_0] : memref<8x32xf32, #tpu.memory_space<vmem>>, vector<8x32xf32>
    %1 = arith.truncf %0 : vector<8x32xf32> to vector<8x32xbf16>
    %c0_1 = arith.constant 0 : index
    %c0_2 = arith.constant 0 : index
    %2 = vector.load %arg2[%c0_1, %c0_2] : memref<32x256xbf16, #tpu.memory_space<vmem>>, vector<32x256xbf16>
    %cst = arith.constant dense<0.000000e+00> : vector<8x256xf32>
    %3 = tpu.matmul %1, %2, %cst {dimension_numbers = #tpu.dot_dimension_numbers<[1], [0], [0], [1], [0, 0, 1, 1], [], []>} : vector<8x32xbf16>, vector<32x256xbf16>, vector<8x256xf32> -> vector<8x256xf32>
    %c0_3 = arith.constant 0 : index
    %c0_4 = arith.constant 0 : index
    %4 = vector.load %arg3[%c0_3, %c0_4] : memref<1x256xf32, #tpu.memory_space<vmem>>, vector<1x256xf32>
    %5 = vector.broadcast %4 : vector<1x256xf32> to vector<8x256xf32>
    %6 = arith.addf %3, %5 : vector<8x256xf32>
    %cst_5 = arith.constant 0.000000e+00 : f32
    %7 = vector.broadcast %cst_5 : f32 to vector<8x256xf32>
    %8 = arith.cmpf ogt, %6, %7 : vector<8x256xf32>
    %cst_6 = arith.constant 2.000000e-01 : f32
    %9 = vector.broadcast %cst_6 : f32 to vector<8x256xf32>
    %10 = arith.mulf %9, %6 : vector<8x256xf32>
    %11 = arith.select %8, %6, %10 : vector<8x256xi1>, vector<8x256xf32>
    %12 = arith.truncf %11 : vector<8x256xf32> to vector<8x256xbf16>
    %c0_7 = arith.constant 0 : index
    %c0_8 = arith.constant 0 : index
    %13 = vector.load %arg4[%c0_7, %c0_8] : memref<256x512xbf16, #tpu.memory_space<vmem>>, vector<256x512xbf16>
    %cst_9 = arith.constant dense<0.000000e+00> : vector<8x512xf32>
    %14 = tpu.matmul %12, %13, %cst_9 {dimension_numbers = #tpu.dot_dimension_numbers<[1], [0], [0], [1], [0, 0, 1, 1], [], []>} : vector<8x256xbf16>, vector<256x512xbf16>, vector<8x512xf32> -> vector<8x512xf32>
    %c0_10 = arith.constant 0 : index
    %c0_11 = arith.constant 0 : index
    %15 = vector.load %arg5[%c0_10, %c0_11] : memref<1x512xf32, #tpu.memory_space<vmem>>, vector<1x512xf32>
    %16 = vector.broadcast %15 : vector<1x512xf32> to vector<8x512xf32>
    %17 = arith.addf %14, %16 : vector<8x512xf32>
    %cst_12 = arith.constant 0.000000e+00 : f32
    %18 = vector.broadcast %cst_12 : f32 to vector<8x512xf32>
    %19 = arith.cmpf ogt, %17, %18 : vector<8x512xf32>
    %cst_13 = arith.constant 2.000000e-01 : f32
    %20 = vector.broadcast %cst_13 : f32 to vector<8x512xf32>
    %21 = arith.mulf %20, %17 : vector<8x512xf32>
    %22 = arith.select %19, %17, %21 : vector<8x512xi1>, vector<8x512xf32>
    %23 = arith.truncf %22 : vector<8x512xf32> to vector<8x512xbf16>
    %c0_14 = arith.constant 0 : index
    %c0_15 = arith.constant 0 : index
    %24 = vector.load %arg6[%c0_14, %c0_15] : memref<512x1024xbf16, #tpu.memory_space<vmem>>, vector<512x1024xbf16>
    %cst_16 = arith.constant dense<0.000000e+00> : vector<8x1024xf32>
    %25 = tpu.matmul %23, %24, %cst_16 {dimension_numbers = #tpu.dot_dimension_numbers<[1], [0], [0], [1], [0, 0, 1, 1], [], []>} : vector<8x512xbf16>, vector<512x1024xbf16>, vector<8x1024xf32> -> vector<8x1024xf32>
    %c0_17 = arith.constant 0 : index
    %c0_18 = arith.constant 0 : index
    %26 = vector.load %arg7[%c0_17, %c0_18] : memref<1x1024xf32, #tpu.memory_space<vmem>>, vector<1x1024xf32>
    %27 = vector.broadcast %26 : vector<1x1024xf32> to vector<8x1024xf32>
    %28 = arith.addf %25, %27 : vector<8x1024xf32>
    %cst_19 = arith.constant 0.000000e+00 : f32
    %29 = vector.broadcast %cst_19 : f32 to vector<8x1024xf32>
    %30 = arith.cmpf ogt, %28, %29 : vector<8x1024xf32>
    %cst_20 = arith.constant 2.000000e-01 : f32
    %31 = vector.broadcast %cst_20 : f32 to vector<8x1024xf32>
    %32 = arith.mulf %31, %28 : vector<8x1024xf32>
    %33 = arith.select %30, %28, %32 : vector<8x1024xi1>, vector<8x1024xf32>
    %34 = arith.truncf %33 : vector<8x1024xf32> to vector<8x1024xbf16>
    %c0_21 = arith.constant 0 : index
    %c0_22 = arith.constant 0 : index
    %35 = vector.load %arg8[%c0_21, %c0_22] : memref<1024x896xbf16, #tpu.memory_space<vmem>>, vector<1024x896xbf16>
    %cst_23 = arith.constant dense<0.000000e+00> : vector<8x896xf32>
    %36 = tpu.matmul %34, %35, %cst_23 {dimension_numbers = #tpu.dot_dimension_numbers<[1], [0], [0], [1], [0, 0, 1, 1], [], []>} : vector<8x1024xbf16>, vector<1024x896xbf16>, vector<8x896xf32> -> vector<8x896xf32>
    %c0_24 = arith.constant 0 : index
    %c0_25 = arith.constant 0 : index
    %37 = vector.load %arg9[%c0_24, %c0_25] : memref<1x896xf32, #tpu.memory_space<vmem>>, vector<1x896xf32>
    %38 = vector.broadcast %37 : vector<1x896xf32> to vector<8x896xf32>
    %39 = arith.addf %36, %38 : vector<8x896xf32>
    %40 = math.tanh %39 : vector<8x896xf32>
    %c0_26 = arith.constant 0 : index
    %c0_27 = arith.constant 0 : index
    %41 = vector.load %arg10[%c0_26, %c0_27] : memref<8x896xf32, #tpu.memory_space<vmem>>, vector<8x896xf32>
    tpu.vector_store %arg10[%c0_26, %c0_27], %40 {strides = array<i32>} : memref<8x896xf32, #tpu.memory_space<vmem>>, vector<8x896xf32>,
    return
  }
  func.func @transform_0(%arg0: i32) -> (i32, i32) {
    %c0_i32 = arith.constant 0 : i32
    %c0_i32_0 = arith.constant 0 : i32
    return %arg0, %c0_i32 : i32, i32
  }
  func.func @transform_1(%arg0: i32) -> (i32, i32) {
    %c0_i32 = arith.constant 0 : i32
    %c0_i32_0 = arith.constant 0 : i32
    %c0_i32_1 = arith.constant 0 : i32
    return %c0_i32, %c0_i32_0 : i32, i32
  }
  func.func @transform_2(%arg0: i32) -> (i32, i32) {
    %c0_i32 = arith.constant 0 : i32
    %c0_i32_0 = arith.constant 0 : i32
    %c0_i32_1 = arith.constant 0 : i32
    return %c0_i32, %c0_i32_0 : i32, i32
  }
  func.func @transform_3(%arg0: i32) -> (i32, i32) {
    %c0_i32 = arith.constant 0 : i32
    %c0_i32_0 = arith.constant 0 : i32
    %c0_i32_1 = arith.constant 0 : i32
    return %c0_i32, %c0_i32_0 : i32, i32
  }
  func.func @transform_4(%arg0: i32) -> (i32, i32) {
    %c0_i32 = arith.constant 0 : i32
    %c0_i32_0 = arith.constant 0 : i32
    %c0_i32_1 = arith.constant 0 : i32
    return %c0_i32, %c0_i32_0 : i32, i32
  }
  func.func @transform_5(%arg0: i32) -> (i32, i32) {
    %c0_i32 = arith.constant 0 : i32
    %c0_i32_0 = arith.constant 0 : i32
    %c0_i32_1 = arith.constant 0 : i32
    return %c0_i32, %c0_i32_0 : i32, i32
  }
  func.func @transform_6(%arg0: i32) -> (i32, i32) {
    %c0_i32 = arith.constant 0 : i32
    %c0_i32_0 = arith.constant 0 : i32
    %c0_i32_1 = arith.constant 0 : i32
    return %c0_i32, %c0_i32_0 : i32, i32
  }
  func.func @transform_7(%arg0: i32) -> (i32, i32) {
    %c0_i32 = arith.constant 0 : i32
    %c0_i32_0 = arith.constant 0 : i32
    %c0_i32_1 = arith.constant 0 : i32
    return %c0_i32, %c0_i32_0 : i32, i32
  }
  func.func @transform_8(%arg0: i32) -> (i32, i32) {
    %c0_i32 = arith.constant 0 : i32
    %c0_i32_0 = arith.constant 0 : i32
    %c0_i32_1 = arith.constant 0 : i32
    return %c0_i32, %c0_i32_0 : i32, i32
  }
  func.func @transform_9(%arg0: i32) -> (i32, i32) {
    %c0_i32 = arith.constant 0 : i32
    %c0_i32_0 = arith.constant 0 : i32
    return %arg0, %c0_i32 : i32, i32
  }
}

module attributes {stable_mosaic.version = 11 : i64} {
  func.func @generator_kernel(%arg0: i32, %arg1: memref<8x32xf32, #tpu.memory_space<vmem>>, %arg2: memref<32x256xbf16, #tpu.memory_space<vmem>>, %arg3: memref<1x256xf32, #tpu.memory_space<vmem>>, %arg4: memref<256x512xbf16, #tpu.memory_space<vmem>>, %arg5: memref<1x512xf32, #tpu.memory_space<vmem>>, %arg6: memref<512x1024xbf16, #tpu.memory_space<vmem>>, %arg7: memref<1x1024xf32, #tpu.memory_space<vmem>>, %arg8: memref<1024x896xbf16, #tpu.memory_space<vmem>>, %arg9: memref<1x896xf32, #tpu.memory_space<vmem>>, %arg10: memref<8x896xf32, #tpu.memory_space<vmem>>) attributes {dimension_semantics = [#tpu.dimension_semantics<parallel>], iteration_bounds = array<i64: 1>, scalar_prefetch = 0 : i64, scratch_operands = 0 : i64, tpu.core_type = #tpu.core_type<tc>, window_params = [{transform_indices = @transform_0, window_bounds = array<i64: 8, 32>}, {pipeline_mode = #tpu.pipeline_mode<synchronous>, transform_indices = @transform_1, window_bounds = array<i64: 32, 256>}, {pipeline_mode = #tpu.pipeline_mode<synchronous>, transform_indices = @transform_2, window_bounds = array<i64: 1, 256>}, {pipeline_mode = #tpu.pipeline_mode<synchronous>, transform_indices = @transform_3, window_bounds = array<i64: 256, 512>}, {pipeline_mode = #tpu.pipeline_mode<synchronous>, transform_indices = @transform_4, window_bounds = array<i64: 1, 512>}, {pipeline_mode = #tpu.pipeline_mode<synchronous>, transform_indices = @transform_5, window_bounds = array<i64: 512, 1024>}, {pipeline_mode = #tpu.pipeline_mode<synchronous>, transform_indices = @transform_6, window_bounds = array<i64: 1, 1024>}, {pipeline_mode = #tpu.pipeline_mode<synchronous>, transform_indices = @transform_7, window_bounds = array<i64: 1024, 896>}, {pipeline_mode = #tpu.pipeline_mode<synchronous>, transform_indices = @transform_8, window_bounds = array<i64: 1, 896>}, {transform_indices = @transform_9, window_bounds = array<i64: 8, 896>}]} {
    %c0 = arith.constant 0 : index
    %c0_0 = arith.constant 0 : index
    %0 = vector.load %arg1[%c0, %c0_0] : memref<8x32xf32, #tpu.memory_space<vmem>>, vector<8x32xf32>
    %1 = arith.truncf %0 : vector<8x32xf32> to vector<8x32xbf16>
    %c0_1 = arith.constant 0 : index
    %c0_2 = arith.constant 0 : index
    %2 = vector.load %arg2[%c0_1, %c0_2] : memref<32x256xbf16, #tpu.memory_space<vmem>>, vector<32x256xbf16>
    %cst = arith.constant dense<0.000000e+00> : vector<8x256xf32>
    %3 = tpu.matmul %1, %2, %cst {dimension_numbers = #tpu.dot_dimension_numbers<[1], [0], [0], [1], [0, 0, 1, 1], [], []>} : vector<8x32xbf16>, vector<32x256xbf16>, vector<8x256xf32> -> vector<8x256xf32>
    %c0_3 = arith.constant 0 : index
    %c0_4 = arith.constant 0 : index
    %4 = vector.load %arg3[%c0_3, %c0_4] : memref<1x256xf32, #tpu.memory_space<vmem>>, vector<1x256xf32>
    %5 = vector.broadcast %4 : vector<1x256xf32> to vector<8x256xf32>
    %6 = arith.addf %3, %5 : vector<8x256xf32>
    %cst_5 = arith.constant 0.000000e+00 : f32
    %7 = vector.broadcast %cst_5 : f32 to vector<8x256xf32>
    %8 = arith.cmpf ogt, %6, %7 : vector<8x256xf32>
    %cst_6 = arith.constant 2.000000e-01 : f32
    %9 = vector.broadcast %cst_6 : f32 to vector<8x256xf32>
    %10 = arith.mulf %9, %6 : vector<8x256xf32>
    %11 = arith.select %8, %6, %10 : vector<8x256xi1>, vector<8x256xf32>
    %12 = arith.truncf %11 : vector<8x256xf32> to vector<8x256xbf16>
    %c0_7 = arith.constant 0 : index
    %c0_8 = arith.constant 0 : index
    %13 = vector.load %arg4[%c0_7, %c0_8] : memref<256x512xbf16, #tpu.memory_space<vmem>>, vector<256x512xbf16>
    %cst_9 = arith.constant dense<0.000000e+00> : vector<8x512xf32>
    %14 = tpu.matmul %12, %13, %cst_9 {dimension_numbers = #tpu.dot_dimension_numbers<[1], [0], [0], [1], [0, 0, 1, 1], [], []>} : vector<8x256xbf16>, vector<256x512xbf16>, vector<8x512xf32> -> vector<8x512xf32>
    %c0_10 = arith.constant 0 : index
    %c0_11 = arith.constant 0 : index
    %15 = vector.load %arg5[%c0_10, %c0_11] : memref<1x512xf32, #tpu.memory_space<vmem>>, vector<1x512xf32>
    %16 = vector.broadcast %15 : vector<1x512xf32> to vector<8x512xf32>
    %17 = arith.addf %14, %16 : vector<8x512xf32>
    %cst_12 = arith.constant 0.000000e+00 : f32
    %18 = vector.broadcast %cst_12 : f32 to vector<8x512xf32>
    %19 = arith.cmpf ogt, %17, %18 : vector<8x512xf32>
    %cst_13 = arith.constant 2.000000e-01 : f32
    %20 = vector.broadcast %cst_13 : f32 to vector<8x512xf32>
    %21 = arith.mulf %20, %17 : vector<8x512xf32>
    %22 = arith.select %19, %17, %21 : vector<8x512xi1>, vector<8x512xf32>
    %23 = arith.truncf %22 : vector<8x512xf32> to vector<8x512xbf16>
    %c0_14 = arith.constant 0 : index
    %c0_15 = arith.constant 0 : index
    %24 = vector.load %arg6[%c0_14, %c0_15] : memref<512x1024xbf16, #tpu.memory_space<vmem>>, vector<512x1024xbf16>
    %cst_16 = arith.constant dense<0.000000e+00> : vector<8x1024xf32>
    %25 = tpu.matmul %23, %24, %cst_16 {dimension_numbers = #tpu.dot_dimension_numbers<[1], [0], [0], [1], [0, 0, 1, 1], [], []>} : vector<8x512xbf16>, vector<512x1024xbf16>, vector<8x1024xf32> -> vector<8x1024xf32>
    %c0_17 = arith.constant 0 : index
    %c0_18 = arith.constant 0 : index
    %26 = vector.load %arg7[%c0_17, %c0_18] : memref<1x1024xf32, #tpu.memory_space<vmem>>, vector<1x1024xf32>
    %27 = vector.broadcast %26 : vector<1x1024xf32> to vector<8x1024xf32>
    %28 = arith.addf %25, %27 : vector<8x1024xf32>
    %cst_19 = arith.constant 0.000000e+00 : f32
    %29 = vector.broadcast %cst_19 : f32 to vector<8x1024xf32>
    %30 = arith.cmpf ogt, %28, %29 : vector<8x1024xf32>
    %cst_20 = arith.constant 2.000000e-01 : f32
    %31 = vector.broadcast %cst_20 : f32 to vector<8x1024xf32>
    %32 = arith.mulf %31, %28 : vector<8x1024xf32>
    %33 = arith.select %30, %28, %32 : vector<8x1024xi1>, vector<8x1024xf32>
    %34 = arith.truncf %33 : vector<8x1024xf32> to vector<8x1024xbf16>
    %c0_21 = arith.constant 0 : index
    %c0_22 = arith.constant 0 : index
    %35 = vector.load %arg8[%c0_21, %c0_22] : memref<1024x896xbf16, #tpu.memory_space<vmem>>, vector<1024x896xbf16>
    %cst_23 = arith.constant dense<0.000000e+00> : vector<8x896xf32>
    %36 = tpu.matmul %34, %35, %cst_23 {dimension_numbers = #tpu.dot_dimension_numbers<[1], [0], [0], [1], [0, 0, 1, 1], [], []>} : vector<8x1024xbf16>, vector<1024x896xbf16>, vector<8x896xf32> -> vector<8x896xf32>
    %c0_24 = arith.constant 0 : index
    %c0_25 = arith.constant 0 : index
    %37 = vector.load %arg9[%c0_24, %c0_25] : memref<1x896xf32, #tpu.memory_space<vmem>>, vector<1x896xf32>
    %38 = vector.broadcast %37 : vector<1x896xf32> to vector<8x896xf32>
    %39 = arith.addf %36, %38 : vector<8x896xf32>
    %40 = math.tanh %39 : vector<8x896xf32>
    %c0_26 = arith.constant 0 : index
    %c0_27 = arith.constant 0 : index
    %41 = vector.load %arg10[%c0_26, %c0_27] : memref<8x896xf32, #tpu.memory_space<vmem>>, vector<8x896xf32>
    tpu.vector_store %arg10[%c0_26, %c0_27], %40 {strides = array<i32>} : memref<8x896xf32, #tpu.memory_space<vmem>>, vector<8x896xf32>,
    return
  }
  func.func @transform_0(%arg0: i32) -> (i32, i32) {
    %c0_i32 = arith.constant 0 : i32
    %c0_i32_0 = arith.constant 0 : i32
    return %arg0, %c0_i32 : i32, i32
  }
  func.func @transform_1(%arg0: i32) -> (i32, i32) {
    %c0_i32 = arith.constant 0 : i32
    %c0_i32_0 = arith.constant 0 : i32
    %c0_i32_1 = arith.constant 0 : i32
    return %c0_i32, %c0_i32_0 : i32, i32
  }
  func.func @transform_2(%arg0: i32) -> (i32, i32) {
    %c0_i32 = arith.constant 0 : i32
    %c0_i32_0 = arith.constant 0 : i32
    %c0_i32_1 = arith.constant 0 : i32
    return %c0_i32, %c0_i32_0 : i32, i32
  }
  func.func @transform_3(%arg0: i32) -> (i32, i32) {
    %c0_i32 = arith.constant 0 : i32
    %c0_i32_0 = arith.constant 0 : i32
    %c0_i32_1 = arith.constant 0 : i32
    return %c0_i32, %c0_i32_0 : i32, i32
  }
  func.func @transform_4(%arg0: i32) -> (i32, i32) {
    %c0_i32 = arith.constant 0 : i32
    %c0_i32_0 = arith.constant 0 : i32
    %c0_i32_1 = arith.constant 0 : i32
    return %c0_i32, %c0_i32_0 : i32, i32
  }
  func.func @transform_5(%arg0: i32) -> (i32, i32) {
    %c0_i32 = arith.constant 0 : i32
    %c0_i32_0 = arith.constant 0 : i32
    %c0_i32_1 = arith.constant 0 : i32
    return %c0_i32, %c0_i32_0 : i32, i32
  }
  func.func @transform_6(%arg0: i32) -> (i32, i32) {
    %c0_i32 = arith.constant 0 : i32
    %c0_i32_0 = arith.constant 0 : i32
    %c0_i32_1 = arith.constant 0 : i32
    return %c0_i32, %c0_i32_0 : i32, i32
  }
  func.func @transform_7(%arg0: i32) -> (i32, i32) {
    %c0_i32 = arith.constant 0 : i32
    %c0_i32_0 = arith.constant 0 : i32
    %c0_i32_1 = arith.constant 0 : i32
    return %c0_i32, %c0_i32_0 : i32, i32
  }
  func.func @transform_8(%arg0: i32) -> (i32, i32) {
    %c0_i32 = arith.constant 0 : i32
    %c0_i32_0 = arith.constant 0 : i32
    %c0_i32_1 = arith.constant 0 : i32
    return %c0_i32, %c0_i32_0 : i32, i32
  }
  func.func @transform_9(%arg0: i32) -> (i32, i32) {
    %c0_i32 = arith.constant 0 : i32
    %c0_i32_0 = arith.constant 0 : i32
    return %arg0, %c0_i32 : i32, i32
  }
}

</mosaic_0001>

<llo_original>
// kernel: tpu_custom_call.1
$region0: #{tpu_custom_call.1}
  #allocation0 [shape = 'u32[]', space=smem, size = 0x4, offset = 0x4, fixed_abs, tag = 'smem constant byte address 0x4 - core index']
  #allocation1 [shape = 'u32[144,128]{1,0:T(1,128)}', space=vmem, size = 0x12000, scoped, tag = 'internal scratch']
  %s0 = inlined_call_operand.hbm [shape: f32[8,32], index: 0, kind: input, shape index: {}]
  %s1 = inlined_call_operand.hbm [shape: bf16[32,256], index: 1, kind: input, shape index: {}]
  %s2 = inlined_call_operand.hbm [shape: f32[1,256], index: 2, kind: input, shape index: {}]
  %s3 = inlined_call_operand.hbm [shape: bf16[256,512], index: 3, kind: input, shape index: {}]
  %s4 = inlined_call_operand.hbm [shape: f32[1,512], index: 4, kind: input, shape index: {}]
  %s5 = inlined_call_operand.hbm [shape: bf16[512,1024], index: 5, kind: input, shape index: {}]
  %s6 = inlined_call_operand.hbm [shape: f32[1,1024], index: 6, kind: input, shape index: {}]
  %s7 = inlined_call_operand.hbm [shape: bf16[1024,896], index: 7, kind: input, shape index: {}]
  %s8 = inlined_call_operand.hbm [shape: f32[1,896], index: 8, kind: input, shape index: {}]
  %s9 = inlined_call_operand.hbm [shape: f32[8,896], index: 9, kind: output, shape index: {}]
  %s10 = sld [smem:[#allocation0]]
  $region82: #{tpu_custom_call.1} parent=0
    _
  %s12 = ssub.s32 1, %s10
  %s13 = scalar_select 0, %s12, %s10
  $region1: #{tpu_custom_call.1} parent=0
    #allocation2 [shape = 'u8[4096]{0}', space=vmem, size = 0x1000, scoped, tag = 'input window, operand 0, single buffered']
    #allocation3 [shape = 's32[1]{0}', space=sflag, size = 0x4, scoped, tag = 'scoped memory for tpu_custom_call.1']
    #allocation4 [shape = 's32[1]{0}', space=sflag, size = 0x4, scoped, tag = 'scoped memory for tpu_custom_call.1']
    #allocation5 [shape = 'u8[16384]{0}', space=vmem, size = 0x4000, scoped, tag = 'input window, operand 1, single buffered']
    #allocation6 [shape = 's32[1]{0}', space=sflag, size = 0x4, scoped, tag = 'scoped memory for tpu_custom_call.1']
    #allocation7 [shape = 'u8[1024]{0}', space=vmem, size = 0x400, scoped, tag = 'input window, operand 2, single buffered']
    #allocation8 [shape = 'u8[262144]{0}', space=vmem, size = 0x40000, scoped, tag = 'input window, operand 3, single buffered']
    #allocation9 [shape = 's32[1]{0}', space=sflag, size = 0x4, scoped, tag = 'scoped memory for tpu_custom_call.1']
    #allocation10 [shape = 'u8[2048]{0}', space=vmem, size = 0x800, scoped, tag = 'input window, operand 4, single buffered']
    #allocation11 [shape = 'u8[1048576]{0}', space=vmem, size = 0x100000, scoped, tag = 'input window, operand 5, single buffered']
    #allocation12 [shape = 's32[1]{0}', space=sflag, size = 0x4, scoped, tag = 'scoped memory for tpu_custom_call.1']
    #allocation13 [shape = 'u8[4096]{0}', space=vmem, size = 0x1000, scoped, tag = 'input window, operand 6, single buffered']
    #allocation14 [shape = 'u8[1835008]{0}', space=vmem, size = 0x1c0000, scoped, tag = 'input window, operand 7, single buffered']
    #allocation15 [shape = 's32[1]{0}', space=sflag, size = 0x4, scoped, tag = 'scoped memory for tpu_custom_call.1']
    #allocation16 [shape = 'u8[3584]{0}', space=vmem, size = 0x1000, scoped, tag = 'input window, operand 8, single buffered']
    #allocation17 [shape = 'u8[28672]{0}', space=vmem, size = 0x7000, scoped, tag = 'output window, operand 0, single buffered']
    %14 = vsyncpa [#allocation3], 0
    %15 = vsyncpa [#allocation6], 0
    %16 = vsyncpa [#allocation9], 0
    %17 = vsyncpa [#allocation12], 0
    %18 = vsyncpa [#allocation15], 0
    %19 = vsyncpa [#allocation4], 0
    // Predicated region
    $region2: #{tpu_custom_call.1} parent=1 // pred_check
      _
    $region3: #{tpu_custom_call.1} parent=1 // pred_check_branch
      %21 = sbr.rel (0) target = $region5
    $region4: #{tpu_custom_call.1} parent=1 // pred_region
      %s23 = ssub.s32 128, 128
      %24 = vsyncadd [#allocation3], %s23
      %s26 = sshll.u32 [#allocation2], 4
      %s27 = int_to_ptr.vmem [resolvable:$true] %s26
      %29 = dma.hbm_to_vmem [thread:$0]  %s0, 128, %s27, [#allocation3]
    $region5: #{tpu_custom_call.1} parent=1 // pred_fallthru
      _
    // Predicated region
    $region6: #{tpu_custom_call.1} parent=1 // pred_check
      _
    $region7: #{tpu_custom_call.1} parent=1 // pred_check_branch
      %31 = sbr.rel (0) target = $region9
    $region8: #{tpu_custom_call.1} parent=1 // pred_region
      %s33 = ssub.s32 512, 512
      %34 = vsyncadd [#allocation6], %s33
      %s35 = sshll.u32 [#allocation5], 4
      %s36 = int_to_ptr.vmem [resolvable:$true] %s35
      %41 = dma.hbm_to_vmem [thread:$0]  %s1, 512, %s36, [#allocation6], 128, 128, 8
    $region9: #{tpu_custom_call.1} parent=1 // pred_fallthru
      _
    // Predicated region
    $region10: #{tpu_custom_call.1} parent=1 // pred_check
      _
    $region11: #{tpu_custom_call.1} parent=1 // pred_check_branch
      %43 = sbr.rel (0) target = $region13
    $region12: #{tpu_custom_call.1} parent=1 // pred_region
      %s45 = ssub.s32 32, 32
      %46 = vsyncadd [#allocation6], %s45
      %s48 = sshll.u32 [#allocation7], 4
      %s49 = int_to_ptr.vmem [resolvable:$true] %s48
      %51 = dma.hbm_to_vmem [thread:$0]  %s2, 32, %s49, [#allocation6]
    $region13: #{tpu_custom_call.1} parent=1 // pred_fallthru
      _
    // Predicated region
    $region14: #{tpu_custom_call.1} parent=1 // pred_check
      _
    $region15: #{tpu_custom_call.1} parent=1 // pred_check_branch
      %53 = sbr.rel (0) target = $region17
    $region16: #{tpu_custom_call.1} parent=1 // pred_region
      %s55 = ssub.s32 8192, 8192
      %56 = vsyncadd [#allocation9], %s55
      %s57 = sshll.u32 [#allocation8], 4
      %s58 = int_to_ptr.vmem [resolvable:$true] %s57
      %63 = dma.hbm_to_vmem [thread:$0]  %s3, 8192, %s58, [#allocation9], 256, 256, 16
    $region17: #{tpu_custom_call.1} parent=1 // pred_fallthru
      _
    // Predicated region
    $region18: #{tpu_custom_call.1} parent=1 // pred_check
      _
    $region19: #{tpu_custom_call.1} parent=1 // pred_check_branch
      %65 = sbr.rel (0) target = $region21
    $region20: #{tpu_custom_call.1} parent=1 // pred_region
      %s67 = ssub.s32 64, 64
      %68 = vsyncadd [#allocation9], %s67
      %s70 = sshll.u32 [#allocation10], 4
      %s71 = int_to_ptr.vmem [resolvable:$true] %s70
      %73 = dma.hbm_to_vmem [thread:$0]  %s4, 64, %s71, [#allocation9]
    $region21: #{tpu_custom_call.1} parent=1 // pred_fallthru
      _
    // Predicated region
    $region22: #{tpu_custom_call.1} parent=1 // pred_check
      _
    $region23: #{tpu_custom_call.1} parent=1 // pred_check_branch
      %75 = sbr.rel (0) target = $region25
    $region24: #{tpu_custom_call.1} parent=1 // pred_region
      %s77 = ssub.s32 32768, 32768
      %78 = vsyncadd [#allocation12], %s77
      %s79 = sshll.u32 [#allocation11], 4
      %s80 = int_to_ptr.vmem [resolvable:$true] %s79
      %85 = dma.hbm_to_vmem [thread:$0]  %s5, 32768, %s80, [#allocation12], 512, 512, 32
    $region25: #{tpu_custom_call.1} parent=1 // pred_fallthru
      _
    // Predicated region
    $region26: #{tpu_custom_call.1} parent=1 // pred_check
      _
    $region27: #{tpu_custom_call.1} parent=1 // pred_check_branch
      %87 = sbr.rel (0) target = $region29
    $region28: #{tpu_custom_call.1} parent=1 // pred_region
      %s89 = ssub.s32 128, 128
      %90 = vsyncadd [#allocation12], %s89
      %s92 = sshll.u32 [#allocation13], 4
      %s93 = int_to_ptr.vmem [resolvable:$true] %s92
      %95 = dma.hbm_to_vmem [thread:$0]  %s6, 128, %s93, [#allocation12]
    $region29: #{tpu_custom_call.1} parent=1 // pred_fallthru
      _
    // Predicated region
    $region30: #{tpu_custom_call.1} parent=1 // pred_check
      _
    $region31: #{tpu_custom_call.1} parent=1 // pred_check_branch
      %97 = sbr.rel (0) target = $region33
    $region32: #{tpu_custom_call.1} parent=1 // pred_region
      %s99 = ssub.s32 57344, 57344
      %100 = vsyncadd [#allocation15], %s99
      %s101 = sshll.u32 [#allocation14], 4
      %s102 = int_to_ptr.vmem [resolvable:$true] %s101
      %107 = dma.hbm_to_vmem [thread:$0]  %s7, 57344, %s102, [#allocation15], 448, 448, 28
    $region33: #{tpu_custom_call.1} parent=1 // pred_fallthru
      _
    // Predicated region
    $region34: #{tpu_custom_call.1} parent=1 // pred_check
      _
    $region35: #{tpu_custom_call.1} parent=1 // pred_check_branch
      %109 = sbr.rel (0) target = $region37
    $region36: #{tpu_custom_call.1} parent=1 // pred_region
      %s111 = ssub.s32 112, 112
      %112 = vsyncadd [#allocation15], %s111
      %s114 = sshll.u32 [#allocation16], 4
      %s115 = int_to_ptr.vmem [resolvable:$true] %s114
      %117 = dma.hbm_to_vmem [thread:$0]  %s8, 112, %s115, [#allocation15]
    $region37: #{tpu_custom_call.1} parent=1 // pred_fallthru
      _
    // Predicated region
    $region38: #{tpu_custom_call.1} parent=1 // pred_check
      _
    $region39: #{tpu_custom_call.1} parent=1 // pred_check_branch
      %119 = sbr.rel (0) target = $region41
    $region40: #{tpu_custom_call.1} parent=1 // pred_region
      %120 = dma.done [#allocation3], 128
    $region41: #{tpu_custom_call.1} parent=1 // pred_fallthru
      _
    // Predicated region
    $region42: #{tpu_custom_call.1} parent=1 // pred_check
      _
    $region43: #{tpu_custom_call.1} parent=1 // pred_check_branch
      %122 = sbr.rel (0) target = $region45
    $region44: #{tpu_custom_call.1} parent=1 // pred_region
      %123 = dma.done [#allocation6], 512
    $region45: #{tpu_custom_call.1} parent=1 // pred_fallthru
      _
    // Predicated region
    $region46: #{tpu_custom_call.1} parent=1 // pred_check
      _
    $region47: #{tpu_custom_call.1} parent=1 // pred_check_branch
      %125 = sbr.rel (0) target = $region49
    $region48: #{tpu_custom_call.1} parent=1 // pred_region
      %126 = dma.done [#allocation6], 32
    $region49: #{tpu_custom_call.1} parent=1 // pred_fallthru
      _
    // Predicated region
    $region50: #{tpu_custom_call.1} parent=1 // pred_check
      _
    $region51: #{tpu_custom_call.1} parent=1 // pred_check_branch
      %128 = sbr.rel (0) target = $region53
    $region52: #{tpu_custom_call.1} parent=1 // pred_region
      %129 = dma.done [#allocation9], 8192
    $region53: #{tpu_custom_call.1} parent=1 // pred_fallthru
      _
    // Predicated region
    $region54: #{tpu_custom_call.1} parent=1 // pred_check
      _
    $region55: #{tpu_custom_call.1} parent=1 // pred_check_branch
      %131 = sbr.rel (0) target = $region57
    $region56: #{tpu_custom_call.1} parent=1 // pred_region
      %132 = dma.done [#allocation9], 64
    $region57: #{tpu_custom_call.1} parent=1 // pred_fallthru
      _
    // Predicated region
    $region58: #{tpu_custom_call.1} parent=1 // pred_check
      _
    $region59: #{tpu_custom_call.1} parent=1 // pred_check_branch
      %134 = sbr.rel (0) target = $region61
    $region60: #{tpu_custom_call.1} parent=1 // pred_region
      %135 = dma.done [#allocation12], 32768
    $region61: #{tpu_custom_call.1} parent=1 // pred_fallthru
      _
    // Predicated region
    $region62: #{tpu_custom_call.1} parent=1 // pred_check
      _
    $region63: #{tpu_custom_call.1} parent=1 // pred_check_branch
      %137 = sbr.rel (0) target = $region65
    $region64: #{tpu_custom_call.1} parent=1 // pred_region
      %138 = dma.done [#allocation12], 128
    $region65: #{tpu_custom_call.1} parent=1 // pred_fallthru
      _
    // Predicated region
    $region66: #{tpu_custom_call.1} parent=1 // pred_check
      _
    $region67: #{tpu_custom_call.1} parent=1 // pred_check_branch
      %140 = sbr.rel (0) target = $region69
    $region68: #{tpu_custom_call.1} parent=1 // pred_region
      %141 = dma.done [#allocation15], 57344
    $region69: #{tpu_custom_call.1} parent=1 // pred_fallthru
      _
    // Predicated region
    $region70: #{tpu_custom_call.1} parent=1 // pred_check
      _
    $region71: #{tpu_custom_call.1} parent=1 // pred_check_branch
      %143 = sbr.rel (0) target = $region73
    $region72: #{tpu_custom_call.1} parent=1 // pred_region
      %144 = dma.done [#allocation15], 112
    $region73: #{tpu_custom_call.1} parent=1 // pred_fallthru
      _
    %v146 = vld [vmem:[#allocation2] sm:$0xff]
    %v147 = vpack.c.bf16 %v146, %v146
    %v148 = vld [vmem:[#allocation5] sm:$0xff]
    %v149 = vld [vmem:[#allocation5 + $0x8] sm:$0xff]
    %v150 = vld [vmem:[#allocation5 + $0x10] sm:$0xff]
    %v151 = vld [vmem:[#allocation5 + $0x18] sm:$0xff]
    %v152 = vld [vmem:[#allocation7] sm:$0x3]
    %v154 = vlaneseq
    %v155 = vshrl.u32 %v154, 7
    %v156 = vsub.s32 0, %v155
    %v157 = vrot.slane %v152, %v156
    %v158 = vlaneseq
    %v159 = vshrl.u32 %v158, 7
    %v160 = vsub.s32 1, %v159
    %v161 = vrot.slane %v152, %v160
    %v168 = vunpack.c.l.b16 %v148
    %v169 = vunpack.c.h.b16 %v148
    %v170 = vunpack.c.l.b16 %v149
    %v171 = vunpack.c.h.b16 %v149
    %v172 = vunpack.c.l.b16 %v150
    %v173 = vunpack.c.h.b16 %v150
    %v174 = vunpack.c.l.b16 %v151
    %v175 = vunpack.c.h.b16 %v151
    %v176 = vpack.c.b16 %v170, %v168
    %v177 = vpack.c.b16 %v171, %v169
    %v178 = vpack.c.b16 %v174, %v172
    %v179 = vpack.c.b16 %v175, %v173
    %vm184 = vcmask 261120
    %v186 = vsel %vm184, %v147, 0
    %188 = vmatprep.subr.bf16.mxu0 0
    %189 = vmatpush1.bf16.msra.mxu0 0
    %190 = vmatprep.subr.bf16.mxu0 0
    %191 = vmatpush1.bf16.msra.mxu0 0
    %192 = vmatprep.subr.bf16.mxu0 0
    %193 = vmatpush1.bf16.msra.mxu0 0
    %194 = vmatprep.subr.bf16.mxu0 0
    %195 = vmatpush1.bf16.msra.mxu0 0
    %196 = vmatprep.subr.bf16.mxu0 0
    %197 = vmatpush1.bf16.msra.mxu0 0
    %198 = vmatprep.subr.bf16.mxu0 0
    %199 = vmatpush1.bf16.msra.mxu0 0
    %200 = vmatprep.subr.bf16.mxu0 %v179
    %201 = vmatpush1.bf16.msra.mxu0 %v178
    %202 = vmatprep.subr.bf16.mxu0 %v177
    %203 = vmatpush1.bf16.msra.mxu0 %v176
    %204 = vmatprep.subr.bf16.mxu0 0
    %205 = vmatpush2.bf16.msra.mxu0 0
    %206 = vmatprep.subr.bf16.mxu0 0
    %207 = vmatpush2.bf16.msra.mxu0 0
    %208 = vmatprep.subr.bf16.mxu0 0
    %209 = vmatpush2.bf16.msra.mxu0 0
    %210 = vmatprep.subr.bf16.mxu0 0
    %211 = vmatpush2.bf16.msra.mxu0 0
    %212 = vmatprep.subr.bf16.mxu0 0
    %213 = vmatpush2.bf16.msra.mxu0 0
    %214 = vmatprep.subr.bf16.mxu0 0
    %215 = vmatpush2.bf16.msra.mxu0 0
    %216 = vmatprep.subr.bf16.mxu0 0
    %217 = vmatpush2.bf16.msra.mxu0 0
    %218 = vmatprep.subr.bf16.mxu0 0
    %219 = vmatpush2.bf16.msra.mxu0 0
    %220 = vmatprep.mubr.bf16.mxu0 0
    %221 = vmatmul.mubr.bf16.gmra.mxu0 %v186
    %v222 = vpop.f32.mrf.mxu0
    %v223 = vadd.f32 %v157, %v222
    %v224 = vpop.f32.mrf.mxu0
    %v225 = vadd.f32 %v161, %v224
    %v226 = vpop.f32.mrf.mxu0
    %v227 = vpop.f32.mrf.mxu0
    %228 = vdwg.mxu0
    %vm229 = vcmp.gt.f32.partialorder %v223, 0.0
    %vm230 = vcmp.gt.f32.partialorder %v225, 0.0
    %v231 = vmul.f32 %v223, 0.2
    %v232 = vmul.f32 %v225, 0.2
    %v233 = vsel %vm229, %v223, %v231
    %v234 = vsel %vm230, %v225, %v232
    %v235 = vpack.c.bf16 %v233, %v233
    %v236 = vpack.c.bf16 %v234, %v234
    %v237 = vld [vmem:[#allocation8] sm:$0xff]
    %v238 = vld [vmem:[#allocation8 + $0x8] sm:$0xff]
    %v239 = vld [vmem:[#allocation8 + $0x10] sm:$0xff]
    %v240 = vld [vmem:[#allocation8 + $0x18] sm:$0xff]
    %v241 = vld [vmem:[#allocation8 + $0x20] sm:$0xff]
    %v242 = vld [vmem:[#allocation8 + $0x28] sm:$0xff]
    %v243 = vld [vmem:[#allocation8 + $0x30] sm:$0xff]
    %v244 = vld [vmem:[#allocation8 + $0x38] sm:$0xff]
    %v245 = vld [vmem:[#allocation8 + $0x40] sm:$0xff]
    %v246 = vld [vmem:[#allocation8 + $0x48] sm:$0xff]
    %v247 = vld [vmem:[#allocation8 + $0x50] sm:$0xff]
    %v248 = vld [vmem:[#allocation8 + $0x58] sm:$0xff]
    %v249 = vld [vmem:[#allocation8 + $0x60] sm:$0xff]
    %v250 = vld [vmem:[#allocation8 + $0x68] sm:$0xff]
    %v251 = vld [vmem:[#allocation8 + $0x70] sm:$0xff]
    %v252 = vld [vmem:[#allocation8 + $0x78] sm:$0xff]
    %v253 = vld [vmem:[#allocation8 + $0x80] sm:$0xff]
    %v254 = vld [vmem:[#allocation8 + $0x88] sm:$0xff]
    %v255 = vld [vmem:[#allocation8 + $0x90] sm:$0xff]
    %v256 = vld [vmem:[#allocation8 + $0x98] sm:$0xff]
    %v257 = vld [vmem:[#allocation8 + $0xa0] sm:$0xff]
    %v258 = vld [vmem:[#allocation8 + $0xa8] sm:$0xff]
    %v259 = vld [vmem:[#allocation8 + $0xb0] sm:$0xff]
    %v260 = vld [vmem:[#allocation8 + $0xb8] sm:$0xff]
    %v261 = vld [vmem:[#allocation8 + $0xc0] sm:$0xff]
    %v262 = vld [vmem:[#allocation8 + $0xc8] sm:$0xff]
    %v263 = vld [vmem:[#allocation8 + $0xd0] sm:$0xff]
    %v264 = vld [vmem:[#allocation8 + $0xd8] sm:$0xff]
    %v265 = vld [vmem:[#allocation8 + $0xe0] sm:$0xff]
    %v266 = vld [vmem:[#allocation8 + $0xe8] sm:$0xff]
    %v267 = vld [vmem:[#allocation8 + $0xf0] sm:$0xff]
    %v268 = vld [vmem:[#allocation8 + $0xf8] sm:$0xff]
    %v269 = vld [vmem:[#allocation8 + $0x100] sm:$0xff]
    %v270 = vld [vmem:[#allocation8 + $0x108] sm:$0xff]
    %v271 = vld [vmem:[#allocation8 + $0x110] sm:$0xff]
    %v272 = vld [vmem:[#allocation8 + $0x118] sm:$0xff]
    %v273 = vld [vmem:[#allocation8 + $0x120] sm:$0xff]
    %v274 = vld [vmem:[#allocation8 + $0x128] sm:$0xff]
    %v275 = vld [vmem:[#allocation8 + $0x130] sm:$0xff]
    %v276 = vld [vmem:[#allocation8 + $0x138] sm:$0xff]
    %v277 = vld [vmem:[#allocation8 + $0x140] sm:$0xff]
    %v278 = vld [vmem:[#allocation8 + $0x148] sm:$0xff]
    %v279 = vld [vmem:[#allocation8 + $0x150] sm:$0xff]
    %v280 = vld [vmem:[#allocation8 + $0x158] sm:$0xff]
    %v281 = vld [vmem:[#allocation8 + $0x160] sm:$0xff]
    %v282 = vld [vmem:[#allocation8 + $0x168] sm:$0xff]
    %v283 = vld [vmem:[#allocation8 + $0x170] sm:$0xff]
    %v284 = vld [vmem:[#allocation8 + $0x178] sm:$0xff]
    %v285 = vld [vmem:[#allocation8 + $0x180] sm:$0xff]
    %v286 = vld [vmem:[#allocation8 + $0x188] sm:$0xff]
    %v287 = vld [vmem:[#allocation8 + $0x190] sm:$0xff]
    %v288 = vld [vmem:[#allocation8 + $0x198] sm:$0xff]
    %v289 = vld [vmem:[#allocation8 + $0x1a0] sm:$0xff]
    %v290 = vld [vmem:[#allocation8 + $0x1a8] sm:$0xff]
    %v291 = vld [vmem:[#allocation8 + $0x1b0] sm:$0xff]
    %v292 = vld [vmem:[#allocation8 + $0x1b8] sm:$0xff]
    %v293 = vld [vmem:[#allocation8 + $0x1c0] sm:$0xff]
    %v294 = vld [vmem:[#allocation8 + $0x1c8] sm:$0xff]
    %v295 = vld [vmem:[#allocation8 + $0x1d0] sm:$0xff]
    %v296 = vld [vmem:[#allocation8 + $0x1d8] sm:$0xff]
    %v297 = vld [vmem:[#allocation8 + $0x1e0] sm:$0xff]
    %v298 = vld [vmem:[#allocation8 + $0x1e8] sm:$0xff]
    %v299 = vld [vmem:[#allocation8 + $0x1f0] sm:$0xff]
    %v300 = vld [vmem:[#allocation8 + $0x1f8] sm:$0xff]
    %v301 = vld [vmem:[#allocation10] sm:$0xf]
    %v303 = vlaneseq
    %v304 = vshrl.u32 %v303, 7
    %v305 = vsub.s32 0, %v304
    %v306 = vrot.slane %v301, %v305
    %v307 = vlaneseq
    %v308 = vshrl.u32 %v307, 7
    %v309 = vsub.s32 1, %v308
    %v310 = vrot.slane %v301, %v309
    %v311 = vlaneseq
    %v312 = vshrl.u32 %v311, 7
    %v313 = vsub.s32 2, %v312
    %v314 = vrot.slane %v301, %v313
    %v315 = vlaneseq
    %v316 = vshrl.u32 %v315, 7
    %v317 = vsub.s32 3, %v316
    %v318 = vrot.slane %v301, %v317
    %v387 = vunpack.c.l.b16 %v237
    %v388 = vunpack.c.h.b16 %v237
    %v389 = vunpack.c.l.b16 %v238
    %v390 = vunpack.c.h.b16 %v238
    %v391 = vunpack.c.l.b16 %v239
    %v392 = vunpack.c.h.b16 %v239
    %v393 = vunpack.c.l.b16 %v240
    %v394 = vunpack.c.h.b16 %v240
    %v395 = vunpack.c.l.b16 %v241
    %v396 = vunpack.c.h.b16 %v241
    %v397 = vunpack.c.l.b16 %v242
    %v398 = vunpack.c.h.b16 %v242
    %v399 = vunpack.c.l.b16 %v243
    %v400 = vunpack.c.h.b16 %v243
    %v401 = vunpack.c.l.b16 %v244
    %v402 = vunpack.c.h.b16 %v244
    %v403 = vunpack.c.l.b16 %v245
    %v404 = vunpack.c.h.b16 %v245
    %v405 = vunpack.c.l.b16 %v246
    %v406 = vunpack.c.h.b16 %v246
    %v407 = vunpack.c.l.b16 %v247
    %v408 = vunpack.c.h.b16 %v247
    %v409 = vunpack.c.l.b16 %v248
    %v410 = vunpack.c.h.b16 %v248
    %v411 = vunpack.c.l.b16 %v249
    %v412 = vunpack.c.h.b16 %v249
    %v413 = vunpack.c.l.b16 %v250
    %v414 = vunpack.c.h.b16 %v250
    %v415 = vunpack.c.l.b16 %v251
    %v416 = vunpack.c.h.b16 %v251
    %v417 = vunpack.c.l.b16 %v252
    %v418 = vunpack.c.h.b16 %v252
    %v419 = vunpack.c.l.b16 %v253
    %v420 = vunpack.c.h.b16 %v253
    %v421 = vunpack.c.l.b16 %v254
    %v422 = vunpack.c.h.b16 %v254
    %v423 = vunpack.c.l.b16 %v255
    %v424 = vunpack.c.h.b16 %v255
    %v425 = vunpack.c.l.b16 %v256
    %v426 = vunpack.c.h.b16 %v256
    %v427 = vunpack.c.l.b16 %v257
    %v428 = vunpack.c.h.b16 %v257
    %v429 = vunpack.c.l.b16 %v258
    %v430 = vunpack.c.h.b16 %v258
    %v431 = vunpack.c.l.b16 %v259
    %v432 = vunpack.c.h.b16 %v259
    %v433 = vunpack.c.l.b16 %v260
    %v434 = vunpack.c.h.b16 %v260
    %v435 = vunpack.c.l.b16 %v261
    %v436 = vunpack.c.h.b16 %v261
    %v437 = vunpack.c.l.b16 %v262
    %v438 = vunpack.c.h.b16 %v262
    %v439 = vunpack.c.l.b16 %v263
    %v440 = vunpack.c.h.b16 %v263
    %v441 = vunpack.c.l.b16 %v264
    %v442 = vunpack.c.h.b16 %v264
    %v443 = vunpack.c.l.b16 %v265
    %v444 = vunpack.c.h.b16 %v265
    %v445 = vunpack.c.l.b16 %v266
    %v446 = vunpack.c.h.b16 %v266
    %v447 = vunpack.c.l.b16 %v267
    %v448 = vunpack.c.h.b16 %v267
    %v449 = vunpack.c.l.b16 %v268
    %v450 = vunpack.c.h.b16 %v268
    %v451 = vunpack.c.l.b16 %v269
    %v452 = vunpack.c.h.b16 %v269
    %v453 = vunpack.c.l.b16 %v270
    %v454 = vunpack.c.h.b16 %v270
    %v455 = vunpack.c.l.b16 %v271
    %v456 = vunpack.c.h.b16 %v271
    %v457 = vunpack.c.l.b16 %v272
    %v458 = vunpack.c.h.b16 %v272
    %v459 = vunpack.c.l.b16 %v273
    %v460 = vunpack.c.h.b16 %v273
    %v461 = vunpack.c.l.b16 %v274
    %v462 = vunpack.c.h.b16 %v274
    %v463 = vunpack.c.l.b16 %v275
    %v464 = vunpack.c.h.b16 %v275
    %v465 = vunpack.c.l.b16 %v276
    %v466 = vunpack.c.h.b16 %v276
    %v467 = vunpack.c.l.b16 %v277
    %v468 = vunpack.c.h.b16 %v277
    %v469 = vunpack.c.l.b16 %v278
    %v470 = vunpack.c.h.b16 %v278
    %v471 = vunpack.c.l.b16 %v279
    %v472 = vunpack.c.h.b16 %v279
    %v473 = vunpack.c.l.b16 %v280
    %v474 = vunpack.c.h.b16 %v280
    %v475 = vunpack.c.l.b16 %v281
    %v476 = vunpack.c.h.b16 %v281
    %v477 = vunpack.c.l.b16 %v282
    %v478 = vunpack.c.h.b16 %v282
    %v479 = vunpack.c.l.b16 %v283
    %v480 = vunpack.c.h.b16 %v283
    %v481 = vunpack.c.l.b16 %v284
    %v482 = vunpack.c.h.b16 %v284
    %v483 = vunpack.c.l.b16 %v285
    %v484 = vunpack.c.h.b16 %v285
    %v485 = vunpack.c.l.b16 %v286
    %v486 = vunpack.c.h.b16 %v286
    %v487 = vunpack.c.l.b16 %v287
    %v488 = vunpack.c.h.b16 %v287
    %v489 = vunpack.c.l.b16 %v288
    %v490 = vunpack.c.h.b16 %v288
    %v491 = vunpack.c.l.b16 %v289
    %v492 = vunpack.c.h.b16 %v289
    %v493 = vunpack.c.l.b16 %v290
    %v494 = vunpack.c.h.b16 %v290
    %v495 = vunpack.c.l.b16 %v291
    %v496 = vunpack.c.h.b16 %v291
    %v497 = vunpack.c.l.b16 %v292
    %v498 = vunpack.c.h.b16 %v292
    %v499 = vunpack.c.l.b16 %v293
    %v500 = vunpack.c.h.b16 %v293
    %v501 = vunpack.c.l.b16 %v294
    %v502 = vunpack.c.h.b16 %v294
    %v503 = vunpack.c.l.b16 %v295
    %v504 = vunpack.c.h.b16 %v295
    %v505 = vunpack.c.l.b16 %v296
    %v506 = vunpack.c.h.b16 %v296
    %v507 = vunpack.c.l.b16 %v297
    %v508 = vunpack.c.h.b16 %v297
    %v509 = vunpack.c.l.b16 %v298
    %v510 = vunpack.c.h.b16 %v298
    %v511 = vunpack.c.l.b16 %v299
    %v512 = vunpack.c.h.b16 %v299
    %v513 = vunpack.c.l.b16 %v300
    %v514 = vunpack.c.h.b16 %v300
    %v515 = vpack.c.b16 %v391, %v387
    %v516 = vpack.c.b16 %v392, %v388
    %v517 = vpack.c.b16 %v393, %v389
    %v518 = vpack.c.b16 %v394, %v390
    %v519 = vpack.c.b16 %v399, %v395
    %v520 = vpack.c.b16 %v400, %v396
    %v521 = vpack.c.b16 %v401, %v397
    %v522 = vpack.c.b16 %v402, %v398
    %v523 = vpack.c.b16 %v407, %v403
    %v524 = vpack.c.b16 %v408, %v404
    %v525 = vpack.c.b16 %v409, %v405
    %v526 = vpack.c.b16 %v410, %v406
    %v527 = vpack.c.b16 %v415, %v411
    %v528 = vpack.c.b16 %v416, %v412
    %v529 = vpack.c.b16 %v417, %v413
    %v530 = vpack.c.b16 %v418, %v414
    %v531 = vpack.c.b16 %v423, %v419
    %v532 = vpack.c.b16 %v424, %v420
    %v533 = vpack.c.b16 %v425, %v421
    %v534 = vpack.c.b16 %v426, %v422
    %v535 = vpack.c.b16 %v431, %v427
    %v536 = vpack.c.b16 %v432, %v428
    %v537 = vpack.c.b16 %v433, %v429
    %v538 = vpack.c.b16 %v434, %v430
    %v539 = vpack.c.b16 %v439, %v435
    %v540 = vpack.c.b16 %v440, %v436
    %v541 = vpack.c.b16 %v441, %v437
    %v542 = vpack.c.b16 %v442, %v438
    %v543 = vpack.c.b16 %v447, %v443
    %v544 = vpack.c.b16 %v448, %v444
    %v545 = vpack.c.b16 %v449, %v445
    %v546 = vpack.c.b16 %v450, %v446
    %v547 = vpack.c.b16 %v455, %v451
    %v548 = vpack.c.b16 %v456, %v452
    %v549 = vpack.c.b16 %v457, %v453
    %v550 = vpack.c.b16 %v458, %v454
    %v551 = vpack.c.b16 %v463, %v459
    %v552 = vpack.c.b16 %v464, %v460
    %v553 = vpack.c.b16 %v465, %v461
    %v554 = vpack.c.b16 %v466, %v462
    %v555 = vpack.c.b16 %v471, %v467
    %v556 = vpack.c.b16 %v472, %v468
    %v557 = vpack.c.b16 %v473, %v469
    %v558 = vpack.c.b16 %v474, %v470
    %v559 = vpack.c.b16 %v479, %v475
    %v560 = vpack.c.b16 %v480, %v476
    %v561 = vpack.c.b16 %v481, %v477
    %v562 = vpack.c.b16 %v482, %v478
    %v563 = vpack.c.b16 %v487, %v483
    %v564 = vpack.c.b16 %v488, %v484
    %v565 = vpack.c.b16 %v489, %v485
    %v566 = vpack.c.b16 %v490, %v486
    %v567 = vpack.c.b16 %v495, %v491
    %v568 = vpack.c.b16 %v496, %v492
    %v569 = vpack.c.b16 %v497, %v493
    %v570 = vpack.c.b16 %v498, %v494
    %v571 = vpack.c.b16 %v503, %v499
    %v572 = vpack.c.b16 %v504, %v500
    %v573 = vpack.c.b16 %v505, %v501
    %v574 = vpack.c.b16 %v506, %v502
    %v575 = vpack.c.b16 %v511, %v507
    %v576 = vpack.c.b16 %v512, %v508
    %v577 = vpack.c.b16 %v513, %v509
    %v578 = vpack.c.b16 %v514, %v510
    %643 = vmatprep.subr.bf16.mxu0 %v544
    %644 = vmatpush1.bf16.msra.mxu0 %v543
    %645 = vmatprep.subr.bf16.mxu0 %v540
    %646 = vmatpush1.bf16.msra.mxu0 %v539
    %647 = vmatprep.subr.bf16.mxu0 %v536
    %648 = vmatpush1.bf16.msra.mxu0 %v535
    %649 = vmatprep.subr.bf16.mxu0 %v532
    %650 = vmatpush1.bf16.msra.mxu0 %v531
    %651 = vmatprep.subr.bf16.mxu0 %v528
    %652 = vmatpush1.bf16.msra.mxu0 %v527
    %653 = vmatprep.subr.bf16.mxu0 %v524
    %654 = vmatpush1.bf16.msra.mxu0 %v523
    %655 = vmatprep.subr.bf16.mxu0 %v520
    %656 = vmatpush1.bf16.msra.mxu0 %v519
    %657 = vmatprep.subr.bf16.mxu0 %v516
    %658 = vmatpush1.bf16.msra.mxu0 %v515
    %659 = vmatprep.subr.bf16.mxu0 %v576
    %660 = vmatpush2.bf16.msra.mxu0 %v575
    %661 = vmatprep.subr.bf16.mxu0 %v572
    %662 = vmatpush2.bf16.msra.mxu0 %v571
    %663 = vmatprep.subr.bf16.mxu0 %v568
    %664 = vmatpush2.bf16.msra.mxu0 %v567
    %665 = vmatprep.subr.bf16.mxu0 %v564
    %666 = vmatpush2.bf16.msra.mxu0 %v563
    %667 = vmatprep.subr.bf16.mxu0 %v560
    %668 = vmatpush2.bf16.msra.mxu0 %v559
    %669 = vmatprep.subr.bf16.mxu0 %v556
    %670 = vmatpush2.bf16.msra.mxu0 %v555
    %671 = vmatprep.subr.bf16.mxu0 %v552
    %672 = vmatpush2.bf16.msra.mxu0 %v551
    %673 = vmatprep.subr.bf16.mxu0 %v548
    %674 = vmatpush2.bf16.msra.mxu0 %v547
    %675 = vmatprep.mubr.bf16.mxu0 %v236
    %676 = vmatmul.mubr.bf16.gmra.mxu0 %v235
    %v677 = vpop.f32.mrf.mxu0
    %v678 = vadd.f32 %v306, %v677
    %v679 = vpop.f32.mrf.mxu0
    %v680 = vadd.f32 %v310, %v679
    %v681 = vpop.f32.mrf.mxu0
    %v682 = vpop.f32.mrf.mxu0
    %683 = vdwg.mxu0
    %684 = vmatprep.subr.bf16.mxu0 %v546
    %685 = vmatpush1.bf16.msra.mxu0 %v545
    %686 = vmatprep.subr.bf16.mxu0 %v542
    %687 = vmatpush1.bf16.msra.mxu0 %v541
    %688 = vmatprep.subr.bf16.mxu0 %v538
    %689 = vmatpush1.bf16.msra.mxu0 %v537
    %690 = vmatprep.subr.bf16.mxu0 %v534
    %691 = vmatpush1.bf16.msra.mxu0 %v533
    %692 = vmatprep.subr.bf16.mxu0 %v530
    %693 = vmatpush1.bf16.msra.mxu0 %v529
    %694 = vmatprep.subr.bf16.mxu0 %v526
    %695 = vmatpush1.bf16.msra.mxu0 %v525
    %696 = vmatprep.subr.bf16.mxu0 %v522
    %697 = vmatpush1.bf16.msra.mxu0 %v521
    %698 = vmatprep.subr.bf16.mxu0 %v518
    %699 = vmatpush1.bf16.msra.mxu0 %v517
    %700 = vmatprep.subr.bf16.mxu0 %v578
    %701 = vmatpush2.bf16.msra.mxu0 %v577
    %702 = vmatprep.subr.bf16.mxu0 %v574
    %703 = vmatpush2.bf16.msra.mxu0 %v573
    %704 = vmatprep.subr.bf16.mxu0 %v570
    %705 = vmatpush2.bf16.msra.mxu0 %v569
    %706 = vmatprep.subr.bf16.mxu0 %v566
    %707 = vmatpush2.bf16.msra.mxu0 %v565
    %708 = vmatprep.subr.bf16.mxu0 %v562
    %709 = vmatpush2.bf16.msra.mxu0 %v561
    %710 = vmatprep.subr.bf16.mxu0 %v558
    %711 = vmatpush2.bf16.msra.mxu0 %v557
    %712 = vmatprep.subr.bf16.mxu0 %v554
    %713 = vmatpush2.bf16.msra.mxu0 %v553
    %714 = vmatprep.subr.bf16.mxu0 %v550
    %715 = vmatpush2.bf16.msra.mxu0 %v549
    %716 = vmatprep.mubr.bf16.mxu0 %v236
    %717 = vmatmul.mubr.bf16.gmra.mxu0 %v235
    %v718 = vpop.f32.mrf.mxu0
    %v719 = vadd.f32 %v314, %v718
    %v720 = vpop.f32.mrf.mxu0
    %v721 = vadd.f32 %v318, %v720
    %v722 = vpop.f32.mrf.mxu0
    %v723 = vpop.f32.mrf.mxu0
    %724 = vdwg.mxu0
    %vm725 = vcmp.gt.f32.partialorder %v678, 0.0
    %vm726 = vcmp.gt.f32.partialorder %v680, 0.0
    %vm727 = vcmp.gt.f32.partialorder %v719, 0.0
    %vm728 = vcmp.gt.f32.partialorder %v721, 0.0
    %v729 = vmul.f32 %v678, 0.2
    %v730 = vmul.f32 %v680, 0.2
    %v731 = vmul.f32 %v719, 0.2
    %v732 = vmul.f32 %v721, 0.2
    %v733 = vsel %vm725, %v678, %v729
    %v734 = vsel %vm726, %v680, %v730
    %v735 = vsel %vm727, %v719, %v731
    %v736 = vsel %vm728, %v721, %v732
    %v737 = vpack.c.bf16 %v733, %v733
    %v738 = vpack.c.bf16 %v734, %v734
    %v739 = vpack.c.bf16 %v735, %v735
    %v740 = vpack.c.bf16 %v736, %v736
    %v741 = vld [vmem:[#allocation11] sm:$0xff]
    %v742 = vld [vmem:[#allocation11 + $0x8] sm:$0xff]
    %v743 = vld [vmem:[#allocation11 + $0x10] sm:$0xff]
    %v744 = vld [vmem:[#allocation11 + $0x18] sm:$0xff]
    %v745 = vld [vmem:[#allocation11 + $0x20] sm:$0xff]
    %v746 = vld [vmem:[#allocation11 + $0x28] sm:$0xff]
    %v747 = vld [vmem:[#allocation11 + $0x30] sm:$0xff]
    %v748 = vld [vmem:[#allocation11 + $0x38] sm:$0xff]
    %v749 = vld [vmem:[#allocation11 + $0x40] sm:$0xff]
    %v750 = vld [vmem:[#allocation11 + $0x48] sm:$0xff]
    %v751 = vld [vmem:[#allocation11 + $0x50] sm:$0xff]
    %v752 = vld [vmem:[#allocation11 + $0x58] sm:$0xff]
    %v753 = vld [vmem:[#allocation11 + $0x60] sm:$0xff]
    %v754 = vld [vmem:[#allocation11 + $0x68] sm:$0xff]
    %v755 = vld [vmem:[#allocation11 + $0x70] sm:$0xff]
    %v756 = vld [vmem:[#allocation11 + $0x78] sm:$0xff]
    %v757 = vld [vmem:[#allocation11 + $0x80] sm:$0xff]
    %v758 = vld [vmem:[#allocation11 + $0x88] sm:$0xff]
    %v759 = vld [vmem:[#allocation11 + $0x90] sm:$0xff]
    %v760 = vld [vmem:[#allocation11 + $0x98] sm:$0xff]
    %v761 = vld [vmem:[#allocation11 + $0xa0] sm:$0xff]
    %v762 = vld [vmem:[#allocation11 + $0xa8] sm:$0xff]
    %v763 = vld [vmem:[#allocation11 + $0xb0] sm:$0xff]
    %v764 = vld [vmem:[#allocation11 + $0xb8] sm:$0xff]
    %v765 = vld [vmem:[#allocation11 + $0xc0] sm:$0xff]
    %v766 = vld [vmem:[#allocation11 + $0xc8] sm:$0xff]
    %v767 = vld [vmem:[#allocation11 + $0xd0] sm:$0xff]
    %v768 = vld [vmem:[#allocation11 + $0xd8] sm:$0xff]
    %v769 = vld [vmem:[#allocation11 + $0xe0] sm:$0xff]
    %v770 = vld [vmem:[#allocation11 + $0xe8] sm:$0xff]
    %v771 = vld [vmem:[#allocation11 + $0xf0] sm:$0xff]
    %v772 = vld [vmem:[#allocation11 + $0xf8] sm:$0xff]
    %v773 = vld [vmem:[#allocation11 + $0x100] sm:$0xff]
    %v774 = vld [vmem:[#allocation11 + $0x108] sm:$0xff]
    %v775 = vld [vmem:[#allocation11 + $0x110] sm:$0xff]
    %v776 = vld [vmem:[#allocation11 + $0x118] sm:$0xff]
    %v777 = vld [vmem:[#allocation11 + $0x120] sm:$0xff]
    %v778 = vld [vmem:[#allocation11 + $0x128] sm:$0xff]
    %v779 = vld [vmem:[#allocation11 + $0x130] sm:$0xff]
    %v780 = vld [vmem:[#allocation11 + $0x138] sm:$0xff]
    %v781 = vld [vmem:[#allocation11 + $0x140] sm:$0xff]
    %v782 = vld [vmem:[#allocation11 + $0x148] sm:$0xff]
    %v783 = vld [vmem:[#allocation11 + $0x150] sm:$0xff]
    %v784 = vld [vmem:[#allocation11 + $0x158] sm:$0xff]
    %v785 = vld [vmem:[#allocation11 + $0x160] sm:$0xff]
    %v786 = vld [vmem:[#allocation11 + $0x168] sm:$0xff]
    %v787 = vld [vmem:[#allocation11 + $0x170] sm:$0xff]
    %v788 = vld [vmem:[#allocation11 + $0x178] sm:$0xff]
    %v789 = vld [vmem:[#allocation11 + $0x180] sm:$0xff]
    %v790 = vld [vmem:[#allocation11 + $0x188] sm:$0xff]
    %v791 = vld [vmem:[#allocation11 + $0x190] sm:$0xff]
    %v792 = vld [vmem:[#allocation11 + $0x198] sm:$0xff]
    %v793 = vld [vmem:[#allocation11 + $0x1a0] sm:$0xff]
    %v794 = vld [vmem:[#allocation11 + $0x1a8] sm:$0xff]
    %v795 = vld [vmem:[#allocation11 + $0x1b0] sm:$0xff]
    %v796 = vld [vmem:[#allocation11 + $0x1b8] sm:$0xff]
    %v797 = vld [vmem:[#allocation11 + $0x1c0] sm:$0xff]
    %v798 = vld [vmem:[#allocation11 + $0x1c8] sm:$0xff]
    %v799 = vld [vmem:[#allocation11 + $0x1d0] sm:$0xff]
    %v800 = vld [vmem:[#allocation11 + $0x1d8] sm:$0xff]
    %v801 = vld [vmem:[#allocation11 + $0x1e0] sm:$0xff]
    %v802 = vld [vmem:[#allocation11 + $0x1e8] sm:$0xff]
    %v803 = vld [vmem:[#allocation11 + $0x1f0] sm:$0xff]
    %v804 = vld [vmem:[#allocation11 + $0x1f8] sm:$0xff]
    %v805 = vld [vmem:[#allocation11 + $0x200] sm:$0xff]
    %v806 = vld [vmem:[#allocation11 + $0x208] sm:$0xff]
    %v807 = vld [vmem:[#allocation11 + $0x210] sm:$0xff]
    %v808 = vld [vmem:[#allocation11 + $0x218] sm:$0xff]
    %v809 = vld [vmem:[#allocation11 + $0x220] sm:$0xff]
    %v810 = vld [vmem:[#allocation11 + $0x228] sm:$0xff]
    %v811 = vld [vmem:[#allocation11 + $0x230] sm:$0xff]
    %v812 = vld [vmem:[#allocation11 + $0x238] sm:$0xff]
    %v813 = vld [vmem:[#allocation11 + $0x240] sm:$0xff]
    %v814 = vld [vmem:[#allocation11 + $0x248] sm:$0xff]
    %v815 = vld [vmem:[#allocation11 + $0x250] sm:$0xff]
    %v816 = vld [vmem:[#allocation11 + $0x258] sm:$0xff]
    %v817 = vld [vmem:[#allocation11 + $0x260] sm:$0xff]
    %v818 = vld [vmem:[#allocation11 + $0x268] sm:$0xff]
    %v819 = vld [vmem:[#allocation11 + $0x270] sm:$0xff]
    %v820 = vld [vmem:[#allocation11 + $0x278] sm:$0xff]
    %v821 = vld [vmem:[#allocation11 + $0x280] sm:$0xff]
    %v822 = vld [vmem:[#allocation11 + $0x288] sm:$0xff]
    %v823 = vld [vmem:[#allocation11 + $0x290] sm:$0xff]
    %v824 = vld [vmem:[#allocation11 + $0x298] sm:$0xff]
    %v825 = vld [vmem:[#allocation11 + $0x2a0] sm:$0xff]
    %v826 = vld [vmem:[#allocation11 + $0x2a8] sm:$0xff]
    %v827 = vld [vmem:[#allocation11 + $0x2b0] sm:$0xff]
    %v828 = vld [vmem:[#allocation11 + $0x2b8] sm:$0xff]
    %v829 = vld [vmem:[#allocation11 + $0x2c0] sm:$0xff]
    %v830 = vld [vmem:[#allocation11 + $0x2c8] sm:$0xff]
    %v831 = vld [vmem:[#allocation11 + $0x2d0] sm:$0xff]
    %v832 = vld [vmem:[#allocation11 + $0x2d8] sm:$0xff]
    %v833 = vld [vmem:[#allocation11 + $0x2e0] sm:$0xff]
    %v834 = vld [vmem:[#allocation11 + $0x2e8] sm:$0xff]
    %v835 = vld [vmem:[#allocation11 + $0x2f0] sm:$0xff]
    %v836 = vld [vmem:[#allocation11 + $0x2f8] sm:$0xff]
    %v837 = vld [vmem:[#allocation11 + $0x300] sm:$0xff]
    %v838 = vld [vmem:[#allocation11 + $0x308] sm:$0xff]
    %v839 = vld [vmem:[#allocation11 + $0x310] sm:$0xff]
    %v840 = vld [vmem:[#allocation11 + $0x318] sm:$0xff]
    %v841 = vld [vmem:[#allocation11 + $0x320] sm:$0xff]
    %v842 = vld [vmem:[#allocation11 + $0x328] sm:$0xff]
    %v843 = vld [vmem:[#allocation11 + $0x330] sm:$0xff]
    %v844 = vld [vmem:[#allocation11 + $0x338] sm:$0xff]
    %v845 = vld [vmem:[#allocation11 + $0x340] sm:$0xff]
    %v846 = vld [vmem:[#allocation11 + $0x348] sm:$0xff]
    %v847 = vld [vmem:[#allocation11 + $0x350] sm:$0xff]
    %v848 = vld [vmem:[#allocation11 + $0x358] sm:$0xff]
    %v849 = vld [vmem:[#allocation11 + $0x360] sm:$0xff]
    %v850 = vld [vmem:[#allocation11 + $0x368] sm:$0xff]
    %v851 = vld [vmem:[#allocation11 + $0x370] sm:$0xff]
    %v852 = vld [vmem:[#allocation11 + $0x378] sm:$0xff]
    %v853 = vld [vmem:[#allocation11 + $0x380] sm:$0xff]
    %v854 = vld [vmem:[#allocation11 + $0x388] sm:$0xff]
    %v855 = vld [vmem:[#allocation11 + $0x390] sm:$0xff]
    %v856 = vld [vmem:[#allocation11 + $0x398] sm:$0xff]
    %v857 = vld [vmem:[#allocation11 + $0x3a0] sm:$0xff]
    %v858 = vld [vmem:[#allocation11 + $0x3a8] sm:$0xff]
    %v859 = vld [vmem:[#allocation11 + $0x3b0] sm:$0xff]
    %v860 = vld [vmem:[#allocation11 + $0x3b8] sm:$0xff]
    %v861 = vld [vmem:[#allocation11 + $0x3c0] sm:$0xff]
    %v862 = vld [vmem:[#allocation11 + $0x3c8] sm:$0xff]
    %v863 = vld [vmem:[#allocation11 + $0x3d0] sm:$0xff]
    %v864 = vld [vmem:[#allocation11 + $0x3d8] sm:$0xff]
    %v865 = vld [vmem:[#allocation11 + $0x3e0] sm:$0xff]
    %v866 = vld [vmem:[#allocation11 + $0x3e8] sm:$0xff]
    %v867 = vld [vmem:[#allocation11 + $0x3f0] sm:$0xff]
    %v868 = vld [vmem:[#allocation11 + $0x3f8] sm:$0xff]
    %v869 = vld [vmem:[#allocation11 + $0x400] sm:$0xff]
    %v870 = vld [vmem:[#allocation11 + $0x408] sm:$0xff]
    %v871 = vld [vmem:[#allocation11 + $0x410] sm:$0xff]
    %v872 = vld [vmem:[#allocation11 + $0x418] sm:$0xff]
    %v873 = vld [vmem:[#allocation11 + $0x420] sm:$0xff]
    %v874 = vld [vmem:[#allocation11 + $0x428] sm:$0xff]
    %v875 = vld [vmem:[#allocation11 + $0x430] sm:$0xff]
    %v876 = vld [vmem:[#allocation11 + $0x438] sm:$0xff]
    %v877 = vld [vmem:[#allocation11 + $0x440] sm:$0xff]
    %v878 = vld [vmem:[#allocation11 + $0x448] sm:$0xff]
    %v879 = vld [vmem:[#allocation11 + $0x450] sm:$0xff]
    %v880 = vld [vmem:[#allocation11 + $0x458] sm:$0xff]
    %v881 = vld [vmem:[#allocation11 + $0x460] sm:$0xff]
    %v882 = vld [vmem:[#allocation11 + $0x468] sm:$0xff]
    %v883 = vld [vmem:[#allocation11 + $0x470] sm:$0xff]
    %v884 = vld [vmem:[#allocation11 + $0x478] sm:$0xff]
    %v885 = vld [vmem:[#allocation11 + $0x480] sm:$0xff]
    %v886 = vld [vmem:[#allocation11 + $0x488] sm:$0xff]
    %v887 = vld [vmem:[#allocation11 + $0x490] sm:$0xff]
    %v888 = vld [vmem:[#allocation11 + $0x498] sm:$0xff]
    %v889 = vld [vmem:[#allocation11 + $0x4a0] sm:$0xff]
    %v890 = vld [vmem:[#allocation11 + $0x4a8] sm:$0xff]
    %v891 = vld [vmem:[#allocation11 + $0x4b0] sm:$0xff]
    %v892 = vld [vmem:[#allocation11 + $0x4b8] sm:$0xff]
    %v893 = vld [vmem:[#allocation11 + $0x4c0] sm:$0xff]
    %v894 = vld [vmem:[#allocation11 + $0x4c8] sm:$0xff]
    %v895 = vld [vmem:[#allocation11 + $0x4d0] sm:$0xff]
    %v896 = vld [vmem:[#allocation11 + $0x4d8] sm:$0xff]
    %v897 = vld [vmem:[#allocation11 + $0x4e0] sm:$0xff]
    %v898 = vld [vmem:[#allocation11 + $0x4e8] sm:$0xff]
    %v899 = vld [vmem:[#allocation11 + $0x4f0] sm:$0xff]
    %v900 = vld [vmem:[#allocation11 + $0x4f8] sm:$0xff]
    %v901 = vld [vmem:[#allocation11 + $0x500] sm:$0xff]
    %v902 = vld [vmem:[#allocation11 + $0x508] sm:$0xff]
    %v903 = vld [vmem:[#allocation11 + $0x510] sm:$0xff]
    %v904 = vld [vmem:[#allocation11 + $0x518] sm:$0xff]
    %v905 = vld [vmem:[#allocation11 + $0x520] sm:$0xff]
    %v906 = vld [vmem:[#allocation11 + $0x528] sm:$0xff]
    %v907 = vld [vmem:[#allocation11 + $0x530] sm:$0xff]
    %v908 = vld [vmem:[#allocation11 + $0x538] sm:$0xff]
    %v909 = vld [vmem:[#allocation11 + $0x540] sm:$0xff]
    %v910 = vld [vmem:[#allocation11 + $0x548] sm:$0xff]
    %v911 = vld [vmem:[#allocation11 + $0x550] sm:$0xff]
    %v912 = vld [vmem:[#allocation11 + $0x558] sm:$0xff]
    %v913 = vld [vmem:[#allocation11 + $0x560] sm:$0xff]
    %v914 = vld [vmem:[#allocation11 + $0x568] sm:$0xff]
    %v915 = vld [vmem:[#allocation11 + $0x570] sm:$0xff]
    %v916 = vld [vmem:[#allocation11 + $0x578] sm:$0xff]
    %v917 = vld [vmem:[#allocation11 + $0x580] sm:$0xff]
    %v918 = vld [vmem:[#allocation11 + $0x588] sm:$0xff]
    %v919 = vld [vmem:[#allocation11 + $0x590] sm:$0xff]
    %v920 = vld [vmem:[#allocation11 + $0x598] sm:$0xff]
    %v921 = vld [vmem:[#allocation11 + $0x5a0] sm:$0xff]
    %v922 = vld [vmem:[#allocation11 + $0x5a8] sm:$0xff]
    %v923 = vld [vmem:[#allocation11 + $0x5b0] sm:$0xff]
    %v924 = vld [vmem:[#allocation11 + $0x5b8] sm:$0xff]
    %v925 = vld [vmem:[#allocation11 + $0x5c0] sm:$0xff]
    %v926 = vld [vmem:[#allocation11 + $0x5c8] sm:$0xff]
    %v927 = vld [vmem:[#allocation11 + $0x5d0] sm:$0xff]
    %v928 = vld [vmem:[#allocation11 + $0x5d8] sm:$0xff]
    %v929 = vld [vmem:[#allocation11 + $0x5e0] sm:$0xff]
    %v930 = vld [vmem:[#allocation11 + $0x5e8] sm:$0xff]
    %v931 = vld [vmem:[#allocation11 + $0x5f0] sm:$0xff]
    %v932 = vld [vmem:[#allocation11 + $0x5f8] sm:$0xff]
    %v933 = vld [vmem:[#allocation11 + $0x600] sm:$0xff]
    %v934 = vld [vmem:[#allocation11 + $0x608] sm:$0xff]
    %v935 = vld [vmem:[#allocation11 + $0x610] sm:$0xff]
    %v936 = vld [vmem:[#allocation11 + $0x618] sm:$0xff]
    %v937 = vld [vmem:[#allocation11 + $0x620] sm:$0xff]
    %v938 = vld [vmem:[#allocation11 + $0x628] sm:$0xff]
    %v939 = vld [vmem:[#allocation11 + $0x630] sm:$0xff]
    %v940 = vld [vmem:[#allocation11 + $0x638] sm:$0xff]
    %v941 = vld [vmem:[#allocation11 + $0x640] sm:$0xff]
    %v942 = vld [vmem:[#allocation11 + $0x648] sm:$0xff]
    %v943 = vld [vmem:[#allocation11 + $0x650] sm:$0xff]
    %v944 = vld [vmem:[#allocation11 + $0x658] sm:$0xff]
    %v945 = vld [vmem:[#allocation11 + $0x660] sm:$0xff]
    %v946 = vld [vmem:[#allocation11 + $0x668] sm:$0xff]
    %v947 = vld [vmem:[#allocation11 + $0x670] sm:$0xff]
    %v948 = vld [vmem:[#allocation11 + $0x678] sm:$0xff]
    %v949 = vld [vmem:[#allocation11 + $0x680] sm:$0xff]
    %v950 = vld [vmem:[#allocation11 + $0x688] sm:$0xff]
    %v951 = vld [vmem:[#allocation11 + $0x690] sm:$0xff]
    %v952 = vld [vmem:[#allocation11 + $0x698] sm:$0xff]
    %v953 = vld [vmem:[#allocation11 + $0x6a0] sm:$0xff]
    %v954 = vld [vmem:[#allocation11 + $0x6a8] sm:$0xff]
    %v955 = vld [vmem:[#allocation11 + $0x6b0] sm:$0xff]
    %v956 = vld [vmem:[#allocation11 + $0x6b8] sm:$0xff]
    %v957 = vld [vmem:[#allocation11 + $0x6c0] sm:$0xff]
    %v958 = vld [vmem:[#allocation11 + $0x6c8] sm:$0xff]
    %v959 = vld [vmem:[#allocation11 + $0x6d0] sm:$0xff]
    %v960 = vld [vmem:[#allocation11 + $0x6d8] sm:$0xff]
    %v961 = vld [vmem:[#allocation11 + $0x6e0] sm:$0xff]
    %v962 = vld [vmem:[#allocation11 + $0x6e8] sm:$0xff]
    %v963 = vld [vmem:[#allocation11 + $0x6f0] sm:$0xff]
    %v964 = vld [vmem:[#allocation11 + $0x6f8] sm:$0xff]
    %v965 = vld [vmem:[#allocation11 + $0x700] sm:$0xff]
    %v966 = vld [vmem:[#allocation11 + $0x708] sm:$0xff]
    %v967 = vld [vmem:[#allocation11 + $0x710] sm:$0xff]
    %v968 = vld [vmem:[#allocation11 + $0x718] sm:$0xff]
    %v969 = vld [vmem:[#allocation11 + $0x720] sm:$0xff]
    %v970 = vld [vmem:[#allocation11 + $0x728] sm:$0xff]
    %v971 = vld [vmem:[#allocation11 + $0x730] sm:$0xff]
    %v972 = vld [vmem:[#allocation11 + $0x738] sm:$0xff]
    %v973 = vld [vmem:[#allocation11 + $0x740] sm:$0xff]
    %v974 = vld [vmem:[#allocation11 + $0x748] sm:$0xff]
    %v975 = vld [vmem:[#allocation11 + $0x750] sm:$0xff]
    %v976 = vld [vmem:[#allocation11 + $0x758] sm:$0xff]
    %v977 = vld [vmem:[#allocation11 + $0x760] sm:$0xff]
    %v978 = vld [vmem:[#allocation11 + $0x768] sm:$0xff]
    %v979 = vld [vmem:[#allocation11 + $0x770] sm:$0xff]
    %v980 = vld [vmem:[#allocation11 + $0x778] sm:$0xff]
    %v981 = vld [vmem:[#allocation11 + $0x780] sm:$0xff]
    %v982 = vld [vmem:[#allocation11 + $0x788] sm:$0xff]
    %v983 = vld [vmem:[#allocation11 + $0x790] sm:$0xff]
    %v984 = vld [vmem:[#allocation11 + $0x798] sm:$0xff]
    %v985 = vld [vmem:[#allocation11 + $0x7a0] sm:$0xff]
    %v986 = vld [vmem:[#allocation11 + $0x7a8] sm:$0xff]
    %v987 = vld [vmem:[#allocation11 + $0x7b0] sm:$0xff]
    %v988 = vld [vmem:[#allocation11 + $0x7b8] sm:$0xff]
    %v989 = vld [vmem:[#allocation11 + $0x7c0] sm:$0xff]
    %v990 = vld [vmem:[#allocation11 + $0x7c8] sm:$0xff]
    %v991 = vld [vmem:[#allocation11 + $0x7d0] sm:$0xff]
    %v992 = vld [vmem:[#allocation11 + $0x7d8] sm:$0xff]
    %v993 = vld [vmem:[#allocation11 + $0x7e0] sm:$0xff]
    %v994 = vld [vmem:[#allocation11 + $0x7e8] sm:$0xff]
    %v995 = vld [vmem:[#allocation11 + $0x7f0] sm:$0xff]
    %v996 = vld [vmem:[#allocation11 + $0x7f8] sm:$0xff]
    %v997 = vld [vmem:[#allocation13] sm:$0xff]
    %v999 = vlaneseq
    %v1000 = vshrl.u32 %v999, 7
    %v1001 = vsub.s32 0, %v1000
    %v1002 = vrot.slane %v997, %v1001
    %v1003 = vlaneseq
    %v1004 = vshrl.u32 %v1003, 7
    %v1005 = vsub.s32 1, %v1004
    %v1006 = vrot.slane %v997, %v1005
    %v1007 = vlaneseq
    %v1008 = vshrl.u32 %v1007, 7
    %v1009 = vsub.s32 2, %v1008
    %v1010 = vrot.slane %v997, %v1009
    %v1011 = vlaneseq
    %v1012 = vshrl.u32 %v1011, 7
    %v1013 = vsub.s32 3, %v1012
    %v1014 = vrot.slane %v997, %v1013
    %v1015 = vlaneseq
    %v1016 = vshrl.u32 %v1015, 7
    %v1017 = vsub.s32 4, %v1016
    %v1018 = vrot.slane %v997, %v1017
    %v1019 = vlaneseq
    %v1020 = vshrl.u32 %v1019, 7
    %v1021 = vsub.s32 5, %v1020
    %v1022 = vrot.slane %v997, %v1021
    %v1023 = vlaneseq
    %v1024 = vshrl.u32 %v1023, 7
    %v1025 = vsub.s32 6, %v1024
    %v1026 = vrot.slane %v997, %v1025
    %v1027 = vlaneseq
    %v1028 = vshrl.u32 %v1027, 7
    %v1029 = vsub.s32 7, %v1028
    %v1030 = vrot.slane %v997, %v1029
    %v1295 = vunpack.c.l.b16 %v741
    %v1296 = vunpack.c.h.b16 %v741
    %v1297 = vunpack.c.l.b16 %v742
    %v1298 = vunpack.c.h.b16 %v742
    %v1299 = vunpack.c.l.b16 %v743
    %v1300 = vunpack.c.h.b16 %v743
    %v1301 = vunpack.c.l.b16 %v744
    %v1302 = vunpack.c.h.b16 %v744
    %v1303 = vunpack.c.l.b16 %v745
    %v1304 = vunpack.c.h.b16 %v745
    %v1305 = vunpack.c.l.b16 %v746
    %v1306 = vunpack.c.h.b16 %v746
    %v1307 = vunpack.c.l.b16 %v747
    %v1308 = vunpack.c.h.b16 %v747
    %v1309 = vunpack.c.l.b16 %v748
    %v1310 = vunpack.c.h.b16 %v748
    %v1311 = vunpack.c.l.b16 %v749
    %v1312 = vunpack.c.h.b16 %v749
    %v1313 = vunpack.c.l.b16 %v750
    %v1314 = vunpack.c.h.b16 %v750
    %v1315 = vunpack.c.l.b16 %v751
    %v1316 = vunpack.c.h.b16 %v751
    %v1317 = vunpack.c.l.b16 %v752
    %v1318 = vunpack.c.h.b16 %v752
    %v1319 = vunpack.c.l.b16 %v753
    %v1320 = vunpack.c.h.b16 %v753
    %v1321 = vunpack.c.l.b16 %v754
    %v1322 = vunpack.c.h.b16 %v754
    %v1323 = vunpack.c.l.b16 %v755
    %v1324 = vunpack.c.h.b16 %v755
    %v1325 = vunpack.c.l.b16 %v756
    %v1326 = vunpack.c.h.b16 %v756
    %v1327 = vunpack.c.l.b16 %v757
    %v1328 = vunpack.c.h.b16 %v757
    %v1329 = vunpack.c.l.b16 %v758
    %v1330 = vunpack.c.h.b16 %v758
    %v1331 = vunpack.c.l.b16 %v759
    %v1332 = vunpack.c.h.b16 %v759
    %v1333 = vunpack.c.l.b16 %v760
    %v1334 = vunpack.c.h.b16 %v760
    %v1335 = vunpack.c.l.b16 %v761
    %v1336 = vunpack.c.h.b16 %v761
    %v1337 = vunpack.c.l.b16 %v762
    %v1338 = vunpack.c.h.b16 %v762
    %v1339 = vunpack.c.l.b16 %v763
    %v1340 = vunpack.c.h.b16 %v763
    %v1341 = vunpack.c.l.b16 %v764
    %v1342 = vunpack.c.h.b16 %v764
    %v1343 = vunpack.c.l.b16 %v765
    %v1344 = vunpack.c.h.b16 %v765
    %v1345 = vunpack.c.l.b16 %v766
    %v1346 = vunpack.c.h.b16 %v766
    %v1347 = vunpack.c.l.b16 %v767
    %v1348 = vunpack.c.h.b16 %v767
    %v1349 = vunpack.c.l.b16 %v768
    %v1350 = vunpack.c.h.b16 %v768
    %v1351 = vunpack.c.l.b16 %v769
    %v1352 = vunpack.c.h.b16 %v769
    %v1353 = vunpack.c.l.b16 %v770
    %v1354 = vunpack.c.h.b16 %v770
    %v1355 = vunpack.c.l.b16 %v771
    %v1356 = vunpack.c.h.b16 %v771
    %v1357 = vunpack.c.l.b16 %v772
    %v1358 = vunpack.c.h.b16 %v772
    %v1359 = vunpack.c.l.b16 %v773
    %v1360 = vunpack.c.h.b16 %v773
    %v1361 = vunpack.c.l.b16 %v774
    %v1362 = vunpack.c.h.b16 %v774
    %v1363 = vunpack.c.l.b16 %v775
    %v1364 = vunpack.c.h.b16 %v775
    %v1365 = vunpack.c.l.b16 %v776
    %v1366 = vunpack.c.h.b16 %v776
    %v1367 = vunpack.c.l.b16 %v777
    %v1368 = vunpack.c.h.b16 %v777
    %v1369 = vunpack.c.l.b16 %v778
    %v1370 = vunpack.c.h.b16 %v778
    %v1371 = vunpack.c.l.b16 %v779
    %v1372 = vunpack.c.h.b16 %v779
    %v1373 = vunpack.c.l.b16 %v780
    %v1374 = vunpack.c.h.b16 %v780
    %v1375 = vunpack.c.l.b16 %v781
    %v1376 = vunpack.c.h.b16 %v781
    %v1377 = vunpack.c.l.b16 %v782
    %v1378 = vunpack.c.h.b16 %v782
    %v1379 = vunpack.c.l.b16 %v783
    %v1380 = vunpack.c.h.b16 %v783
    %v1381 = vunpack.c.l.b16 %v784
    %v1382 = vunpack.c.h.b16 %v784
    %v1383 = vunpack.c.l.b16 %v785
    %v1384 = vunpack.c.h.b16 %v785
    %v1385 = vunpack.c.l.b16 %v786
    %v1386 = vunpack.c.h.b16 %v786
    %v1387 = vunpack.c.l.b16 %v787
    %v1388 = vunpack.c.h.b16 %v787
    %v1389 = vunpack.c.l.b16 %v788
    %v1390 = vunpack.c.h.b16 %v788
    %v1391 = vunpack.c.l.b16 %v789
    %v1392 = vunpack.c.h.b16 %v789
    %v1393 = vunpack.c.l.b16 %v790
    %v1394 = vunpack.c.h.b16 %v790
    %v1395 = vunpack.c.l.b16 %v791
    %v1396 = vunpack.c.h.b16 %v791
    %v1397 = vunpack.c.l.b16 %v792
    %v1398 = vunpack.c.h.b16 %v792
    %v1399 = vunpack.c.l.b16 %v793
    %v1400 = vunpack.c.h.b16 %v793
    %v1401 = vunpack.c.l.b16 %v794
    %v1402 = vunpack.c.h.b16 %v794
    %v1403 = vunpack.c.l.b16 %v795
    %v1404 = vunpack.c.h.b16 %v795
    %v1405 = vunpack.c.l.b16 %v796
    %v1406 = vunpack.c.h.b16 %v796
    %v1407 = vunpack.c.l.b16 %v797
    %v1408 = vunpack.c.h.b16 %v797
    %v1409 = vunpack.c.l.b16 %v798
    %v1410 = vunpack.c.h.b16 %v798
    %v1411 = vunpack.c.l.b16 %v799
    %v1412 = vunpack.c.h.b16 %v799
    %v1413 = vunpack.c.l.b16 %v800
    %v1414 = vunpack.c.h.b16 %v800
    %v1415 = vunpack.c.l.b16 %v801
    %v1416 = vunpack.c.h.b16 %v801
    %v1417 = vunpack.c.l.b16 %v802
    %v1418 = vunpack.c.h.b16 %v802
    %v1419 = vunpack.c.l.b16 %v803
    %v1420 = vunpack.c.h.b16 %v803
    %v1421 = vunpack.c.l.b16 %v804
    %v1422 = vunpack.c.h.b16 %v804
    %v1423 = vunpack.c.l.b16 %v805
    %v1424 = vunpack.c.h.b16 %v805
    %v1425 = vunpack.c.l.b16 %v806
    %v1426 = vunpack.c.h.b16 %v806
    %v1427 = vunpack.c.l.b16 %v807
    %v1428 = vunpack.c.h.b16 %v807
    %v1429 = vunpack.c.l.b16 %v808
    %v1430 = vunpack.c.h.b16 %v808
    %v1431 = vunpack.c.l.b16 %v809
    %v1432 = vunpack.c.h.b16 %v809
    %v1433 = vunpack.c.l.b16 %v810
    %v1434 = vunpack.c.h.b16 %v810
    %v1435 = vunpack.c.l.b16 %v811
    %v1436 = vunpack.c.h.b16 %v811
    %v1437 = vunpack.c.l.b16 %v812
    %v1438 = vunpack.c.h.b16 %v812
    %v1439 = vunpack.c.l.b16 %v813
    %v1440 = vunpack.c.h.b16 %v813
    %v1441 = vunpack.c.l.b16 %v814
    %v1442 = vunpack.c.h.b16 %v814
    %v1443 = vunpack.c.l.b16 %v815
    %v1444 = vunpack.c.h.b16 %v815
    %v1445 = vunpack.c.l.b16 %v816
    %v1446 = vunpack.c.h.b16 %v816
    %v1447 = vunpack.c.l.b16 %v817
    %v1448 = vunpack.c.h.b16 %v817
    %v1449 = vunpack.c.l.b16 %v818
    %v1450 = vunpack.c.h.b16 %v818
    %v1451 = vunpack.c.l.b16 %v819
    %v1452 = vunpack.c.h.b16 %v819
    %v1453 = vunpack.c.l.b16 %v820
    %v1454 = vunpack.c.h.b16 %v820
    %v1455 = vunpack.c.l.b16 %v821
    %v1456 = vunpack.c.h.b16 %v821
    %v1457 = vunpack.c.l.b16 %v822
    %v1458 = vunpack.c.h.b16 %v822
    %v1459 = vunpack.c.l.b16 %v823
    %v1460 = vunpack.c.h.b16 %v823
    %v1461 = vunpack.c.l.b16 %v824
    %v1462 = vunpack.c.h.b16 %v824
    %v1463 = vunpack.c.l.b16 %v825
    %v1464 = vunpack.c.h.b16 %v825
    %v1465 = vunpack.c.l.b16 %v826
    %v1466 = vunpack.c.h.b16 %v826
    %v1467 = vunpack.c.l.b16 %v827
    %v1468 = vunpack.c.h.b16 %v827
    %v1469 = vunpack.c.l.b16 %v828
    %v1470 = vunpack.c.h.b16 %v828
    %v1471 = vunpack.c.l.b16 %v829
    %v1472 = vunpack.c.h.b16 %v829
    %v1473 = vunpack.c.l.b16 %v830
    %v1474 = vunpack.c.h.b16 %v830
    %v1475 = vunpack.c.l.b16 %v831
    %v1476 = vunpack.c.h.b16 %v831
    %v1477 = vunpack.c.l.b16 %v832
    %v1478 = vunpack.c.h.b16 %v832
    %v1479 = vunpack.c.l.b16 %v833
    %v1480 = vunpack.c.h.b16 %v833
    %v1481 = vunpack.c.l.b16 %v834
    %v1482 = vunpack.c.h.b16 %v834
    %v1483 = vunpack.c.l.b16 %v835
    %v1484 = vunpack.c.h.b16 %v835
    %v1485 = vunpack.c.l.b16 %v836
    %v1486 = vunpack.c.h.b16 %v836
    %v1487 = vunpack.c.l.b16 %v837
    %v1488 = vunpack.c.h.b16 %v837
    %v1489 = vunpack.c.l.b16 %v838
    %v1490 = vunpack.c.h.b16 %v838
    %v1491 = vunpack.c.l.b16 %v839
    %v1492 = vunpack.c.h.b16 %v839
    %v1493 = vunpack.c.l.b16 %v840
    %v1494 = vunpack.c.h.b16 %v840
    %v1495 = vunpack.c.l.b16 %v841
    %v1496 = vunpack.c.h.b16 %v841
    %v1497 = vunpack.c.l.b16 %v842
    %v1498 = vunpack.c.h.b16 %v842
    %v1499 = vunpack.c.l.b16 %v843
    %v1500 = vunpack.c.h.b16 %v843
    %v1501 = vunpack.c.l.b16 %v844
    %v1502 = vunpack.c.h.b16 %v844
    %v1503 = vunpack.c.l.b16 %v845
    %v1504 = vunpack.c.h.b16 %v845
    %v1505 = vunpack.c.l.b16 %v846
    %v1506 = vunpack.c.h.b16 %v846
    %v1507 = vunpack.c.l.b16 %v847
    %v1508 = vunpack.c.h.b16 %v847
    %v1509 = vunpack.c.l.b16 %v848
    %v1510 = vunpack.c.h.b16 %v848
    %v1511 = vunpack.c.l.b16 %v849
    %v1512 = vunpack.c.h.b16 %v849
    %v1513 = vunpack.c.l.b16 %v850
    %v1514 = vunpack.c.h.b16 %v850
    %v1515 = vunpack.c.l.b16 %v851
    %v1516 = vunpack.c.h.b16 %v851
    %v1517 = vunpack.c.l.b16 %v852
    %v1518 = vunpack.c.h.b16 %v852
    %v1519 = vunpack.c.l.b16 %v853
    %v1520 = vunpack.c.h.b16 %v853
    %v1521 = vunpack.c.l.b16 %v854
    %v1522 = vunpack.c.h.b16 %v854
    %v1523 = vunpack.c.l.b16 %v855
    %v1524 = vunpack.c.h.b16 %v855
    %v1525 = vunpack.c.l.b16 %v856
    %v1526 = vunpack.c.h.b16 %v856
    %v1527 = vunpack.c.l.b16 %v857
    %v1528 = vunpack.c.h.b16 %v857
    %v1529 = vunpack.c.l.b16 %v858
    %v1530 = vunpack.c.h.b16 %v858
    %v1531 = vunpack.c.l.b16 %v859
    %v1532 = vunpack.c.h.b16 %v859
    %v1533 = vunpack.c.l.b16 %v860
    %v1534 = vunpack.c.h.b16 %v860
    %v1535 = vunpack.c.l.b16 %v861
    %v1536 = vunpack.c.h.b16 %v861
    %v1537 = vunpack.c.l.b16 %v862
    %v1538 = vunpack.c.h.b16 %v862
    %v1539 = vunpack.c.l.b16 %v863
    %v1540 = vunpack.c.h.b16 %v863
    %v1541 = vunpack.c.l.b16 %v864
    %v1542 = vunpack.c.h.b16 %v864
    %v1543 = vunpack.c.l.b16 %v865
    %v1544 = vunpack.c.h.b16 %v865
    %v1545 = vunpack.c.l.b16 %v866
    %v1546 = vunpack.c.h.b16 %v866
    %v1547 = vunpack.c.l.b16 %v867
    %v1548 = vunpack.c.h.b16 %v867
    %v1549 = vunpack.c.l.b16 %v868
    %v1550 = vunpack.c.h.b16 %v868
    %v1551 = vunpack.c.l.b16 %v869
    %v1552 = vunpack.c.h.b16 %v869
    %v1553 = vunpack.c.l.b16 %v870
    %v1554 = vunpack.c.h.b16 %v870
    %v1555 = vunpack.c.l.b16 %v871
    %v1556 = vunpack.c.h.b16 %v871
    %v1557 = vunpack.c.l.b16 %v872
    %v1558 = vunpack.c.h.b16 %v872
    %v1559 = vunpack.c.l.b16 %v873
    %v1560 = vunpack.c.h.b16 %v873
    %v1561 = vunpack.c.l.b16 %v874
    %v1562 = vunpack.c.h.b16 %v874
    %v1563 = vunpack.c.l.b16 %v875
    %v1564 = vunpack.c.h.b16 %v875
    %v1565 = vunpack.c.l.b16 %v876
    %v1566 = vunpack.c.h.b16 %v876
    %v1567 = vunpack.c.l.b16 %v877
    %v1568 = vunpack.c.h.b16 %v877
    %v1569 = vunpack.c.l.b16 %v878
    %v1570 = vunpack.c.h.b16 %v878
    %v1571 = vunpack.c.l.b16 %v879
    %v1572 = vunpack.c.h.b16 %v879
    %v1573 = vunpack.c.l.b16 %v880
    %v1574 = vunpack.c.h.b16 %v880
    %v1575 = vunpack.c.l.b16 %v881
    %v1576 = vunpack.c.h.b16 %v881
    %v1577 = vunpack.c.l.b16 %v882
    %v1578 = vunpack.c.h.b16 %v882
    %v1579 = vunpack.c.l.b16 %v883
    %v1580 = vunpack.c.h.b16 %v883
    %v1581 = vunpack.c.l.b16 %v884
    %v1582 = vunpack.c.h.b16 %v884
    %v1583 = vunpack.c.l.b16 %v885
    %v1584 = vunpack.c.h.b16 %v885
    %v1585 = vunpack.c.l.b16 %v886
    %v1586 = vunpack.c.h.b16 %v886
    %v1587 = vunpack.c.l.b16 %v887
    %v1588 = vunpack.c.h.b16 %v887
    %v1589 = vunpack.c.l.b16 %v888
    %v1590 = vunpack.c.h.b16 %v888
    %v1591 = vunpack.c.l.b16 %v889
    %v1592 = vunpack.c.h.b16 %v889
    %v1593 = vunpack.c.l.b16 %v890
    %v1594 = vunpack.c.h.b16 %v890
    %v1595 = vunpack.c.l.b16 %v891
    %v1596 = vunpack.c.h.b16 %v891
    %v1597 = vunpack.c.l.b16 %v892
    %v1598 = vunpack.c.h.b16 %v892
    %v1599 = vunpack.c.l.b16 %v893
    %v1600 = vunpack.c.h.b16 %v893
    %v1601 = vunpack.c.l.b16 %v894
    %v1602 = vunpack.c.h.b16 %v894
    %v1603 = vunpack.c.l.b16 %v895
    %v1604 = vunpack.c.h.b16 %v895
    %v1605 = vunpack.c.l.b16 %v896
    %v1606 = vunpack.c.h.b16 %v896
    %v1607 = vunpack.c.l.b16 %v897
    %v1608 = vunpack.c.h.b16 %v897
    %v1609 = vunpack.c.l.b16 %v898
    %v1610 = vunpack.c.h.b16 %v898
    %v1611 = vunpack.c.l.b16 %v899
    %v1612 = vunpack.c.h.b16 %v899
    %v1613 = vunpack.c.l.b16 %v900
    %v1614 = vunpack.c.h.b16 %v900
    %v1615 = vunpack.c.l.b16 %v901
    %v1616 = vunpack.c.h.b16 %v901
    %v1617 = vunpack.c.l.b16 %v902
    %v1618 = vunpack.c.h.b16 %v902
    %v1619 = vunpack.c.l.b16 %v903
    %v1620 = vunpack.c.h.b16 %v903
    %v1621 = vunpack.c.l.b16 %v904
    %v1622 = vunpack.c.h.b16 %v904
    %v1623 = vunpack.c.l.b16 %v905
    %v1624 = vunpack.c.h.b16 %v905
    %v1625 = vunpack.c.l.b16 %v906
    %v1626 = vunpack.c.h.b16 %v906
    %v1627 = vunpack.c.l.b16 %v907
    %v1628 = vunpack.c.h.b16 %v907
    %v1629 = vunpack.c.l.b16 %v908
    %v1630 = vunpack.c.h.b16 %v908
    %v1631 = vunpack.c.l.b16 %v909
    %v1632 = vunpack.c.h.b16 %v909
    %v1633 = vunpack.c.l.b16 %v910
    %v1634 = vunpack.c.h.b16 %v910
    %v1635 = vunpack.c.l.b16 %v911
    %v1636 = vunpack.c.h.b16 %v911
    %v1637 = vunpack.c.l.b16 %v912
    %v1638 = vunpack.c.h.b16 %v912
    %v1639 = vunpack.c.l.b16 %v913
    %v1640 = vunpack.c.h.b16 %v913
    %v1641 = vunpack.c.l.b16 %v914
    %v1642 = vunpack.c.h.b16 %v914
    %v1643 = vunpack.c.l.b16 %v915
    %v1644 = vunpack.c.h.b16 %v915
    %v1645 = vunpack.c.l.b16 %v916
    %v1646 = vunpack.c.h.b16 %v916
    %v1647 = vunpack.c.l.b16 %v917
    %v1648 = vunpack.c.h.b16 %v917
    %v1649 = vunpack.c.l.b16 %v918
    %v1650 = vunpack.c.h.b16 %v918
    %v1651 = vunpack.c.l.b16 %v919
    %v1652 = vunpack.c.h.b16 %v919
    %v1653 = vunpack.c.l.b16 %v920
    %v1654 = vunpack.c.h.b16 %v920
    %v1655 = vunpack.c.l.b16 %v921
    %v1656 = vunpack.c.h.b16 %v921
    %v1657 = vunpack.c.l.b16 %v922
    %v1658 = vunpack.c.h.b16 %v922
    %v1659 = vunpack.c.l.b16 %v923
    %v1660 = vunpack.c.h.b16 %v923
    %v1661 = vunpack.c.l.b16 %v924
    %v1662 = vunpack.c.h.b16 %v924
    %v1663 = vunpack.c.l.b16 %v925
    %v1664 = vunpack.c.h.b16 %v925
    %v1665 = vunpack.c.l.b16 %v926
    %v1666 = vunpack.c.h.b16 %v926
    %v1667 = vunpack.c.l.b16 %v927
    %v1668 = vunpack.c.h.b16 %v927
    %v1669 = vunpack.c.l.b16 %v928
    %v1670 = vunpack.c.h.b16 %v928
    %v1671 = vunpack.c.l.b16 %v929
    %v1672 = vunpack.c.h.b16 %v929
    %v1673 = vunpack.c.l.b16 %v930
    %v1674 = vunpack.c.h.b16 %v930
    %v1675 = vunpack.c.l.b16 %v931
    %v1676 = vunpack.c.h.b16 %v931
    %v1677 = vunpack.c.l.b16 %v932
    %v1678 = vunpack.c.h.b16 %v932
    %v1679 = vunpack.c.l.b16 %v933
    %v1680 = vunpack.c.h.b16 %v933
    %v1681 = vunpack.c.l.b16 %v934
    %v1682 = vunpack.c.h.b16 %v934
    %v1683 = vunpack.c.l.b16 %v935
    %v1684 = vunpack.c.h.b16 %v935
    %v1685 = vunpack.c.l.b16 %v936
    %v1686 = vunpack.c.h.b16 %v936
    %v1687 = vunpack.c.l.b16 %v937
    %v1688 = vunpack.c.h.b16 %v937
    %v1689 = vunpack.c.l.b16 %v938
    %v1690 = vunpack.c.h.b16 %v938
    %v1691 = vunpack.c.l.b16 %v939
    %v1692 = vunpack.c.h.b16 %v939
    %v1693 = vunpack.c.l.b16 %v940
    %v1694 = vunpack.c.h.b16 %v940
    %v1695 = vunpack.c.l.b16 %v941
    %v1696 = vunpack.c.h.b16 %v941
    %v1697 = vunpack.c.l.b16 %v942
    %v1698 = vunpack.c.h.b16 %v942
    %v1699 = vunpack.c.l.b16 %v943
    %v1700 = vunpack.c.h.b16 %v943
    %v1701 = vunpack.c.l.b16 %v944
    %v1702 = vunpack.c.h.b16 %v944
    %v1703 = vunpack.c.l.b16 %v945
    %v1704 = vunpack.c.h.b16 %v945
    %v1705 = vunpack.c.l.b16 %v946
    %v1706 = vunpack.c.h.b16 %v946
    %v1707 = vunpack.c.l.b16 %v947
    %v1708 = vunpack.c.h.b16 %v947
    %v1709 = vunpack.c.l.b16 %v948
    %v1710 = vunpack.c.h.b16 %v948
    %v1711 = vunpack.c.l.b16 %v949
    %v1712 = vunpack.c.h.b16 %v949
    %v1713 = vunpack.c.l.b16 %v950
    %v1714 = vunpack.c.h.b16 %v950
    %v1715 = vunpack.c.l.b16 %v951
    %v1716 = vunpack.c.h.b16 %v951
    %v1717 = vunpack.c.l.b16 %v952
    %v1718 = vunpack.c.h.b16 %v952
    %v1719 = vunpack.c.l.b16 %v953
    %v1720 = vunpack.c.h.b16 %v953
    %v1721 = vunpack.c.l.b16 %v954
    %v1722 = vunpack.c.h.b16 %v954
    %v1723 = vunpack.c.l.b16 %v955
    %v1724 = vunpack.c.h.b16 %v955
    %v1725 = vunpack.c.l.b16 %v956
    %v1726 = vunpack.c.h.b16 %v956
    %v1727 = vunpack.c.l.b16 %v957
    %v1728 = vunpack.c.h.b16 %v957
    %v1729 = vunpack.c.l.b16 %v958
    %v1730 = vunpack.c.h.b16 %v958
    %v1731 = vunpack.c.l.b16 %v959
    %v1732 = vunpack.c.h.b16 %v959
    %v1733 = vunpack.c.l.b16 %v960
    %v1734 = vunpack.c.h.b16 %v960
    %v1735 = vunpack.c.l.b16 %v961
    %v1736 = vunpack.c.h.b16 %v961
    %v1737 = vunpack.c.l.b16 %v962
    %v1738 = vunpack.c.h.b16 %v962
    %v1739 = vunpack.c.l.b16 %v963
    %v1740 = vunpack.c.h.b16 %v963
    %v1741 = vunpack.c.l.b16 %v964
    %v1742 = vunpack.c.h.b16 %v964
    %v1743 = vunpack.c.l.b16 %v965
    %v1744 = vunpack.c.h.b16 %v965
    %v1745 = vunpack.c.l.b16 %v966
    %v1746 = vunpack.c.h.b16 %v966
    %v1747 = vunpack.c.l.b16 %v967
    %v1748 = vunpack.c.h.b16 %v967
    %v1749 = vunpack.c.l.b16 %v968
    %v1750 = vunpack.c.h.b16 %v968
    %v1751 = vunpack.c.l.b16 %v969
    %v1752 = vunpack.c.h.b16 %v969
    %v1753 = vunpack.c.l.b16 %v970
    %v1754 = vunpack.c.h.b16 %v970
    %v1755 = vunpack.c.l.b16 %v971
    %v1756 = vunpack.c.h.b16 %v971
    %v1757 = vunpack.c.l.b16 %v972
    %v1758 = vunpack.c.h.b16 %v972
    %v1759 = vunpack.c.l.b16 %v973
    %v1760 = vunpack.c.h.b16 %v973
    %v1761 = vunpack.c.l.b16 %v974
    %v1762 = vunpack.c.h.b16 %v974
    %v1763 = vunpack.c.l.b16 %v975
    %v1764 = vunpack.c.h.b16 %v975
    %v1765 = vunpack.c.l.b16 %v976
    %v1766 = vunpack.c.h.b16 %v976
    %v1767 = vunpack.c.l.b16 %v977
    %v1768 = vunpack.c.h.b16 %v977
    %v1769 = vunpack.c.l.b16 %v978
    %v1770 = vunpack.c.h.b16 %v978
    %v1771 = vunpack.c.l.b16 %v979
    %v1772 = vunpack.c.h.b16 %v979
    %v1773 = vunpack.c.l.b16 %v980
    %v1774 = vunpack.c.h.b16 %v980
    %v1775 = vunpack.c.l.b16 %v981
    %v1776 = vunpack.c.h.b16 %v981
    %v1777 = vunpack.c.l.b16 %v982
    %v1778 = vunpack.c.h.b16 %v982
    %v1779 = vunpack.c.l.b16 %v983
    %v1780 = vunpack.c.h.b16 %v983
    %v1781 = vunpack.c.l.b16 %v984
    %v1782 = vunpack.c.h.b16 %v984
    %v1783 = vunpack.c.l.b16 %v985
    %v1784 = vunpack.c.h.b16 %v985
    %v1785 = vunpack.c.l.b16 %v986
    %v1786 = vunpack.c.h.b16 %v986
    %v1787 = vunpack.c.l.b16 %v987
    %v1788 = vunpack.c.h.b16 %v987
    %v1789 = vunpack.c.l.b16 %v988
    %v1790 = vunpack.c.h.b16 %v988
    %v1791 = vunpack.c.l.b16 %v989
    %v1792 = vunpack.c.h.b16 %v989
    %v1793 = vunpack.c.l.b16 %v990
    %v1794 = vunpack.c.h.b16 %v990
    %v1795 = vunpack.c.l.b16 %v991
    %v1796 = vunpack.c.h.b16 %v991
    %v1797 = vunpack.c.l.b16 %v992
    %v1798 = vunpack.c.h.b16 %v992
    %v1799 = vunpack.c.l.b16 %v993
    %v1800 = vunpack.c.h.b16 %v993
    %v1801 = vunpack.c.l.b16 %v994
    %v1802 = vunpack.c.h.b16 %v994
    %v1803 = vunpack.c.l.b16 %v995
    %v1804 = vunpack.c.h.b16 %v995
    %v1805 = vunpack.c.l.b16 %v996
    %v1806 = vunpack.c.h.b16 %v996
    %v1807 = vpack.c.b16 %v1303, %v1295
    %v1808 = vpack.c.b16 %v1304, %v1296
    %v1809 = vpack.c.b16 %v1305, %v1297
    %v1810 = vpack.c.b16 %v1306, %v1298
    %v1811 = vpack.c.b16 %v1307, %v1299
    %v1812 = vpack.c.b16 %v1308, %v1300
    %v1813 = vpack.c.b16 %v1309, %v1301
    %v1814 = vpack.c.b16 %v1310, %v1302
    %v1815 = vpack.c.b16 %v1319, %v1311
    %v1816 = vpack.c.b16 %v1320, %v1312
    %v1817 = vpack.c.b16 %v1321, %v1313
    %v1818 = vpack.c.b16 %v1322, %v1314
    %v1819 = vpack.c.b16 %v1323, %v1315
    %v1820 = vpack.c.b16 %v1324, %v1316
    %v1821 = vpack.c.b16 %v1325, %v1317
    %v1822 = vpack.c.b16 %v1326, %v1318
    %v1823 = vpack.c.b16 %v1335, %v1327
    %v1824 = vpack.c.b16 %v1336, %v1328
    %v1825 = vpack.c.b16 %v1337, %v1329
    %v1826 = vpack.c.b16 %v1338, %v1330
    %v1827 = vpack.c.b16 %v1339, %v1331
    %v1828 = vpack.c.b16 %v1340, %v1332
    %v1829 = vpack.c.b16 %v1341, %v1333
    %v1830 = vpack.c.b16 %v1342, %v1334
    %v1831 = vpack.c.b16 %v1351, %v1343
    %v1832 = vpack.c.b16 %v1352, %v1344
    %v1833 = vpack.c.b16 %v1353, %v1345
    %v1834 = vpack.c.b16 %v1354, %v1346
    %v1835 = vpack.c.b16 %v1355, %v1347
    %v1836 = vpack.c.b16 %v1356, %v1348
    %v1837 = vpack.c.b16 %v1357, %v1349
    %v1838 = vpack.c.b16 %v1358, %v1350
    %v1839 = vpack.c.b16 %v1367, %v1359
    %v1840 = vpack.c.b16 %v1368, %v1360
    %v1841 = vpack.c.b16 %v1369, %v1361
    %v1842 = vpack.c.b16 %v1370, %v1362
    %v1843 = vpack.c.b16 %v1371, %v1363
    %v1844 = vpack.c.b16 %v1372, %v1364
    %v1845 = vpack.c.b16 %v1373, %v1365
    %v1846 = vpack.c.b16 %v1374, %v1366
    %v1847 = vpack.c.b16 %v1383, %v1375
    %v1848 = vpack.c.b16 %v1384, %v1376
    %v1849 = vpack.c.b16 %v1385, %v1377
    %v1850 = vpack.c.b16 %v1386, %v1378
    %v1851 = vpack.c.b16 %v1387, %v1379
    %v1852 = vpack.c.b16 %v1388, %v1380
    %v1853 = vpack.c.b16 %v1389, %v1381
    %v1854 = vpack.c.b16 %v1390, %v1382
    %v1855 = vpack.c.b16 %v1399, %v1391
    %v1856 = vpack.c.b16 %v1400, %v1392
    %v1857 = vpack.c.b16 %v1401, %v1393
    %v1858 = vpack.c.b16 %v1402, %v1394
    %v1859 = vpack.c.b16 %v1403, %v1395
    %v1860 = vpack.c.b16 %v1404, %v1396
    %v1861 = vpack.c.b16 %v1405, %v1397
    %v1862 = vpack.c.b16 %v1406, %v1398
    %v1863 = vpack.c.b16 %v1415, %v1407
    %v1864 = vpack.c.b16 %v1416, %v1408
    %v1865 = vpack.c.b16 %v1417, %v1409
    %v1866 = vpack.c.b16 %v1418, %v1410
    %v1867 = vpack.c.b16 %v1419, %v1411
    %v1868 = vpack.c.b16 %v1420, %v1412
    %v1869 = vpack.c.b16 %v1421, %v1413
    %v1870 = vpack.c.b16 %v1422, %v1414
    %v1871 = vpack.c.b16 %v1431, %v1423
    %v1872 = vpack.c.b16 %v1432, %v1424
    %v1873 = vpack.c.b16 %v1433, %v1425
    %v1874 = vpack.c.b16 %v1434, %v1426
    %v1875 = vpack.c.b16 %v1435, %v1427
    %v1876 = vpack.c.b16 %v1436, %v1428
    %v1877 = vpack.c.b16 %v1437, %v1429
    %v1878 = vpack.c.b16 %v1438, %v1430
    %v1879 = vpack.c.b16 %v1447, %v1439
    %v1880 = vpack.c.b16 %v1448, %v1440
    %v1881 = vpack.c.b16 %v1449, %v1441
    %v1882 = vpack.c.b16 %v1450, %v1442
    %v1883 = vpack.c.b16 %v1451, %v1443
    %v1884 = vpack.c.b16 %v1452, %v1444
    %v1885 = vpack.c.b16 %v1453, %v1445
    %v1886 = vpack.c.b16 %v1454, %v1446
    %v1887 = vpack.c.b16 %v1463, %v1455
    %v1888 = vpack.c.b16 %v1464, %v1456
    %v1889 = vpack.c.b16 %v1465, %v1457
    %v1890 = vpack.c.b16 %v1466, %v1458
    %v1891 = vpack.c.b16 %v1467, %v1459
    %v1892 = vpack.c.b16 %v1468, %v1460
    %v1893 = vpack.c.b16 %v1469, %v1461
    %v1894 = vpack.c.b16 %v1470, %v1462
    %v1895 = vpack.c.b16 %v1479, %v1471
    %v1896 = vpack.c.b16 %v1480, %v1472
    %v1897 = vpack.c.b16 %v1481, %v1473
    %v1898 = vpack.c.b16 %v1482, %v1474
    %v1899 = vpack.c.b16 %v1483, %v1475
    %v1900 = vpack.c.b16 %v1484, %v1476
    %v1901 = vpack.c.b16 %v1485, %v1477
    %v1902 = vpack.c.b16 %v1486, %v1478
    %v1903 = vpack.c.b16 %v1495, %v1487
    %v1904 = vpack.c.b16 %v1496, %v1488
    %v1905 = vpack.c.b16 %v1497, %v1489
    %v1906 = vpack.c.b16 %v1498, %v1490
    %v1907 = vpack.c.b16 %v1499, %v1491
    %v1908 = vpack.c.b16 %v1500, %v1492
    %v1909 = vpack.c.b16 %v1501, %v1493
    %v1910 = vpack.c.b16 %v1502, %v1494
    %v1911 = vpack.c.b16 %v1511, %v1503
    %v1912 = vpack.c.b16 %v1512, %v1504
    %v1913 = vpack.c.b16 %v1513, %v1505
    %v1914 = vpack.c.b16 %v1514, %v1506
    %v1915 = vpack.c.b16 %v1515, %v1507
    %v1916 = vpack.c.b16 %v1516, %v1508
    %v1917 = vpack.c.b16 %v1517, %v1509
    %v1918 = vpack.c.b16 %v1518, %v1510
    %v1919 = vpack.c.b16 %v1527, %v1519
    %v1920 = vpack.c.b16 %v1528, %v1520
    %v1921 = vpack.c.b16 %v1529, %v1521
    %v1922 = vpack.c.b16 %v1530, %v1522
    %v1923 = vpack.c.b16 %v1531, %v1523
    %v1924 = vpack.c.b16 %v1532, %v1524
    %v1925 = vpack.c.b16 %v1533, %v1525
    %v1926 = vpack.c.b16 %v1534, %v1526
    %v1927 = vpack.c.b16 %v1543, %v1535
    %v1928 = vpack.c.b16 %v1544, %v1536
    %v1929 = vpack.c.b16 %v1545, %v1537
    %v1930 = vpack.c.b16 %v1546, %v1538
    %v1931 = vpack.c.b16 %v1547, %v1539
    %v1932 = vpack.c.b16 %v1548, %v1540
    %v1933 = vpack.c.b16 %v1549, %v1541
    %v1934 = vpack.c.b16 %v1550, %v1542
    %v1935 = vpack.c.b16 %v1559, %v1551
    %v1936 = vpack.c.b16 %v1560, %v1552
    %v1937 = vpack.c.b16 %v1561, %v1553
    %v1938 = vpack.c.b16 %v1562, %v1554
    %v1939 = vpack.c.b16 %v1563, %v1555
    %v1940 = vpack.c.b16 %v1564, %v1556
    %v1941 = vpack.c.b16 %v1565, %v1557
    %v1942 = vpack.c.b16 %v1566, %v1558
    %v1943 = vpack.c.b16 %v1575, %v1567
    %v1944 = vpack.c.b16 %v1576, %v1568
    %v1945 = vpack.c.b16 %v1577, %v1569
    %v1946 = vpack.c.b16 %v1578, %v1570
    %v1947 = vpack.c.b16 %v1579, %v1571
    %v1948 = vpack.c.b16 %v1580, %v1572
    %v1949 = vpack.c.b16 %v1581, %v1573
    %v1950 = vpack.c.b16 %v1582, %v1574
    %v1951 = vpack.c.b16 %v1591, %v1583
    %v1952 = vpack.c.b16 %v1592, %v1584
    %v1953 = vpack.c.b16 %v1593, %v1585
    %v1954 = vpack.c.b16 %v1594, %v1586
    %v1955 = vpack.c.b16 %v1595, %v1587
    %v1956 = vpack.c.b16 %v1596, %v1588
    %v1957 = vpack.c.b16 %v1597, %v1589
    %v1958 = vpack.c.b16 %v1598, %v1590
    %v1959 = vpack.c.b16 %v1607, %v1599
    %v1960 = vpack.c.b16 %v1608, %v1600
    %v1961 = vpack.c.b16 %v1609, %v1601
    %v1962 = vpack.c.b16 %v1610, %v1602
    %v1963 = vpack.c.b16 %v1611, %v1603
    %v1964 = vpack.c.b16 %v1612, %v1604
    %v1965 = vpack.c.b16 %v1613, %v1605
    %v1966 = vpack.c.b16 %v1614, %v1606
    %v1967 = vpack.c.b16 %v1623, %v1615
    %v1968 = vpack.c.b16 %v1624, %v1616
    %v1969 = vpack.c.b16 %v1625, %v1617
    %v1970 = vpack.c.b16 %v1626, %v1618
    %v1971 = vpack.c.b16 %v1627, %v1619
    %v1972 = vpack.c.b16 %v1628, %v1620
    %v1973 = vpack.c.b16 %v1629, %v1621
    %v1974 = vpack.c.b16 %v1630, %v1622
    %v1975 = vpack.c.b16 %v1639, %v1631
    %v1976 = vpack.c.b16 %v1640, %v1632
    %v1977 = vpack.c.b16 %v1641, %v1633
    %v1978 = vpack.c.b16 %v1642, %v1634
    %v1979 = vpack.c.b16 %v1643, %v1635
    %v1980 = vpack.c.b16 %v1644, %v1636
    %v1981 = vpack.c.b16 %v1645, %v1637
    %v1982 = vpack.c.b16 %v1646, %v1638
    %v1983 = vpack.c.b16 %v1655, %v1647
    %v1984 = vpack.c.b16 %v1656, %v1648
    %v1985 = vpack.c.b16 %v1657, %v1649
    %v1986 = vpack.c.b16 %v1658, %v1650
    %v1987 = vpack.c.b16 %v1659, %v1651
    %v1988 = vpack.c.b16 %v1660, %v1652
    %v1989 = vpack.c.b16 %v1661, %v1653
    %v1990 = vpack.c.b16 %v1662, %v1654
    %v1991 = vpack.c.b16 %v1671, %v1663
    %v1992 = vpack.c.b16 %v1672, %v1664
    %v1993 = vpack.c.b16 %v1673, %v1665
    %v1994 = vpack.c.b16 %v1674, %v1666
    %v1995 = vpack.c.b16 %v1675, %v1667
    %v1996 = vpack.c.b16 %v1676, %v1668
    %v1997 = vpack.c.b16 %v1677, %v1669
    %v1998 = vpack.c.b16 %v1678, %v1670
    %v1999 = vpack.c.b16 %v1687, %v1679
    %v2000 = vpack.c.b16 %v1688, %v1680
    %v2001 = vpack.c.b16 %v1689, %v1681
    %v2002 = vpack.c.b16 %v1690, %v1682
    %v2003 = vpack.c.b16 %v1691, %v1683
    %v2004 = vpack.c.b16 %v1692, %v1684
    %v2005 = vpack.c.b16 %v1693, %v1685
    %v2006 = vpack.c.b16 %v1694, %v1686
    %v2007 = vpack.c.b16 %v1703, %v1695
    %v2008 = vpack.c.b16 %v1704, %v1696
    %v2009 = vpack.c.b16 %v1705, %v1697
    %v2010 = vpack.c.b16 %v1706, %v1698
    %v2011 = vpack.c.b16 %v1707, %v1699
    %v2012 = vpack.c.b16 %v1708, %v1700
    %v2013 = vpack.c.b16 %v1709, %v1701
    %v2014 = vpack.c.b16 %v1710, %v1702
    %v2015 = vpack.c.b16 %v1719, %v1711
    %v2016 = vpack.c.b16 %v1720, %v1712
    %v2017 = vpack.c.b16 %v1721, %v1713
    %v2018 = vpack.c.b16 %v1722, %v1714
    %v2019 = vpack.c.b16 %v1723, %v1715
    %v2020 = vpack.c.b16 %v1724, %v1716
    %v2021 = vpack.c.b16 %v1725, %v1717
    %v2022 = vpack.c.b16 %v1726, %v1718
    %v2023 = vpack.c.b16 %v1735, %v1727
    %v2024 = vpack.c.b16 %v1736, %v1728
    %v2025 = vpack.c.b16 %v1737, %v1729
    %v2026 = vpack.c.b16 %v1738, %v1730
    %v2027 = vpack.c.b16 %v1739, %v1731
    %v2028 = vpack.c.b16 %v1740, %v1732
    %v2029 = vpack.c.b16 %v1741, %v1733
    %v2030 = vpack.c.b16 %v1742, %v1734
    %v2031 = vpack.c.b16 %v1751, %v1743
    %v2032 = vpack.c.b16 %v1752, %v1744
    %v2033 = vpack.c.b16 %v1753, %v1745
    %v2034 = vpack.c.b16 %v1754, %v1746
    %v2035 = vpack.c.b16 %v1755, %v1747
    %v2036 = vpack.c.b16 %v1756, %v1748
    %v2037 = vpack.c.b16 %v1757, %v1749
    %v2038 = vpack.c.b16 %v1758, %v1750
    %v2039 = vpack.c.b16 %v1767, %v1759
    %v2040 = vpack.c.b16 %v1768, %v1760
    %v2041 = vpack.c.b16 %v1769, %v1761
    %v2042 = vpack.c.b16 %v1770, %v1762
    %v2043 = vpack.c.b16 %v1771, %v1763
    %v2044 = vpack.c.b16 %v1772, %v1764
    %v2045 = vpack.c.b16 %v1773, %v1765
    %v2046 = vpack.c.b16 %v1774, %v1766
    %v2047 = vpack.c.b16 %v1783, %v1775
    %v2048 = vpack.c.b16 %v1784, %v1776
    %v2049 = vpack.c.b16 %v1785, %v1777
    %v2050 = vpack.c.b16 %v1786, %v1778
    %v2051 = vpack.c.b16 %v1787, %v1779
    %v2052 = vpack.c.b16 %v1788, %v1780
    %v2053 = vpack.c.b16 %v1789, %v1781
    %v2054 = vpack.c.b16 %v1790, %v1782
    %v2055 = vpack.c.b16 %v1799, %v1791
    %v2056 = vpack.c.b16 %v1800, %v1792
    %v2057 = vpack.c.b16 %v1801, %v1793
    %v2058 = vpack.c.b16 %v1802, %v1794
    %v2059 = vpack.c.b16 %v1803, %v1795
    %v2060 = vpack.c.b16 %v1804, %v1796
    %v2061 = vpack.c.b16 %v1805, %v1797
    %v2062 = vpack.c.b16 %v1806, %v1798
    %2319 = vmatprep.subr.bf16.mxu0 %v1864
    %2320 = vmatpush1.bf16.msra.mxu0 %v1863
    %2321 = vmatprep.subr.bf16.mxu0 %v1856
    %2322 = vmatpush1.bf16.msra.mxu0 %v1855
    %2323 = vmatprep.subr.bf16.mxu0 %v1848
    %2324 = vmatpush1.bf16.msra.mxu0 %v1847
    %2325 = vmatprep.subr.bf16.mxu0 %v1840
    %2326 = vmatpush1.bf16.msra.mxu0 %v1839
    %2327 = vmatprep.subr.bf16.mxu0 %v1832
    %2328 = vmatpush1.bf16.msra.mxu0 %v1831
    %2329 = vmatprep.subr.bf16.mxu0 %v1824
    %2330 = vmatpush1.bf16.msra.mxu0 %v1823
    %2331 = vmatprep.subr.bf16.mxu0 %v1816
    %2332 = vmatpush1.bf16.msra.mxu0 %v1815
    %2333 = vmatprep.subr.bf16.mxu0 %v1808
    %2334 = vmatpush1.bf16.msra.mxu0 %v1807
    %2335 = vmatprep.subr.bf16.mxu0 %v1928
    %2336 = vmatpush2.bf16.msra.mxu0 %v1927
    %2337 = vmatprep.subr.bf16.mxu0 %v1920
    %2338 = vmatpush2.bf16.msra.mxu0 %v1919
    %2339 = vmatprep.subr.bf16.mxu0 %v1912
    %2340 = vmatpush2.bf16.msra.mxu0 %v1911
    %2341 = vmatprep.subr.bf16.mxu0 %v1904
    %2342 = vmatpush2.bf16.msra.mxu0 %v1903
    %2343 = vmatprep.subr.bf16.mxu0 %v1896
    %2344 = vmatpush2.bf16.msra.mxu0 %v1895
    %2345 = vmatprep.subr.bf16.mxu0 %v1888
    %2346 = vmatpush2.bf16.msra.mxu0 %v1887
    %2347 = vmatprep.subr.bf16.mxu0 %v1880
    %2348 = vmatpush2.bf16.msra.mxu0 %v1879
    %2349 = vmatprep.subr.bf16.mxu0 %v1872
    %2350 = vmatpush2.bf16.msra.mxu0 %v1871
    %2351 = vmatprep.mubr.bf16.mxu0 %v738
    %2352 = vmatmul.mubr.bf16.gmra.mxu0 %v737
    %v2353 = vpop.f32.mrf.mxu0
    %v2354 = vadd.f32 %v1002, %v2353
    %v2355 = vpop.f32.mrf.mxu0
    %v2356 = vadd.f32 %v1006, %v2355
    %v2357 = vpop.f32.mrf.mxu0
    %v2358 = vpop.f32.mrf.mxu0
    %2359 = vdwg.mxu0
    %2360 = vmatprep.subr.bf16.mxu0 %v1992
    %2361 = vmatpush1.bf16.msra.mxu0 %v1991
    %2362 = vmatprep.subr.bf16.mxu0 %v1984
    %2363 = vmatpush1.bf16.msra.mxu0 %v1983
    %2364 = vmatprep.subr.bf16.mxu0 %v1976
    %2365 = vmatpush1.bf16.msra.mxu0 %v1975
    %2366 = vmatprep.subr.bf16.mxu0 %v1968
    %2367 = vmatpush1.bf16.msra.mxu0 %v1967
    %2368 = vmatprep.subr.bf16.mxu0 %v1960
    %2369 = vmatpush1.bf16.msra.mxu0 %v1959
    %2370 = vmatprep.subr.bf16.mxu0 %v1952
    %2371 = vmatpush1.bf16.msra.mxu0 %v1951
    %2372 = vmatprep.subr.bf16.mxu0 %v1944
    %2373 = vmatpush1.bf16.msra.mxu0 %v1943
    %2374 = vmatprep.subr.bf16.mxu0 %v1936
    %2375 = vmatpush1.bf16.msra.mxu0 %v1935
    %2376 = vmatprep.subr.bf16.mxu0 %v2056
    %2377 = vmatpush2.bf16.msra.mxu0 %v2055
    %2378 = vmatprep.subr.bf16.mxu0 %v2048
    %2379 = vmatpush2.bf16.msra.mxu0 %v2047
    %2380 = vmatprep.subr.bf16.mxu0 %v2040
    %2381 = vmatpush2.bf16.msra.mxu0 %v2039
    %2382 = vmatprep.subr.bf16.mxu0 %v2032
    %2383 = vmatpush2.bf16.msra.mxu0 %v2031
    %2384 = vmatprep.subr.bf16.mxu0 %v2024
    %2385 = vmatpush2.bf16.msra.mxu0 %v2023
    %2386 = vmatprep.subr.bf16.mxu0 %v2016
    %2387 = vmatpush2.bf16.msra.mxu0 %v2015
    %2388 = vmatprep.subr.bf16.mxu0 %v2008
    %2389 = vmatpush2.bf16.msra.mxu0 %v2007
    %2390 = vmatprep.subr.bf16.mxu0 %v2000
    %2391 = vmatpush2.bf16.msra.mxu0 %v1999
    %2392 = vmatprep.mubr.bf16.mxu0 %v740
    %2393 = vmatmul.mubr.bf16.gmra.mxu0 %v739
    %v2394 = vpop.f32.mrf.mxu0
    %v2395 = vadd.f32 %v2354, %v2394
    %v2396 = vpop.f32.mrf.mxu0
    %v2397 = vadd.f32 %v2356, %v2396
    %v2398 = vpop.f32.mrf.mxu0
    %v2399 = vpop.f32.mrf.mxu0
    %2400 = vdwg.mxu0
    %2401 = vmatprep.subr.bf16.mxu0 %v1866
    %2402 = vmatpush1.bf16.msra.mxu0 %v1865
    %2403 = vmatprep.subr.bf16.mxu0 %v1858
    %2404 = vmatpush1.bf16.msra.mxu0 %v1857
    %2405 = vmatprep.subr.bf16.mxu0 %v1850
    %2406 = vmatpush1.bf16.msra.mxu0 %v1849
    %2407 = vmatprep.subr.bf16.mxu0 %v1842
    %2408 = vmatpush1.bf16.msra.mxu0 %v1841
    %2409 = vmatprep.subr.bf16.mxu0 %v1834
    %2410 = vmatpush1.bf16.msra.mxu0 %v1833
    %2411 = vmatprep.subr.bf16.mxu0 %v1826
    %2412 = vmatpush1.bf16.msra.mxu0 %v1825
    %2413 = vmatprep.subr.bf16.mxu0 %v1818
    %2414 = vmatpush1.bf16.msra.mxu0 %v1817
    %2415 = vmatprep.subr.bf16.mxu0 %v1810
    %2416 = vmatpush1.bf16.msra.mxu0 %v1809
    %2417 = vmatprep.subr.bf16.mxu0 %v1930
    %2418 = vmatpush2.bf16.msra.mxu0 %v1929
    %2419 = vmatprep.subr.bf16.mxu0 %v1922
    %2420 = vmatpush2.bf16.msra.mxu0 %v1921
    %2421 = vmatprep.subr.bf16.mxu0 %v1914
    %2422 = vmatpush2.bf16.msra.mxu0 %v1913
    %2423 = vmatprep.subr.bf16.mxu0 %v1906
    %2424 = vmatpush2.bf16.msra.mxu0 %v1905
    %2425 = vmatprep.subr.bf16.mxu0 %v1898
    %2426 = vmatpush2.bf16.msra.mxu0 %v1897
    %2427 = vmatprep.subr.bf16.mxu0 %v1890
    %2428 = vmatpush2.bf16.msra.mxu0 %v1889
    %2429 = vmatprep.subr.bf16.mxu0 %v1882
    %2430 = vmatpush2.bf16.msra.mxu0 %v1881
    %2431 = vmatprep.subr.bf16.mxu0 %v1874
    %2432 = vmatpush2.bf16.msra.mxu0 %v1873
    %2433 = vmatprep.mubr.bf16.mxu0 %v738
    %2434 = vmatmul.mubr.bf16.gmra.mxu0 %v737
    %v2435 = vpop.f32.mrf.mxu0
    %v2436 = vadd.f32 %v1010, %v2435
    %v2437 = vpop.f32.mrf.mxu0
    %v2438 = vadd.f32 %v1014, %v2437
    %v2439 = vpop.f32.mrf.mxu0
    %v2440 = vpop.f32.mrf.mxu0
    %2441 = vdwg.mxu0
    %2442 = vmatprep.subr.bf16.mxu0 %v1994
    %2443 = vmatpush1.bf16.msra.mxu0 %v1993
    %2444 = vmatprep.subr.bf16.mxu0 %v1986
    %2445 = vmatpush1.bf16.msra.mxu0 %v1985
    %2446 = vmatprep.subr.bf16.mxu0 %v1978
    %2447 = vmatpush1.bf16.msra.mxu0 %v1977
    %2448 = vmatprep.subr.bf16.mxu0 %v1970
    %2449 = vmatpush1.bf16.msra.mxu0 %v1969
    %2450 = vmatprep.subr.bf16.mxu0 %v1962
    %2451 = vmatpush1.bf16.msra.mxu0 %v1961
    %2452 = vmatprep.subr.bf16.mxu0 %v1954
    %2453 = vmatpush1.bf16.msra.mxu0 %v1953
    %2454 = vmatprep.subr.bf16.mxu0 %v1946
    %2455 = vmatpush1.bf16.msra.mxu0 %v1945
    %2456 = vmatprep.subr.bf16.mxu0 %v1938
    %2457 = vmatpush1.bf16.msra.mxu0 %v1937
    %2458 = vmatprep.subr.bf16.mxu0 %v2058
    %2459 = vmatpush2.bf16.msra.mxu0 %v2057
    %2460 = vmatprep.subr.bf16.mxu0 %v2050
    %2461 = vmatpush2.bf16.msra.mxu0 %v2049
    %2462 = vmatprep.subr.bf16.mxu0 %v2042
    %2463 = vmatpush2.bf16.msra.mxu0 %v2041
    %2464 = vmatprep.subr.bf16.mxu0 %v2034
    %2465 = vmatpush2.bf16.msra.mxu0 %v2033
    %2466 = vmatprep.subr.bf16.mxu0 %v2026
    %2467 = vmatpush2.bf16.msra.mxu0 %v2025
    %2468 = vmatprep.subr.bf16.mxu0 %v2018
    %2469 = vmatpush2.bf16.msra.mxu0 %v2017
    %2470 = vmatprep.subr.bf16.mxu0 %v2010
    %2471 = vmatpush2.bf16.msra.mxu0 %v2009
    %2472 = vmatprep.subr.bf16.mxu0 %v2002
    %2473 = vmatpush2.bf16.msra.mxu0 %v2001
    %2474 = vmatprep.mubr.bf16.mxu0 %v740
    %2475 = vmatmul.mubr.bf16.gmra.mxu0 %v739
    %v2476 = vpop.f32.mrf.mxu0
    %v2477 = vadd.f32 %v2436, %v2476
    %v2478 = vpop.f32.mrf.mxu0
    %v2479 = vadd.f32 %v2438, %v2478
    %v2480 = vpop.f32.mrf.mxu0
    %v2481 = vpop.f32.mrf.mxu0
    %2482 = vdwg.mxu0
    %2483 = vmatprep.subr.bf16.mxu0 %v1868
    %2484 = vmatpush1.bf16.msra.mxu0 %v1867
    %2485 = vmatprep.subr.bf16.mxu0 %v1860
    %2486 = vmatpush1.bf16.msra.mxu0 %v1859
    %2487 = vmatprep.subr.bf16.mxu0 %v1852
    %2488 = vmatpush1.bf16.msra.mxu0 %v1851
    %2489 = vmatprep.subr.bf16.mxu0 %v1844
    %2490 = vmatpush1.bf16.msra.mxu0 %v1843
    %2491 = vmatprep.subr.bf16.mxu0 %v1836
    %2492 = vmatpush1.bf16.msra.mxu0 %v1835
    %2493 = vmatprep.subr.bf16.mxu0 %v1828
    %2494 = vmatpush1.bf16.msra.mxu0 %v1827
    %2495 = vmatprep.subr.bf16.mxu0 %v1820
    %2496 = vmatpush1.bf16.msra.mxu0 %v1819
    %2497 = vmatprep.subr.bf16.mxu0 %v1812
    %2498 = vmatpush1.bf16.msra.mxu0 %v1811
    %2499 = vmatprep.subr.bf16.mxu0 %v1932
    %2500 = vmatpush2.bf16.msra.mxu0 %v1931
    %2501 = vmatprep.subr.bf16.mxu0 %v1924
    %2502 = vmatpush2.bf16.msra.mxu0 %v1923
    %2503 = vmatprep.subr.bf16.mxu0 %v1916
    %2504 = vmatpush2.bf16.msra.mxu0 %v1915
    %2505 = vmatprep.subr.bf16.mxu0 %v1908
    %2506 = vmatpush2.bf16.msra.mxu0 %v1907
    %2507 = vmatprep.subr.bf16.mxu0 %v1900
    %2508 = vmatpush2.bf16.msra.mxu0 %v1899
    %2509 = vmatprep.subr.bf16.mxu0 %v1892
    %2510 = vmatpush2.bf16.msra.mxu0 %v1891
    %2511 = vmatprep.subr.bf16.mxu0 %v1884
    %2512 = vmatpush2.bf16.msra.mxu0 %v1883
    %2513 = vmatprep.subr.bf16.mxu0 %v1876
    %2514 = vmatpush2.bf16.msra.mxu0 %v1875
    %2515 = vmatprep.mubr.bf16.mxu0 %v738
    %2516 = vmatmul.mubr.bf16.gmra.mxu0 %v737
    %v2517 = vpop.f32.mrf.mxu0
    %v2518 = vadd.f32 %v1018, %v2517
    %v2519 = vpop.f32.mrf.mxu0
    %v2520 = vadd.f32 %v1022, %v2519
    %v2521 = vpop.f32.mrf.mxu0
    %v2522 = vpop.f32.mrf.mxu0
    %2523 = vdwg.mxu0
    %2524 = vmatprep.subr.bf16.mxu0 %v1996
    %2525 = vmatpush1.bf16.msra.mxu0 %v1995
    %2526 = vmatprep.subr.bf16.mxu0 %v1988
    %2527 = vmatpush1.bf16.msra.mxu0 %v1987
    %2528 = vmatprep.subr.bf16.mxu0 %v1980
    %2529 = vmatpush1.bf16.msra.mxu0 %v1979
    %2530 = vmatprep.subr.bf16.mxu0 %v1972
    %2531 = vmatpush1.bf16.msra.mxu0 %v1971
    %2532 = vmatprep.subr.bf16.mxu0 %v1964
    %2533 = vmatpush1.bf16.msra.mxu0 %v1963
    %2534 = vmatprep.subr.bf16.mxu0 %v1956
    %2535 = vmatpush1.bf16.msra.mxu0 %v1955
    %2536 = vmatprep.subr.bf16.mxu0 %v1948
    %2537 = vmatpush1.bf16.msra.mxu0 %v1947
    %2538 = vmatprep.subr.bf16.mxu0 %v1940
    %2539 = vmatpush1.bf16.msra.mxu0 %v1939
    %2540 = vmatprep.subr.bf16.mxu0 %v2060
    %2541 = vmatpush2.bf16.msra.mxu0 %v2059
    %2542 = vmatprep.subr.bf16.mxu0 %v2052
    %2543 = vmatpush2.bf16.msra.mxu0 %v2051
    %2544 = vmatprep.subr.bf16.mxu0 %v2044
    %2545 = vmatpush2.bf16.msra.mxu0 %v2043
    %2546 = vmatprep.subr.bf16.mxu0 %v2036
    %2547 = vmatpush2.bf16.msra.mxu0 %v2035
    %2548 = vmatprep.subr.bf16.mxu0 %v2028
    %2549 = vmatpush2.bf16.msra.mxu0 %v2027
    %2550 = vmatprep.subr.bf16.mxu0 %v2020
    %2551 = vmatpush2.bf16.msra.mxu0 %v2019
    %2552 = vmatprep.subr.bf16.mxu0 %v2012
    %2553 = vmatpush2.bf16.msra.mxu0 %v2011
    %2554 = vmatprep.subr.bf16.mxu0 %v2004
    %2555 = vmatpush2.bf16.msra.mxu0 %v2003
    %2556 = vmatprep.mubr.bf16.mxu0 %v740
    %2557 = vmatmul.mubr.bf16.gmra.mxu0 %v739
    %v2558 = vpop.f32.mrf.mxu0
    %v2559 = vadd.f32 %v2518, %v2558
    %v2560 = vpop.f32.mrf.mxu0
    %v2561 = vadd.f32 %v2520, %v2560
    %v2562 = vpop.f32.mrf.mxu0
    %v2563 = vpop.f32.mrf.mxu0
    %2564 = vdwg.mxu0
    %2565 = vmatprep.subr.bf16.mxu0 %v1870
    %2566 = vmatpush1.bf16.msra.mxu0 %v1869
    %2567 = vmatprep.subr.bf16.mxu0 %v1862
    %2568 = vmatpush1.bf16.msra.mxu0 %v1861
    %2569 = vmatprep.subr.bf16.mxu0 %v1854
    %2570 = vmatpush1.bf16.msra.mxu0 %v1853
    %2571 = vmatprep.subr.bf16.mxu0 %v1846
    %2572 = vmatpush1.bf16.msra.mxu0 %v1845
    %2573 = vmatprep.subr.bf16.mxu0 %v1838
    %2574 = vmatpush1.bf16.msra.mxu0 %v1837
    %2575 = vmatprep.subr.bf16.mxu0 %v1830
    %2576 = vmatpush1.bf16.msra.mxu0 %v1829
    %2577 = vmatprep.subr.bf16.mxu0 %v1822
    %2578 = vmatpush1.bf16.msra.mxu0 %v1821
    %2579 = vmatprep.subr.bf16.mxu0 %v1814
    %2580 = vmatpush1.bf16.msra.mxu0 %v1813
    %2581 = vmatprep.subr.bf16.mxu0 %v1934
    %2582 = vmatpush2.bf16.msra.mxu0 %v1933
    %2583 = vmatprep.subr.bf16.mxu0 %v1926
    %2584 = vmatpush2.bf16.msra.mxu0 %v1925
    %2585 = vmatprep.subr.bf16.mxu0 %v1918
    %2586 = vmatpush2.bf16.msra.mxu0 %v1917
    %2587 = vmatprep.subr.bf16.mxu0 %v1910
    %2588 = vmatpush2.bf16.msra.mxu0 %v1909
    %2589 = vmatprep.subr.bf16.mxu0 %v1902
    %2590 = vmatpush2.bf16.msra.mxu0 %v1901
    %2591 = vmatprep.subr.bf16.mxu0 %v1894
    %2592 = vmatpush2.bf16.msra.mxu0 %v1893
    %2593 = vmatprep.subr.bf16.mxu0 %v1886
    %2594 = vmatpush2.bf16.msra.mxu0 %v1885
    %2595 = vmatprep.subr.bf16.mxu0 %v1878
    %2596 = vmatpush2.bf16.msra.mxu0 %v1877
    %2597 = vmatprep.mubr.bf16.mxu0 %v738
    %2598 = vmatmul.mubr.bf16.gmra.mxu0 %v737
    %v2599 = vpop.f32.mrf.mxu0
    %v2600 = vadd.f32 %v1026, %v2599
    %v2601 = vpop.f32.mrf.mxu0
    %v2602 = vadd.f32 %v1030, %v2601
    %v2603 = vpop.f32.mrf.mxu0
    %v2604 = vpop.f32.mrf.mxu0
    %2605 = vdwg.mxu0
    %2606 = vmatprep.subr.bf16.mxu0 %v1998
    %2607 = vmatpush1.bf16.msra.mxu0 %v1997
    %2608 = vmatprep.subr.bf16.mxu0 %v1990
    %2609 = vmatpush1.bf16.msra.mxu0 %v1989
    %2610 = vmatprep.subr.bf16.mxu0 %v1982
    %2611 = vmatpush1.bf16.msra.mxu0 %v1981
    %2612 = vmatprep.subr.bf16.mxu0 %v1974
    %2613 = vmatpush1.bf16.msra.mxu0 %v1973
    %2614 = vmatprep.subr.bf16.mxu0 %v1966
    %2615 = vmatpush1.bf16.msra.mxu0 %v1965
    %2616 = vmatprep.subr.bf16.mxu0 %v1958
    %2617 = vmatpush1.bf16.msra.mxu0 %v1957
    %2618 = vmatprep.subr.bf16.mxu0 %v1950
    %2619 = vmatpush1.bf16.msra.mxu0 %v1949
    %2620 = vmatprep.subr.bf16.mxu0 %v1942
    %2621 = vmatpush1.bf16.msra.mxu0 %v1941
    %2622 = vmatprep.subr.bf16.mxu0 %v2062
    %2623 = vmatpush2.bf16.msra.mxu0 %v2061
    %2624 = vmatprep.subr.bf16.mxu0 %v2054
    %2625 = vmatpush2.bf16.msra.mxu0 %v2053
    %2626 = vmatprep.subr.bf16.mxu0 %v2046
    %2627 = vmatpush2.bf16.msra.mxu0 %v2045
    %2628 = vmatprep.subr.bf16.mxu0 %v2038
    %2629 = vmatpush2.bf16.msra.mxu0 %v2037
    %2630 = vmatprep.subr.bf16.mxu0 %v2030
    %2631 = vmatpush2.bf16.msra.mxu0 %v2029
    %2632 = vmatprep.subr.bf16.mxu0 %v2022
    %2633 = vmatpush2.bf16.msra.mxu0 %v2021
    %2634 = vmatprep.subr.bf16.mxu0 %v2014
    %2635 = vmatpush2.bf16.msra.mxu0 %v2013
    %2636 = vmatprep.subr.bf16.mxu0 %v2006
    %2637 = vmatpush2.bf16.msra.mxu0 %v2005
    %2638 = vmatprep.mubr.bf16.mxu0 %v740
    %2639 = vmatmul.mubr.bf16.gmra.mxu0 %v739
    %v2640 = vpop.f32.mrf.mxu0
    %v2641 = vadd.f32 %v2600, %v2640
    %v2642 = vpop.f32.mrf.mxu0
    %v2643 = vadd.f32 %v2602, %v2642
    %v2644 = vpop.f32.mrf.mxu0
    %v2645 = vpop.f32.mrf.mxu0
    %2646 = vdwg.mxu0
    %vm2647 = vcmp.gt.f32.partialorder %v2395, 0.0
    %vm2648 = vcmp.gt.f32.partialorder %v2397, 0.0
    %vm2649 = vcmp.gt.f32.partialorder %v2477, 0.0
    %vm2650 = vcmp.gt.f32.partialorder %v2479, 0.0
    %vm2651 = vcmp.gt.f32.partialorder %v2559, 0.0
    %vm2652 = vcmp.gt.f32.partialorder %v2561, 0.0
    %vm2653 = vcmp.gt.f32.partialorder %v2641, 0.0
    %vm2654 = vcmp.gt.f32.partialorder %v2643, 0.0
    %v2655 = vmul.f32 %v2395, 0.2
    %v2656 = vmul.f32 %v2397, 0.2
    %v2657 = vmul.f32 %v2477, 0.2
    %v2658 = vmul.f32 %v2479, 0.2
    %v2659 = vmul.f32 %v2559, 0.2
    %v2660 = vmul.f32 %v2561, 0.2
    %v2661 = vmul.f32 %v2641, 0.2
    %v2662 = vmul.f32 %v2643, 0.2
    %v2663 = vsel %vm2647, %v2395, %v2655
    %v2664 = vsel %vm2648, %v2397, %v2656
    %v2665 = vsel %vm2649, %v2477, %v2657
    %v2666 = vsel %vm2650, %v2479, %v2658
    %v2667 = vsel %vm2651, %v2559, %v2659
    %v2668 = vsel %vm2652, %v2561, %v2660
    %v2669 = vsel %vm2653, %v2641, %v2661
    %v2670 = vsel %vm2654, %v2643, %v2662
    %v2671 = vpack.c.bf16 %v2663, %v2663
    %v2672 = vpack.c.bf16 %v2664, %v2664
    %v2673 = vpack.c.bf16 %v2665, %v2665
    %v2674 = vpack.c.bf16 %v2666, %v2666
    %v2675 = vpack.c.bf16 %v2667, %v2667
    %v2676 = vpack.c.bf16 %v2668, %v2668
    %v2677 = vpack.c.bf16 %v2669, %v2669
    %v2678 = vpack.c.bf16 %v2670, %v2670
    %v2679 = vld [vmem:[#allocation14] sm:$0xff]
    %v2680 = vld [vmem:[#allocation14 + $0x8] sm:$0xff]
    %v2681 = vld [vmem:[#allocation14 + $0x10] sm:$0xff]
    %v2682 = vld [vmem:[#allocation14 + $0x18] sm:$0xf]
    %v2683 = vld [vmem:[#allocation14 + $0x1c] sm:$0xff]
    %v2684 = vld [vmem:[#allocation14 + $0x24] sm:$0xff]
    %v2685 = vld [vmem:[#allocation14 + $0x2c] sm:$0xff]
    %v2686 = vld [vmem:[#allocation14 + $0x34] sm:$0xf]
    %v2687 = vld [vmem:[#allocation14 + $0x38] sm:$0xff]
    %v2688 = vld [vmem:[#allocation14 + $0x40] sm:$0xff]
    %v2689 = vld [vmem:[#allocation14 + $0x48] sm:$0xff]
    %v2690 = vld [vmem:[#allocation14 + $0x50] sm:$0xf]
    %v2691 = vld [vmem:[#allocation14 + $0x54] sm:$0xff]
    %v2692 = vld [vmem:[#allocation14 + $0x5c] sm:$0xff]
    %v2693 = vld [vmem:[#allocation14 + $0x64] sm:$0xff]
    %v2694 = vld [vmem:[#allocation14 + $0x6c] sm:$0xf]
    %v2695 = vld [vmem:[#allocation14 + $0x70] sm:$0xff]
    %v2696 = vld [vmem:[#allocation14 + $0x78] sm:$0xff]
    %v2697 = vld [vmem:[#allocation14 + $0x80] sm:$0xff]
    %v2698 = vld [vmem:[#allocation14 + $0x88] sm:$0xf]
    %v2699 = vld [vmem:[#allocation14 + $0x8c] sm:$0xff]
    %v2700 = vld [vmem:[#allocation14 + $0x94] sm:$0xff]
    %v2701 = vld [vmem:[#allocation14 + $0x9c] sm:$0xff]
    %v2702 = vld [vmem:[#allocation14 + $0xa4] sm:$0xf]
    %v2703 = vld [vmem:[#allocation14 + $0xa8] sm:$0xff]
    %v2704 = vld [vmem:[#allocation14 + $0xb0] sm:$0xff]
    %v2705 = vld [vmem:[#allocation14 + $0xb8] sm:$0xff]
    %v2706 = vld [vmem:[#allocation14 + $0xc0] sm:$0xf]
    %v2707 = vld [vmem:[#allocation14 + $0xc4] sm:$0xff]
    %v2708 = vld [vmem:[#allocation14 + $0xcc] sm:$0xff]
    %v2709 = vld [vmem:[#allocation14 + $0xd4] sm:$0xff]
    %v2710 = vld [vmem:[#allocation14 + $0xdc] sm:$0xf]
    %v2711 = vld [vmem:[#allocation14 + $0xe0] sm:$0xff]
    %v2712 = vld [vmem:[#allocation14 + $0xe8] sm:$0xff]
    %v2713 = vld [vmem:[#allocation14 + $0xf0] sm:$0xff]
    %v2714 = vld [vmem:[#allocation14 + $0xf8] sm:$0xf]
    %v2715 = vld [vmem:[#allocation14 + $0xfc] sm:$0xff]
    %v2716 = vld [vmem:[#allocation14 + $0x104] sm:$0xff]
    %v2717 = vld [vmem:[#allocation14 + $0x10c] sm:$0xff]
    %v2718 = vld [vmem:[#allocation14 + $0x114] sm:$0xf]
    %v2719 = vld [vmem:[#allocation14 + $0x118] sm:$0xff]
    %v2720 = vld [vmem:[#allocation14 + $0x120] sm:$0xff]
    %v2721 = vld [vmem:[#allocation14 + $0x128] sm:$0xff]
    %v2722 = vld [vmem:[#allocation14 + $0x130] sm:$0xf]
    %v2723 = vld [vmem:[#allocation14 + $0x134] sm:$0xff]
    %v2724 = vld [vmem:[#allocation14 + $0x13c] sm:$0xff]
    %v2725 = vld [vmem:[#allocation14 + $0x144] sm:$0xff]
    %v2726 = vld [vmem:[#allocation14 + $0x14c] sm:$0xf]
    %v2727 = vld [vmem:[#allocation14 + $0x150] sm:$0xff]
    %v2728 = vld [vmem:[#allocation14 + $0x158] sm:$0xff]
    %v2729 = vld [vmem:[#allocation14 + $0x160] sm:$0xff]
    %v2730 = vld [vmem:[#allocation14 + $0x168] sm:$0xf]
    %v2731 = vld [vmem:[#allocation14 + $0x16c] sm:$0xff]
    %v2732 = vld [vmem:[#allocation14 + $0x174] sm:$0xff]
    %v2733 = vld [vmem:[#allocation14 + $0x17c] sm:$0xff]
    %v2734 = vld [vmem:[#allocation14 + $0x184] sm:$0xf]
    %v2735 = vld [vmem:[#allocation14 + $0x188] sm:$0xff]
    %v2736 = vld [vmem:[#allocation14 + $0x190] sm:$0xff]
    %v2737 = vld [vmem:[#allocation14 + $0x198] sm:$0xff]
    %v2738 = vld [vmem:[#allocation14 + $0x1a0] sm:$0xf]
    %v2739 = vld [vmem:[#allocation14 + $0x1a4] sm:$0xff]
    %v2740 = vld [vmem:[#allocation14 + $0x1ac] sm:$0xff]
    %v2741 = vld [vmem:[#allocation14 + $0x1b4] sm:$0xff]
    %v2742 = vld [vmem:[#allocation14 + $0x1bc] sm:$0xf]
    %v2743 = vld [vmem:[#allocation14 + $0x1c0] sm:$0xff]
    %v2744 = vld [vmem:[#allocation14 + $0x1c8] sm:$0xff]
    %v2745 = vld [vmem:[#allocation14 + $0x1d0] sm:$0xff]
    %v2746 = vld [vmem:[#allocation14 + $0x1d8] sm:$0xf]
    %v2747 = vld [vmem:[#allocation14 + $0x1dc] sm:$0xff]
    %v2748 = vld [vmem:[#allocation14 + $0x1e4] sm:$0xff]
    %v2749 = vld [vmem:[#allocation14 + $0x1ec] sm:$0xff]
    %v2750 = vld [vmem:[#allocation14 + $0x1f4] sm:$0xf]
    %v2751 = vld [vmem:[#allocation14 + $0x1f8] sm:$0xff]
    %v2752 = vld [vmem:[#allocation14 + $0x200] sm:$0xff]
    %v2753 = vld [vmem:[#allocation14 + $0x208] sm:$0xff]
    %v2754 = vld [vmem:[#allocation14 + $0x210] sm:$0xf]
    %v2755 = vld [vmem:[#allocation14 + $0x214] sm:$0xff]
    %v2756 = vld [vmem:[#allocation14 + $0x21c] sm:$0xff]
    %v2757 = vld [vmem:[#allocation14 + $0x224] sm:$0xff]
    %v2758 = vld [vmem:[#allocation14 + $0x22c] sm:$0xf]
    %v2759 = vld [vmem:[#allocation14 + $0x230] sm:$0xff]
    %v2760 = vld [vmem:[#allocation14 + $0x238] sm:$0xff]
    %v2761 = vld [vmem:[#allocation14 + $0x240] sm:$0xff]
    %v2762 = vld [vmem:[#allocation14 + $0x248] sm:$0xf]
    %v2763 = vld [vmem:[#allocation14 + $0x24c] sm:$0xff]
    %v2764 = vld [vmem:[#allocation14 + $0x254] sm:$0xff]
    %v2765 = vld [vmem:[#allocation14 + $0x25c] sm:$0xff]
    %v2766 = vld [vmem:[#allocation14 + $0x264] sm:$0xf]
    %v2767 = vld [vmem:[#allocation14 + $0x268] sm:$0xff]
    %v2768 = vld [vmem:[#allocation14 + $0x270] sm:$0xff]
    %v2769 = vld [vmem:[#allocation14 + $0x278] sm:$0xff]
    %v2770 = vld [vmem:[#allocation14 + $0x280] sm:$0xf]
    %v2771 = vld [vmem:[#allocation14 + $0x284] sm:$0xff]
    %v2772 = vld [vmem:[#allocation14 + $0x28c] sm:$0xff]
    %v2773 = vld [vmem:[#allocation14 + $0x294] sm:$0xff]
    %v2774 = vld [vmem:[#allocation14 + $0x29c] sm:$0xf]
    %v2775 = vld [vmem:[#allocation14 + $0x2a0] sm:$0xff]
    %v2776 = vld [vmem:[#allocation14 + $0x2a8] sm:$0xff]
    %v2777 = vld [vmem:[#allocation14 + $0x2b0] sm:$0xff]
    %v2778 = vld [vmem:[#allocation14 + $0x2b8] sm:$0xf]
    %v2779 = vld [vmem:[#allocation14 + $0x2bc] sm:$0xff]
    %v2780 = vld [vmem:[#allocation14 + $0x2c4] sm:$0xff]
    %v2781 = vld [vmem:[#allocation14 + $0x2cc] sm:$0xff]
    %v2782 = vld [vmem:[#allocation14 + $0x2d4] sm:$0xf]
    %v2783 = vld [vmem:[#allocation14 + $0x2d8] sm:$0xff]
    %v2784 = vld [vmem:[#allocation14 + $0x2e0] sm:$0xff]
    %v2785 = vld [vmem:[#allocation14 + $0x2e8] sm:$0xff]
    %v2786 = vld [vmem:[#allocation14 + $0x2f0] sm:$0xf]
    %v2787 = vld [vmem:[#allocation14 + $0x2f4] sm:$0xff]
    %v2788 = vld [vmem:[#allocation14 + $0x2fc] sm:$0xff]
    %v2789 = vld [vmem:[#allocation14 + $0x304] sm:$0xff]
    %v2790 = vld [vmem:[#allocation14 + $0x30c] sm:$0xf]
    %v2791 = vld [vmem:[#allocation14 + $0x310] sm:$0xff]
    %v2792 = vld [vmem:[#allocation14 + $0x318] sm:$0xff]
    %v2793 = vld [vmem:[#allocation14 + $0x320] sm:$0xff]
    %v2794 = vld [vmem:[#allocation14 + $0x328] sm:$0xf]
    %v2795 = vld [vmem:[#allocation14 + $0x32c] sm:$0xff]
    %v2796 = vld [vmem:[#allocation14 + $0x334] sm:$0xff]
    %v2797 = vld [vmem:[#allocation14 + $0x33c] sm:$0xff]
    %v2798 = vld [vmem:[#allocation14 + $0x344] sm:$0xf]
    %v2799 = vld [vmem:[#allocation14 + $0x348] sm:$0xff]
    %v2800 = vld [vmem:[#allocation14 + $0x350] sm:$0xff]
    %v2801 = vld [vmem:[#allocation14 + $0x358] sm:$0xff]
    %v2802 = vld [vmem:[#allocation14 + $0x360] sm:$0xf]
    %v2803 = vld [vmem:[#allocation14 + $0x364] sm:$0xff]
    %v2804 = vld [vmem:[#allocation14 + $0x36c] sm:$0xff]
    %v2805 = vld [vmem:[#allocation14 + $0x374] sm:$0xff]
    %v2806 = vld [vmem:[#allocation14 + $0x37c] sm:$0xf]
    %v2807 = vld [vmem:[#allocation14 + $0x380] sm:$0xff]
    %v2808 = vld [vmem:[#allocation14 + $0x388] sm:$0xff]
    %v2809 = vld [vmem:[#allocation14 + $0x390] sm:$0xff]
    %v2810 = vld [vmem:[#allocation14 + $0x398] sm:$0xf]
    %v2811 = vld [vmem:[#allocation14 + $0x39c] sm:$0xff]
    %v2812 = vld [vmem:[#allocation14 + $0x3a4] sm:$0xff]
    %v2813 = vld [vmem:[#allocation14 + $0x3ac] sm:$0xff]
    %v2814 = vld [vmem:[#allocation14 + $0x3b4] sm:$0xf]
    %v2815 = vld [vmem:[#allocation14 + $0x3b8] sm:$0xff]
    %v2816 = vld [vmem:[#allocation14 + $0x3c0] sm:$0xff]
    %v2817 = vld [vmem:[#allocation14 + $0x3c8] sm:$0xff]
    %v2818 = vld [vmem:[#allocation14 + $0x3d0] sm:$0xf]
    %v2819 = vld [vmem:[#allocation14 + $0x3d4] sm:$0xff]
    %v2820 = vld [vmem:[#allocation14 + $0x3dc] sm:$0xff]
    %v2821 = vld [vmem:[#allocation14 + $0x3e4] sm:$0xff]
    %v2822 = vld [vmem:[#allocation14 + $0x3ec] sm:$0xf]
    %v2823 = vld [vmem:[#allocation14 + $0x3f0] sm:$0xff]
    %v2824 = vld [vmem:[#allocation14 + $0x3f8] sm:$0xff]
    %v2825 = vld [vmem:[#allocation14 + $0x400] sm:$0xff]
    %v2826 = vld [vmem:[#allocation14 + $0x408] sm:$0xf]
    %v2827 = vld [vmem:[#allocation14 + $0x40c] sm:$0xff]
    %v2828 = vld [vmem:[#allocation14 + $0x414] sm:$0xff]
    %v2829 = vld [vmem:[#allocation14 + $0x41c] sm:$0xff]
    %v2830 = vld [vmem:[#allocation14 + $0x424] sm:$0xf]
    %v2831 = vld [vmem:[#allocation14 + $0x428] sm:$0xff]
    %v2832 = vld [vmem:[#allocation14 + $0x430] sm:$0xff]
    %v2833 = vld [vmem:[#allocation14 + $0x438] sm:$0xff]
    %v2834 = vld [vmem:[#allocation14 + $0x440] sm:$0xf]
    %v2835 = vld [vmem:[#allocation14 + $0x444] sm:$0xff]
    %v2836 = vld [vmem:[#allocation14 + $0x44c] sm:$0xff]
    %v2837 = vld [vmem:[#allocation14 + $0x454] sm:$0xff]
    %v2838 = vld [vmem:[#allocation14 + $0x45c] sm:$0xf]
    %v2839 = vld [vmem:[#allocation14 + $0x460] sm:$0xff]
    %v2840 = vld [vmem:[#allocation14 + $0x468] sm:$0xff]
    %v2841 = vld [vmem:[#allocation14 + $0x470] sm:$0xff]
    %v2842 = vld [vmem:[#allocation14 + $0x478] sm:$0xf]
    %v2843 = vld [vmem:[#allocation14 + $0x47c] sm:$0xff]
    %v2844 = vld [vmem:[#allocation14 + $0x484] sm:$0xff]
    %v2845 = vld [vmem:[#allocation14 + $0x48c] sm:$0xff]
    %v2846 = vld [vmem:[#allocation14 + $0x494] sm:$0xf]
    %v2847 = vld [vmem:[#allocation14 + $0x498] sm:$0xff]
    %v2848 = vld [vmem:[#allocation14 + $0x4a0] sm:$0xff]
    %v2849 = vld [vmem:[#allocation14 + $0x4a8] sm:$0xff]
    %v2850 = vld [vmem:[#allocation14 + $0x4b0] sm:$0xf]
    %v2851 = vld [vmem:[#allocation14 + $0x4b4] sm:$0xff]
    %v2852 = vld [vmem:[#allocation14 + $0x4bc] sm:$0xff]
    %v2853 = vld [vmem:[#allocation14 + $0x4c4] sm:$0xff]
    %v2854 = vld [vmem:[#allocation14 + $0x4cc] sm:$0xf]
    %v2855 = vld [vmem:[#allocation14 + $0x4d0] sm:$0xff]
    %v2856 = vld [vmem:[#allocation14 + $0x4d8] sm:$0xff]
    %v2857 = vld [vmem:[#allocation14 + $0x4e0] sm:$0xff]
    %v2858 = vld [vmem:[#allocation14 + $0x4e8] sm:$0xf]
    %v2859 = vld [vmem:[#allocation14 + $0x4ec] sm:$0xff]
    %v2860 = vld [vmem:[#allocation14 + $0x4f4] sm:$0xff]
    %v2861 = vld [vmem:[#allocation14 + $0x4fc] sm:$0xff]
    %v2862 = vld [vmem:[#allocation14 + $0x504] sm:$0xf]
    %v2863 = vld [vmem:[#allocation14 + $0x508] sm:$0xff]
    %v2864 = vld [vmem:[#allocation14 + $0x510] sm:$0xff]
    %v2865 = vld [vmem:[#allocation14 + $0x518] sm:$0xff]
    %v2866 = vld [vmem:[#allocation14 + $0x520] sm:$0xf]
    %v2867 = vld [vmem:[#allocation14 + $0x524] sm:$0xff]
    %v2868 = vld [vmem:[#allocation14 + $0x52c] sm:$0xff]
    %v2869 = vld [vmem:[#allocation14 + $0x534] sm:$0xff]
    %v2870 = vld [vmem:[#allocation14 + $0x53c] sm:$0xf]
    %v2871 = vld [vmem:[#allocation14 + $0x540] sm:$0xff]
    %v2872 = vld [vmem:[#allocation14 + $0x548] sm:$0xff]
    %v2873 = vld [vmem:[#allocation14 + $0x550] sm:$0xff]
    %v2874 = vld [vmem:[#allocation14 + $0x558] sm:$0xf]
    %v2875 = vld [vmem:[#allocation14 + $0x55c] sm:$0xff]
    %v2876 = vld [vmem:[#allocation14 + $0x564] sm:$0xff]
    %v2877 = vld [vmem:[#allocation14 + $0x56c] sm:$0xff]
    %v2878 = vld [vmem:[#allocation14 + $0x574] sm:$0xf]
    %v2879 = vld [vmem:[#allocation14 + $0x578] sm:$0xff]
    %v2880 = vld [vmem:[#allocation14 + $0x580] sm:$0xff]
    %v2881 = vld [vmem:[#allocation14 + $0x588] sm:$0xff]
    %v2882 = vld [vmem:[#allocation14 + $0x590] sm:$0xf]
    %v2883 = vld [vmem:[#allocation14 + $0x594] sm:$0xff]
    %v2884 = vld [vmem:[#allocation14 + $0x59c] sm:$0xff]
    %v2885 = vld [vmem:[#allocation14 + $0x5a4] sm:$0xff]
    %v2886 = vld [vmem:[#allocation14 + $0x5ac] sm:$0xf]
    %v2887 = vld [vmem:[#allocation14 + $0x5b0] sm:$0xff]
    %v2888 = vld [vmem:[#allocation14 + $0x5b8] sm:$0xff]
    %v2889 = vld [vmem:[#allocation14 + $0x5c0] sm:$0xff]
    %v2890 = vld [vmem:[#allocation14 + $0x5c8] sm:$0xf]
    %v2891 = vld [vmem:[#allocation14 + $0x5cc] sm:$0xff]
    %v2892 = vld [vmem:[#allocation14 + $0x5d4] sm:$0xff]
    %v2893 = vld [vmem:[#allocation14 + $0x5dc] sm:$0xff]
    %v2894 = vld [vmem:[#allocation14 + $0x5e4] sm:$0xf]
    %v2895 = vld [vmem:[#allocation14 + $0x5e8] sm:$0xff]
    %v2896 = vld [vmem:[#allocation14 + $0x5f0] sm:$0xff]
    %v2897 = vld [vmem:[#allocation14 + $0x5f8] sm:$0xff]
    %v2898 = vld [vmem:[#allocation14 + $0x600] sm:$0xf]
    %v2899 = vld [vmem:[#allocation14 + $0x604] sm:$0xff]
    %v2900 = vld [vmem:[#allocation14 + $0x60c] sm:$0xff]
    %v2901 = vld [vmem:[#allocation14 + $0x614] sm:$0xff]
    %v2902 = vld [vmem:[#allocation14 + $0x61c] sm:$0xf]
    %v2903 = vld [vmem:[#allocation14 + $0x620] sm:$0xff]
    %v2904 = vld [vmem:[#allocation14 + $0x628] sm:$0xff]
    %v2905 = vld [vmem:[#allocation14 + $0x630] sm:$0xff]
    %v2906 = vld [vmem:[#allocation14 + $0x638] sm:$0xf]
    %v2907 = vld [vmem:[#allocation14 + $0x63c] sm:$0xff]
    %v2908 = vld [vmem:[#allocation14 + $0x644] sm:$0xff]
    %v2909 = vld [vmem:[#allocation14 + $0x64c] sm:$0xff]
    %v2910 = vld [vmem:[#allocation14 + $0x654] sm:$0xf]
    %v2911 = vld [vmem:[#allocation14 + $0x658] sm:$0xff]
    %v2912 = vld [vmem:[#allocation14 + $0x660] sm:$0xff]
    %v2913 = vld [vmem:[#allocation14 + $0x668] sm:$0xff]
    %v2914 = vld [vmem:[#allocation14 + $0x670] sm:$0xf]
    %v2915 = vld [vmem:[#allocation14 + $0x674] sm:$0xff]
    %v2916 = vld [vmem:[#allocation14 + $0x67c] sm:$0xff]
    %v2917 = vld [vmem:[#allocation14 + $0x684] sm:$0xff]
    %v2918 = vld [vmem:[#allocation14 + $0x68c] sm:$0xf]
    %v2919 = vld [vmem:[#allocation14 + $0x690] sm:$0xff]
    %v2920 = vld [vmem:[#allocation14 + $0x698] sm:$0xff]
    %v2921 = vld [vmem:[#allocation14 + $0x6a0] sm:$0xff]
    %v2922 = vld [vmem:[#allocation14 + $0x6a8] sm:$0xf]
    %v2923 = vld [vmem:[#allocation14 + $0x6ac] sm:$0xff]
    %v2924 = vld [vmem:[#allocation14 + $0x6b4] sm:$0xff]
    %v2925 = vld [vmem:[#allocation14 + $0x6bc] sm:$0xff]
    %v2926 = vld [vmem:[#allocation14 + $0x6c4] sm:$0xf]
    %v2927 = vld [vmem:[#allocation14 + $0x6c8] sm:$0xff]
    %v2928 = vld [vmem:[#allocation14 + $0x6d0] sm:$0xff]
    %v2929 = vld [vmem:[#allocation14 + $0x6d8] sm:$0xff]
    %v2930 = vld [vmem:[#allocation14 + $0x6e0] sm:$0xf]
    %v2931 = vld [vmem:[#allocation14 + $0x6e4] sm:$0xff]
    %v2932 = vld [vmem:[#allocation14 + $0x6ec] sm:$0xff]
    %v2933 = vld [vmem:[#allocation14 + $0x6f4] sm:$0xff]
    %v2934 = vld [vmem:[#allocation14 + $0x6fc] sm:$0xf]
    %v2935 = vld [vmem:[#allocation14 + $0x700] sm:$0xff]
    %v2936 = vld [vmem:[#allocation14 + $0x708] sm:$0xff]
    %v2937 = vld [vmem:[#allocation14 + $0x710] sm:$0xff]
    %v2938 = vld [vmem:[#allocation14 + $0x718] sm:$0xf]
    %v2939 = vld [vmem:[#allocation14 + $0x71c] sm:$0xff]
    %v2940 = vld [vmem:[#allocation14 + $0x724] sm:$0xff]
    %v2941 = vld [vmem:[#allocation14 + $0x72c] sm:$0xff]
    %v2942 = vld [vmem:[#allocation14 + $0x734] sm:$0xf]
    %v2943 = vld [vmem:[#allocation14 + $0x738] sm:$0xff]
    %v2944 = vld [vmem:[#allocation14 + $0x740] sm:$0xff]
    %v2945 = vld [vmem:[#allocation14 + $0x748] sm:$0xff]
    %v2946 = vld [vmem:[#allocation14 + $0x750] sm:$0xf]
    %v2947 = vld [vmem:[#allocation14 + $0x754] sm:$0xff]
    %v2948 = vld [vmem:[#allocation14 + $0x75c] sm:$0xff]
    %v2949 = vld [vmem:[#allocation14 + $0x764] sm:$0xff]
    %v2950 = vld [vmem:[#allocation14 + $0x76c] sm:$0xf]
    %v2951 = vld [vmem:[#allocation14 + $0x770] sm:$0xff]
    %v2952 = vld [vmem:[#allocation14 + $0x778] sm:$0xff]
    %v2953 = vld [vmem:[#allocation14 + $0x780] sm:$0xff]
    %v2954 = vld [vmem:[#allocation14 + $0x788] sm:$0xf]
    %v2955 = vld [vmem:[#allocation14 + $0x78c] sm:$0xff]
    %v2956 = vld [vmem:[#allocation14 + $0x794] sm:$0xff]
    %v2957 = vld [vmem:[#allocation14 + $0x79c] sm:$0xff]
    %v2958 = vld [vmem:[#allocation14 + $0x7a4] sm:$0xf]
    %v2959 = vld [vmem:[#allocation14 + $0x7a8] sm:$0xff]
    %v2960 = vld [vmem:[#allocation14 + $0x7b0] sm:$0xff]
    %v2961 = vld [vmem:[#allocation14 + $0x7b8] sm:$0xff]
    %v2962 = vld [vmem:[#allocation14 + $0x7c0] sm:$0xf]
    %v2963 = vld [vmem:[#allocation14 + $0x7c4] sm:$0xff]
    %v2964 = vld [vmem:[#allocation14 + $0x7cc] sm:$0xff]
    %v2965 = vld [vmem:[#allocation14 + $0x7d4] sm:$0xff]
    %v2966 = vld [vmem:[#allocation14 + $0x7dc] sm:$0xf]
    %v2967 = vld [vmem:[#allocation14 + $0x7e0] sm:$0xff]
    %v2968 = vld [vmem:[#allocation14 + $0x7e8] sm:$0xff]
    %v2969 = vld [vmem:[#allocation14 + $0x7f0] sm:$0xff]
    %v2970 = vld [vmem:[#allocation14 + $0x7f8] sm:$0xf]
    %v2971 = vld [vmem:[#allocation14 + $0x7fc] sm:$0xff]
    %v2972 = vld [vmem:[#allocation14 + $0x804] sm:$0xff]
    %v2973 = vld [vmem:[#allocation14 + $0x80c] sm:$0xff]
    %v2974 = vld [vmem:[#allocation14 + $0x814] sm:$0xf]
    %v2975 = vld [vmem:[#allocation14 + $0x818] sm:$0xff]
    %v2976 = vld [vmem:[#allocation14 + $0x820] sm:$0xff]
    %v2977 = vld [vmem:[#allocation14 + $0x828] sm:$0xff]
    %v2978 = vld [vmem:[#allocation14 + $0x830] sm:$0xf]
    %v2979 = vld [vmem:[#allocation14 + $0x834] sm:$0xff]
    %v2980 = vld [vmem:[#allocation14 + $0x83c] sm:$0xff]
    %v2981 = vld [vmem:[#allocation14 + $0x844] sm:$0xff]
    %v2982 = vld [vmem:[#allocation14 + $0x84c] sm:$0xf]
    %v2983 = vld [vmem:[#allocation14 + $0x850] sm:$0xff]
    %v2984 = vld [vmem:[#allocation14 + $0x858] sm:$0xff]
    %v2985 = vld [vmem:[#allocation14 + $0x860] sm:$0xff]
    %v2986 = vld [vmem:[#allocation14 + $0x868] sm:$0xf]
    %v2987 = vld [vmem:[#allocation14 + $0x86c] sm:$0xff]
    %v2988 = vld [vmem:[#allocation14 + $0x874] sm:$0xff]
    %v2989 = vld [vmem:[#allocation14 + $0x87c] sm:$0xff]
    %v2990 = vld [vmem:[#allocation14 + $0x884] sm:$0xf]
    %v2991 = vld [vmem:[#allocation14 + $0x888] sm:$0xff]
    %v2992 = vld [vmem:[#allocation14 + $0x890] sm:$0xff]
    %v2993 = vld [vmem:[#allocation14 + $0x898] sm:$0xff]
    %v2994 = vld [vmem:[#allocation14 + $0x8a0] sm:$0xf]
    %v2995 = vld [vmem:[#allocation14 + $0x8a4] sm:$0xff]
    %v2996 = vld [vmem:[#allocation14 + $0x8ac] sm:$0xff]
    %v2997 = vld [vmem:[#allocation14 + $0x8b4] sm:$0xff]
    %v2998 = vld [vmem:[#allocation14 + $0x8bc] sm:$0xf]
    %v2999 = vld [vmem:[#allocation14 + $0x8c0] sm:$0xff]
    %v3000 = vld [vmem:[#allocation14 + $0x8c8] sm:$0xff]
    %v3001 = vld [vmem:[#allocation14 + $0x8d0] sm:$0xff]
    %v3002 = vld [vmem:[#allocation14 + $0x8d8] sm:$0xf]
    %v3003 = vld [vmem:[#allocation14 + $0x8dc] sm:$0xff]
    %v3004 = vld [vmem:[#allocation14 + $0x8e4] sm:$0xff]
    %v3005 = vld [vmem:[#allocation14 + $0x8ec] sm:$0xff]
    %v3006 = vld [vmem:[#allocation14 + $0x8f4] sm:$0xf]
    %v3007 = vld [vmem:[#allocation14 + $0x8f8] sm:$0xff]
    %v3008 = vld [vmem:[#allocation14 + $0x900] sm:$0xff]
    %v3009 = vld [vmem:[#allocation14 + $0x908] sm:$0xff]
    %v3010 = vld [vmem:[#allocation14 + $0x910] sm:$0xf]
    %v3011 = vld [vmem:[#allocation14 + $0x914] sm:$0xff]
    %v3012 = vld [vmem:[#allocation14 + $0x91c] sm:$0xff]
    %v3013 = vld [vmem:[#allocation14 + $0x924] sm:$0xff]
    %v3014 = vld [vmem:[#allocation14 + $0x92c] sm:$0xf]
    %v3015 = vld [vmem:[#allocation14 + $0x930] sm:$0xff]
    %v3016 = vld [vmem:[#allocation14 + $0x938] sm:$0xff]
    %v3017 = vld [vmem:[#allocation14 + $0x940] sm:$0xff]
    %v3018 = vld [vmem:[#allocation14 + $0x948] sm:$0xf]
    %v3019 = vld [vmem:[#allocation14 + $0x94c] sm:$0xff]
    %v3020 = vld [vmem:[#allocation14 + $0x954] sm:$0xff]
    %v3021 = vld [vmem:[#allocation14 + $0x95c] sm:$0xff]
    %v3022 = vld [vmem:[#allocation14 + $0x964] sm:$0xf]
    %v3023 = vld [vmem:[#allocation14 + $0x968] sm:$0xff]
    %v3024 = vld [vmem:[#allocation14 + $0x970] sm:$0xff]
    %v3025 = vld [vmem:[#allocation14 + $0x978] sm:$0xff]
    %v3026 = vld [vmem:[#allocation14 + $0x980] sm:$0xf]
    %v3027 = vld [vmem:[#allocation14 + $0x984] sm:$0xff]
    %v3028 = vld [vmem:[#allocation14 + $0x98c] sm:$0xff]
    %v3029 = vld [vmem:[#allocation14 + $0x994] sm:$0xff]
    %v3030 = vld [vmem:[#allocation14 + $0x99c] sm:$0xf]
    %v3031 = vld [vmem:[#allocation14 + $0x9a0] sm:$0xff]
    %v3032 = vld [vmem:[#allocation14 + $0x9a8] sm:$0xff]
    %v3033 = vld [vmem:[#allocation14 + $0x9b0] sm:$0xff]
    %v3034 = vld [vmem:[#allocation14 + $0x9b8] sm:$0xf]
    %v3035 = vld [vmem:[#allocation14 + $0x9bc] sm:$0xff]
    %v3036 = vld [vmem:[#allocation14 + $0x9c4] sm:$0xff]
    %v3037 = vld [vmem:[#allocation14 + $0x9cc] sm:$0xff]
    %v3038 = vld [vmem:[#allocation14 + $0x9d4] sm:$0xf]
    %v3039 = vld [vmem:[#allocation14 + $0x9d8] sm:$0xff]
    %v3040 = vld [vmem:[#allocation14 + $0x9e0] sm:$0xff]
    %v3041 = vld [vmem:[#allocation14 + $0x9e8] sm:$0xff]
    %v3042 = vld [vmem:[#allocation14 + $0x9f0] sm:$0xf]
    %v3043 = vld [vmem:[#allocation14 + $0x9f4] sm:$0xff]
    %v3044 = vld [vmem:[#allocation14 + $0x9fc] sm:$0xff]
    %v3045 = vld [vmem:[#allocation14 + $0xa04] sm:$0xff]
    %v3046 = vld [vmem:[#allocation14 + $0xa0c] sm:$0xf]
    %v3047 = vld [vmem:[#allocation14 + $0xa10] sm:$0xff]
    %v3048 = vld [vmem:[#allocation14 + $0xa18] sm:$0xff]
    %v3049 = vld [vmem:[#allocation14 + $0xa20] sm:$0xff]
    %v3050 = vld [vmem:[#allocation14 + $0xa28] sm:$0xf]
    %v3051 = vld [vmem:[#allocation14 + $0xa2c] sm:$0xff]
    %v3052 = vld [vmem:[#allocation14 + $0xa34] sm:$0xff]
    %v3053 = vld [vmem:[#allocation14 + $0xa3c] sm:$0xff]
    %v3054 = vld [vmem:[#allocation14 + $0xa44] sm:$0xf]
    %v3055 = vld [vmem:[#allocation14 + $0xa48] sm:$0xff]
    %v3056 = vld [vmem:[#allocation14 + $0xa50] sm:$0xff]
    %v3057 = vld [vmem:[#allocation14 + $0xa58] sm:$0xff]
    %v3058 = vld [vmem:[#allocation14 + $0xa60] sm:$0xf]
    %v3059 = vld [vmem:[#allocation14 + $0xa64] sm:$0xff]
    %v3060 = vld [vmem:[#allocation14 + $0xa6c] sm:$0xff]
    %v3061 = vld [vmem:[#allocation14 + $0xa74] sm:$0xff]
    %v3062 = vld [vmem:[#allocation14 + $0xa7c] sm:$0xf]
    %v3063 = vld [vmem:[#allocation14 + $0xa80] sm:$0xff]
    %v3064 = vld [vmem:[#allocation14 + $0xa88] sm:$0xff]
    %v3065 = vld [vmem:[#allocation14 + $0xa90] sm:$0xff]
    %v3066 = vld [vmem:[#allocation14 + $0xa98] sm:$0xf]
    %v3067 = vld [vmem:[#allocation14 + $0xa9c] sm:$0xff]
    %v3068 = vld [vmem:[#allocation14 + $0xaa4] sm:$0xff]
    %v3069 = vld [vmem:[#allocation14 + $0xaac] sm:$0xff]
    %v3070 = vld [vmem:[#allocation14 + $0xab4] sm:$0xf]
    %v3071 = vld [vmem:[#allocation14 + $0xab8] sm:$0xff]
    %v3072 = vld [vmem:[#allocation14 + $0xac0] sm:$0xff]
    %v3073 = vld [vmem:[#allocation14 + $0xac8] sm:$0xff]
    %v3074 = vld [vmem:[#allocation14 + $0xad0] sm:$0xf]
    %v3075 = vld [vmem:[#allocation14 + $0xad4] sm:$0xff]
    %v3076 = vld [vmem:[#allocation14 + $0xadc] sm:$0xff]
    %v3077 = vld [vmem:[#allocation14 + $0xae4] sm:$0xff]
    %v3078 = vld [vmem:[#allocation14 + $0xaec] sm:$0xf]
    %v3079 = vld [vmem:[#allocation14 + $0xaf0] sm:$0xff]
    %v3080 = vld [vmem:[#allocation14 + $0xaf8] sm:$0xff]
    %v3081 = vld [vmem:[#allocation14 + $0xb00] sm:$0xff]
    %v3082 = vld [vmem:[#allocation14 + $0xb08] sm:$0xf]
    %v3083 = vld [vmem:[#allocation14 + $0xb0c] sm:$0xff]
    %v3084 = vld [vmem:[#allocation14 + $0xb14] sm:$0xff]
    %v3085 = vld [vmem:[#allocation14 + $0xb1c] sm:$0xff]
    %v3086 = vld [vmem:[#allocation14 + $0xb24] sm:$0xf]
    %v3087 = vld [vmem:[#allocation14 + $0xb28] sm:$0xff]
    %v3088 = vld [vmem:[#allocation14 + $0xb30] sm:$0xff]
    %v3089 = vld [vmem:[#allocation14 + $0xb38] sm:$0xff]
    %v3090 = vld [vmem:[#allocation14 + $0xb40] sm:$0xf]
    %v3091 = vld [vmem:[#allocation14 + $0xb44] sm:$0xff]
    %v3092 = vld [vmem:[#allocation14 + $0xb4c] sm:$0xff]
    %v3093 = vld [vmem:[#allocation14 + $0xb54] sm:$0xff]
    %v3094 = vld [vmem:[#allocation14 + $0xb5c] sm:$0xf]
    %v3095 = vld [vmem:[#allocation14 + $0xb60] sm:$0xff]
    %v3096 = vld [vmem:[#allocation14 + $0xb68] sm:$0xff]
    %v3097 = vld [vmem:[#allocation14 + $0xb70] sm:$0xff]
    %v3098 = vld [vmem:[#allocation14 + $0xb78] sm:$0xf]
    %v3099 = vld [vmem:[#allocation14 + $0xb7c] sm:$0xff]
    %v3100 = vld [vmem:[#allocation14 + $0xb84] sm:$0xff]
    %v3101 = vld [vmem:[#allocation14 + $0xb8c] sm:$0xff]
    %v3102 = vld [vmem:[#allocation14 + $0xb94] sm:$0xf]
    %v3103 = vld [vmem:[#allocation14 + $0xb98] sm:$0xff]
    %v3104 = vld [vmem:[#allocation14 + $0xba0] sm:$0xff]
    %v3105 = vld [vmem:[#allocation14 + $0xba8] sm:$0xff]
    %v3106 = vld [vmem:[#allocation14 + $0xbb0] sm:$0xf]
    %v3107 = vld [vmem:[#allocation14 + $0xbb4] sm:$0xff]
    %v3108 = vld [vmem:[#allocation14 + $0xbbc] sm:$0xff]
    %v3109 = vld [vmem:[#allocation14 + $0xbc4] sm:$0xff]
    %v3110 = vld [vmem:[#allocation14 + $0xbcc] sm:$0xf]
    %v3111 = vld [vmem:[#allocation14 + $0xbd0] sm:$0xff]
    %v3112 = vld [vmem:[#allocation14 + $0xbd8] sm:$0xff]
    %v3113 = vld [vmem:[#allocation14 + $0xbe0] sm:$0xff]
    %v3114 = vld [vmem:[#allocation14 + $0xbe8] sm:$0xf]
    %v3115 = vld [vmem:[#allocation14 + $0xbec] sm:$0xff]
    %v3116 = vld [vmem:[#allocation14 + $0xbf4] sm:$0xff]
    %v3117 = vld [vmem:[#allocation14 + $0xbfc] sm:$0xff]
    %v3118 = vld [vmem:[#allocation14 + $0xc04] sm:$0xf]
    %v3119 = vld [vmem:[#allocation14 + $0xc08] sm:$0xff]
    %v3120 = vld [vmem:[#allocation14 + $0xc10] sm:$0xff]
    %v3121 = vld [vmem:[#allocation14 + $0xc18] sm:$0xff]
    %v3122 = vld [vmem:[#allocation14 + $0xc20] sm:$0xf]
    %v3123 = vld [vmem:[#allocation14 + $0xc24] sm:$0xff]
    %v3124 = vld [vmem:[#allocation14 + $0xc2c] sm:$0xff]
    %v3125 = vld [vmem:[#allocation14 + $0xc34] sm:$0xff]
    %v3126 = vld [vmem:[#allocation14 + $0xc3c] sm:$0xf]
    %v3127 = vld [vmem:[#allocation14 + $0xc40] sm:$0xff]
    %v3128 = vld [vmem:[#allocation14 + $0xc48] sm:$0xff]
    %v3129 = vld [vmem:[#allocation14 + $0xc50] sm:$0xff]
    %v3130 = vld [vmem:[#allocation14 + $0xc58] sm:$0xf]
    %v3131 = vld [vmem:[#allocation14 + $0xc5c] sm:$0xff]
    %v3132 = vld [vmem:[#allocation14 + $0xc64] sm:$0xff]
    %v3133 = vld [vmem:[#allocation14 + $0xc6c] sm:$0xff]
    %v3134 = vld [vmem:[#allocation14 + $0xc74] sm:$0xf]
    %v3135 = vld [vmem:[#allocation14 + $0xc78] sm:$0xff]
    %v3136 = vld [vmem:[#allocation14 + $0xc80] sm:$0xff]
    %v3137 = vld [vmem:[#allocation14 + $0xc88] sm:$0xff]
    %v3138 = vld [vmem:[#allocation14 + $0xc90] sm:$0xf]
    %v3139 = vld [vmem:[#allocation14 + $0xc94] sm:$0xff]
    %v3140 = vld [vmem:[#allocation14 + $0xc9c] sm:$0xff]
    %v3141 = vld [vmem:[#allocation14 + $0xca4] sm:$0xff]
    %v3142 = vld [vmem:[#allocation14 + $0xcac] sm:$0xf]
    %v3143 = vld [vmem:[#allocation14 + $0xcb0] sm:$0xff]
    %v3144 = vld [vmem:[#allocation14 + $0xcb8] sm:$0xff]
    %v3145 = vld [vmem:[#allocation14 + $0xcc0] sm:$0xff]
    %v3146 = vld [vmem:[#allocation14 + $0xcc8] sm:$0xf]
    %v3147 = vld [vmem:[#allocation14 + $0xccc] sm:$0xff]
    %v3148 = vld [vmem:[#allocation14 + $0xcd4] sm:$0xff]
    %v3149 = vld [vmem:[#allocation14 + $0xcdc] sm:$0xff]
    %v3150 = vld [vmem:[#allocation14 + $0xce4] sm:$0xf]
    %v3151 = vld [vmem:[#allocation14 + $0xce8] sm:$0xff]
    %v3152 = vld [vmem:[#allocation14 + $0xcf0] sm:$0xff]
    %v3153 = vld [vmem:[#allocation14 + $0xcf8] sm:$0xff]
    %v3154 = vld [vmem:[#allocation14 + $0xd00] sm:$0xf]
    %v3155 = vld [vmem:[#allocation14 + $0xd04] sm:$0xff]
    %v3156 = vld [vmem:[#allocation14 + $0xd0c] sm:$0xff]
    %v3157 = vld [vmem:[#allocation14 + $0xd14] sm:$0xff]
    %v3158 = vld [vmem:[#allocation14 + $0xd1c] sm:$0xf]
    %v3159 = vld [vmem:[#allocation14 + $0xd20] sm:$0xff]
    %v3160 = vld [vmem:[#allocation14 + $0xd28] sm:$0xff]
    %v3161 = vld [vmem:[#allocation14 + $0xd30] sm:$0xff]
    %v3162 = vld [vmem:[#allocation14 + $0xd38] sm:$0xf]
    %v3163 = vld [vmem:[#allocation14 + $0xd3c] sm:$0xff]
    %v3164 = vld [vmem:[#allocation14 + $0xd44] sm:$0xff]
    %v3165 = vld [vmem:[#allocation14 + $0xd4c] sm:$0xff]
    %v3166 = vld [vmem:[#allocation14 + $0xd54] sm:$0xf]
    %v3167 = vld [vmem:[#allocation14 + $0xd58] sm:$0xff]
    %v3168 = vld [vmem:[#allocation14 + $0xd60] sm:$0xff]
    %v3169 = vld [vmem:[#allocation14 + $0xd68] sm:$0xff]
    %v3170 = vld [vmem:[#allocation14 + $0xd70] sm:$0xf]
    %v3171 = vld [vmem:[#allocation14 + $0xd74] sm:$0xff]
    %v3172 = vld [vmem:[#allocation14 + $0xd7c] sm:$0xff]
    %v3173 = vld [vmem:[#allocation14 + $0xd84] sm:$0xff]
    %v3174 = vld [vmem:[#allocation14 + $0xd8c] sm:$0xf]
    %v3175 = vld [vmem:[#allocation14 + $0xd90] sm:$0xff]
    %v3176 = vld [vmem:[#allocation14 + $0xd98] sm:$0xff]
    %v3177 = vld [vmem:[#allocation14 + $0xda0] sm:$0xff]
    %v3178 = vld [vmem:[#allocation14 + $0xda8] sm:$0xf]
    %v3179 = vld [vmem:[#allocation14 + $0xdac] sm:$0xff]
    %v3180 = vld [vmem:[#allocation14 + $0xdb4] sm:$0xff]
    %v3181 = vld [vmem:[#allocation14 + $0xdbc] sm:$0xff]
    %v3182 = vld [vmem:[#allocation14 + $0xdc4] sm:$0xf]
    %v3183 = vld [vmem:[#allocation14 + $0xdc8] sm:$0xff]
    %v3184 = vld [vmem:[#allocation14 + $0xdd0] sm:$0xff]
    %v3185 = vld [vmem:[#allocation14 + $0xdd8] sm:$0xff]
    %v3186 = vld [vmem:[#allocation14 + $0xde0] sm:$0xf]
    %v3187 = vld [vmem:[#allocation14 + $0xde4] sm:$0xff]
    %v3188 = vld [vmem:[#allocation14 + $0xdec] sm:$0xff]
    %v3189 = vld [vmem:[#allocation14 + $0xdf4] sm:$0xff]
    %v3190 = vld [vmem:[#allocation14 + $0xdfc] sm:$0xf]
    %v3191 = vld [vmem:[#allocation16] sm:$0xff]
    %v3193 = vlaneseq
    %v3194 = vshrl.u32 %v3193, 7
    %v3195 = vsub.s32 0, %v3194
    %v3196 = vrot.slane %v3191, %v3195
    %v3197 = vlaneseq
    %v3198 = vshrl.u32 %v3197, 7
    %v3199 = vsub.s32 1, %v3198
    %v3200 = vrot.slane %v3191, %v3199
    %v3201 = vlaneseq
    %v3202 = vshrl.u32 %v3201, 7
    %v3203 = vsub.s32 2, %v3202
    %v3204 = vrot.slane %v3191, %v3203
    %v3205 = vlaneseq
    %v3206 = vshrl.u32 %v3205, 7
    %v3207 = vsub.s32 3, %v3206
    %v3208 = vrot.slane %v3191, %v3207
    %v3209 = vlaneseq
    %v3210 = vshrl.u32 %v3209, 7
    %v3211 = vsub.s32 4, %v3210
    %v3212 = vrot.slane %v3191, %v3211
    %v3213 = vlaneseq
    %v3214 = vshrl.u32 %v3213, 7
    %v3215 = vsub.s32 5, %v3214
    %v3216 = vrot.slane %v3191, %v3215
    %v3217 = vlaneseq
    %v3218 = vshrl.u32 %v3217, 7
    %v3219 = vsub.s32 6, %v3218
    %v3220 = vrot.slane %v3191, %v3219
    %v3740 = vunpack.c.l.b16 %v2679
    %v3741 = vunpack.c.h.b16 %v2679
    %v3742 = vunpack.c.l.b16 %v2680
    %v3743 = vunpack.c.h.b16 %v2680
    %v3744 = vunpack.c.l.b16 %v2681
    %v3745 = vunpack.c.h.b16 %v2681
    %v3746 = vunpack.c.l.b16 %v2682
    %v3747 = vunpack.c.l.b16 %v2683
    %v3748 = vunpack.c.h.b16 %v2683
    %v3749 = vunpack.c.l.b16 %v2684
    %v3750 = vunpack.c.h.b16 %v2684
    %v3751 = vunpack.c.l.b16 %v2685
    %v3752 = vunpack.c.h.b16 %v2685
    %v3753 = vunpack.c.l.b16 %v2686
    %v3754 = vunpack.c.l.b16 %v2687
    %v3755 = vunpack.c.h.b16 %v2687
    %v3756 = vunpack.c.l.b16 %v2688
    %v3757 = vunpack.c.h.b16 %v2688
    %v3758 = vunpack.c.l.b16 %v2689
    %v3759 = vunpack.c.h.b16 %v2689
    %v3760 = vunpack.c.l.b16 %v2690
    %v3761 = vunpack.c.l.b16 %v2691
    %v3762 = vunpack.c.h.b16 %v2691
    %v3763 = vunpack.c.l.b16 %v2692
    %v3764 = vunpack.c.h.b16 %v2692
    %v3765 = vunpack.c.l.b16 %v2693
    %v3766 = vunpack.c.h.b16 %v2693
    %v3767 = vunpack.c.l.b16 %v2694
    %v3768 = vunpack.c.l.b16 %v2695
    %v3769 = vunpack.c.h.b16 %v2695
    %v3770 = vunpack.c.l.b16 %v2696
    %v3771 = vunpack.c.h.b16 %v2696
    %v3772 = vunpack.c.l.b16 %v2697
    %v3773 = vunpack.c.h.b16 %v2697
    %v3774 = vunpack.c.l.b16 %v2698
    %v3775 = vunpack.c.l.b16 %v2699
    %v3776 = vunpack.c.h.b16 %v2699
    %v3777 = vunpack.c.l.b16 %v2700
    %v3778 = vunpack.c.h.b16 %v2700
    %v3779 = vunpack.c.l.b16 %v2701
    %v3780 = vunpack.c.h.b16 %v2701
    %v3781 = vunpack.c.l.b16 %v2702
    %v3782 = vunpack.c.l.b16 %v2703
    %v3783 = vunpack.c.h.b16 %v2703
    %v3784 = vunpack.c.l.b16 %v2704
    %v3785 = vunpack.c.h.b16 %v2704
    %v3786 = vunpack.c.l.b16 %v2705
    %v3787 = vunpack.c.h.b16 %v2705
    %v3788 = vunpack.c.l.b16 %v2706
    %v3789 = vunpack.c.l.b16 %v2707
    %v3790 = vunpack.c.h.b16 %v2707
    %v3791 = vunpack.c.l.b16 %v2708
    %v3792 = vunpack.c.h.b16 %v2708
    %v3793 = vunpack.c.l.b16 %v2709
    %v3794 = vunpack.c.h.b16 %v2709
    %v3795 = vunpack.c.l.b16 %v2710
    %v3796 = vunpack.c.l.b16 %v2711
    %v3797 = vunpack.c.h.b16 %v2711
    %v3798 = vunpack.c.l.b16 %v2712
    %v3799 = vunpack.c.h.b16 %v2712
    %v3800 = vunpack.c.l.b16 %v2713
    %v3801 = vunpack.c.h.b16 %v2713
    %v3802 = vunpack.c.l.b16 %v2714
    %v3803 = vunpack.c.l.b16 %v2715
    %v3804 = vunpack.c.h.b16 %v2715
    %v3805 = vunpack.c.l.b16 %v2716
    %v3806 = vunpack.c.h.b16 %v2716
    %v3807 = vunpack.c.l.b16 %v2717
    %v3808 = vunpack.c.h.b16 %v2717
    %v3809 = vunpack.c.l.b16 %v2718
    %v3810 = vunpack.c.l.b16 %v2719
    %v3811 = vunpack.c.h.b16 %v2719
    %v3812 = vunpack.c.l.b16 %v2720
    %v3813 = vunpack.c.h.b16 %v2720
    %v3814 = vunpack.c.l.b16 %v2721
    %v3815 = vunpack.c.h.b16 %v2721
    %v3816 = vunpack.c.l.b16 %v2722
    %v3817 = vunpack.c.l.b16 %v2723
    %v3818 = vunpack.c.h.b16 %v2723
    %v3819 = vunpack.c.l.b16 %v2724
    %v3820 = vunpack.c.h.b16 %v2724
    %v3821 = vunpack.c.l.b16 %v2725
    %v3822 = vunpack.c.h.b16 %v2725
    %v3823 = vunpack.c.l.b16 %v2726
    %v3824 = vunpack.c.l.b16 %v2727
    %v3825 = vunpack.c.h.b16 %v2727
    %v3826 = vunpack.c.l.b16 %v2728
    %v3827 = vunpack.c.h.b16 %v2728
    %v3828 = vunpack.c.l.b16 %v2729
    %v3829 = vunpack.c.h.b16 %v2729
    %v3830 = vunpack.c.l.b16 %v2730
    %v3831 = vunpack.c.l.b16 %v2731
    %v3832 = vunpack.c.h.b16 %v2731
    %v3833 = vunpack.c.l.b16 %v2732
    %v3834 = vunpack.c.h.b16 %v2732
    %v3835 = vunpack.c.l.b16 %v2733
    %v3836 = vunpack.c.h.b16 %v2733
    %v3837 = vunpack.c.l.b16 %v2734
    %v3838 = vunpack.c.l.b16 %v2735
    %v3839 = vunpack.c.h.b16 %v2735
    %v3840 = vunpack.c.l.b16 %v2736
    %v3841 = vunpack.c.h.b16 %v2736
    %v3842 = vunpack.c.l.b16 %v2737
    %v3843 = vunpack.c.h.b16 %v2737
    %v3844 = vunpack.c.l.b16 %v2738
    %v3845 = vunpack.c.l.b16 %v2739
    %v3846 = vunpack.c.h.b16 %v2739
    %v3847 = vunpack.c.l.b16 %v2740
    %v3848 = vunpack.c.h.b16 %v2740
    %v3849 = vunpack.c.l.b16 %v2741
    %v3850 = vunpack.c.h.b16 %v2741
    %v3851 = vunpack.c.l.b16 %v2742
    %v3852 = vunpack.c.l.b16 %v2743
    %v3853 = vunpack.c.h.b16 %v2743
    %v3854 = vunpack.c.l.b16 %v2744
    %v3855 = vunpack.c.h.b16 %v2744
    %v3856 = vunpack.c.l.b16 %v2745
    %v3857 = vunpack.c.h.b16 %v2745
    %v3858 = vunpack.c.l.b16 %v2746
    %v3859 = vunpack.c.l.b16 %v2747
    %v3860 = vunpack.c.h.b16 %v2747
    %v3861 = vunpack.c.l.b16 %v2748
    %v3862 = vunpack.c.h.b16 %v2748
    %v3863 = vunpack.c.l.b16 %v2749
    %v3864 = vunpack.c.h.b16 %v2749
    %v3865 = vunpack.c.l.b16 %v2750
    %v3866 = vunpack.c.l.b16 %v2751
    %v3867 = vunpack.c.h.b16 %v2751
    %v3868 = vunpack.c.l.b16 %v2752
    %v3869 = vunpack.c.h.b16 %v2752
    %v3870 = vunpack.c.l.b16 %v2753
    %v3871 = vunpack.c.h.b16 %v2753
    %v3872 = vunpack.c.l.b16 %v2754
    %v3873 = vunpack.c.l.b16 %v2755
    %v3874 = vunpack.c.h.b16 %v2755
    %v3875 = vunpack.c.l.b16 %v2756
    %v3876 = vunpack.c.h.b16 %v2756
    %v3877 = vunpack.c.l.b16 %v2757
    %v3878 = vunpack.c.h.b16 %v2757
    %v3879 = vunpack.c.l.b16 %v2758
    %v3880 = vunpack.c.l.b16 %v2759
    %v3881 = vunpack.c.h.b16 %v2759
    %v3882 = vunpack.c.l.b16 %v2760
    %v3883 = vunpack.c.h.b16 %v2760
    %v3884 = vunpack.c.l.b16 %v2761
    %v3885 = vunpack.c.h.b16 %v2761
    %v3886 = vunpack.c.l.b16 %v2762
    %v3887 = vunpack.c.l.b16 %v2763
    %v3888 = vunpack.c.h.b16 %v2763
    %v3889 = vunpack.c.l.b16 %v2764
    %v3890 = vunpack.c.h.b16 %v2764
    %v3891 = vunpack.c.l.b16 %v2765
    %v3892 = vunpack.c.h.b16 %v2765
    %v3893 = vunpack.c.l.b16 %v2766
    %v3894 = vunpack.c.l.b16 %v2767
    %v3895 = vunpack.c.h.b16 %v2767
    %v3896 = vunpack.c.l.b16 %v2768
    %v3897 = vunpack.c.h.b16 %v2768
    %v3898 = vunpack.c.l.b16 %v2769
    %v3899 = vunpack.c.h.b16 %v2769
    %v3900 = vunpack.c.l.b16 %v2770
    %v3901 = vunpack.c.l.b16 %v2771
    %v3902 = vunpack.c.h.b16 %v2771
    %v3903 = vunpack.c.l.b16 %v2772
    %v3904 = vunpack.c.h.b16 %v2772
    %v3905 = vunpack.c.l.b16 %v2773
    %v3906 = vunpack.c.h.b16 %v2773
    %v3907 = vunpack.c.l.b16 %v2774
    %v3908 = vunpack.c.l.b16 %v2775
    %v3909 = vunpack.c.h.b16 %v2775
    %v3910 = vunpack.c.l.b16 %v2776
    %v3911 = vunpack.c.h.b16 %v2776
    %v3912 = vunpack.c.l.b16 %v2777
    %v3913 = vunpack.c.h.b16 %v2777
    %v3914 = vunpack.c.l.b16 %v2778
    %v3915 = vunpack.c.l.b16 %v2779
    %v3916 = vunpack.c.h.b16 %v2779
    %v3917 = vunpack.c.l.b16 %v2780
    %v3918 = vunpack.c.h.b16 %v2780
    %v3919 = vunpack.c.l.b16 %v2781
    %v3920 = vunpack.c.h.b16 %v2781
    %v3921 = vunpack.c.l.b16 %v2782
    %v3922 = vunpack.c.l.b16 %v2783
    %v3923 = vunpack.c.h.b16 %v2783
    %v3924 = vunpack.c.l.b16 %v2784
    %v3925 = vunpack.c.h.b16 %v2784
    %v3926 = vunpack.c.l.b16 %v2785
    %v3927 = vunpack.c.h.b16 %v2785
    %v3928 = vunpack.c.l.b16 %v2786
    %v3929 = vunpack.c.l.b16 %v2787
    %v3930 = vunpack.c.h.b16 %v2787
    %v3931 = vunpack.c.l.b16 %v2788
    %v3932 = vunpack.c.h.b16 %v2788
    %v3933 = vunpack.c.l.b16 %v2789
    %v3934 = vunpack.c.h.b16 %v2789
    %v3935 = vunpack.c.l.b16 %v2790
    %v3936 = vunpack.c.l.b16 %v2791
    %v3937 = vunpack.c.h.b16 %v2791
    %v3938 = vunpack.c.l.b16 %v2792
    %v3939 = vunpack.c.h.b16 %v2792
    %v3940 = vunpack.c.l.b16 %v2793
    %v3941 = vunpack.c.h.b16 %v2793
    %v3942 = vunpack.c.l.b16 %v2794
    %v3943 = vunpack.c.l.b16 %v2795
    %v3944 = vunpack.c.h.b16 %v2795
    %v3945 = vunpack.c.l.b16 %v2796
    %v3946 = vunpack.c.h.b16 %v2796
    %v3947 = vunpack.c.l.b16 %v2797
    %v3948 = vunpack.c.h.b16 %v2797
    %v3949 = vunpack.c.l.b16 %v2798
    %v3950 = vunpack.c.l.b16 %v2799
    %v3951 = vunpack.c.h.b16 %v2799
    %v3952 = vunpack.c.l.b16 %v2800
    %v3953 = vunpack.c.h.b16 %v2800
    %v3954 = vunpack.c.l.b16 %v2801
    %v3955 = vunpack.c.h.b16 %v2801
    %v3956 = vunpack.c.l.b16 %v2802
    %v3957 = vunpack.c.l.b16 %v2803
    %v3958 = vunpack.c.h.b16 %v2803
    %v3959 = vunpack.c.l.b16 %v2804
    %v3960 = vunpack.c.h.b16 %v2804
    %v3961 = vunpack.c.l.b16 %v2805
    %v3962 = vunpack.c.h.b16 %v2805
    %v3963 = vunpack.c.l.b16 %v2806
    %v3964 = vunpack.c.l.b16 %v2807
    %v3965 = vunpack.c.h.b16 %v2807
    %v3966 = vunpack.c.l.b16 %v2808
    %v3967 = vunpack.c.h.b16 %v2808
    %v3968 = vunpack.c.l.b16 %v2809
    %v3969 = vunpack.c.h.b16 %v2809
    %v3970 = vunpack.c.l.b16 %v2810
    %v3971 = vunpack.c.l.b16 %v2811
    %v3972 = vunpack.c.h.b16 %v2811
    %v3973 = vunpack.c.l.b16 %v2812
    %v3974 = vunpack.c.h.b16 %v2812
    %v3975 = vunpack.c.l.b16 %v2813
    %v3976 = vunpack.c.h.b16 %v2813
    %v3977 = vunpack.c.l.b16 %v2814
    %v3978 = vunpack.c.l.b16 %v2815
    %v3979 = vunpack.c.h.b16 %v2815
    %v3980 = vunpack.c.l.b16 %v2816
    %v3981 = vunpack.c.h.b16 %v2816
    %v3982 = vunpack.c.l.b16 %v2817
    %v3983 = vunpack.c.h.b16 %v2817
    %v3984 = vunpack.c.l.b16 %v2818
    %v3985 = vunpack.c.l.b16 %v2819
    %v3986 = vunpack.c.h.b16 %v2819
    %v3987 = vunpack.c.l.b16 %v2820
    %v3988 = vunpack.c.h.b16 %v2820
    %v3989 = vunpack.c.l.b16 %v2821
    %v3990 = vunpack.c.h.b16 %v2821
    %v3991 = vunpack.c.l.b16 %v2822
    %v3992 = vunpack.c.l.b16 %v2823
    %v3993 = vunpack.c.h.b16 %v2823
    %v3994 = vunpack.c.l.b16 %v2824
    %v3995 = vunpack.c.h.b16 %v2824
    %v3996 = vunpack.c.l.b16 %v2825
    %v3997 = vunpack.c.h.b16 %v2825
    %v3998 = vunpack.c.l.b16 %v2826
    %v3999 = vunpack.c.l.b16 %v2827
    %v4000 = vunpack.c.h.b16 %v2827
    %v4001 = vunpack.c.l.b16 %v2828
    %v4002 = vunpack.c.h.b16 %v2828
    %v4003 = vunpack.c.l.b16 %v2829
    %v4004 = vunpack.c.h.b16 %v2829
    %v4005 = vunpack.c.l.b16 %v2830
    %v4006 = vunpack.c.l.b16 %v2831
    %v4007 = vunpack.c.h.b16 %v2831
    %v4008 = vunpack.c.l.b16 %v2832
    %v4009 = vunpack.c.h.b16 %v2832
    %v4010 = vunpack.c.l.b16 %v2833
    %v4011 = vunpack.c.h.b16 %v2833
    %v4012 = vunpack.c.l.b16 %v2834
    %v4013 = vunpack.c.l.b16 %v2835
    %v4014 = vunpack.c.h.b16 %v2835
    %v4015 = vunpack.c.l.b16 %v2836
    %v4016 = vunpack.c.h.b16 %v2836
    %v4017 = vunpack.c.l.b16 %v2837
    %v4018 = vunpack.c.h.b16 %v2837
    %v4019 = vunpack.c.l.b16 %v2838
    %v4020 = vunpack.c.l.b16 %v2839
    %v4021 = vunpack.c.h.b16 %v2839
    %v4022 = vunpack.c.l.b16 %v2840
    %v4023 = vunpack.c.h.b16 %v2840
    %v4024 = vunpack.c.l.b16 %v2841
    %v4025 = vunpack.c.h.b16 %v2841
    %v4026 = vunpack.c.l.b16 %v2842
    %v4027 = vunpack.c.l.b16 %v2843
    %v4028 = vunpack.c.h.b16 %v2843
    %v4029 = vunpack.c.l.b16 %v2844
    %v4030 = vunpack.c.h.b16 %v2844
    %v4031 = vunpack.c.l.b16 %v2845
    %v4032 = vunpack.c.h.b16 %v2845
    %v4033 = vunpack.c.l.b16 %v2846
    %v4034 = vunpack.c.l.b16 %v2847
    %v4035 = vunpack.c.h.b16 %v2847
    %v4036 = vunpack.c.l.b16 %v2848
    %v4037 = vunpack.c.h.b16 %v2848
    %v4038 = vunpack.c.l.b16 %v2849
    %v4039 = vunpack.c.h.b16 %v2849
    %v4040 = vunpack.c.l.b16 %v2850
    %v4041 = vunpack.c.l.b16 %v2851
    %v4042 = vunpack.c.h.b16 %v2851
    %v4043 = vunpack.c.l.b16 %v2852
    %v4044 = vunpack.c.h.b16 %v2852
    %v4045 = vunpack.c.l.b16 %v2853
    %v4046 = vunpack.c.h.b16 %v2853
    %v4047 = vunpack.c.l.b16 %v2854
    %v4048 = vunpack.c.l.b16 %v2855
    %v4049 = vunpack.c.h.b16 %v2855
    %v4050 = vunpack.c.l.b16 %v2856
    %v4051 = vunpack.c.h.b16 %v2856
    %v4052 = vunpack.c.l.b16 %v2857
    %v4053 = vunpack.c.h.b16 %v2857
    %v4054 = vunpack.c.l.b16 %v2858
    %v4055 = vunpack.c.l.b16 %v2859
    %v4056 = vunpack.c.h.b16 %v2859
    %v4057 = vunpack.c.l.b16 %v2860
    %v4058 = vunpack.c.h.b16 %v2860
    %v4059 = vunpack.c.l.b16 %v2861
    %v4060 = vunpack.c.h.b16 %v2861
    %v4061 = vunpack.c.l.b16 %v2862
    %v4062 = vunpack.c.l.b16 %v2863
    %v4063 = vunpack.c.h.b16 %v2863
    %v4064 = vunpack.c.l.b16 %v2864
    %v4065 = vunpack.c.h.b16 %v2864
    %v4066 = vunpack.c.l.b16 %v2865
    %v4067 = vunpack.c.h.b16 %v2865
    %v4068 = vunpack.c.l.b16 %v2866
    %v4069 = vunpack.c.l.b16 %v2867
    %v4070 = vunpack.c.h.b16 %v2867
    %v4071 = vunpack.c.l.b16 %v2868
    %v4072 = vunpack.c.h.b16 %v2868
    %v4073 = vunpack.c.l.b16 %v2869
    %v4074 = vunpack.c.h.b16 %v2869
    %v4075 = vunpack.c.l.b16 %v2870
    %v4076 = vunpack.c.l.b16 %v2871
    %v4077 = vunpack.c.h.b16 %v2871
    %v4078 = vunpack.c.l.b16 %v2872
    %v4079 = vunpack.c.h.b16 %v2872
    %v4080 = vunpack.c.l.b16 %v2873
    %v4081 = vunpack.c.h.b16 %v2873
    %v4082 = vunpack.c.l.b16 %v2874
    %v4083 = vunpack.c.l.b16 %v2875
    %v4084 = vunpack.c.h.b16 %v2875
    %v4085 = vunpack.c.l.b16 %v2876
    %v4086 = vunpack.c.h.b16 %v2876
    %v4087 = vunpack.c.l.b16 %v2877
    %v4088 = vunpack.c.h.b16 %v2877
    %v4089 = vunpack.c.l.b16 %v2878
    %v4090 = vunpack.c.l.b16 %v2879
    %v4091 = vunpack.c.h.b16 %v2879
    %v4092 = vunpack.c.l.b16 %v2880
    %v4093 = vunpack.c.h.b16 %v2880
    %v4094 = vunpack.c.l.b16 %v2881
    %v4095 = vunpack.c.h.b16 %v2881
    %v4096 = vunpack.c.l.b16 %v2882
    %v4097 = vunpack.c.l.b16 %v2883
    %v4098 = vunpack.c.h.b16 %v2883
    %v4099 = vunpack.c.l.b16 %v2884
    %v4100 = vunpack.c.h.b16 %v2884
    %v4101 = vunpack.c.l.b16 %v2885
    %v4102 = vunpack.c.h.b16 %v2885
    %v4103 = vunpack.c.l.b16 %v2886
    %v4104 = vunpack.c.l.b16 %v2887
    %v4105 = vunpack.c.h.b16 %v2887
    %v4106 = vunpack.c.l.b16 %v2888
    %v4107 = vunpack.c.h.b16 %v2888
    %v4108 = vunpack.c.l.b16 %v2889
    %v4109 = vunpack.c.h.b16 %v2889
    %v4110 = vunpack.c.l.b16 %v2890
    %v4111 = vunpack.c.l.b16 %v2891
    %v4112 = vunpack.c.h.b16 %v2891
    %v4113 = vunpack.c.l.b16 %v2892
    %v4114 = vunpack.c.h.b16 %v2892
    %v4115 = vunpack.c.l.b16 %v2893
    %v4116 = vunpack.c.h.b16 %v2893
    %v4117 = vunpack.c.l.b16 %v2894
    %v4118 = vunpack.c.l.b16 %v2895
    %v4119 = vunpack.c.h.b16 %v2895
    %v4120 = vunpack.c.l.b16 %v2896
    %v4121 = vunpack.c.h.b16 %v2896
    %v4122 = vunpack.c.l.b16 %v2897
    %v4123 = vunpack.c.h.b16 %v2897
    %v4124 = vunpack.c.l.b16 %v2898
    %v4125 = vunpack.c.l.b16 %v2899
    %v4126 = vunpack.c.h.b16 %v2899
    %v4127 = vunpack.c.l.b16 %v2900
    %v4128 = vunpack.c.h.b16 %v2900
    %v4129 = vunpack.c.l.b16 %v2901
    %v4130 = vunpack.c.h.b16 %v2901
    %v4131 = vunpack.c.l.b16 %v2902
    %v4132 = vunpack.c.l.b16 %v2903
    %v4133 = vunpack.c.h.b16 %v2903
    %v4134 = vunpack.c.l.b16 %v2904
    %v4135 = vunpack.c.h.b16 %v2904
    %v4136 = vunpack.c.l.b16 %v2905
    %v4137 = vunpack.c.h.b16 %v2905
    %v4138 = vunpack.c.l.b16 %v2906
    %v4139 = vunpack.c.l.b16 %v2907
    %v4140 = vunpack.c.h.b16 %v2907
    %v4141 = vunpack.c.l.b16 %v2908
    %v4142 = vunpack.c.h.b16 %v2908
    %v4143 = vunpack.c.l.b16 %v2909
    %v4144 = vunpack.c.h.b16 %v2909
    %v4145 = vunpack.c.l.b16 %v2910
    %v4146 = vunpack.c.l.b16 %v2911
    %v4147 = vunpack.c.h.b16 %v2911
    %v4148 = vunpack.c.l.b16 %v2912
    %v4149 = vunpack.c.h.b16 %v2912
    %v4150 = vunpack.c.l.b16 %v2913
    %v4151 = vunpack.c.h.b16 %v2913
    %v4152 = vunpack.c.l.b16 %v2914
    %v4153 = vunpack.c.l.b16 %v2915
    %v4154 = vunpack.c.h.b16 %v2915
    %v4155 = vunpack.c.l.b16 %v2916
    %v4156 = vunpack.c.h.b16 %v2916
    %v4157 = vunpack.c.l.b16 %v2917
    %v4158 = vunpack.c.h.b16 %v2917
    %v4159 = vunpack.c.l.b16 %v2918
    %v4160 = vunpack.c.l.b16 %v2919
    %v4161 = vunpack.c.h.b16 %v2919
    %v4162 = vunpack.c.l.b16 %v2920
    %v4163 = vunpack.c.h.b16 %v2920
    %v4164 = vunpack.c.l.b16 %v2921
    %v4165 = vunpack.c.h.b16 %v2921
    %v4166 = vunpack.c.l.b16 %v2922
    %v4167 = vunpack.c.l.b16 %v2923
    %v4168 = vunpack.c.h.b16 %v2923
    %v4169 = vunpack.c.l.b16 %v2924
    %v4170 = vunpack.c.h.b16 %v2924
    %v4171 = vunpack.c.l.b16 %v2925
    %v4172 = vunpack.c.h.b16 %v2925
    %v4173 = vunpack.c.l.b16 %v2926
    %v4174 = vunpack.c.l.b16 %v2927
    %v4175 = vunpack.c.h.b16 %v2927
    %v4176 = vunpack.c.l.b16 %v2928
    %v4177 = vunpack.c.h.b16 %v2928
    %v4178 = vunpack.c.l.b16 %v2929
    %v4179 = vunpack.c.h.b16 %v2929
    %v4180 = vunpack.c.l.b16 %v2930
    %v4181 = vunpack.c.l.b16 %v2931
    %v4182 = vunpack.c.h.b16 %v2931
    %v4183 = vunpack.c.l.b16 %v2932
    %v4184 = vunpack.c.h.b16 %v2932
    %v4185 = vunpack.c.l.b16 %v2933
    %v4186 = vunpack.c.h.b16 %v2933
    %v4187 = vunpack.c.l.b16 %v2934
    %v4188 = vunpack.c.l.b16 %v2935
    %v4189 = vunpack.c.h.b16 %v2935
    %v4190 = vunpack.c.l.b16 %v2936
    %v4191 = vunpack.c.h.b16 %v2936
    %v4192 = vunpack.c.l.b16 %v2937
    %v4193 = vunpack.c.h.b16 %v2937
    %v4194 = vunpack.c.l.b16 %v2938
    %v4195 = vunpack.c.l.b16 %v2939
    %v4196 = vunpack.c.h.b16 %v2939
    %v4197 = vunpack.c.l.b16 %v2940
    %v4198 = vunpack.c.h.b16 %v2940
    %v4199 = vunpack.c.l.b16 %v2941
    %v4200 = vunpack.c.h.b16 %v2941
    %v4201 = vunpack.c.l.b16 %v2942
    %v4202 = vunpack.c.l.b16 %v2943
    %v4203 = vunpack.c.h.b16 %v2943
    %v4204 = vunpack.c.l.b16 %v2944
    %v4205 = vunpack.c.h.b16 %v2944
    %v4206 = vunpack.c.l.b16 %v2945
    %v4207 = vunpack.c.h.b16 %v2945
    %v4208 = vunpack.c.l.b16 %v2946
    %v4209 = vunpack.c.l.b16 %v2947
    %v4210 = vunpack.c.h.b16 %v2947
    %v4211 = vunpack.c.l.b16 %v2948
    %v4212 = vunpack.c.h.b16 %v2948
    %v4213 = vunpack.c.l.b16 %v2949
    %v4214 = vunpack.c.h.b16 %v2949
    %v4215 = vunpack.c.l.b16 %v2950
    %v4216 = vunpack.c.l.b16 %v2951
    %v4217 = vunpack.c.h.b16 %v2951
    %v4218 = vunpack.c.l.b16 %v2952
    %v4219 = vunpack.c.h.b16 %v2952
    %v4220 = vunpack.c.l.b16 %v2953
    %v4221 = vunpack.c.h.b16 %v2953
    %v4222 = vunpack.c.l.b16 %v2954
    %v4223 = vunpack.c.l.b16 %v2955
    %v4224 = vunpack.c.h.b16 %v2955
    %v4225 = vunpack.c.l.b16 %v2956
    %v4226 = vunpack.c.h.b16 %v2956
    %v4227 = vunpack.c.l.b16 %v2957
    %v4228 = vunpack.c.h.b16 %v2957
    %v4229 = vunpack.c.l.b16 %v2958
    %v4230 = vunpack.c.l.b16 %v2959
    %v4231 = vunpack.c.h.b16 %v2959
    %v4232 = vunpack.c.l.b16 %v2960
    %v4233 = vunpack.c.h.b16 %v2960
    %v4234 = vunpack.c.l.b16 %v2961
    %v4235 = vunpack.c.h.b16 %v2961
    %v4236 = vunpack.c.l.b16 %v2962
    %v4237 = vunpack.c.l.b16 %v2963
    %v4238 = vunpack.c.h.b16 %v2963
    %v4239 = vunpack.c.l.b16 %v2964
    %v4240 = vunpack.c.h.b16 %v2964
    %v4241 = vunpack.c.l.b16 %v2965
    %v4242 = vunpack.c.h.b16 %v2965
    %v4243 = vunpack.c.l.b16 %v2966
    %v4244 = vunpack.c.l.b16 %v2967
    %v4245 = vunpack.c.h.b16 %v2967
    %v4246 = vunpack.c.l.b16 %v2968
    %v4247 = vunpack.c.h.b16 %v2968
    %v4248 = vunpack.c.l.b16 %v2969
    %v4249 = vunpack.c.h.b16 %v2969
    %v4250 = vunpack.c.l.b16 %v2970
    %v4251 = vunpack.c.l.b16 %v2971
    %v4252 = vunpack.c.h.b16 %v2971
    %v4253 = vunpack.c.l.b16 %v2972
    %v4254 = vunpack.c.h.b16 %v2972
    %v4255 = vunpack.c.l.b16 %v2973
    %v4256 = vunpack.c.h.b16 %v2973
    %v4257 = vunpack.c.l.b16 %v2974
    %v4258 = vunpack.c.l.b16 %v2975
    %v4259 = vunpack.c.h.b16 %v2975
    %v4260 = vunpack.c.l.b16 %v2976
    %v4261 = vunpack.c.h.b16 %v2976
    %v4262 = vunpack.c.l.b16 %v2977
    %v4263 = vunpack.c.h.b16 %v2977
    %v4264 = vunpack.c.l.b16 %v2978
    %v4265 = vunpack.c.l.b16 %v2979
    %v4266 = vunpack.c.h.b16 %v2979
    %v4267 = vunpack.c.l.b16 %v2980
    %v4268 = vunpack.c.h.b16 %v2980
    %v4269 = vunpack.c.l.b16 %v2981
    %v4270 = vunpack.c.h.b16 %v2981
    %v4271 = vunpack.c.l.b16 %v2982
    %v4272 = vunpack.c.l.b16 %v2983
    %v4273 = vunpack.c.h.b16 %v2983
    %v4274 = vunpack.c.l.b16 %v2984
    %v4275 = vunpack.c.h.b16 %v2984
    %v4276 = vunpack.c.l.b16 %v2985
    %v4277 = vunpack.c.h.b16 %v2985
    %v4278 = vunpack.c.l.b16 %v2986
    %v4279 = vunpack.c.l.b16 %v2987
    %v4280 = vunpack.c.h.b16 %v2987
    %v4281 = vunpack.c.l.b16 %v2988
    %v4282 = vunpack.c.h.b16 %v2988
    %v4283 = vunpack.c.l.b16 %v2989
    %v4284 = vunpack.c.h.b16 %v2989
    %v4285 = vunpack.c.l.b16 %v2990
    %v4286 = vunpack.c.l.b16 %v2991
    %v4287 = vunpack.c.h.b16 %v2991
    %v4288 = vunpack.c.l.b16 %v2992
    %v4289 = vunpack.c.h.b16 %v2992
    %v4290 = vunpack.c.l.b16 %v2993
    %v4291 = vunpack.c.h.b16 %v2993
    %v4292 = vunpack.c.l.b16 %v2994
    %v4293 = vunpack.c.l.b16 %v2995
    %v4294 = vunpack.c.h.b16 %v2995
    %v4295 = vunpack.c.l.b16 %v2996
    %v4296 = vunpack.c.h.b16 %v2996
    %v4297 = vunpack.c.l.b16 %v2997
    %v4298 = vunpack.c.h.b16 %v2997
    %v4299 = vunpack.c.l.b16 %v2998
    %v4300 = vunpack.c.l.b16 %v2999
    %v4301 = vunpack.c.h.b16 %v2999
    %v4302 = vunpack.c.l.b16 %v3000
    %v4303 = vunpack.c.h.b16 %v3000
    %v4304 = vunpack.c.l.b16 %v3001
    %v4305 = vunpack.c.h.b16 %v3001
    %v4306 = vunpack.c.l.b16 %v3002
    %v4307 = vunpack.c.l.b16 %v3003
    %v4308 = vunpack.c.h.b16 %v3003
    %v4309 = vunpack.c.l.b16 %v3004
    %v4310 = vunpack.c.h.b16 %v3004
    %v4311 = vunpack.c.l.b16 %v3005
    %v4312 = vunpack.c.h.b16 %v3005
    %v4313 = vunpack.c.l.b16 %v3006
    %v4314 = vunpack.c.l.b16 %v3007
    %v4315 = vunpack.c.h.b16 %v3007
    %v4316 = vunpack.c.l.b16 %v3008
    %v4317 = vunpack.c.h.b16 %v3008
    %v4318 = vunpack.c.l.b16 %v3009
    %v4319 = vunpack.c.h.b16 %v3009
    %v4320 = vunpack.c.l.b16 %v3010
    %v4321 = vunpack.c.l.b16 %v3011
    %v4322 = vunpack.c.h.b16 %v3011
    %v4323 = vunpack.c.l.b16 %v3012
    %v4324 = vunpack.c.h.b16 %v3012
    %v4325 = vunpack.c.l.b16 %v3013
    %v4326 = vunpack.c.h.b16 %v3013
    %v4327 = vunpack.c.l.b16 %v3014
    %v4328 = vunpack.c.l.b16 %v3015
    %v4329 = vunpack.c.h.b16 %v3015
    %v4330 = vunpack.c.l.b16 %v3016
    %v4331 = vunpack.c.h.b16 %v3016
    %v4332 = vunpack.c.l.b16 %v3017
    %v4333 = vunpack.c.h.b16 %v3017
    %v4334 = vunpack.c.l.b16 %v3018
    %v4335 = vunpack.c.l.b16 %v3019
    %v4336 = vunpack.c.h.b16 %v3019
    %v4337 = vunpack.c.l.b16 %v3020
    %v4338 = vunpack.c.h.b16 %v3020
    %v4339 = vunpack.c.l.b16 %v3021
    %v4340 = vunpack.c.h.b16 %v3021
    %v4341 = vunpack.c.l.b16 %v3022
    %v4342 = vunpack.c.l.b16 %v3023
    %v4343 = vunpack.c.h.b16 %v3023
    %v4344 = vunpack.c.l.b16 %v3024
    %v4345 = vunpack.c.h.b16 %v3024
    %v4346 = vunpack.c.l.b16 %v3025
    %v4347 = vunpack.c.h.b16 %v3025
    %v4348 = vunpack.c.l.b16 %v3026
    %v4349 = vunpack.c.l.b16 %v3027
    %v4350 = vunpack.c.h.b16 %v3027
    %v4351 = vunpack.c.l.b16 %v3028
    %v4352 = vunpack.c.h.b16 %v3028
    %v4353 = vunpack.c.l.b16 %v3029
    %v4354 = vunpack.c.h.b16 %v3029
    %v4355 = vunpack.c.l.b16 %v3030
    %v4356 = vunpack.c.l.b16 %v3031
    %v4357 = vunpack.c.h.b16 %v3031
    %v4358 = vunpack.c.l.b16 %v3032
    %v4359 = vunpack.c.h.b16 %v3032
    %v4360 = vunpack.c.l.b16 %v3033
    %v4361 = vunpack.c.h.b16 %v3033
    %v4362 = vunpack.c.l.b16 %v3034
    %v4363 = vunpack.c.l.b16 %v3035
    %v4364 = vunpack.c.h.b16 %v3035
    %v4365 = vunpack.c.l.b16 %v3036
    %v4366 = vunpack.c.h.b16 %v3036
    %v4367 = vunpack.c.l.b16 %v3037
    %v4368 = vunpack.c.h.b16 %v3037
    %v4369 = vunpack.c.l.b16 %v3038
    %v4370 = vunpack.c.l.b16 %v3039
    %v4371 = vunpack.c.h.b16 %v3039
    %v4372 = vunpack.c.l.b16 %v3040
    %v4373 = vunpack.c.h.b16 %v3040
    %v4374 = vunpack.c.l.b16 %v3041
    %v4375 = vunpack.c.h.b16 %v3041
    %v4376 = vunpack.c.l.b16 %v3042
    %v4377 = vunpack.c.l.b16 %v3043
    %v4378 = vunpack.c.h.b16 %v3043
    %v4379 = vunpack.c.l.b16 %v3044
    %v4380 = vunpack.c.h.b16 %v3044
    %v4381 = vunpack.c.l.b16 %v3045
    %v4382 = vunpack.c.h.b16 %v3045
    %v4383 = vunpack.c.l.b16 %v3046
    %v4384 = vunpack.c.l.b16 %v3047
    %v4385 = vunpack.c.h.b16 %v3047
    %v4386 = vunpack.c.l.b16 %v3048
    %v4387 = vunpack.c.h.b16 %v3048
    %v4388 = vunpack.c.l.b16 %v3049
    %v4389 = vunpack.c.h.b16 %v3049
    %v4390 = vunpack.c.l.b16 %v3050
    %v4391 = vunpack.c.l.b16 %v3051
    %v4392 = vunpack.c.h.b16 %v3051
    %v4393 = vunpack.c.l.b16 %v3052
    %v4394 = vunpack.c.h.b16 %v3052
    %v4395 = vunpack.c.l.b16 %v3053
    %v4396 = vunpack.c.h.b16 %v3053
    %v4397 = vunpack.c.l.b16 %v3054
    %v4398 = vunpack.c.l.b16 %v3055
    %v4399 = vunpack.c.h.b16 %v3055
    %v4400 = vunpack.c.l.b16 %v3056
    %v4401 = vunpack.c.h.b16 %v3056
    %v4402 = vunpack.c.l.b16 %v3057
    %v4403 = vunpack.c.h.b16 %v3057
    %v4404 = vunpack.c.l.b16 %v3058
    %v4405 = vunpack.c.l.b16 %v3059
    %v4406 = vunpack.c.h.b16 %v3059
    %v4407 = vunpack.c.l.b16 %v3060
    %v4408 = vunpack.c.h.b16 %v3060
    %v4409 = vunpack.c.l.b16 %v3061
    %v4410 = vunpack.c.h.b16 %v3061
    %v4411 = vunpack.c.l.b16 %v3062
    %v4412 = vunpack.c.l.b16 %v3063
    %v4413 = vunpack.c.h.b16 %v3063
    %v4414 = vunpack.c.l.b16 %v3064
    %v4415 = vunpack.c.h.b16 %v3064
    %v4416 = vunpack.c.l.b16 %v3065
    %v4417 = vunpack.c.h.b16 %v3065
    %v4418 = vunpack.c.l.b16 %v3066
    %v4419 = vunpack.c.l.b16 %v3067
    %v4420 = vunpack.c.h.b16 %v3067
    %v4421 = vunpack.c.l.b16 %v3068
    %v4422 = vunpack.c.h.b16 %v3068
    %v4423 = vunpack.c.l.b16 %v3069
    %v4424 = vunpack.c.h.b16 %v3069
    %v4425 = vunpack.c.l.b16 %v3070
    %v4426 = vunpack.c.l.b16 %v3071
    %v4427 = vunpack.c.h.b16 %v3071
    %v4428 = vunpack.c.l.b16 %v3072
    %v4429 = vunpack.c.h.b16 %v3072
    %v4430 = vunpack.c.l.b16 %v3073
    %v4431 = vunpack.c.h.b16 %v3073
    %v4432 = vunpack.c.l.b16 %v3074
    %v4433 = vunpack.c.l.b16 %v3075
    %v4434 = vunpack.c.h.b16 %v3075
    %v4435 = vunpack.c.l.b16 %v3076
    %v4436 = vunpack.c.h.b16 %v3076
    %v4437 = vunpack.c.l.b16 %v3077
    %v4438 = vunpack.c.h.b16 %v3077
    %v4439 = vunpack.c.l.b16 %v3078
    %v4440 = vunpack.c.l.b16 %v3079
    %v4441 = vunpack.c.h.b16 %v3079
    %v4442 = vunpack.c.l.b16 %v3080
    %v4443 = vunpack.c.h.b16 %v3080
    %v4444 = vunpack.c.l.b16 %v3081
    %v4445 = vunpack.c.h.b16 %v3081
    %v4446 = vunpack.c.l.b16 %v3082
    %v4447 = vunpack.c.l.b16 %v3083
    %v4448 = vunpack.c.h.b16 %v3083
    %v4449 = vunpack.c.l.b16 %v3084
    %v4450 = vunpack.c.h.b16 %v3084
    %v4451 = vunpack.c.l.b16 %v3085
    %v4452 = vunpack.c.h.b16 %v3085
    %v4453 = vunpack.c.l.b16 %v3086
    %v4454 = vunpack.c.l.b16 %v3087
    %v4455 = vunpack.c.h.b16 %v3087
    %v4456 = vunpack.c.l.b16 %v3088
    %v4457 = vunpack.c.h.b16 %v3088
    %v4458 = vunpack.c.l.b16 %v3089
    %v4459 = vunpack.c.h.b16 %v3089
    %v4460 = vunpack.c.l.b16 %v3090
    %v4461 = vunpack.c.l.b16 %v3091
    %v4462 = vunpack.c.h.b16 %v3091
    %v4463 = vunpack.c.l.b16 %v3092
    %v4464 = vunpack.c.h.b16 %v3092
    %v4465 = vunpack.c.l.b16 %v3093
    %v4466 = vunpack.c.h.b16 %v3093
    %v4467 = vunpack.c.l.b16 %v3094
    %v4468 = vunpack.c.l.b16 %v3095
    %v4469 = vunpack.c.h.b16 %v3095
    %v4470 = vunpack.c.l.b16 %v3096
    %v4471 = vunpack.c.h.b16 %v3096
    %v4472 = vunpack.c.l.b16 %v3097
    %v4473 = vunpack.c.h.b16 %v3097
    %v4474 = vunpack.c.l.b16 %v3098
    %v4475 = vunpack.c.l.b16 %v3099
    %v4476 = vunpack.c.h.b16 %v3099
    %v4477 = vunpack.c.l.b16 %v3100
    %v4478 = vunpack.c.h.b16 %v3100
    %v4479 = vunpack.c.l.b16 %v3101
    %v4480 = vunpack.c.h.b16 %v3101
    %v4481 = vunpack.c.l.b16 %v3102
    %v4482 = vunpack.c.l.b16 %v3103
    %v4483 = vunpack.c.h.b16 %v3103
    %v4484 = vunpack.c.l.b16 %v3104
    %v4485 = vunpack.c.h.b16 %v3104
    %v4486 = vunpack.c.l.b16 %v3105
    %v4487 = vunpack.c.h.b16 %v3105
    %v4488 = vunpack.c.l.b16 %v3106
    %v4489 = vunpack.c.l.b16 %v3107
    %v4490 = vunpack.c.h.b16 %v3107
    %v4491 = vunpack.c.l.b16 %v3108
    %v4492 = vunpack.c.h.b16 %v3108
    %v4493 = vunpack.c.l.b16 %v3109
    %v4494 = vunpack.c.h.b16 %v3109
    %v4495 = vunpack.c.l.b16 %v3110
    %v4496 = vunpack.c.l.b16 %v3111
    %v4497 = vunpack.c.h.b16 %v3111
    %v4498 = vunpack.c.l.b16 %v3112
    %v4499 = vunpack.c.h.b16 %v3112
    %v4500 = vunpack.c.l.b16 %v3113
    %v4501 = vunpack.c.h.b16 %v3113
    %v4502 = vunpack.c.l.b16 %v3114
    %v4503 = vunpack.c.l.b16 %v3115
    %v4504 = vunpack.c.h.b16 %v3115
    %v4505 = vunpack.c.l.b16 %v3116
    %v4506 = vunpack.c.h.b16 %v3116
    %v4507 = vunpack.c.l.b16 %v3117
    %v4508 = vunpack.c.h.b16 %v3117
    %v4509 = vunpack.c.l.b16 %v3118
    %v4510 = vunpack.c.l.b16 %v3119
    %v4511 = vunpack.c.h.b16 %v3119
    %v4512 = vunpack.c.l.b16 %v3120
    %v4513 = vunpack.c.h.b16 %v3120
    %v4514 = vunpack.c.l.b16 %v3121
    %v4515 = vunpack.c.h.b16 %v3121
    %v4516 = vunpack.c.l.b16 %v3122
    %v4517 = vunpack.c.l.b16 %v3123
    %v4518 = vunpack.c.h.b16 %v3123
    %v4519 = vunpack.c.l.b16 %v3124
    %v4520 = vunpack.c.h.b16 %v3124
    %v4521 = vunpack.c.l.b16 %v3125
    %v4522 = vunpack.c.h.b16 %v3125
    %v4523 = vunpack.c.l.b16 %v3126
    %v4524 = vunpack.c.l.b16 %v3127
    %v4525 = vunpack.c.h.b16 %v3127
    %v4526 = vunpack.c.l.b16 %v3128
    %v4527 = vunpack.c.h.b16 %v3128
    %v4528 = vunpack.c.l.b16 %v3129
    %v4529 = vunpack.c.h.b16 %v3129
    %v4530 = vunpack.c.l.b16 %v3130
    %v4531 = vunpack.c.l.b16 %v3131
    %v4532 = vunpack.c.h.b16 %v3131
    %v4533 = vunpack.c.l.b16 %v3132
    %v4534 = vunpack.c.h.b16 %v3132
    %v4535 = vunpack.c.l.b16 %v3133
    %v4536 = vunpack.c.h.b16 %v3133
    %v4537 = vunpack.c.l.b16 %v3134
    %v4538 = vunpack.c.l.b16 %v3135
    %v4539 = vunpack.c.h.b16 %v3135
    %v4540 = vunpack.c.l.b16 %v3136
    %v4541 = vunpack.c.h.b16 %v3136
    %v4542 = vunpack.c.l.b16 %v3137
    %v4543 = vunpack.c.h.b16 %v3137
    %v4544 = vunpack.c.l.b16 %v3138
    %v4545 = vunpack.c.l.b16 %v3139
    %v4546 = vunpack.c.h.b16 %v3139
    %v4547 = vunpack.c.l.b16 %v3140
    %v4548 = vunpack.c.h.b16 %v3140
    %v4549 = vunpack.c.l.b16 %v3141
    %v4550 = vunpack.c.h.b16 %v3141
    %v4551 = vunpack.c.l.b16 %v3142
    %v4552 = vunpack.c.l.b16 %v3143
    %v4553 = vunpack.c.h.b16 %v3143
    %v4554 = vunpack.c.l.b16 %v3144
    %v4555 = vunpack.c.h.b16 %v3144
    %v4556 = vunpack.c.l.b16 %v3145
    %v4557 = vunpack.c.h.b16 %v3145
    %v4558 = vunpack.c.l.b16 %v3146
    %v4559 = vunpack.c.l.b16 %v3147
    %v4560 = vunpack.c.h.b16 %v3147
    %v4561 = vunpack.c.l.b16 %v3148
    %v4562 = vunpack.c.h.b16 %v3148
    %v4563 = vunpack.c.l.b16 %v3149
    %v4564 = vunpack.c.h.b16 %v3149
    %v4565 = vunpack.c.l.b16 %v3150
    %v4566 = vunpack.c.l.b16 %v3151
    %v4567 = vunpack.c.h.b16 %v3151
    %v4568 = vunpack.c.l.b16 %v3152
    %v4569 = vunpack.c.h.b16 %v3152
    %v4570 = vunpack.c.l.b16 %v3153
    %v4571 = vunpack.c.h.b16 %v3153
    %v4572 = vunpack.c.l.b16 %v3154
    %v4573 = vunpack.c.l.b16 %v3155
    %v4574 = vunpack.c.h.b16 %v3155
    %v4575 = vunpack.c.l.b16 %v3156
    %v4576 = vunpack.c.h.b16 %v3156
    %v4577 = vunpack.c.l.b16 %v3157
    %v4578 = vunpack.c.h.b16 %v3157
    %v4579 = vunpack.c.l.b16 %v3158
    %v4580 = vunpack.c.l.b16 %v3159
    %v4581 = vunpack.c.h.b16 %v3159
    %v4582 = vunpack.c.l.b16 %v3160
    %v4583 = vunpack.c.h.b16 %v3160
    %v4584 = vunpack.c.l.b16 %v3161
    %v4585 = vunpack.c.h.b16 %v3161
    %v4586 = vunpack.c.l.b16 %v3162
    %v4587 = vunpack.c.l.b16 %v3163
    %v4588 = vunpack.c.h.b16 %v3163
    %v4589 = vunpack.c.l.b16 %v3164
    %v4590 = vunpack.c.h.b16 %v3164
    %v4591 = vunpack.c.l.b16 %v3165
    %v4592 = vunpack.c.h.b16 %v3165
    %v4593 = vunpack.c.l.b16 %v3166
    %v4594 = vunpack.c.l.b16 %v3167
    %v4595 = vunpack.c.h.b16 %v3167
    %v4596 = vunpack.c.l.b16 %v3168
    %v4597 = vunpack.c.h.b16 %v3168
    %v4598 = vunpack.c.l.b16 %v3169
    %v4599 = vunpack.c.h.b16 %v3169
    %v4600 = vunpack.c.l.b16 %v3170
    %v4601 = vunpack.c.l.b16 %v3171
    %v4602 = vunpack.c.h.b16 %v3171
    %v4603 = vunpack.c.l.b16 %v3172
    %v4604 = vunpack.c.h.b16 %v3172
    %v4605 = vunpack.c.l.b16 %v3173
    %v4606 = vunpack.c.h.b16 %v3173
    %v4607 = vunpack.c.l.b16 %v3174
    %v4608 = vunpack.c.l.b16 %v3175
    %v4609 = vunpack.c.h.b16 %v3175
    %v4610 = vunpack.c.l.b16 %v3176
    %v4611 = vunpack.c.h.b16 %v3176
    %v4612 = vunpack.c.l.b16 %v3177
    %v4613 = vunpack.c.h.b16 %v3177
    %v4614 = vunpack.c.l.b16 %v3178
    %v4615 = vunpack.c.l.b16 %v3179
    %v4616 = vunpack.c.h.b16 %v3179
    %v4617 = vunpack.c.l.b16 %v3180
    %v4618 = vunpack.c.h.b16 %v3180
    %v4619 = vunpack.c.l.b16 %v3181
    %v4620 = vunpack.c.h.b16 %v3181
    %v4621 = vunpack.c.l.b16 %v3182
    %v4622 = vunpack.c.l.b16 %v3183
    %v4623 = vunpack.c.h.b16 %v3183
    %v4624 = vunpack.c.l.b16 %v3184
    %v4625 = vunpack.c.h.b16 %v3184
    %v4626 = vunpack.c.l.b16 %v3185
    %v4627 = vunpack.c.h.b16 %v3185
    %v4628 = vunpack.c.l.b16 %v3186
    %v4629 = vunpack.c.l.b16 %v3187
    %v4630 = vunpack.c.h.b16 %v3187
    %v4631 = vunpack.c.l.b16 %v3188
    %v4632 = vunpack.c.h.b16 %v3188
    %v4633 = vunpack.c.l.b16 %v3189
    %v4634 = vunpack.c.h.b16 %v3189
    %v4635 = vunpack.c.l.b16 %v3190
    %v4636 = vpack.c.b16 %v3747, %v3740
    %v4637 = vpack.c.b16 %v3748, %v3741
    %v4638 = vpack.c.b16 %v3749, %v3742
    %v4639 = vpack.c.b16 %v3750, %v3743
    %v4640 = vpack.c.b16 %v3751, %v3744
    %v4641 = vpack.c.b16 %v3752, %v3745
    %v4642 = vpack.c.b16 %v3753, %v3746
    %v4643 = vpack.c.b16 %v3761, %v3754
    %v4644 = vpack.c.b16 %v3762, %v3755
    %v4645 = vpack.c.b16 %v3763, %v3756
    %v4646 = vpack.c.b16 %v3764, %v3757
    %v4647 = vpack.c.b16 %v3765, %v3758
    %v4648 = vpack.c.b16 %v3766, %v3759
    %v4649 = vpack.c.b16 %v3767, %v3760
    %v4650 = vpack.c.b16 %v3775, %v3768
    %v4651 = vpack.c.b16 %v3776, %v3769
    %v4652 = vpack.c.b16 %v3777, %v3770
    %v4653 = vpack.c.b16 %v3778, %v3771
    %v4654 = vpack.c.b16 %v3779, %v3772
    %v4655 = vpack.c.b16 %v3780, %v3773
    %v4656 = vpack.c.b16 %v3781, %v3774
    %v4657 = vpack.c.b16 %v3789, %v3782
    %v4658 = vpack.c.b16 %v3790, %v3783
    %v4659 = vpack.c.b16 %v3791, %v3784
    %v4660 = vpack.c.b16 %v3792, %v3785
    %v4661 = vpack.c.b16 %v3793, %v3786
    %v4662 = vpack.c.b16 %v3794, %v3787
    %v4663 = vpack.c.b16 %v3795, %v3788
    %v4664 = vpack.c.b16 %v3803, %v3796
    %v4665 = vpack.c.b16 %v3804, %v3797
    %v4666 = vpack.c.b16 %v3805, %v3798
    %v4667 = vpack.c.b16 %v3806, %v3799
    %v4668 = vpack.c.b16 %v3807, %v3800
    %v4669 = vpack.c.b16 %v3808, %v3801
    %v4670 = vpack.c.b16 %v3809, %v3802
    %v4671 = vpack.c.b16 %v3817, %v3810
    %v4672 = vpack.c.b16 %v3818, %v3811
    %v4673 = vpack.c.b16 %v3819, %v3812
    %v4674 = vpack.c.b16 %v3820, %v3813
    %v4675 = vpack.c.b16 %v3821, %v3814
    %v4676 = vpack.c.b16 %v3822, %v3815
    %v4677 = vpack.c.b16 %v3823, %v3816
    %v4678 = vpack.c.b16 %v3831, %v3824
    %v4679 = vpack.c.b16 %v3832, %v3825
    %v4680 = vpack.c.b16 %v3833, %v3826
    %v4681 = vpack.c.b16 %v3834, %v3827
    %v4682 = vpack.c.b16 %v3835, %v3828
    %v4683 = vpack.c.b16 %v3836, %v3829
    %v4684 = vpack.c.b16 %v3837, %v3830
    %v4685 = vpack.c.b16 %v3845, %v3838
    %v4686 = vpack.c.b16 %v3846, %v3839
    %v4687 = vpack.c.b16 %v3847, %v3840
    %v4688 = vpack.c.b16 %v3848, %v3841
    %v4689 = vpack.c.b16 %v3849, %v3842
    %v4690 = vpack.c.b16 %v3850, %v3843
    %v4691 = vpack.c.b16 %v3851, %v3844
    %v4692 = vpack.c.b16 %v3859, %v3852
    %v4693 = vpack.c.b16 %v3860, %v3853
    %v4694 = vpack.c.b16 %v3861, %v3854
    %v4695 = vpack.c.b16 %v3862, %v3855
    %v4696 = vpack.c.b16 %v3863, %v3856
    %v4697 = vpack.c.b16 %v3864, %v3857
    %v4698 = vpack.c.b16 %v3865, %v3858
    %v4699 = vpack.c.b16 %v3873, %v3866
    %v4700 = vpack.c.b16 %v3874, %v3867
    %v4701 = vpack.c.b16 %v3875, %v3868
    %v4702 = vpack.c.b16 %v3876, %v3869
    %v4703 = vpack.c.b16 %v3877, %v3870
    %v4704 = vpack.c.b16 %v3878, %v3871
    %v4705 = vpack.c.b16 %v3879, %v3872
    %v4706 = vpack.c.b16 %v3887, %v3880
    %v4707 = vpack.c.b16 %v3888, %v3881
    %v4708 = vpack.c.b16 %v3889, %v3882
    %v4709 = vpack.c.b16 %v3890, %v3883
    %v4710 = vpack.c.b16 %v3891, %v3884
    %v4711 = vpack.c.b16 %v3892, %v3885
    %v4712 = vpack.c.b16 %v3893, %v3886
    %v4713 = vpack.c.b16 %v3901, %v3894
    %v4714 = vpack.c.b16 %v3902, %v3895
    %v4715 = vpack.c.b16 %v3903, %v3896
    %v4716 = vpack.c.b16 %v3904, %v3897
    %v4717 = vpack.c.b16 %v3905, %v3898
    %v4718 = vpack.c.b16 %v3906, %v3899
    %v4719 = vpack.c.b16 %v3907, %v3900
    %v4720 = vpack.c.b16 %v3915, %v3908
    %v4721 = vpack.c.b16 %v3916, %v3909
    %v4722 = vpack.c.b16 %v3917, %v3910
    %v4723 = vpack.c.b16 %v3918, %v3911
    %v4724 = vpack.c.b16 %v3919, %v3912
    %v4725 = vpack.c.b16 %v3920, %v3913
    %v4726 = vpack.c.b16 %v3921, %v3914
    %v4727 = vpack.c.b16 %v3929, %v3922
    %v4728 = vpack.c.b16 %v3930, %v3923
    %v4729 = vpack.c.b16 %v3931, %v3924
    %v4730 = vpack.c.b16 %v3932, %v3925
    %v4731 = vpack.c.b16 %v3933, %v3926
    %v4732 = vpack.c.b16 %v3934, %v3927
    %v4733 = vpack.c.b16 %v3935, %v3928
    %v4734 = vpack.c.b16 %v3943, %v3936
    %v4735 = vpack.c.b16 %v3944, %v3937
    %v4736 = vpack.c.b16 %v3945, %v3938
    %v4737 = vpack.c.b16 %v3946, %v3939
    %v4738 = vpack.c.b16 %v3947, %v3940
    %v4739 = vpack.c.b16 %v3948, %v3941
    %v4740 = vpack.c.b16 %v3949, %v3942
    %v4741 = vpack.c.b16 %v3957, %v3950
    %v4742 = vpack.c.b16 %v3958, %v3951
    %v4743 = vpack.c.b16 %v3959, %v3952
    %v4744 = vpack.c.b16 %v3960, %v3953
    %v4745 = vpack.c.b16 %v3961, %v3954
    %v4746 = vpack.c.b16 %v3962, %v3955
    %v4747 = vpack.c.b16 %v3963, %v3956
    %v4748 = vpack.c.b16 %v3971, %v3964
    %v4749 = vpack.c.b16 %v3972, %v3965
    %v4750 = vpack.c.b16 %v3973, %v3966
    %v4751 = vpack.c.b16 %v3974, %v3967
    %v4752 = vpack.c.b16 %v3975, %v3968
    %v4753 = vpack.c.b16 %v3976, %v3969
    %v4754 = vpack.c.b16 %v3977, %v3970
    %v4755 = vpack.c.b16 %v3985, %v3978
    %v4756 = vpack.c.b16 %v3986, %v3979
    %v4757 = vpack.c.b16 %v3987, %v3980
    %v4758 = vpack.c.b16 %v3988, %v3981
    %v4759 = vpack.c.b16 %v3989, %v3982
    %v4760 = vpack.c.b16 %v3990, %v3983
    %v4761 = vpack.c.b16 %v3991, %v3984
    %v4762 = vpack.c.b16 %v3999, %v3992
    %v4763 = vpack.c.b16 %v4000, %v3993
    %v4764 = vpack.c.b16 %v4001, %v3994
    %v4765 = vpack.c.b16 %v4002, %v3995
    %v4766 = vpack.c.b16 %v4003, %v3996
    %v4767 = vpack.c.b16 %v4004, %v3997
    %v4768 = vpack.c.b16 %v4005, %v3998
    %v4769 = vpack.c.b16 %v4013, %v4006
    %v4770 = vpack.c.b16 %v4014, %v4007
    %v4771 = vpack.c.b16 %v4015, %v4008
    %v4772 = vpack.c.b16 %v4016, %v4009
    %v4773 = vpack.c.b16 %v4017, %v4010
    %v4774 = vpack.c.b16 %v4018, %v4011
    %v4775 = vpack.c.b16 %v4019, %v4012
    %v4776 = vpack.c.b16 %v4027, %v4020
    %v4777 = vpack.c.b16 %v4028, %v4021
    %v4778 = vpack.c.b16 %v4029, %v4022
    %v4779 = vpack.c.b16 %v4030, %v4023
    %v4780 = vpack.c.b16 %v4031, %v4024
    %v4781 = vpack.c.b16 %v4032, %v4025
    %v4782 = vpack.c.b16 %v4033, %v4026
    %v4783 = vpack.c.b16 %v4041, %v4034
    %v4784 = vpack.c.b16 %v4042, %v4035
    %v4785 = vpack.c.b16 %v4043, %v4036
    %v4786 = vpack.c.b16 %v4044, %v4037
    %v4787 = vpack.c.b16 %v4045, %v4038
    %v4788 = vpack.c.b16 %v4046, %v4039
    %v4789 = vpack.c.b16 %v4047, %v4040
    %v4790 = vpack.c.b16 %v4055, %v4048
    %v4791 = vpack.c.b16 %v4056, %v4049
    %v4792 = vpack.c.b16 %v4057, %v4050
    %v4793 = vpack.c.b16 %v4058, %v4051
    %v4794 = vpack.c.b16 %v4059, %v4052
    %v4795 = vpack.c.b16 %v4060, %v4053
    %v4796 = vpack.c.b16 %v4061, %v4054
    %v4797 = vpack.c.b16 %v4069, %v4062
    %v4798 = vpack.c.b16 %v4070, %v4063
    %v4799 = vpack.c.b16 %v4071, %v4064
    %v4800 = vpack.c.b16 %v4072, %v4065
    %v4801 = vpack.c.b16 %v4073, %v4066
    %v4802 = vpack.c.b16 %v4074, %v4067
    %v4803 = vpack.c.b16 %v4075, %v4068
    %v4804 = vpack.c.b16 %v4083, %v4076
    %v4805 = vpack.c.b16 %v4084, %v4077
    %v4806 = vpack.c.b16 %v4085, %v4078
    %v4807 = vpack.c.b16 %v4086, %v4079
    %v4808 = vpack.c.b16 %v4087, %v4080
    %v4809 = vpack.c.b16 %v4088, %v4081
    %v4810 = vpack.c.b16 %v4089, %v4082
    %v4811 = vpack.c.b16 %v4097, %v4090
    %v4812 = vpack.c.b16 %v4098, %v4091
    %v4813 = vpack.c.b16 %v4099, %v4092
    %v4814 = vpack.c.b16 %v4100, %v4093
    %v4815 = vpack.c.b16 %v4101, %v4094
    %v4816 = vpack.c.b16 %v4102, %v4095
    %v4817 = vpack.c.b16 %v4103, %v4096
    %v4818 = vpack.c.b16 %v4111, %v4104
    %v4819 = vpack.c.b16 %v4112, %v4105
    %v4820 = vpack.c.b16 %v4113, %v4106
    %v4821 = vpack.c.b16 %v4114, %v4107
    %v4822 = vpack.c.b16 %v4115, %v4108
    %v4823 = vpack.c.b16 %v4116, %v4109
    %v4824 = vpack.c.b16 %v4117, %v4110
    %v4825 = vpack.c.b16 %v4125, %v4118
    %v4826 = vpack.c.b16 %v4126, %v4119
    %v4827 = vpack.c.b16 %v4127, %v4120
    %v4828 = vpack.c.b16 %v4128, %v4121
    %v4829 = vpack.c.b16 %v4129, %v4122
    %v4830 = vpack.c.b16 %v4130, %v4123
    %v4831 = vpack.c.b16 %v4131, %v4124
    %v4832 = vpack.c.b16 %v4139, %v4132
    %v4833 = vpack.c.b16 %v4140, %v4133
    %v4834 = vpack.c.b16 %v4141, %v4134
    %v4835 = vpack.c.b16 %v4142, %v4135
    %v4836 = vpack.c.b16 %v4143, %v4136
    %v4837 = vpack.c.b16 %v4144, %v4137
    %v4838 = vpack.c.b16 %v4145, %v4138
    %v4839 = vpack.c.b16 %v4153, %v4146
    %v4840 = vpack.c.b16 %v4154, %v4147
    %v4841 = vpack.c.b16 %v4155, %v4148
    %v4842 = vpack.c.b16 %v4156, %v4149
    %v4843 = vpack.c.b16 %v4157, %v4150
    %v4844 = vpack.c.b16 %v4158, %v4151
    %v4845 = vpack.c.b16 %v4159, %v4152
    %v4846 = vpack.c.b16 %v4167, %v4160
    %v4847 = vpack.c.b16 %v4168, %v4161
    %v4848 = vpack.c.b16 %v4169, %v4162
    %v4849 = vpack.c.b16 %v4170, %v4163
    %v4850 = vpack.c.b16 %v4171, %v4164
    %v4851 = vpack.c.b16 %v4172, %v4165
    %v4852 = vpack.c.b16 %v4173, %v4166
    %v4853 = vpack.c.b16 %v4181, %v4174
    %v4854 = vpack.c.b16 %v4182, %v4175
    %v4855 = vpack.c.b16 %v4183, %v4176
    %v4856 = vpack.c.b16 %v4184, %v4177
    %v4857 = vpack.c.b16 %v4185, %v4178
    %v4858 = vpack.c.b16 %v4186, %v4179
    %v4859 = vpack.c.b16 %v4187, %v4180
    %v4860 = vpack.c.b16 %v4195, %v4188
    %v4861 = vpack.c.b16 %v4196, %v4189
    %v4862 = vpack.c.b16 %v4197, %v4190
    %v4863 = vpack.c.b16 %v4198, %v4191
    %v4864 = vpack.c.b16 %v4199, %v4192
    %v4865 = vpack.c.b16 %v4200, %v4193
    %v4866 = vpack.c.b16 %v4201, %v4194
    %v4867 = vpack.c.b16 %v4209, %v4202
    %v4868 = vpack.c.b16 %v4210, %v4203
    %v4869 = vpack.c.b16 %v4211, %v4204
    %v4870 = vpack.c.b16 %v4212, %v4205
    %v4871 = vpack.c.b16 %v4213, %v4206
    %v4872 = vpack.c.b16 %v4214, %v4207
    %v4873 = vpack.c.b16 %v4215, %v4208
    %v4874 = vpack.c.b16 %v4223, %v4216
    %v4875 = vpack.c.b16 %v4224, %v4217
    %v4876 = vpack.c.b16 %v4225, %v4218
    %v4877 = vpack.c.b16 %v4226, %v4219
    %v4878 = vpack.c.b16 %v4227, %v4220
    %v4879 = vpack.c.b16 %v4228, %v4221
    %v4880 = vpack.c.b16 %v4229, %v4222
    %v4881 = vpack.c.b16 %v4237, %v4230
    %v4882 = vpack.c.b16 %v4238, %v4231
    %v4883 = vpack.c.b16 %v4239, %v4232
    %v4884 = vpack.c.b16 %v4240, %v4233
    %v4885 = vpack.c.b16 %v4241, %v4234
    %v4886 = vpack.c.b16 %v4242, %v4235
    %v4887 = vpack.c.b16 %v4243, %v4236
    %v4888 = vpack.c.b16 %v4251, %v4244
    %v4889 = vpack.c.b16 %v4252, %v4245
    %v4890 = vpack.c.b16 %v4253, %v4246
    %v4891 = vpack.c.b16 %v4254, %v4247
    %v4892 = vpack.c.b16 %v4255, %v4248
    %v4893 = vpack.c.b16 %v4256, %v4249
    %v4894 = vpack.c.b16 %v4257, %v4250
    %v4895 = vpack.c.b16 %v4265, %v4258
    %v4896 = vpack.c.b16 %v4266, %v4259
    %v4897 = vpack.c.b16 %v4267, %v4260
    %v4898 = vpack.c.b16 %v4268, %v4261
    %v4899 = vpack.c.b16 %v4269, %v4262
    %v4900 = vpack.c.b16 %v4270, %v4263
    %v4901 = vpack.c.b16 %v4271, %v4264
    %v4902 = vpack.c.b16 %v4279, %v4272
    %v4903 = vpack.c.b16 %v4280, %v4273
    %v4904 = vpack.c.b16 %v4281, %v4274
    %v4905 = vpack.c.b16 %v4282, %v4275
    %v4906 = vpack.c.b16 %v4283, %v4276
    %v4907 = vpack.c.b16 %v4284, %v4277
    %v4908 = vpack.c.b16 %v4285, %v4278
    %v4909 = vpack.c.b16 %v4293, %v4286
    %v4910 = vpack.c.b16 %v4294, %v4287
    %v4911 = vpack.c.b16 %v4295, %v4288
    %v4912 = vpack.c.b16 %v4296, %v4289
    %v4913 = vpack.c.b16 %v4297, %v4290
    %v4914 = vpack.c.b16 %v4298, %v4291
    %v4915 = vpack.c.b16 %v4299, %v4292
    %v4916 = vpack.c.b16 %v4307, %v4300
    %v4917 = vpack.c.b16 %v4308, %v4301
    %v4918 = vpack.c.b16 %v4309, %v4302
    %v4919 = vpack.c.b16 %v4310, %v4303
    %v4920 = vpack.c.b16 %v4311, %v4304
    %v4921 = vpack.c.b16 %v4312, %v4305
    %v4922 = vpack.c.b16 %v4313, %v4306
    %v4923 = vpack.c.b16 %v4321, %v4314
    %v4924 = vpack.c.b16 %v4322, %v4315
    %v4925 = vpack.c.b16 %v4323, %v4316
    %v4926 = vpack.c.b16 %v4324, %v4317
    %v4927 = vpack.c.b16 %v4325, %v4318
    %v4928 = vpack.c.b16 %v4326, %v4319
    %v4929 = vpack.c.b16 %v4327, %v4320
    %v4930 = vpack.c.b16 %v4335, %v4328
    %v4931 = vpack.c.b16 %v4336, %v4329
    %v4932 = vpack.c.b16 %v4337, %v4330
    %v4933 = vpack.c.b16 %v4338, %v4331
    %v4934 = vpack.c.b16 %v4339, %v4332
    %v4935 = vpack.c.b16 %v4340, %v4333
    %v4936 = vpack.c.b16 %v4341, %v4334
    %v4937 = vpack.c.b16 %v4349, %v4342
    %v4938 = vpack.c.b16 %v4350, %v4343
    %v4939 = vpack.c.b16 %v4351, %v4344
    %v4940 = vpack.c.b16 %v4352, %v4345
    %v4941 = vpack.c.b16 %v4353, %v4346
    %v4942 = vpack.c.b16 %v4354, %v4347
    %v4943 = vpack.c.b16 %v4355, %v4348
    %v4944 = vpack.c.b16 %v4363, %v4356
    %v4945 = vpack.c.b16 %v4364, %v4357
    %v4946 = vpack.c.b16 %v4365, %v4358
    %v4947 = vpack.c.b16 %v4366, %v4359
    %v4948 = vpack.c.b16 %v4367, %v4360
    %v4949 = vpack.c.b16 %v4368, %v4361
    %v4950 = vpack.c.b16 %v4369, %v4362
    %v4951 = vpack.c.b16 %v4377, %v4370
    %v4952 = vpack.c.b16 %v4378, %v4371
    %v4953 = vpack.c.b16 %v4379, %v4372
    %v4954 = vpack.c.b16 %v4380, %v4373
    %v4955 = vpack.c.b16 %v4381, %v4374
    %v4956 = vpack.c.b16 %v4382, %v4375
    %v4957 = vpack.c.b16 %v4383, %v4376
    %v4958 = vpack.c.b16 %v4391, %v4384
    %v4959 = vpack.c.b16 %v4392, %v4385
    %v4960 = vpack.c.b16 %v4393, %v4386
    %v4961 = vpack.c.b16 %v4394, %v4387
    %v4962 = vpack.c.b16 %v4395, %v4388
    %v4963 = vpack.c.b16 %v4396, %v4389
    %v4964 = vpack.c.b16 %v4397, %v4390
    %v4965 = vpack.c.b16 %v4405, %v4398
    %v4966 = vpack.c.b16 %v4406, %v4399
    %v4967 = vpack.c.b16 %v4407, %v4400
    %v4968 = vpack.c.b16 %v4408, %v4401
    %v4969 = vpack.c.b16 %v4409, %v4402
    %v4970 = vpack.c.b16 %v4410, %v4403
    %v4971 = vpack.c.b16 %v4411, %v4404
    %v4972 = vpack.c.b16 %v4419, %v4412
    %v4973 = vpack.c.b16 %v4420, %v4413
    %v4974 = vpack.c.b16 %v4421, %v4414
    %v4975 = vpack.c.b16 %v4422, %v4415
    %v4976 = vpack.c.b16 %v4423, %v4416
    %v4977 = vpack.c.b16 %v4424, %v4417
    %v4978 = vpack.c.b16 %v4425, %v4418
    %v4979 = vpack.c.b16 %v4433, %v4426
    %v4980 = vpack.c.b16 %v4434, %v4427
    %v4981 = vpack.c.b16 %v4435, %v4428
    %v4982 = vpack.c.b16 %v4436, %v4429
    %v4983 = vpack.c.b16 %v4437, %v4430
    %v4984 = vpack.c.b16 %v4438, %v4431
    %v4985 = vpack.c.b16 %v4439, %v4432
    %v4986 = vpack.c.b16 %v4447, %v4440
    %v4987 = vpack.c.b16 %v4448, %v4441
    %v4988 = vpack.c.b16 %v4449, %v4442
    %v4989 = vpack.c.b16 %v4450, %v4443
    %v4990 = vpack.c.b16 %v4451, %v4444
    %v4991 = vpack.c.b16 %v4452, %v4445
    %v4992 = vpack.c.b16 %v4453, %v4446
    %v4993 = vpack.c.b16 %v4461, %v4454
    %v4994 = vpack.c.b16 %v4462, %v4455
    %v4995 = vpack.c.b16 %v4463, %v4456
    %v4996 = vpack.c.b16 %v4464, %v4457
    %v4997 = vpack.c.b16 %v4465, %v4458
    %v4998 = vpack.c.b16 %v4466, %v4459
    %v4999 = vpack.c.b16 %v4467, %v4460
    %v5000 = vpack.c.b16 %v4475, %v4468
    %v5001 = vpack.c.b16 %v4476, %v4469
    %v5002 = vpack.c.b16 %v4477, %v4470
    %v5003 = vpack.c.b16 %v4478, %v4471
    %v5004 = vpack.c.b16 %v4479, %v4472
    %v5005 = vpack.c.b16 %v4480, %v4473
    %v5006 = vpack.c.b16 %v4481, %v4474
    %v5007 = vpack.c.b16 %v4489, %v4482
    %v5008 = vpack.c.b16 %v4490, %v4483
    %v5009 = vpack.c.b16 %v4491, %v4484
    %v5010 = vpack.c.b16 %v4492, %v4485
    %v5011 = vpack.c.b16 %v4493, %v4486
    %v5012 = vpack.c.b16 %v4494, %v4487
    %v5013 = vpack.c.b16 %v4495, %v4488
    %v5014 = vpack.c.b16 %v4503, %v4496
    %v5015 = vpack.c.b16 %v4504, %v4497
    %v5016 = vpack.c.b16 %v4505, %v4498
    %v5017 = vpack.c.b16 %v4506, %v4499
    %v5018 = vpack.c.b16 %v4507, %v4500
    %v5019 = vpack.c.b16 %v4508, %v4501
    %v5020 = vpack.c.b16 %v4509, %v4502
    %v5021 = vpack.c.b16 %v4517, %v4510
    %v5022 = vpack.c.b16 %v4518, %v4511
    %v5023 = vpack.c.b16 %v4519, %v4512
    %v5024 = vpack.c.b16 %v4520, %v4513
    %v5025 = vpack.c.b16 %v4521, %v4514
    %v5026 = vpack.c.b16 %v4522, %v4515
    %v5027 = vpack.c.b16 %v4523, %v4516
    %v5028 = vpack.c.b16 %v4531, %v4524
    %v5029 = vpack.c.b16 %v4532, %v4525
    %v5030 = vpack.c.b16 %v4533, %v4526
    %v5031 = vpack.c.b16 %v4534, %v4527
    %v5032 = vpack.c.b16 %v4535, %v4528
    %v5033 = vpack.c.b16 %v4536, %v4529
    %v5034 = vpack.c.b16 %v4537, %v4530
    %v5035 = vpack.c.b16 %v4545, %v4538
    %v5036 = vpack.c.b16 %v4546, %v4539
    %v5037 = vpack.c.b16 %v4547, %v4540
    %v5038 = vpack.c.b16 %v4548, %v4541
    %v5039 = vpack.c.b16 %v4549, %v4542
    %v5040 = vpack.c.b16 %v4550, %v4543
    %v5041 = vpack.c.b16 %v4551, %v4544
    %v5042 = vpack.c.b16 %v4559, %v4552
    %v5043 = vpack.c.b16 %v4560, %v4553
    %v5044 = vpack.c.b16 %v4561, %v4554
    %v5045 = vpack.c.b16 %v4562, %v4555
    %v5046 = vpack.c.b16 %v4563, %v4556
    %v5047 = vpack.c.b16 %v4564, %v4557
    %v5048 = vpack.c.b16 %v4565, %v4558
    %v5049 = vpack.c.b16 %v4573, %v4566
    %v5050 = vpack.c.b16 %v4574, %v4567
    %v5051 = vpack.c.b16 %v4575, %v4568
    %v5052 = vpack.c.b16 %v4576, %v4569
    %v5053 = vpack.c.b16 %v4577, %v4570
    %v5054 = vpack.c.b16 %v4578, %v4571
    %v5055 = vpack.c.b16 %v4579, %v4572
    %v5056 = vpack.c.b16 %v4587, %v4580
    %v5057 = vpack.c.b16 %v4588, %v4581
    %v5058 = vpack.c.b16 %v4589, %v4582
    %v5059 = vpack.c.b16 %v4590, %v4583
    %v5060 = vpack.c.b16 %v4591, %v4584
    %v5061 = vpack.c.b16 %v4592, %v4585
    %v5062 = vpack.c.b16 %v4593, %v4586
    %v5063 = vpack.c.b16 %v4601, %v4594
    %v5064 = vpack.c.b16 %v4602, %v4595
    %v5065 = vpack.c.b16 %v4603, %v4596
    %v5066 = vpack.c.b16 %v4604, %v4597
    %v5067 = vpack.c.b16 %v4605, %v4598
    %v5068 = vpack.c.b16 %v4606, %v4599
    %v5069 = vpack.c.b16 %v4607, %v4600
    %v5070 = vpack.c.b16 %v4615, %v4608
    %v5071 = vpack.c.b16 %v4616, %v4609
    %v5072 = vpack.c.b16 %v4617, %v4610
    %v5073 = vpack.c.b16 %v4618, %v4611
    %v5074 = vpack.c.b16 %v4619, %v4612
    %v5075 = vpack.c.b16 %v4620, %v4613
    %v5076 = vpack.c.b16 %v4621, %v4614
    %v5077 = vpack.c.b16 %v4629, %v4622
    %v5078 = vpack.c.b16 %v4630, %v4623
    %v5079 = vpack.c.b16 %v4631, %v4624
    %v5080 = vpack.c.b16 %v4632, %v4625
    %v5081 = vpack.c.b16 %v4633, %v4626
    %v5082 = vpack.c.b16 %v4634, %v4627
    %v5083 = vpack.c.b16 %v4635, %v4628
    %5532 = vmatprep.subr.bf16.mxu0 %v4686
    %5533 = vmatpush1.bf16.msra.mxu0 %v4685
    %5534 = vmatprep.subr.bf16.mxu0 %v4679
    %5535 = vmatpush1.bf16.msra.mxu0 %v4678
    %5536 = vmatprep.subr.bf16.mxu0 %v4672
    %5537 = vmatpush1.bf16.msra.mxu0 %v4671
    %5538 = vmatprep.subr.bf16.mxu0 %v4665
    %5539 = vmatpush1.bf16.msra.mxu0 %v4664
    %5540 = vmatprep.subr.bf16.mxu0 %v4658
    %5541 = vmatpush1.bf16.msra.mxu0 %v4657
    %5542 = vmatprep.subr.bf16.mxu0 %v4651
    %5543 = vmatpush1.bf16.msra.mxu0 %v4650
    %5544 = vmatprep.subr.bf16.mxu0 %v4644
    %5545 = vmatpush1.bf16.msra.mxu0 %v4643
    %5546 = vmatprep.subr.bf16.mxu0 %v4637
    %5547 = vmatpush1.bf16.msra.mxu0 %v4636
    %5548 = vmatprep.subr.bf16.mxu0 %v4742
    %5549 = vmatpush2.bf16.msra.mxu0 %v4741
    %5550 = vmatprep.subr.bf16.mxu0 %v4735
    %5551 = vmatpush2.bf16.msra.mxu0 %v4734
    %5552 = vmatprep.subr.bf16.mxu0 %v4728
    %5553 = vmatpush2.bf16.msra.mxu0 %v4727
    %5554 = vmatprep.subr.bf16.mxu0 %v4721
    %5555 = vmatpush2.bf16.msra.mxu0 %v4720
    %5556 = vmatprep.subr.bf16.mxu0 %v4714
    %5557 = vmatpush2.bf16.msra.mxu0 %v4713
    %5558 = vmatprep.subr.bf16.mxu0 %v4707
    %5559 = vmatpush2.bf16.msra.mxu0 %v4706
    %5560 = vmatprep.subr.bf16.mxu0 %v4700
    %5561 = vmatpush2.bf16.msra.mxu0 %v4699
    %5562 = vmatprep.subr.bf16.mxu0 %v4693
    %5563 = vmatpush2.bf16.msra.mxu0 %v4692
    %5564 = vmatprep.mubr.bf16.mxu0 %v2672
    %5565 = vmatmul.mubr.bf16.gmra.mxu0 %v2671
    %v5566 = vpop.f32.mrf.mxu0
    %v5567 = vadd.f32 %v3196, %v5566
    %v5568 = vpop.f32.mrf.mxu0
    %v5569 = vadd.f32 %v3200, %v5568
    %v5570 = vpop.f32.mrf.mxu0
    %v5571 = vpop.f32.mrf.mxu0
    %5572 = vdwg.mxu0
    %5573 = vmatprep.subr.bf16.mxu0 %v4798
    %5574 = vmatpush1.bf16.msra.mxu0 %v4797
    %5575 = vmatprep.subr.bf16.mxu0 %v4791
    %5576 = vmatpush1.bf16.msra.mxu0 %v4790
    %5577 = vmatprep.subr.bf16.mxu0 %v4784
    %5578 = vmatpush1.bf16.msra.mxu0 %v4783
    %5579 = vmatprep.subr.bf16.mxu0 %v4777
    %5580 = vmatpush1.bf16.msra.mxu0 %v4776
    %5581 = vmatprep.subr.bf16.mxu0 %v4770
    %5582 = vmatpush1.bf16.msra.mxu0 %v4769
    %5583 = vmatprep.subr.bf16.mxu0 %v4763
    %5584 = vmatpush1.bf16.msra.mxu0 %v4762
    %5585 = vmatprep.subr.bf16.mxu0 %v4756
    %5586 = vmatpush1.bf16.msra.mxu0 %v4755
    %5587 = vmatprep.subr.bf16.mxu0 %v4749
    %5588 = vmatpush1.bf16.msra.mxu0 %v4748
    %5589 = vmatprep.subr.bf16.mxu0 %v4854
    %5590 = vmatpush2.bf16.msra.mxu0 %v4853
    %5591 = vmatprep.subr.bf16.mxu0 %v4847
    %5592 = vmatpush2.bf16.msra.mxu0 %v4846
    %5593 = vmatprep.subr.bf16.mxu0 %v4840
    %5594 = vmatpush2.bf16.msra.mxu0 %v4839
    %5595 = vmatprep.subr.bf16.mxu0 %v4833
    %5596 = vmatpush2.bf16.msra.mxu0 %v4832
    %5597 = vmatprep.subr.bf16.mxu0 %v4826
    %5598 = vmatpush2.bf16.msra.mxu0 %v4825
    %5599 = vmatprep.subr.bf16.mxu0 %v4819
    %5600 = vmatpush2.bf16.msra.mxu0 %v4818
    %5601 = vmatprep.subr.bf16.mxu0 %v4812
    %5602 = vmatpush2.bf16.msra.mxu0 %v4811
    %5603 = vmatprep.subr.bf16.mxu0 %v4805
    %5604 = vmatpush2.bf16.msra.mxu0 %v4804
    %5605 = vmatprep.mubr.bf16.mxu0 %v2674
    %5606 = vmatmul.mubr.bf16.gmra.mxu0 %v2673
    %v5607 = vpop.f32.mrf.mxu0
    %v5608 = vadd.f32 %v5567, %v5607
    %v5609 = vpop.f32.mrf.mxu0
    %v5610 = vadd.f32 %v5569, %v5609
    %v5611 = vpop.f32.mrf.mxu0
    %v5612 = vpop.f32.mrf.mxu0
    %5613 = vdwg.mxu0
    %5614 = vmatprep.subr.bf16.mxu0 %v4910
    %5615 = vmatpush1.bf16.msra.mxu0 %v4909
    %5616 = vmatprep.subr.bf16.mxu0 %v4903
    %5617 = vmatpush1.bf16.msra.mxu0 %v4902
    %5618 = vmatprep.subr.bf16.mxu0 %v4896
    %5619 = vmatpush1.bf16.msra.mxu0 %v4895
    %5620 = vmatprep.subr.bf16.mxu0 %v4889
    %5621 = vmatpush1.bf16.msra.mxu0 %v4888
    %5622 = vmatprep.subr.bf16.mxu0 %v4882
    %5623 = vmatpush1.bf16.msra.mxu0 %v4881
    %5624 = vmatprep.subr.bf16.mxu0 %v4875
    %5625 = vmatpush1.bf16.msra.mxu0 %v4874
    %5626 = vmatprep.subr.bf16.mxu0 %v4868
    %5627 = vmatpush1.bf16.msra.mxu0 %v4867
    %5628 = vmatprep.subr.bf16.mxu0 %v4861
    %5629 = vmatpush1.bf16.msra.mxu0 %v4860
    %5630 = vmatprep.subr.bf16.mxu0 %v4966
    %5631 = vmatpush2.bf16.msra.mxu0 %v4965
    %5632 = vmatprep.subr.bf16.mxu0 %v4959
    %5633 = vmatpush2.bf16.msra.mxu0 %v4958
    %5634 = vmatprep.subr.bf16.mxu0 %v4952
    %5635 = vmatpush2.bf16.msra.mxu0 %v4951
    %5636 = vmatprep.subr.bf16.mxu0 %v4945
    %5637 = vmatpush2.bf16.msra.mxu0 %v4944
    %5638 = vmatprep.subr.bf16.mxu0 %v4938
    %5639 = vmatpush2.bf16.msra.mxu0 %v4937
    %5640 = vmatprep.subr.bf16.mxu0 %v4931
    %5641 = vmatpush2.bf16.msra.mxu0 %v4930
    %5642 = vmatprep.subr.bf16.mxu0 %v4924
    %5643 = vmatpush2.bf16.msra.mxu0 %v4923
    %5644 = vmatprep.subr.bf16.mxu0 %v4917
    %5645 = vmatpush2.bf16.msra.mxu0 %v4916
    %5646 = vmatprep.mubr.bf16.mxu0 %v2676
    %5647 = vmatmul.mubr.bf16.gmra.mxu0 %v2675
    %v5648 = vpop.f32.mrf.mxu0
    %v5649 = vadd.f32 %v5608, %v5648
    %v5650 = vpop.f32.mrf.mxu0
    %v5651 = vadd.f32 %v5610, %v5650
    %v5652 = vpop.f32.mrf.mxu0
    %v5653 = vpop.f32.mrf.mxu0
    %5654 = vdwg.mxu0
    %5655 = vmatprep.subr.bf16.mxu0 %v5022
    %5656 = vmatpush1.bf16.msra.mxu0 %v5021
    %5657 = vmatprep.subr.bf16.mxu0 %v5015
    %5658 = vmatpush1.bf16.msra.mxu0 %v5014
    %5659 = vmatprep.subr.bf16.mxu0 %v5008
    %5660 = vmatpush1.bf16.msra.mxu0 %v5007
    %5661 = vmatprep.subr.bf16.mxu0 %v5001
    %5662 = vmatpush1.bf16.msra.mxu0 %v5000
    %5663 = vmatprep.subr.bf16.mxu0 %v4994
    %5664 = vmatpush1.bf16.msra.mxu0 %v4993
    %5665 = vmatprep.subr.bf16.mxu0 %v4987
    %5666 = vmatpush1.bf16.msra.mxu0 %v4986
    %5667 = vmatprep.subr.bf16.mxu0 %v4980
    %5668 = vmatpush1.bf16.msra.mxu0 %v4979
    %5669 = vmatprep.subr.bf16.mxu0 %v4973
    %5670 = vmatpush1.bf16.msra.mxu0 %v4972
    %5671 = vmatprep.subr.bf16.mxu0 %v5078
    %5672 = vmatpush2.bf16.msra.mxu0 %v5077
    %5673 = vmatprep.subr.bf16.mxu0 %v5071
    %5674 = vmatpush2.bf16.msra.mxu0 %v5070
    %5675 = vmatprep.subr.bf16.mxu0 %v5064
    %5676 = vmatpush2.bf16.msra.mxu0 %v5063
    %5677 = vmatprep.subr.bf16.mxu0 %v5057
    %5678 = vmatpush2.bf16.msra.mxu0 %v5056
    %5679 = vmatprep.subr.bf16.mxu0 %v5050
    %5680 = vmatpush2.bf16.msra.mxu0 %v5049
    %5681 = vmatprep.subr.bf16.mxu0 %v5043
    %5682 = vmatpush2.bf16.msra.mxu0 %v5042
    %5683 = vmatprep.subr.bf16.mxu0 %v5036
    %5684 = vmatpush2.bf16.msra.mxu0 %v5035
    %5685 = vmatprep.subr.bf16.mxu0 %v5029
    %5686 = vmatpush2.bf16.msra.mxu0 %v5028
    %5687 = vmatprep.mubr.bf16.mxu0 %v2678
    %5688 = vmatmul.mubr.bf16.gmra.mxu0 %v2677
    %v5689 = vpop.f32.mrf.mxu0
    %v5690 = vadd.f32 %v5649, %v5689
    %v5691 = vpop.f32.mrf.mxu0
    %v5692 = vadd.f32 %v5651, %v5691
    %v5693 = vpop.f32.mrf.mxu0
    %v5694 = vpop.f32.mrf.mxu0
    %5695 = vdwg.mxu0
    %5696 = vmatprep.subr.bf16.mxu0 %v4688
    %5697 = vmatpush1.bf16.msra.mxu0 %v4687
    %5698 = vmatprep.subr.bf16.mxu0 %v4681
    %5699 = vmatpush1.bf16.msra.mxu0 %v4680
    %5700 = vmatprep.subr.bf16.mxu0 %v4674
    %5701 = vmatpush1.bf16.msra.mxu0 %v4673
    %5702 = vmatprep.subr.bf16.mxu0 %v4667
    %5703 = vmatpush1.bf16.msra.mxu0 %v4666
    %5704 = vmatprep.subr.bf16.mxu0 %v4660
    %5705 = vmatpush1.bf16.msra.mxu0 %v4659
    %5706 = vmatprep.subr.bf16.mxu0 %v4653
    %5707 = vmatpush1.bf16.msra.mxu0 %v4652
    %5708 = vmatprep.subr.bf16.mxu0 %v4646
    %5709 = vmatpush1.bf16.msra.mxu0 %v4645
    %5710 = vmatprep.subr.bf16.mxu0 %v4639
    %5711 = vmatpush1.bf16.msra.mxu0 %v4638
    %5712 = vmatprep.subr.bf16.mxu0 %v4744
    %5713 = vmatpush2.bf16.msra.mxu0 %v4743
    %5714 = vmatprep.subr.bf16.mxu0 %v4737
    %5715 = vmatpush2.bf16.msra.mxu0 %v4736
    %5716 = vmatprep.subr.bf16.mxu0 %v4730
    %5717 = vmatpush2.bf16.msra.mxu0 %v4729
    %5718 = vmatprep.subr.bf16.mxu0 %v4723
    %5719 = vmatpush2.bf16.msra.mxu0 %v4722
    %5720 = vmatprep.subr.bf16.mxu0 %v4716
    %5721 = vmatpush2.bf16.msra.mxu0 %v4715
    %5722 = vmatprep.subr.bf16.mxu0 %v4709
    %5723 = vmatpush2.bf16.msra.mxu0 %v4708
    %5724 = vmatprep.subr.bf16.mxu0 %v4702
    %5725 = vmatpush2.bf16.msra.mxu0 %v4701
    %5726 = vmatprep.subr.bf16.mxu0 %v4695
    %5727 = vmatpush2.bf16.msra.mxu0 %v4694
    %5728 = vmatprep.mubr.bf16.mxu0 %v2672
    %5729 = vmatmul.mubr.bf16.gmra.mxu0 %v2671
    %v5730 = vpop.f32.mrf.mxu0
    %v5731 = vadd.f32 %v3204, %v5730
    %v5732 = vpop.f32.mrf.mxu0
    %v5733 = vadd.f32 %v3208, %v5732
    %v5734 = vpop.f32.mrf.mxu0
    %v5735 = vpop.f32.mrf.mxu0
    %5736 = vdwg.mxu0
    %5737 = vmatprep.subr.bf16.mxu0 %v4800
    %5738 = vmatpush1.bf16.msra.mxu0 %v4799
    %5739 = vmatprep.subr.bf16.mxu0 %v4793
    %5740 = vmatpush1.bf16.msra.mxu0 %v4792
    %5741 = vmatprep.subr.bf16.mxu0 %v4786
    %5742 = vmatpush1.bf16.msra.mxu0 %v4785
    %5743 = vmatprep.subr.bf16.mxu0 %v4779
    %5744 = vmatpush1.bf16.msra.mxu0 %v4778
    %5745 = vmatprep.subr.bf16.mxu0 %v4772
    %5746 = vmatpush1.bf16.msra.mxu0 %v4771
    %5747 = vmatprep.subr.bf16.mxu0 %v4765
    %5748 = vmatpush1.bf16.msra.mxu0 %v4764
    %5749 = vmatprep.subr.bf16.mxu0 %v4758
    %5750 = vmatpush1.bf16.msra.mxu0 %v4757
    %5751 = vmatprep.subr.bf16.mxu0 %v4751
    %5752 = vmatpush1.bf16.msra.mxu0 %v4750
    %5753 = vmatprep.subr.bf16.mxu0 %v4856
    %5754 = vmatpush2.bf16.msra.mxu0 %v4855
    %5755 = vmatprep.subr.bf16.mxu0 %v4849
    %5756 = vmatpush2.bf16.msra.mxu0 %v4848
    %5757 = vmatprep.subr.bf16.mxu0 %v4842
    %5758 = vmatpush2.bf16.msra.mxu0 %v4841
    %5759 = vmatprep.subr.bf16.mxu0 %v4835
    %5760 = vmatpush2.bf16.msra.mxu0 %v4834
    %5761 = vmatprep.subr.bf16.mxu0 %v4828
    %5762 = vmatpush2.bf16.msra.mxu0 %v4827
    %5763 = vmatprep.subr.bf16.mxu0 %v4821
    %5764 = vmatpush2.bf16.msra.mxu0 %v4820
    %5765 = vmatprep.subr.bf16.mxu0 %v4814
    %5766 = vmatpush2.bf16.msra.mxu0 %v4813
    %5767 = vmatprep.subr.bf16.mxu0 %v4807
    %5768 = vmatpush2.bf16.msra.mxu0 %v4806
    %5769 = vmatprep.mubr.bf16.mxu0 %v2674
    %5770 = vmatmul.mubr.bf16.gmra.mxu0 %v2673
    %v5771 = vpop.f32.mrf.mxu0
    %v5772 = vadd.f32 %v5731, %v5771
    %v5773 = vpop.f32.mrf.mxu0
    %v5774 = vadd.f32 %v5733, %v5773
    %v5775 = vpop.f32.mrf.mxu0
    %v5776 = vpop.f32.mrf.mxu0
    %5777 = vdwg.mxu0
    %5778 = vmatprep.subr.bf16.mxu0 %v4912
    %5779 = vmatpush1.bf16.msra.mxu0 %v4911
    %5780 = vmatprep.subr.bf16.mxu0 %v4905
    %5781 = vmatpush1.bf16.msra.mxu0 %v4904
    %5782 = vmatprep.subr.bf16.mxu0 %v4898
    %5783 = vmatpush1.bf16.msra.mxu0 %v4897
    %5784 = vmatprep.subr.bf16.mxu0 %v4891
    %5785 = vmatpush1.bf16.msra.mxu0 %v4890
    %5786 = vmatprep.subr.bf16.mxu0 %v4884
    %5787 = vmatpush1.bf16.msra.mxu0 %v4883
    %5788 = vmatprep.subr.bf16.mxu0 %v4877
    %5789 = vmatpush1.bf16.msra.mxu0 %v4876
    %5790 = vmatprep.subr.bf16.mxu0 %v4870
    %5791 = vmatpush1.bf16.msra.mxu0 %v4869
    %5792 = vmatprep.subr.bf16.mxu0 %v4863
    %5793 = vmatpush1.bf16.msra.mxu0 %v4862
    %5794 = vmatprep.subr.bf16.mxu0 %v4968
    %5795 = vmatpush2.bf16.msra.mxu0 %v4967
    %5796 = vmatprep.subr.bf16.mxu0 %v4961
    %5797 = vmatpush2.bf16.msra.mxu0 %v4960
    %5798 = vmatprep.subr.bf16.mxu0 %v4954
    %5799 = vmatpush2.bf16.msra.mxu0 %v4953
    %5800 = vmatprep.subr.bf16.mxu0 %v4947
    %5801 = vmatpush2.bf16.msra.mxu0 %v4946
    %5802 = vmatprep.subr.bf16.mxu0 %v4940
    %5803 = vmatpush2.bf16.msra.mxu0 %v4939
    %5804 = vmatprep.subr.bf16.mxu0 %v4933
    %5805 = vmatpush2.bf16.msra.mxu0 %v4932
    %5806 = vmatprep.subr.bf16.mxu0 %v4926
    %5807 = vmatpush2.bf16.msra.mxu0 %v4925
    %5808 = vmatprep.subr.bf16.mxu0 %v4919
    %5809 = vmatpush2.bf16.msra.mxu0 %v4918
    %5810 = vmatprep.mubr.bf16.mxu0 %v2676
    %5811 = vmatmul.mubr.bf16.gmra.mxu0 %v2675
    %v5812 = vpop.f32.mrf.mxu0
    %v5813 = vadd.f32 %v5772, %v5812
    %v5814 = vpop.f32.mrf.mxu0
    %v5815 = vadd.f32 %v5774, %v5814
    %v5816 = vpop.f32.mrf.mxu0
    %v5817 = vpop.f32.mrf.mxu0
    %5818 = vdwg.mxu0
    %5819 = vmatprep.subr.bf16.mxu0 %v5024
    %5820 = vmatpush1.bf16.msra.mxu0 %v5023
    %5821 = vmatprep.subr.bf16.mxu0 %v5017
    %5822 = vmatpush1.bf16.msra.mxu0 %v5016
    %5823 = vmatprep.subr.bf16.mxu0 %v5010
    %5824 = vmatpush1.bf16.msra.mxu0 %v5009
    %5825 = vmatprep.subr.bf16.mxu0 %v5003
    %5826 = vmatpush1.bf16.msra.mxu0 %v5002
    %5827 = vmatprep.subr.bf16.mxu0 %v4996
    %5828 = vmatpush1.bf16.msra.mxu0 %v4995
    %5829 = vmatprep.subr.bf16.mxu0 %v4989
    %5830 = vmatpush1.bf16.msra.mxu0 %v4988
    %5831 = vmatprep.subr.bf16.mxu0 %v4982
    %5832 = vmatpush1.bf16.msra.mxu0 %v4981
    %5833 = vmatprep.subr.bf16.mxu0 %v4975
    %5834 = vmatpush1.bf16.msra.mxu0 %v4974
    %5835 = vmatprep.subr.bf16.mxu0 %v5080
    %5836 = vmatpush2.bf16.msra.mxu0 %v5079
    %5837 = vmatprep.subr.bf16.mxu0 %v5073
    %5838 = vmatpush2.bf16.msra.mxu0 %v5072
    %5839 = vmatprep.subr.bf16.mxu0 %v5066
    %5840 = vmatpush2.bf16.msra.mxu0 %v5065
    %5841 = vmatprep.subr.bf16.mxu0 %v5059
    %5842 = vmatpush2.bf16.msra.mxu0 %v5058
    %5843 = vmatprep.subr.bf16.mxu0 %v5052
    %5844 = vmatpush2.bf16.msra.mxu0 %v5051
    %5845 = vmatprep.subr.bf16.mxu0 %v5045
    %5846 = vmatpush2.bf16.msra.mxu0 %v5044
    %5847 = vmatprep.subr.bf16.mxu0 %v5038
    %5848 = vmatpush2.bf16.msra.mxu0 %v5037
    %5849 = vmatprep.subr.bf16.mxu0 %v5031
    %5850 = vmatpush2.bf16.msra.mxu0 %v5030
    %5851 = vmatprep.mubr.bf16.mxu0 %v2678
    %5852 = vmatmul.mubr.bf16.gmra.mxu0 %v2677
    %v5853 = vpop.f32.mrf.mxu0
    %v5854 = vadd.f32 %v5813, %v5853
    %v5855 = vpop.f32.mrf.mxu0
    %v5856 = vadd.f32 %v5815, %v5855
    %v5857 = vpop.f32.mrf.mxu0
    %v5858 = vpop.f32.mrf.mxu0
    %5859 = vdwg.mxu0
    %5860 = vmatprep.subr.bf16.mxu0 %v4690
    %5861 = vmatpush1.bf16.msra.mxu0 %v4689
    %5862 = vmatprep.subr.bf16.mxu0 %v4683
    %5863 = vmatpush1.bf16.msra.mxu0 %v4682
    %5864 = vmatprep.subr.bf16.mxu0 %v4676
    %5865 = vmatpush1.bf16.msra.mxu0 %v4675
    %5866 = vmatprep.subr.bf16.mxu0 %v4669
    %5867 = vmatpush1.bf16.msra.mxu0 %v4668
    %5868 = vmatprep.subr.bf16.mxu0 %v4662
    %5869 = vmatpush1.bf16.msra.mxu0 %v4661
    %5870 = vmatprep.subr.bf16.mxu0 %v4655
    %5871 = vmatpush1.bf16.msra.mxu0 %v4654
    %5872 = vmatprep.subr.bf16.mxu0 %v4648
    %5873 = vmatpush1.bf16.msra.mxu0 %v4647
    %5874 = vmatprep.subr.bf16.mxu0 %v4641
    %5875 = vmatpush1.bf16.msra.mxu0 %v4640
    %5876 = vmatprep.subr.bf16.mxu0 %v4746
    %5877 = vmatpush2.bf16.msra.mxu0 %v4745
    %5878 = vmatprep.subr.bf16.mxu0 %v4739
    %5879 = vmatpush2.bf16.msra.mxu0 %v4738
    %5880 = vmatprep.subr.bf16.mxu0 %v4732
    %5881 = vmatpush2.bf16.msra.mxu0 %v4731
    %5882 = vmatprep.subr.bf16.mxu0 %v4725
    %5883 = vmatpush2.bf16.msra.mxu0 %v4724
    %5884 = vmatprep.subr.bf16.mxu0 %v4718
    %5885 = vmatpush2.bf16.msra.mxu0 %v4717
    %5886 = vmatprep.subr.bf16.mxu0 %v4711
    %5887 = vmatpush2.bf16.msra.mxu0 %v4710
    %5888 = vmatprep.subr.bf16.mxu0 %v4704
    %5889 = vmatpush2.bf16.msra.mxu0 %v4703
    %5890 = vmatprep.subr.bf16.mxu0 %v4697
    %5891 = vmatpush2.bf16.msra.mxu0 %v4696
    %5892 = vmatprep.mubr.bf16.mxu0 %v2672
    %5893 = vmatmul.mubr.bf16.gmra.mxu0 %v2671
    %v5894 = vpop.f32.mrf.mxu0
    %v5895 = vadd.f32 %v3212, %v5894
    %v5896 = vpop.f32.mrf.mxu0
    %v5897 = vadd.f32 %v3216, %v5896
    %v5898 = vpop.f32.mrf.mxu0
    %v5899 = vpop.f32.mrf.mxu0
    %5900 = vdwg.mxu0
    %5901 = vmatprep.subr.bf16.mxu0 %v4802
    %5902 = vmatpush1.bf16.msra.mxu0 %v4801
    %5903 = vmatprep.subr.bf16.mxu0 %v4795
    %5904 = vmatpush1.bf16.msra.mxu0 %v4794
    %5905 = vmatprep.subr.bf16.mxu0 %v4788
    %5906 = vmatpush1.bf16.msra.mxu0 %v4787
    %5907 = vmatprep.subr.bf16.mxu0 %v4781
    %5908 = vmatpush1.bf16.msra.mxu0 %v4780
    %5909 = vmatprep.subr.bf16.mxu0 %v4774
    %5910 = vmatpush1.bf16.msra.mxu0 %v4773
    %5911 = vmatprep.subr.bf16.mxu0 %v4767
    %5912 = vmatpush1.bf16.msra.mxu0 %v4766
    %5913 = vmatprep.subr.bf16.mxu0 %v4760
    %5914 = vmatpush1.bf16.msra.mxu0 %v4759
    %5915 = vmatprep.subr.bf16.mxu0 %v4753
    %5916 = vmatpush1.bf16.msra.mxu0 %v4752
    %5917 = vmatprep.subr.bf16.mxu0 %v4858
    %5918 = vmatpush2.bf16.msra.mxu0 %v4857
    %5919 = vmatprep.subr.bf16.mxu0 %v4851
    %5920 = vmatpush2.bf16.msra.mxu0 %v4850
    %5921 = vmatprep.subr.bf16.mxu0 %v4844
    %5922 = vmatpush2.bf16.msra.mxu0 %v4843
    %5923 = vmatprep.subr.bf16.mxu0 %v4837
    %5924 = vmatpush2.bf16.msra.mxu0 %v4836
    %5925 = vmatprep.subr.bf16.mxu0 %v4830
    %5926 = vmatpush2.bf16.msra.mxu0 %v4829
    %5927 = vmatprep.subr.bf16.mxu0 %v4823
    %5928 = vmatpush2.bf16.msra.mxu0 %v4822
    %5929 = vmatprep.subr.bf16.mxu0 %v4816
    %5930 = vmatpush2.bf16.msra.mxu0 %v4815
    %5931 = vmatprep.subr.bf16.mxu0 %v4809
    %5932 = vmatpush2.bf16.msra.mxu0 %v4808
    %5933 = vmatprep.mubr.bf16.mxu0 %v2674
    %5934 = vmatmul.mubr.bf16.gmra.mxu0 %v2673
    %v5935 = vpop.f32.mrf.mxu0
    %v5936 = vadd.f32 %v5895, %v5935
    %v5937 = vpop.f32.mrf.mxu0
    %v5938 = vadd.f32 %v5897, %v5937
    %v5939 = vpop.f32.mrf.mxu0
    %v5940 = vpop.f32.mrf.mxu0
    %5941 = vdwg.mxu0
    %5942 = vmatprep.subr.bf16.mxu0 %v4914
    %5943 = vmatpush1.bf16.msra.mxu0 %v4913
    %5944 = vmatprep.subr.bf16.mxu0 %v4907
    %5945 = vmatpush1.bf16.msra.mxu0 %v4906
    %5946 = vmatprep.subr.bf16.mxu0 %v4900
    %5947 = vmatpush1.bf16.msra.mxu0 %v4899
    %5948 = vmatprep.subr.bf16.mxu0 %v4893
    %5949 = vmatpush1.bf16.msra.mxu0 %v4892
    %5950 = vmatprep.subr.bf16.mxu0 %v4886
    %5951 = vmatpush1.bf16.msra.mxu0 %v4885
    %5952 = vmatprep.subr.bf16.mxu0 %v4879
    %5953 = vmatpush1.bf16.msra.mxu0 %v4878
    %5954 = vmatprep.subr.bf16.mxu0 %v4872
    %5955 = vmatpush1.bf16.msra.mxu0 %v4871
    %5956 = vmatprep.subr.bf16.mxu0 %v4865
    %5957 = vmatpush1.bf16.msra.mxu0 %v4864
    %5958 = vmatprep.subr.bf16.mxu0 %v4970
    %5959 = vmatpush2.bf16.msra.mxu0 %v4969
    %5960 = vmatprep.subr.bf16.mxu0 %v4963
    %5961 = vmatpush2.bf16.msra.mxu0 %v4962
    %5962 = vmatprep.subr.bf16.mxu0 %v4956
    %5963 = vmatpush2.bf16.msra.mxu0 %v4955
    %5964 = vmatprep.subr.bf16.mxu0 %v4949
    %5965 = vmatpush2.bf16.msra.mxu0 %v4948
    %5966 = vmatprep.subr.bf16.mxu0 %v4942
    %5967 = vmatpush2.bf16.msra.mxu0 %v4941
    %5968 = vmatprep.subr.bf16.mxu0 %v4935
    %5969 = vmatpush2.bf16.msra.mxu0 %v4934
    %5970 = vmatprep.subr.bf16.mxu0 %v4928
    %5971 = vmatpush2.bf16.msra.mxu0 %v4927
    %5972 = vmatprep.subr.bf16.mxu0 %v4921
    %5973 = vmatpush2.bf16.msra.mxu0 %v4920
    %5974 = vmatprep.mubr.bf16.mxu0 %v2676
    %5975 = vmatmul.mubr.bf16.gmra.mxu0 %v2675
    %v5976 = vpop.f32.mrf.mxu0
    %v5977 = vadd.f32 %v5936, %v5976
    %v5978 = vpop.f32.mrf.mxu0
    %v5979 = vadd.f32 %v5938, %v5978
    %v5980 = vpop.f32.mrf.mxu0
    %v5981 = vpop.f32.mrf.mxu0
    %5982 = vdwg.mxu0
    %5983 = vmatprep.subr.bf16.mxu0 %v5026
    %5984 = vmatpush1.bf16.msra.mxu0 %v5025
    %5985 = vmatprep.subr.bf16.mxu0 %v5019
    %5986 = vmatpush1.bf16.msra.mxu0 %v5018
    %5987 = vmatprep.subr.bf16.mxu0 %v5012
    %5988 = vmatpush1.bf16.msra.mxu0 %v5011
    %5989 = vmatprep.subr.bf16.mxu0 %v5005
    %5990 = vmatpush1.bf16.msra.mxu0 %v5004
    %5991 = vmatprep.subr.bf16.mxu0 %v4998
    %5992 = vmatpush1.bf16.msra.mxu0 %v4997
    %5993 = vmatprep.subr.bf16.mxu0 %v4991
    %5994 = vmatpush1.bf16.msra.mxu0 %v4990
    %5995 = vmatprep.subr.bf16.mxu0 %v4984
    %5996 = vmatpush1.bf16.msra.mxu0 %v4983
    %5997 = vmatprep.subr.bf16.mxu0 %v4977
    %5998 = vmatpush1.bf16.msra.mxu0 %v4976
    %5999 = vmatprep.subr.bf16.mxu0 %v5082
    %6000 = vmatpush2.bf16.msra.mxu0 %v5081
    %6001 = vmatprep.subr.bf16.mxu0 %v5075
    %6002 = vmatpush2.bf16.msra.mxu0 %v5074
    %6003 = vmatprep.subr.bf16.mxu0 %v5068
    %6004 = vmatpush2.bf16.msra.mxu0 %v5067
    %6005 = vmatprep.subr.bf16.mxu0 %v5061
    %6006 = vmatpush2.bf16.msra.mxu0 %v5060
    %6007 = vmatprep.subr.bf16.mxu0 %v5054
    %6008 = vmatpush2.bf16.msra.mxu0 %v5053
    %6009 = vmatprep.subr.bf16.mxu0 %v5047
    %6010 = vmatpush2.bf16.msra.mxu0 %v5046
    %6011 = vmatprep.subr.bf16.mxu0 %v5040
    %6012 = vmatpush2.bf16.msra.mxu0 %v5039
    %6013 = vmatprep.subr.bf16.mxu0 %v5033
    %6014 = vmatpush2.bf16.msra.mxu0 %v5032
    %6015 = vmatprep.mubr.bf16.mxu0 %v2678
    %6016 = vmatmul.mubr.bf16.gmra.mxu0 %v2677
    %v6017 = vpop.f32.mrf.mxu0
    %v6018 = vadd.f32 %v5977, %v6017
    %v6019 = vpop.f32.mrf.mxu0
    %v6020 = vadd.f32 %v5979, %v6019
    %v6021 = vpop.f32.mrf.mxu0
    %v6022 = vpop.f32.mrf.mxu0
    %6023 = vdwg.mxu0
    %6024 = vmatprep.subr.bf16.mxu0 0
    %6025 = vmatpush1.bf16.msra.mxu0 %v4691
    %6026 = vmatprep.subr.bf16.mxu0 0
    %6027 = vmatpush1.bf16.msra.mxu0 %v4684
    %6028 = vmatprep.subr.bf16.mxu0 0
    %6029 = vmatpush1.bf16.msra.mxu0 %v4677
    %6030 = vmatprep.subr.bf16.mxu0 0
    %6031 = vmatpush1.bf16.msra.mxu0 %v4670
    %6032 = vmatprep.subr.bf16.mxu0 0
    %6033 = vmatpush1.bf16.msra.mxu0 %v4663
    %6034 = vmatprep.subr.bf16.mxu0 0
    %6035 = vmatpush1.bf16.msra.mxu0 %v4656
    %6036 = vmatprep.subr.bf16.mxu0 0
    %6037 = vmatpush1.bf16.msra.mxu0 %v4649
    %6038 = vmatprep.subr.bf16.mxu0 0
    %6039 = vmatpush1.bf16.msra.mxu0 %v4642
    %6040 = vmatprep.subr.bf16.mxu0 0
    %6041 = vmatpush2.bf16.msra.mxu0 %v4747
    %6042 = vmatprep.subr.bf16.mxu0 0
    %6043 = vmatpush2.bf16.msra.mxu0 %v4740
    %6044 = vmatprep.subr.bf16.mxu0 0
    %6045 = vmatpush2.bf16.msra.mxu0 %v4733
    %6046 = vmatprep.subr.bf16.mxu0 0
    %6047 = vmatpush2.bf16.msra.mxu0 %v4726
    %6048 = vmatprep.subr.bf16.mxu0 0
    %6049 = vmatpush2.bf16.msra.mxu0 %v4719
    %6050 = vmatprep.subr.bf16.mxu0 0
    %6051 = vmatpush2.bf16.msra.mxu0 %v4712
    %6052 = vmatprep.subr.bf16.mxu0 0
    %6053 = vmatpush2.bf16.msra.mxu0 %v4705
    %6054 = vmatprep.subr.bf16.mxu0 0
    %6055 = vmatpush2.bf16.msra.mxu0 %v4698
    %6056 = vmatprep.mubr.bf16.mxu0 %v2672
    %6057 = vmatmul.mubr.bf16.gmra.mxu0 %v2671
    %v6058 = vpop.f32.mrf.mxu0
    %v6059 = vadd.f32 %v3220, %v6058
    %v6060 = vpop.f32.mrf.mxu0
    %v6061 = vpop.f32.mrf.mxu0
    %v6062 = vpop.f32.mrf.mxu0
    %6063 = vdwg.mxu0
    %6064 = vmatprep.subr.bf16.mxu0 0
    %6065 = vmatpush1.bf16.msra.mxu0 %v4803
    %6066 = vmatprep.subr.bf16.mxu0 0
    %6067 = vmatpush1.bf16.msra.mxu0 %v4796
    %6068 = vmatprep.subr.bf16.mxu0 0
    %6069 = vmatpush1.bf16.msra.mxu0 %v4789
    %6070 = vmatprep.subr.bf16.mxu0 0
    %6071 = vmatpush1.bf16.msra.mxu0 %v4782
    %6072 = vmatprep.subr.bf16.mxu0 0
    %6073 = vmatpush1.bf16.msra.mxu0 %v4775
    %6074 = vmatprep.subr.bf16.mxu0 0
    %6075 = vmatpush1.bf16.msra.mxu0 %v4768
    %6076 = vmatprep.subr.bf16.mxu0 0
    %6077 = vmatpush1.bf16.msra.mxu0 %v4761
    %6078 = vmatprep.subr.bf16.mxu0 0
    %6079 = vmatpush1.bf16.msra.mxu0 %v4754
    %6080 = vmatprep.subr.bf16.mxu0 0
    %6081 = vmatpush2.bf16.msra.mxu0 %v4859
    %6082 = vmatprep.subr.bf16.mxu0 0
    %6083 = vmatpush2.bf16.msra.mxu0 %v4852
    %6084 = vmatprep.subr.bf16.mxu0 0
    %6085 = vmatpush2.bf16.msra.mxu0 %v4845
    %6086 = vmatprep.subr.bf16.mxu0 0
    %6087 = vmatpush2.bf16.msra.mxu0 %v4838
    %6088 = vmatprep.subr.bf16.mxu0 0
    %6089 = vmatpush2.bf16.msra.mxu0 %v4831
    %6090 = vmatprep.subr.bf16.mxu0 0
    %6091 = vmatpush2.bf16.msra.mxu0 %v4824
    %6092 = vmatprep.subr.bf16.mxu0 0
    %6093 = vmatpush2.bf16.msra.mxu0 %v4817
    %6094 = vmatprep.subr.bf16.mxu0 0
    %6095 = vmatpush2.bf16.msra.mxu0 %v4810
    %6096 = vmatprep.mubr.bf16.mxu0 %v2674
    %6097 = vmatmul.mubr.bf16.gmra.mxu0 %v2673
    %v6098 = vpop.f32.mrf.mxu0
    %v6099 = vadd.f32 %v6059, %v6098
    %v6100 = vpop.f32.mrf.mxu0
    %v6101 = vpop.f32.mrf.mxu0
    %v6102 = vpop.f32.mrf.mxu0
    %6103 = vdwg.mxu0
    %6104 = vmatprep.subr.bf16.mxu0 0
    %6105 = vmatpush1.bf16.msra.mxu0 %v4915
    %6106 = vmatprep.subr.bf16.mxu0 0
    %6107 = vmatpush1.bf16.msra.mxu0 %v4908
    %6108 = vmatprep.subr.bf16.mxu0 0
    %6109 = vmatpush1.bf16.msra.mxu0 %v4901
    %6110 = vmatprep.subr.bf16.mxu0 0
    %6111 = vmatpush1.bf16.msra.mxu0 %v4894
    %6112 = vmatprep.subr.bf16.mxu0 0
    %6113 = vmatpush1.bf16.msra.mxu0 %v4887
    %6114 = vmatprep.subr.bf16.mxu0 0
    %6115 = vmatpush1.bf16.msra.mxu0 %v4880
    %6116 = vmatprep.subr.bf16.mxu0 0
    %6117 = vmatpush1.bf16.msra.mxu0 %v4873
    %6118 = vmatprep.subr.bf16.mxu0 0
    %6119 = vmatpush1.bf16.msra.mxu0 %v4866
    %6120 = vmatprep.subr.bf16.mxu0 0
    %6121 = vmatpush2.bf16.msra.mxu0 %v4971
    %6122 = vmatprep.subr.bf16.mxu0 0
    %6123 = vmatpush2.bf16.msra.mxu0 %v4964
    %6124 = vmatprep.subr.bf16.mxu0 0
    %6125 = vmatpush2.bf16.msra.mxu0 %v4957
    %6126 = vmatprep.subr.bf16.mxu0 0
    %6127 = vmatpush2.bf16.msra.mxu0 %v4950
    %6128 = vmatprep.subr.bf16.mxu0 0
    %6129 = vmatpush2.bf16.msra.mxu0 %v4943
    %6130 = vmatprep.subr.bf16.mxu0 0
    %6131 = vmatpush2.bf16.msra.mxu0 %v4936
    %6132 = vmatprep.subr.bf16.mxu0 0
    %6133 = vmatpush2.bf16.msra.mxu0 %v4929
    %6134 = vmatprep.subr.bf16.mxu0 0
    %6135 = vmatpush2.bf16.msra.mxu0 %v4922
    %6136 = vmatprep.mubr.bf16.mxu0 %v2676
    %6137 = vmatmul.mubr.bf16.gmra.mxu0 %v2675
    %v6138 = vpop.f32.mrf.mxu0
    %v6139 = vadd.f32 %v6099, %v6138
    %v6140 = vpop.f32.mrf.mxu0
    %v6141 = vpop.f32.mrf.mxu0
    %v6142 = vpop.f32.mrf.mxu0
    %6143 = vdwg.mxu0
    %6144 = vmatprep.subr.bf16.mxu0 0
    %6145 = vmatpush1.bf16.msra.mxu0 %v5027
    %6146 = vmatprep.subr.bf16.mxu0 0
    %6147 = vmatpush1.bf16.msra.mxu0 %v5020
    %6148 = vmatprep.subr.bf16.mxu0 0
    %6149 = vmatpush1.bf16.msra.mxu0 %v5013
    %6150 = vmatprep.subr.bf16.mxu0 0
    %6151 = vmatpush1.bf16.msra.mxu0 %v5006
    %6152 = vmatprep.subr.bf16.mxu0 0
    %6153 = vmatpush1.bf16.msra.mxu0 %v4999
    %6154 = vmatprep.subr.bf16.mxu0 0
    %6155 = vmatpush1.bf16.msra.mxu0 %v4992
    %6156 = vmatprep.subr.bf16.mxu0 0
    %6157 = vmatpush1.bf16.msra.mxu0 %v4985
    %6158 = vmatprep.subr.bf16.mxu0 0
    %6159 = vmatpush1.bf16.msra.mxu0 %v4978
    %6160 = vmatprep.subr.bf16.mxu0 0
    %6161 = vmatpush2.bf16.msra.mxu0 %v5083
    %6162 = vmatprep.subr.bf16.mxu0 0
    %6163 = vmatpush2.bf16.msra.mxu0 %v5076
    %6164 = vmatprep.subr.bf16.mxu0 0
    %6165 = vmatpush2.bf16.msra.mxu0 %v5069
    %6166 = vmatprep.subr.bf16.mxu0 0
    %6167 = vmatpush2.bf16.msra.mxu0 %v5062
    %6168 = vmatprep.subr.bf16.mxu0 0
    %6169 = vmatpush2.bf16.msra.mxu0 %v5055
    %6170 = vmatprep.subr.bf16.mxu0 0
    %6171 = vmatpush2.bf16.msra.mxu0 %v5048
    %6172 = vmatprep.subr.bf16.mxu0 0
    %6173 = vmatpush2.bf16.msra.mxu0 %v5041
    %6174 = vmatprep.subr.bf16.mxu0 0
    %6175 = vmatpush2.bf16.msra.mxu0 %v5034
    %6176 = vmatprep.mubr.bf16.mxu0 %v2678
    %6177 = vmatmul.mubr.bf16.gmra.mxu0 %v2677
    %v6178 = vpop.f32.mrf.mxu0
    %v6179 = vadd.f32 %v6139, %v6178
    %v6180 = vpop.f32.mrf.mxu0
    %v6181 = vpop.f32.mrf.mxu0
    %v6182 = vpop.f32.mrf.mxu0
    %6183 = vdwg.mxu0
    %v6184 = vtanh.pop %v5690
    %v6185 = vtanh.pop %v5692
    %v6186 = vtanh.pop %v5854
    %v6187 = vtanh.pop %v5856
    %v6188 = vtanh.pop %v6018
    %v6189 = vtanh.pop %v6020
    %v6190 = vtanh.pop %v6179
    %6191 = vst [vmem:[#allocation17] sm:$0xff] %v6184
    %6192 = vst [vmem:[#allocation17 + $0x8] sm:$0xff] %v6185
    %6193 = vst [vmem:[#allocation17 + $0x10] sm:$0xff] %v6186
    %6194 = vst [vmem:[#allocation17 + $0x18] sm:$0xff] %v6187
    %6195 = vst [vmem:[#allocation17 + $0x20] sm:$0xff] %v6188
    %6196 = vst [vmem:[#allocation17 + $0x28] sm:$0xff] %v6189
    %6197 = vst [vmem:[#allocation17 + $0x30] sm:$0xff] %v6190
    // Predicated region
    $region74: #{tpu_custom_call.1} parent=1 // pred_check
      _
    $region75: #{tpu_custom_call.1} parent=1 // pred_check_branch
      %6199 = sbr.rel (0) target = $region77
    $region76: #{tpu_custom_call.1} parent=1 // pred_region
      %s6201 = ssub.s32 896, 896
      %6202 = vsyncadd [#allocation4], %s6201
      %s6204 = sshll.u32 [#allocation17], 4
      %s6205 = int_to_ptr.vmem [resolvable:$true] %s6204
      %6207 = dma.vmem_to_hbm [thread:$0]  %s6205, 896, %s9, [#allocation4]
    $region77: #{tpu_custom_call.1} parent=1 // pred_fallthru
      _
    // Predicated region
    $region78: #{tpu_custom_call.1} parent=1 // pred_check
      _
    $region79: #{tpu_custom_call.1} parent=1 // pred_check_branch
      %6209 = sbr.rel (0) target = $region81
    $region80: #{tpu_custom_call.1} parent=1 // pred_region
      %6210 = dma.done [#allocation4], 896
    $region81: #{tpu_custom_call.1} parent=1 // pred_fallthru
      _
    %6211 = vsyncpa [#allocation3], 1
    %6212 = vsyncpa [#allocation6], 1
    %6213 = vsyncpa [#allocation9], 1
    %6214 = vsyncpa [#allocation12], 1
    %6215 = vsyncpa [#allocation15], 1
    %6216 = vsyncpa [#allocation4], 1

// kernel: tpu_custom_call.1
$region0: #{tpu_custom_call.1}
  #allocation0 [shape = 'u32[]', space=smem, size = 0x4, offset = 0x4, fixed_abs, tag = 'smem constant byte address 0x4 - core index']
  #allocation1 [shape = 'u32[144,128]{1,0:T(1,128)}', space=vmem, size = 0x12000, scoped, tag = 'internal scratch']
  %s0 = inlined_call_operand.hbm [shape: f32[8,32], index: 0, kind: input, shape index: {}]
  %s1 = inlined_call_operand.hbm [shape: bf16[32,256], index: 1, kind: input, shape index: {}]
  %s2 = inlined_call_operand.hbm [shape: f32[1,256], index: 2, kind: input, shape index: {}]
  %s3 = inlined_call_operand.hbm [shape: bf16[256,512], index: 3, kind: input, shape index: {}]
  %s4 = inlined_call_operand.hbm [shape: f32[1,512], index: 4, kind: input, shape index: {}]
  %s5 = inlined_call_operand.hbm [shape: bf16[512,1024], index: 5, kind: input, shape index: {}]
  %s6 = inlined_call_operand.hbm [shape: f32[1,1024], index: 6, kind: input, shape index: {}]
  %s7 = inlined_call_operand.hbm [shape: bf16[1024,896], index: 7, kind: input, shape index: {}]
  %s8 = inlined_call_operand.hbm [shape: f32[1,896], index: 8, kind: input, shape index: {}]
  %s9 = inlined_call_operand.hbm [shape: f32[8,896], index: 9, kind: output, shape index: {}]
  %s10 = sld [smem:[#allocation0]]
  $region82: #{tpu_custom_call.1} parent=0
    _
  %s12 = ssub.s32 1, %s10
  %s13 = scalar_select 0, %s12, %s10
  $region1: #{tpu_custom_call.1} parent=0
    #allocation2 [shape = 'u8[4096]{0}', space=vmem, size = 0x1000, scoped, tag = 'input window, operand 0, single buffered']
    #allocation3 [shape = 's32[1]{0}', space=sflag, size = 0x4, scoped, tag = 'scoped memory for tpu_custom_call.1']
    #allocation4 [shape = 's32[1]{0}', space=sflag, size = 0x4, scoped, tag = 'scoped memory for tpu_custom_call.1']
    #allocation5 [shape = 'u8[16384]{0}', space=vmem, size = 0x4000, scoped, tag = 'input window, operand 1, single buffered']
    #allocation6 [shape = 's32[1]{0}', space=sflag, size = 0x4, scoped, tag = 'scoped memory for tpu_custom_call.1']
    #allocation7 [shape = 'u8[1024]{0}', space=vmem, size = 0x400, scoped, tag = 'input window, operand 2, single buffered']
    #allocation8 [shape = 'u8[262144]{0}', space=vmem, size = 0x40000, scoped, tag = 'input window, operand 3, single buffered']
    #allocation9 [shape = 's32[1]{0}', space=sflag, size = 0x4, scoped, tag = 'scoped memory for tpu_custom_call.1']
    #allocation10 [shape = 'u8[2048]{0}', space=vmem, size = 0x800, scoped, tag = 'input window, operand 4, single buffered']
    #allocation11 [shape = 'u8[1048576]{0}', space=vmem, size = 0x100000, scoped, tag = 'input window, operand 5, single buffered']
    #allocation12 [shape = 's32[1]{0}', space=sflag, size = 0x4, scoped, tag = 'scoped memory for tpu_custom_call.1']
    #allocation13 [shape = 'u8[4096]{0}', space=vmem, size = 0x1000, scoped, tag = 'input window, operand 6, single buffered']
    #allocation14 [shape = 'u8[1835008]{0}', space=vmem, size = 0x1c0000, scoped, tag = 'input window, operand 7, single buffered']
    #allocation15 [shape = 's32[1]{0}', space=sflag, size = 0x4, scoped, tag = 'scoped memory for tpu_custom_call.1']
    #allocation16 [shape = 'u8[3584]{0}', space=vmem, size = 0x1000, scoped, tag = 'input window, operand 8, single buffered']
    #allocation17 [shape = 'u8[28672]{0}', space=vmem, size = 0x7000, scoped, tag = 'output window, operand 0, single buffered']
    %14 = vsyncpa [#allocation3], 0
    %15 = vsyncpa [#allocation6], 0
    %16 = vsyncpa [#allocation9], 0
    %17 = vsyncpa [#allocation12], 0
    %18 = vsyncpa [#allocation15], 0
    %19 = vsyncpa [#allocation4], 0
    // Predicated region
    $region2: #{tpu_custom_call.1} parent=1 // pred_check
      _
    $region3: #{tpu_custom_call.1} parent=1 // pred_check_branch
      %21 = sbr.rel (0) target = $region5
    $region4: #{tpu_custom_call.1} parent=1 // pred_region
      %s23 = ssub.s32 128, 128
      %24 = vsyncadd [#allocation3], %s23
      %s26 = sshll.u32 [#allocation2], 4
      %s27 = int_to_ptr.vmem [resolvable:$true] %s26
      %29 = dma.hbm_to_vmem [thread:$0]  %s0, 128, %s27, [#allocation3]
    $region5: #{tpu_custom_call.1} parent=1 // pred_fallthru
      _
    // Predicated region
    $region6: #{tpu_custom_call.1} parent=1 // pred_check
      _
    $region7: #{tpu_custom_call.1} parent=1 // pred_check_branch
      %31 = sbr.rel (0) target = $region9
    $region8: #{tpu_custom_call.1} parent=1 // pred_region
      %s33 = ssub.s32 512, 512
      %34 = vsyncadd [#allocation6], %s33
      %s35 = sshll.u32 [#allocation5], 4
      %s36 = int_to_ptr.vmem [resolvable:$true] %s35
      %41 = dma.hbm_to_vmem [thread:$0]  %s1, 512, %s36, [#allocation6], 128, 128, 8
    $region9: #{tpu_custom_call.1} parent=1 // pred_fallthru
      _
    // Predicated region
    $region10: #{tpu_custom_call.1} parent=1 // pred_check
      _
    $region11: #{tpu_custom_call.1} parent=1 // pred_check_branch
      %43 = sbr.rel (0) target = $region13
    $region12: #{tpu_custom_call.1} parent=1 // pred_region
      %s45 = ssub.s32 32, 32
      %46 = vsyncadd [#allocation6], %s45
      %s48 = sshll.u32 [#allocation7], 4
      %s49 = int_to_ptr.vmem [resolvable:$true] %s48
      %51 = dma.hbm_to_vmem [thread:$0]  %s2, 32, %s49, [#allocation6]
    $region13: #{tpu_custom_call.1} parent=1 // pred_fallthru
      _
    // Predicated region
    $region14: #{tpu_custom_call.1} parent=1 // pred_check
      _
    $region15: #{tpu_custom_call.1} parent=1 // pred_check_branch
      %53 = sbr.rel (0) target = $region17
    $region16: #{tpu_custom_call.1} parent=1 // pred_region
      %s55 = ssub.s32 8192, 8192
      %56 = vsyncadd [#allocation9], %s55
      %s57 = sshll.u32 [#allocation8], 4
      %s58 = int_to_ptr.vmem [resolvable:$true] %s57
      %63 = dma.hbm_to_vmem [thread:$0]  %s3, 8192, %s58, [#allocation9], 256, 256, 16
    $region17: #{tpu_custom_call.1} parent=1 // pred_fallthru
      _
    // Predicated region
    $region18: #{tpu_custom_call.1} parent=1 // pred_check
      _
    $region19: #{tpu_custom_call.1} parent=1 // pred_check_branch
      %65 = sbr.rel (0) target = $region21
    $region20: #{tpu_custom_call.1} parent=1 // pred_region
      %s67 = ssub.s32 64, 64
      %68 = vsyncadd [#allocation9], %s67
      %s70 = sshll.u32 [#allocation10], 4
      %s71 = int_to_ptr.vmem [resolvable:$true] %s70
      %73 = dma.hbm_to_vmem [thread:$0]  %s4, 64, %s71, [#allocation9]
    $region21: #{tpu_custom_call.1} parent=1 // pred_fallthru
      _
    // Predicated region
    $region22: #{tpu_custom_call.1} parent=1 // pred_check
      _
    $region23: #{tpu_custom_call.1} parent=1 // pred_check_branch
      %75 = sbr.rel (0) target = $region25
    $region24: #{tpu_custom_call.1} parent=1 // pred_region
      %s77 = ssub.s32 32768, 32768
      %78 = vsyncadd [#allocation12], %s77
      %s79 = sshll.u32 [#allocation11], 4
      %s80 = int_to_ptr.vmem [resolvable:$true] %s79
      %85 = dma.hbm_to_vmem [thread:$0]  %s5, 32768, %s80, [#allocation12], 512, 512, 32
    $region25: #{tpu_custom_call.1} parent=1 // pred_fallthru
      _
    // Predicated region
    $region26: #{tpu_custom_call.1} parent=1 // pred_check
      _
    $region27: #{tpu_custom_call.1} parent=1 // pred_check_branch
      %87 = sbr.rel (0) target = $region29
    $region28: #{tpu_custom_call.1} parent=1 // pred_region
      %s89 = ssub.s32 128, 128
      %90 = vsyncadd [#allocation12], %s89
      %s92 = sshll.u32 [#allocation13], 4
      %s93 = int_to_ptr.vmem [resolvable:$true] %s92
      %95 = dma.hbm_to_vmem [thread:$0]  %s6, 128, %s93, [#allocation12]
    $region29: #{tpu_custom_call.1} parent=1 // pred_fallthru
      _
    // Predicated region
    $region30: #{tpu_custom_call.1} parent=1 // pred_check
      _
    $region31: #{tpu_custom_call.1} parent=1 // pred_check_branch
      %97 = sbr.rel (0) target = $region33
    $region32: #{tpu_custom_call.1} parent=1 // pred_region
      %s99 = ssub.s32 57344, 57344
      %100 = vsyncadd [#allocation15], %s99
      %s101 = sshll.u32 [#allocation14], 4
      %s102 = int_to_ptr.vmem [resolvable:$true] %s101
      %107 = dma.hbm_to_vmem [thread:$0]  %s7, 57344, %s102, [#allocation15], 448, 448, 28
    $region33: #{tpu_custom_call.1} parent=1 // pred_fallthru
      _
    // Predicated region
    $region34: #{tpu_custom_call.1} parent=1 // pred_check
      _
    $region35: #{tpu_custom_call.1} parent=1 // pred_check_branch
      %109 = sbr.rel (0) target = $region37
    $region36: #{tpu_custom_call.1} parent=1 // pred_region
      %s111 = ssub.s32 112, 112
      %112 = vsyncadd [#allocation15], %s111
      %s114 = sshll.u32 [#allocation16], 4
      %s115 = int_to_ptr.vmem [resolvable:$true] %s114
      %117 = dma.hbm_to_vmem [thread:$0]  %s8, 112, %s115, [#allocation15]
    $region37: #{tpu_custom_call.1} parent=1 // pred_fallthru
      _
    // Predicated region
    $region38: #{tpu_custom_call.1} parent=1 // pred_check
      _
    $region39: #{tpu_custom_call.1} parent=1 // pred_check_branch
      %119 = sbr.rel (0) target = $region41
    $region40: #{tpu_custom_call.1} parent=1 // pred_region
      %120 = dma.done [#allocation3], 128
    $region41: #{tpu_custom_call.1} parent=1 // pred_fallthru
      _
    // Predicated region
    $region42: #{tpu_custom_call.1} parent=1 // pred_check
      _
    $region43: #{tpu_custom_call.1} parent=1 // pred_check_branch
      %122 = sbr.rel (0) target = $region45
    $region44: #{tpu_custom_call.1} parent=1 // pred_region
      %123 = dma.done [#allocation6], 512
    $region45: #{tpu_custom_call.1} parent=1 // pred_fallthru
      _
    // Predicated region
    $region46: #{tpu_custom_call.1} parent=1 // pred_check
      _
    $region47: #{tpu_custom_call.1} parent=1 // pred_check_branch
      %125 = sbr.rel (0) target = $region49
    $region48: #{tpu_custom_call.1} parent=1 // pred_region
      %126 = dma.done [#allocation6], 32
    $region49: #{tpu_custom_call.1} parent=1 // pred_fallthru
      _
    // Predicated region
    $region50: #{tpu_custom_call.1} parent=1 // pred_check
      _
    $region51: #{tpu_custom_call.1} parent=1 // pred_check_branch
      %128 = sbr.rel (0) target = $region53
    $region52: #{tpu_custom_call.1} parent=1 // pred_region
      %129 = dma.done [#allocation9], 8192
    $region53: #{tpu_custom_call.1} parent=1 // pred_fallthru
      _
    // Predicated region
    $region54: #{tpu_custom_call.1} parent=1 // pred_check
      _
    $region55: #{tpu_custom_call.1} parent=1 // pred_check_branch
      %131 = sbr.rel (0) target = $region57
    $region56: #{tpu_custom_call.1} parent=1 // pred_region
      %132 = dma.done [#allocation9], 64
    $region57: #{tpu_custom_call.1} parent=1 // pred_fallthru
      _
    // Predicated region
    $region58: #{tpu_custom_call.1} parent=1 // pred_check
      _
    $region59: #{tpu_custom_call.1} parent=1 // pred_check_branch
      %134 = sbr.rel (0) target = $region61
    $region60: #{tpu_custom_call.1} parent=1 // pred_region
      %135 = dma.done [#allocation12], 32768
    $region61: #{tpu_custom_call.1} parent=1 // pred_fallthru
      _
    // Predicated region
    $region62: #{tpu_custom_call.1} parent=1 // pred_check
      _
    $region63: #{tpu_custom_call.1} parent=1 // pred_check_branch
      %137 = sbr.rel (0) target = $region65
    $region64: #{tpu_custom_call.1} parent=1 // pred_region
      %138 = dma.done [#allocation12], 128
    $region65: #{tpu_custom_call.1} parent=1 // pred_fallthru
      _
    // Predicated region
    $region66: #{tpu_custom_call.1} parent=1 // pred_check
      _
    $region67: #{tpu_custom_call.1} parent=1 // pred_check_branch
      %140 = sbr.rel (0) target = $region69
    $region68: #{tpu_custom_call.1} parent=1 // pred_region
      %141 = dma.done [#allocation15], 57344
    $region69: #{tpu_custom_call.1} parent=1 // pred_fallthru
      _
    // Predicated region
    $region70: #{tpu_custom_call.1} parent=1 // pred_check
      _
    $region71: #{tpu_custom_call.1} parent=1 // pred_check_branch
      %143 = sbr.rel (0) target = $region73
    $region72: #{tpu_custom_call.1} parent=1 // pred_region
      %144 = dma.done [#allocation15], 112
    $region73: #{tpu_custom_call.1} parent=1 // pred_fallthru
      _
    %v146 = vld [vmem:[#allocation2] sm:$0xff]
    %v147 = vpack.c.bf16 %v146, %v146
    %v148 = vld [vmem:[#allocation5] sm:$0xff]
    %v149 = vld [vmem:[#allocation5 + $0x8] sm:$0xff]
    %v150 = vld [vmem:[#allocation5 + $0x10] sm:$0xff]
    %v151 = vld [vmem:[#allocation5 + $0x18] sm:$0xff]
    %v152 = vld [vmem:[#allocation7] sm:$0x3]
    %v154 = vlaneseq
    %v155 = vshrl.u32 %v154, 7
    %v156 = vsub.s32 0, %v155
    %v157 = vrot.slane %v152, %v156
    %v158 = vlaneseq
    %v159 = vshrl.u32 %v158, 7
    %v160 = vsub.s32 1, %v159
    %v161 = vrot.slane %v152, %v160
    %v168 = vunpack.c.l.b16 %v148
    %v169 = vunpack.c.h.b16 %v148
    %v170 = vunpack.c.l.b16 %v149
    %v171 = vunpack.c.h.b16 %v149
    %v172 = vunpack.c.l.b16 %v150
    %v173 = vunpack.c.h.b16 %v150
    %v174 = vunpack.c.l.b16 %v151
    %v175 = vunpack.c.h.b16 %v151
    %v176 = vpack.c.b16 %v170, %v168
    %v177 = vpack.c.b16 %v171, %v169
    %v178 = vpack.c.b16 %v174, %v172
    %v179 = vpack.c.b16 %v175, %v173
    %vm184 = vcmask 261120
    %v186 = vsel %vm184, %v147, 0
    %188 = vmatprep.subr.bf16.mxu0 0
    %189 = vmatpush1.bf16.msra.mxu0 0
    %190 = vmatprep.subr.bf16.mxu0 0
    %191 = vmatpush1.bf16.msra.mxu0 0
    %192 = vmatprep.subr.bf16.mxu0 0
    %193 = vmatpush1.bf16.msra.mxu0 0
    %194 = vmatprep.subr.bf16.mxu0 0
    %195 = vmatpush1.bf16.msra.mxu0 0
    %196 = vmatprep.subr.bf16.mxu0 0
    %197 = vmatpush1.bf16.msra.mxu0 0
    %198 = vmatprep.subr.bf16.mxu0 0
    %199 = vmatpush1.bf16.msra.mxu0 0
    %200 = vmatprep.subr.bf16.mxu0 %v179
    %201 = vmatpush1.bf16.msra.mxu0 %v178
    %202 = vmatprep.subr.bf16.mxu0 %v177
    %203 = vmatpush1.bf16.msra.mxu0 %v176
    %204 = vmatprep.subr.bf16.mxu0 0
    %205 = vmatpush2.bf16.msra.mxu0 0
    %206 = vmatprep.subr.bf16.mxu0 0
    %207 = vmatpush2.bf16.msra.mxu0 0
    %208 = vmatprep.subr.bf16.mxu0 0
    %209 = vmatpush2.bf16.msra.mxu0 0
    %210 = vmatprep.subr.bf16.mxu0 0
    %211 = vmatpush2.bf16.msra.mxu0 0
    %212 = vmatprep.subr.bf16.mxu0 0
    %213 = vmatpush2.bf16.msra.mxu0 0
    %214 = vmatprep.subr.bf16.mxu0 0
    %215 = vmatpush2.bf16.msra.mxu0 0
    %216 = vmatprep.subr.bf16.mxu0 0
    %217 = vmatpush2.bf16.msra.mxu0 0
    %218 = vmatprep.subr.bf16.mxu0 0
    %219 = vmatpush2.bf16.msra.mxu0 0
    %220 = vmatprep.mubr.bf16.mxu0 0
    %221 = vmatmul.mubr.bf16.gmra.mxu0 %v186
    %v222 = vpop.f32.mrf.mxu0
    %v223 = vadd.f32 %v157, %v222
    %v224 = vpop.f32.mrf.mxu0
    %v225 = vadd.f32 %v161, %v224
    %v226 = vpop.f32.mrf.mxu0
    %v227 = vpop.f32.mrf.mxu0
    %228 = vdwg.mxu0
    %vm229 = vcmp.gt.f32.partialorder %v223, 0.0
    %vm230 = vcmp.gt.f32.partialorder %v225, 0.0
    %v231 = vmul.f32 %v223, 0.2
    %v232 = vmul.f32 %v225, 0.2
    %v233 = vsel %vm229, %v223, %v231
    %v234 = vsel %vm230, %v225, %v232
    %v235 = vpack.c.bf16 %v233, %v233
    %v236 = vpack.c.bf16 %v234, %v234
    %v237 = vld [vmem:[#allocation8] sm:$0xff]
    %v238 = vld [vmem:[#allocation8 + $0x8] sm:$0xff]
    %v239 = vld [vmem:[#allocation8 + $0x10] sm:$0xff]
    %v240 = vld [vmem:[#allocation8 + $0x18] sm:$0xff]
    %v241 = vld [vmem:[#allocation8 + $0x20] sm:$0xff]
    %v242 = vld [vmem:[#allocation8 + $0x28] sm:$0xff]
    %v243 = vld [vmem:[#allocation8 + $0x30] sm:$0xff]
    %v244 = vld [vmem:[#allocation8 + $0x38] sm:$0xff]
    %v245 = vld [vmem:[#allocation8 + $0x40] sm:$0xff]
    %v246 = vld [vmem:[#allocation8 + $0x48] sm:$0xff]
    %v247 = vld [vmem:[#allocation8 + $0x50] sm:$0xff]
    %v248 = vld [vmem:[#allocation8 + $0x58] sm:$0xff]
    %v249 = vld [vmem:[#allocation8 + $0x60] sm:$0xff]
    %v250 = vld [vmem:[#allocation8 + $0x68] sm:$0xff]
    %v251 = vld [vmem:[#allocation8 + $0x70] sm:$0xff]
    %v252 = vld [vmem:[#allocation8 + $0x78] sm:$0xff]
    %v253 = vld [vmem:[#allocation8 + $0x80] sm:$0xff]
    %v254 = vld [vmem:[#allocation8 + $0x88] sm:$0xff]
    %v255 = vld [vmem:[#allocation8 + $0x90] sm:$0xff]
    %v256 = vld [vmem:[#allocation8 + $0x98] sm:$0xff]
    %v257 = vld [vmem:[#allocation8 + $0xa0] sm:$0xff]
    %v258 = vld [vmem:[#allocation8 + $0xa8] sm:$0xff]
    %v259 = vld [vmem:[#allocation8 + $0xb0] sm:$0xff]
    %v260 = vld [vmem:[#allocation8 + $0xb8] sm:$0xff]
    %v261 = vld [vmem:[#allocation8 + $0xc0] sm:$0xff]
    %v262 = vld [vmem:[#allocation8 + $0xc8] sm:$0xff]
    %v263 = vld [vmem:[#allocation8 + $0xd0] sm:$0xff]
    %v264 = vld [vmem:[#allocation8 + $0xd8] sm:$0xff]
    %v265 = vld [vmem:[#allocation8 + $0xe0] sm:$0xff]
    %v266 = vld [vmem:[#allocation8 + $0xe8] sm:$0xff]
    %v267 = vld [vmem:[#allocation8 + $0xf0] sm:$0xff]
    %v268 = vld [vmem:[#allocation8 + $0xf8] sm:$0xff]
    %v269 = vld [vmem:[#allocation8 + $0x100] sm:$0xff]
    %v270 = vld [vmem:[#allocation8 + $0x108] sm:$0xff]
    %v271 = vld [vmem:[#allocation8 + $0x110] sm:$0xff]
    %v272 = vld [vmem:[#allocation8 + $0x118] sm:$0xff]
    %v273 = vld [vmem:[#allocation8 + $0x120] sm:$0xff]
    %v274 = vld [vmem:[#allocation8 + $0x128] sm:$0xff]
    %v275 = vld [vmem:[#allocation8 + $0x130] sm:$0xff]
    %v276 = vld [vmem:[#allocation8 + $0x138] sm:$0xff]
    %v277 = vld [vmem:[#allocation8 + $0x140] sm:$0xff]
    %v278 = vld [vmem:[#allocation8 + $0x148] sm:$0xff]
    %v279 = vld [vmem:[#allocation8 + $0x150] sm:$0xff]
    %v280 = vld [vmem:[#allocation8 + $0x158] sm:$0xff]
    %v281 = vld [vmem:[#allocation8 + $0x160] sm:$0xff]
    %v282 = vld [vmem:[#allocation8 + $0x168] sm:$0xff]
    %v283 = vld [vmem:[#allocation8 + $0x170] sm:$0xff]
    %v284 = vld [vmem:[#allocation8 + $0x178] sm:$0xff]
    %v285 = vld [vmem:[#allocation8 + $0x180] sm:$0xff]
    %v286 = vld [vmem:[#allocation8 + $0x188] sm:$0xff]
    %v287 = vld [vmem:[#allocation8 + $0x190] sm:$0xff]
    %v288 = vld [vmem:[#allocation8 + $0x198] sm:$0xff]
    %v289 = vld [vmem:[#allocation8 + $0x1a0] sm:$0xff]
    %v290 = vld [vmem:[#allocation8 + $0x1a8] sm:$0xff]
    %v291 = vld [vmem:[#allocation8 + $0x1b0] sm:$0xff]
    %v292 = vld [vmem:[#allocation8 + $0x1b8] sm:$0xff]
    %v293 = vld [vmem:[#allocation8 + $0x1c0] sm:$0xff]
    %v294 = vld [vmem:[#allocation8 + $0x1c8] sm:$0xff]
    %v295 = vld [vmem:[#allocation8 + $0x1d0] sm:$0xff]
    %v296 = vld [vmem:[#allocation8 + $0x1d8] sm:$0xff]
    %v297 = vld [vmem:[#allocation8 + $0x1e0] sm:$0xff]
    %v298 = vld [vmem:[#allocation8 + $0x1e8] sm:$0xff]
    %v299 = vld [vmem:[#allocation8 + $0x1f0] sm:$0xff]
    %v300 = vld [vmem:[#allocation8 + $0x1f8] sm:$0xff]
    %v301 = vld [vmem:[#allocation10] sm:$0xf]
    %v303 = vlaneseq
    %v304 = vshrl.u32 %v303, 7
    %v305 = vsub.s32 0, %v304
    %v306 = vrot.slane %v301, %v305
    %v307 = vlaneseq
    %v308 = vshrl.u32 %v307, 7
    %v309 = vsub.s32 1, %v308
    %v310 = vrot.slane %v301, %v309
    %v311 = vlaneseq
    %v312 = vshrl.u32 %v311, 7
    %v313 = vsub.s32 2, %v312
    %v314 = vrot.slane %v301, %v313
    %v315 = vlaneseq
    %v316 = vshrl.u32 %v315, 7
    %v317 = vsub.s32 3, %v316
    %v318 = vrot.slane %v301, %v317
    %v387 = vunpack.c.l.b16 %v237
    %v388 = vunpack.c.h.b16 %v237
    %v389 = vunpack.c.l.b16 %v238
    %v390 = vunpack.c.h.b16 %v238
    %v391 = vunpack.c.l.b16 %v239
    %v392 = vunpack.c.h.b16 %v239
    %v393 = vunpack.c.l.b16 %v240
    %v394 = vunpack.c.h.b16 %v240
    %v395 = vunpack.c.l.b16 %v241
    %v396 = vunpack.c.h.b16 %v241
    %v397 = vunpack.c.l.b16 %v242
    %v398 = vunpack.c.h.b16 %v242
    %v399 = vunpack.c.l.b16 %v243
    %v400 = vunpack.c.h.b16 %v243
    %v401 = vunpack.c.l.b16 %v244
    %v402 = vunpack.c.h.b16 %v244
    %v403 = vunpack.c.l.b16 %v245
    %v404 = vunpack.c.h.b16 %v245
    %v405 = vunpack.c.l.b16 %v246
    %v406 = vunpack.c.h.b16 %v246
    %v407 = vunpack.c.l.b16 %v247
    %v408 = vunpack.c.h.b16 %v247
    %v409 = vunpack.c.l.b16 %v248
    %v410 = vunpack.c.h.b16 %v248
    %v411 = vunpack.c.l.b16 %v249
    %v412 = vunpack.c.h.b16 %v249
    %v413 = vunpack.c.l.b16 %v250
    %v414 = vunpack.c.h.b16 %v250
    %v415 = vunpack.c.l.b16 %v251
    %v416 = vunpack.c.h.b16 %v251
    %v417 = vunpack.c.l.b16 %v252
    %v418 = vunpack.c.h.b16 %v252
    %v419 = vunpack.c.l.b16 %v253
    %v420 = vunpack.c.h.b16 %v253
    %v421 = vunpack.c.l.b16 %v254
    %v422 = vunpack.c.h.b16 %v254
    %v423 = vunpack.c.l.b16 %v255
    %v424 = vunpack.c.h.b16 %v255
    %v425 = vunpack.c.l.b16 %v256
    %v426 = vunpack.c.h.b16 %v256
    %v427 = vunpack.c.l.b16 %v257
    %v428 = vunpack.c.h.b16 %v257
    %v429 = vunpack.c.l.b16 %v258
    %v430 = vunpack.c.h.b16 %v258
    %v431 = vunpack.c.l.b16 %v259
    %v432 = vunpack.c.h.b16 %v259
    %v433 = vunpack.c.l.b16 %v260
    %v434 = vunpack.c.h.b16 %v260
    %v435 = vunpack.c.l.b16 %v261
    %v436 = vunpack.c.h.b16 %v261
    %v437 = vunpack.c.l.b16 %v262
    %v438 = vunpack.c.h.b16 %v262
    %v439 = vunpack.c.l.b16 %v263
    %v440 = vunpack.c.h.b16 %v263
    %v441 = vunpack.c.l.b16 %v264
    %v442 = vunpack.c.h.b16 %v264
    %v443 = vunpack.c.l.b16 %v265
    %v444 = vunpack.c.h.b16 %v265
    %v445 = vunpack.c.l.b16 %v266
    %v446 = vunpack.c.h.b16 %v266
    %v447 = vunpack.c.l.b16 %v267
    %v448 = vunpack.c.h.b16 %v267
    %v449 = vunpack.c.l.b16 %v268
    %v450 = vunpack.c.h.b16 %v268
    %v451 = vunpack.c.l.b16 %v269
    %v452 = vunpack.c.h.b16 %v269
    %v453 = vunpack.c.l.b16 %v270
    %v454 = vunpack.c.h.b16 %v270
    %v455 = vunpack.c.l.b16 %v271
    %v456 = vunpack.c.h.b16 %v271
    %v457 = vunpack.c.l.b16 %v272
    %v458 = vunpack.c.h.b16 %v272
    %v459 = vunpack.c.l.b16 %v273
    %v460 = vunpack.c.h.b16 %v273
    %v461 = vunpack.c.l.b16 %v274
    %v462 = vunpack.c.h.b16 %v274
    %v463 = vunpack.c.l.b16 %v275
    %v464 = vunpack.c.h.b16 %v275
    %v465 = vunpack.c.l.b16 %v276
    %v466 = vunpack.c.h.b16 %v276
    %v467 = vunpack.c.l.b16 %v277
    %v468 = vunpack.c.h.b16 %v277
    %v469 = vunpack.c.l.b16 %v278
    %v470 = vunpack.c.h.b16 %v278
    %v471 = vunpack.c.l.b16 %v279
    %v472 = vunpack.c.h.b16 %v279
    %v473 = vunpack.c.l.b16 %v280
    %v474 = vunpack.c.h.b16 %v280
    %v475 = vunpack.c.l.b16 %v281
    %v476 = vunpack.c.h.b16 %v281
    %v477 = vunpack.c.l.b16 %v282
    %v478 = vunpack.c.h.b16 %v282
    %v479 = vunpack.c.l.b16 %v283
    %v480 = vunpack.c.h.b16 %v283
    %v481 = vunpack.c.l.b16 %v284
    %v482 = vunpack.c.h.b16 %v284
    %v483 = vunpack.c.l.b16 %v285
    %v484 = vunpack.c.h.b16 %v285
    %v485 = vunpack.c.l.b16 %v286
    %v486 = vunpack.c.h.b16 %v286
    %v487 = vunpack.c.l.b16 %v287
    %v488 = vunpack.c.h.b16 %v287
    %v489 = vunpack.c.l.b16 %v288
    %v490 = vunpack.c.h.b16 %v288
    %v491 = vunpack.c.l.b16 %v289
    %v492 = vunpack.c.h.b16 %v289
    %v493 = vunpack.c.l.b16 %v290
    %v494 = vunpack.c.h.b16 %v290
    %v495 = vunpack.c.l.b16 %v291
    %v496 = vunpack.c.h.b16 %v291
    %v497 = vunpack.c.l.b16 %v292
    %v498 = vunpack.c.h.b16 %v292
    %v499 = vunpack.c.l.b16 %v293
    %v500 = vunpack.c.h.b16 %v293
    %v501 = vunpack.c.l.b16 %v294
    %v502 = vunpack.c.h.b16 %v294
    %v503 = vunpack.c.l.b16 %v295
    %v504 = vunpack.c.h.b16 %v295
    %v505 = vunpack.c.l.b16 %v296
    %v506 = vunpack.c.h.b16 %v296
    %v507 = vunpack.c.l.b16 %v297
    %v508 = vunpack.c.h.b16 %v297
    %v509 = vunpack.c.l.b16 %v298
    %v510 = vunpack.c.h.b16 %v298
    %v511 = vunpack.c.l.b16 %v299
    %v512 = vunpack.c.h.b16 %v299
    %v513 = vunpack.c.l.b16 %v300
    %v514 = vunpack.c.h.b16 %v300
    %v515 = vpack.c.b16 %v391, %v387
    %v516 = vpack.c.b16 %v392, %v388
    %v517 = vpack.c.b16 %v393, %v389
    %v518 = vpack.c.b16 %v394, %v390
    %v519 = vpack.c.b16 %v399, %v395
    %v520 = vpack.c.b16 %v400, %v396
    %v521 = vpack.c.b16 %v401, %v397
    %v522 = vpack.c.b16 %v402, %v398
    %v523 = vpack.c.b16 %v407, %v403
    %v524 = vpack.c.b16 %v408, %v404
    %v525 = vpack.c.b16 %v409, %v405
    %v526 = vpack.c.b16 %v410, %v406
    %v527 = vpack.c.b16 %v415, %v411
    %v528 = vpack.c.b16 %v416, %v412
    %v529 = vpack.c.b16 %v417, %v413
    %v530 = vpack.c.b16 %v418, %v414
    %v531 = vpack.c.b16 %v423, %v419
    %v532 = vpack.c.b16 %v424, %v420
    %v533 = vpack.c.b16 %v425, %v421
    %v534 = vpack.c.b16 %v426, %v422
    %v535 = vpack.c.b16 %v431, %v427
    %v536 = vpack.c.b16 %v432, %v428
    %v537 = vpack.c.b16 %v433, %v429
    %v538 = vpack.c.b16 %v434, %v430
    %v539 = vpack.c.b16 %v439, %v435
    %v540 = vpack.c.b16 %v440, %v436
    %v541 = vpack.c.b16 %v441, %v437
    %v542 = vpack.c.b16 %v442, %v438
    %v543 = vpack.c.b16 %v447, %v443
    %v544 = vpack.c.b16 %v448, %v444
    %v545 = vpack.c.b16 %v449, %v445
    %v546 = vpack.c.b16 %v450, %v446
    %v547 = vpack.c.b16 %v455, %v451
    %v548 = vpack.c.b16 %v456, %v452
    %v549 = vpack.c.b16 %v457, %v453
    %v550 = vpack.c.b16 %v458, %v454
    %v551 = vpack.c.b16 %v463, %v459
    %v552 = vpack.c.b16 %v464, %v460
    %v553 = vpack.c.b16 %v465, %v461
    %v554 = vpack.c.b16 %v466, %v462
    %v555 = vpack.c.b16 %v471, %v467
    %v556 = vpack.c.b16 %v472, %v468
    %v557 = vpack.c.b16 %v473, %v469
    %v558 = vpack.c.b16 %v474, %v470
    %v559 = vpack.c.b16 %v479, %v475
    %v560 = vpack.c.b16 %v480, %v476
    %v561 = vpack.c.b16 %v481, %v477
    %v562 = vpack.c.b16 %v482, %v478
    %v563 = vpack.c.b16 %v487, %v483
    %v564 = vpack.c.b16 %v488, %v484
    %v565 = vpack.c.b16 %v489, %v485
    %v566 = vpack.c.b16 %v490, %v486
    %v567 = vpack.c.b16 %v495, %v491
    %v568 = vpack.c.b16 %v496, %v492
    %v569 = vpack.c.b16 %v497, %v493
    %v570 = vpack.c.b16 %v498, %v494
    %v571 = vpack.c.b16 %v503, %v499
    %v572 = vpack.c.b16 %v504, %v500
    %v573 = vpack.c.b16 %v505, %v501
    %v574 = vpack.c.b16 %v506, %v502
    %v575 = vpack.c.b16 %v511, %v507
    %v576 = vpack.c.b16 %v512, %v508
    %v577 = vpack.c.b16 %v513, %v509
    %v578 = vpack.c.b16 %v514, %v510
    %643 = vmatprep.subr.bf16.mxu0 %v544
    %644 = vmatpush1.bf16.msra.mxu0 %v543
    %645 = vmatprep.subr.bf16.mxu0 %v540
    %646 = vmatpush1.bf16.msra.mxu0 %v539
    %647 = vmatprep.subr.bf16.mxu0 %v536
    %648 = vmatpush1.bf16.msra.mxu0 %v535
    %649 = vmatprep.subr.bf16.mxu0 %v532
    %650 = vmatpush1.bf16.msra.mxu0 %v531
    %651 = vmatprep.subr.bf16.mxu0 %v528
    %652 = vmatpush1.bf16.msra.mxu0 %v527
    %653 = vmatprep.subr.bf16.mxu0 %v524
    %654 = vmatpush1.bf16.msra.mxu0 %v523
    %655 = vmatprep.subr.bf16.mxu0 %v520
    %656 = vmatpush1.bf16.msra.mxu0 %v519
    %657 = vmatprep.subr.bf16.mxu0 %v516
    %658 = vmatpush1.bf16.msra.mxu0 %v515
    %659 = vmatprep.subr.bf16.mxu0 %v576
    %660 = vmatpush2.bf16.msra.mxu0 %v575
    %661 = vmatprep.subr.bf16.mxu0 %v572
    %662 = vmatpush2.bf16.msra.mxu0 %v571
    %663 = vmatprep.subr.bf16.mxu0 %v568
    %664 = vmatpush2.bf16.msra.mxu0 %v567
    %665 = vmatprep.subr.bf16.mxu0 %v564
    %666 = vmatpush2.bf16.msra.mxu0 %v563
    %667 = vmatprep.subr.bf16.mxu0 %v560
    %668 = vmatpush2.bf16.msra.mxu0 %v559
    %669 = vmatprep.subr.bf16.mxu0 %v556
    %670 = vmatpush2.bf16.msra.mxu0 %v555
    %671 = vmatprep.subr.bf16.mxu0 %v552
    %672 = vmatpush2.bf16.msra.mxu0 %v551
    %673 = vmatprep.subr.bf16.mxu0 %v548
    %674 = vmatpush2.bf16.msra.mxu0 %v547
    %675 = vmatprep.mubr.bf16.mxu0 %v236
    %676 = vmatmul.mubr.bf16.gmra.mxu0 %v235
    %v677 = vpop.f32.mrf.mxu0
    %v678 = vadd.f32 %v306, %v677
    %v679 = vpop.f32.mrf.mxu0
    %v680 = vadd.f32 %v310, %v679
    %v681 = vpop.f32.mrf.mxu0
    %v682 = vpop.f32.mrf.mxu0
    %683 = vdwg.mxu0
    %684 = vmatprep.subr.bf16.mxu0 %v546
    %685 = vmatpush1.bf16.msra.mxu0 %v545
    %686 = vmatprep.subr.bf16.mxu0 %v542
    %687 = vmatpush1.bf16.msra.mxu0 %v541
    %688 = vmatprep.subr.bf16.mxu0 %v538
    %689 = vmatpush1.bf16.msra.mxu0 %v537
    %690 = vmatprep.subr.bf16.mxu0 %v534
    %691 = vmatpush1.bf16.msra.mxu0 %v533
    %692 = vmatprep.subr.bf16.mxu0 %v530
    %693 = vmatpush1.bf16.msra.mxu0 %v529
    %694 = vmatprep.subr.bf16.mxu0 %v526
    %695 = vmatpush1.bf16.msra.mxu0 %v525
    %696 = vmatprep.subr.bf16.mxu0 %v522
    %697 = vmatpush1.bf16.msra.mxu0 %v521
    %698 = vmatprep.subr.bf16.mxu0 %v518
    %699 = vmatpush1.bf16.msra.mxu0 %v517
    %700 = vmatprep.subr.bf16.mxu0 %v578
    %701 = vmatpush2.bf16.msra.mxu0 %v577
    %702 = vmatprep.subr.bf16.mxu0 %v574
    %703 = vmatpush2.bf16.msra.mxu0 %v573
    %704 = vmatprep.subr.bf16.mxu0 %v570
    %705 = vmatpush2.bf16.msra.mxu0 %v569
    %706 = vmatprep.subr.bf16.mxu0 %v566
    %707 = vmatpush2.bf16.msra.mxu0 %v565
    %708 = vmatprep.subr.bf16.mxu0 %v562
    %709 = vmatpush2.bf16.msra.mxu0 %v561
    %710 = vmatprep.subr.bf16.mxu0 %v558
    %711 = vmatpush2.bf16.msra.mxu0 %v557
    %712 = vmatprep.subr.bf16.mxu0 %v554
    %713 = vmatpush2.bf16.msra.mxu0 %v553
    %714 = vmatprep.subr.bf16.mxu0 %v550
    %715 = vmatpush2.bf16.msra.mxu0 %v549
    %716 = vmatprep.mubr.bf16.mxu0 %v236
    %717 = vmatmul.mubr.bf16.gmra.mxu0 %v235
    %v718 = vpop.f32.mrf.mxu0
    %v719 = vadd.f32 %v314, %v718
    %v720 = vpop.f32.mrf.mxu0
    %v721 = vadd.f32 %v318, %v720
    %v722 = vpop.f32.mrf.mxu0
    %v723 = vpop.f32.mrf.mxu0
    %724 = vdwg.mxu0
    %vm725 = vcmp.gt.f32.partialorder %v678, 0.0
    %vm726 = vcmp.gt.f32.partialorder %v680, 0.0
    %vm727 = vcmp.gt.f32.partialorder %v719, 0.0
    %vm728 = vcmp.gt.f32.partialorder %v721, 0.0
    %v729 = vmul.f32 %v678, 0.2
    %v730 = vmul.f32 %v680, 0.2
    %v731 = vmul.f32 %v719, 0.2
    %v732 = vmul.f32 %v721, 0.2
    %v733 = vsel %vm725, %v678, %v729
    %v734 = vsel %vm726, %v680, %v730
    %v735 = vsel %vm727, %v719, %v731
    %v736 = vsel %vm728, %v721, %v732
    %v737 = vpack.c.bf16 %v733, %v733
    %v738 = vpack.c.bf16 %v734, %v734
    %v739 = vpack.c.bf16 %v735, %v735
    %v740 = vpack.c.bf16 %v736, %v736
    %v741 = vld [vmem:[#allocation11] sm:$0xff]
    %v742 = vld [vmem:[#allocation11 + $0x8] sm:$0xff]
    %v743 = vld [vmem:[#allocation11 + $0x10] sm:$0xff]
    %v744 = vld [vmem:[#allocation11 + $0x18] sm:$0xff]
    %v745 = vld [vmem:[#allocation11 + $0x20] sm:$0xff]
    %v746 = vld [vmem:[#allocation11 + $0x28] sm:$0xff]
    %v747 = vld [vmem:[#allocation11 + $0x30] sm:$0xff]
    %v748 = vld [vmem:[#allocation11 + $0x38] sm:$0xff]
    %v749 = vld [vmem:[#allocation11 + $0x40] sm:$0xff]
    %v750 = vld [vmem:[#allocation11 + $0x48] sm:$0xff]
    %v751 = vld [vmem:[#allocation11 + $0x50] sm:$0xff]
    %v752 = vld [vmem:[#allocation11 + $0x58] sm:$0xff]
    %v753 = vld [vmem:[#allocation11 + $0x60] sm:$0xff]
    %v754 = vld [vmem:[#allocation11 + $0x68] sm:$0xff]
    %v755 = vld [vmem:[#allocation11 + $0x70] sm:$0xff]
    %v756 = vld [vmem:[#allocation11 + $0x78] sm:$0xff]
    %v757 = vld [vmem:[#allocation11 + $0x80] sm:$0xff]
    %v758 = vld [vmem:[#allocation11 + $0x88] sm:$0xff]
    %v759 = vld [vmem:[#allocation11 + $0x90] sm:$0xff]
    %v760 = vld [vmem:[#allocation11 + $0x98] sm:$0xff]
    %v761 = vld [vmem:[#allocation11 + $0xa0] sm:$0xff]
    %v762 = vld [vmem:[#allocation11 + $0xa8] sm:$0xff]
    %v763 = vld [vmem:[#allocation11 + $0xb0] sm:$0xff]
    %v764 = vld [vmem:[#allocation11 + $0xb8] sm:$0xff]
    %v765 = vld [vmem:[#allocation11 + $0xc0] sm:$0xff]
    %v766 = vld [vmem:[#allocation11 + $0xc8] sm:$0xff]
    %v767 = vld [vmem:[#allocation11 + $0xd0] sm:$0xff]
    %v768 = vld [vmem:[#allocation11 + $0xd8] sm:$0xff]
    %v769 = vld [vmem:[#allocation11 + $0xe0] sm:$0xff]
    %v770 = vld [vmem:[#allocation11 + $0xe8] sm:$0xff]
    %v771 = vld [vmem:[#allocation11 + $0xf0] sm:$0xff]
    %v772 = vld [vmem:[#allocation11 + $0xf8] sm:$0xff]
    %v773 = vld [vmem:[#allocation11 + $0x100] sm:$0xff]
    %v774 = vld [vmem:[#allocation11 + $0x108] sm:$0xff]
    %v775 = vld [vmem:[#allocation11 + $0x110] sm:$0xff]
    %v776 = vld [vmem:[#allocation11 + $0x118] sm:$0xff]
    %v777 = vld [vmem:[#allocation11 + $0x120] sm:$0xff]
    %v778 = vld [vmem:[#allocation11 + $0x128] sm:$0xff]
    %v779 = vld [vmem:[#allocation11 + $0x130] sm:$0xff]
    %v780 = vld [vmem:[#allocation11 + $0x138] sm:$0xff]
    %v781 = vld [vmem:[#allocation11 + $0x140] sm:$0xff]
    %v782 = vld [vmem:[#allocation11 + $0x148] sm:$0xff]
    %v783 = vld [vmem:[#allocation11 + $0x150] sm:$0xff]
    %v784 = vld [vmem:[#allocation11 + $0x158] sm:$0xff]
    %v785 = vld [vmem:[#allocation11 + $0x160] sm:$0xff]
    %v786 = vld [vmem:[#allocation11 + $0x168] sm:$0xff]
    %v787 = vld [vmem:[#allocation11 + $0x170] sm:$0xff]
    %v788 = vld [vmem:[#allocation11 + $0x178] sm:$0xff]
    %v789 = vld [vmem:[#allocation11 + $0x180] sm:$0xff]
    %v790 = vld [vmem:[#allocation11 + $0x188] sm:$0xff]
    %v791 = vld [vmem:[#allocation11 + $0x190] sm:$0xff]
    %v792 = vld [vmem:[#allocation11 + $0x198] sm:$0xff]
    %v793 = vld [vmem:[#allocation11 + $0x1a0] sm:$0xff]
    %v794 = vld [vmem:[#allocation11 + $0x1a8] sm:$0xff]
    %v795 = vld [vmem:[#allocation11 + $0x1b0] sm:$0xff]
    %v796 = vld [vmem:[#allocation11 + $0x1b8] sm:$0xff]
    %v797 = vld [vmem:[#allocation11 + $0x1c0] sm:$0xff]
    %v798 = vld [vmem:[#allocation11 + $0x1c8] sm:$0xff]
    %v799 = vld [vmem:[#allocation11 + $0x1d0] sm:$0xff]
    %v800 = vld [vmem:[#allocation11 + $0x1d8] sm:$0xff]
    %v801 = vld [vmem:[#allocation11 + $0x1e0] sm:$0xff]
    %v802 = vld [vmem:[#allocation11 + $0x1e8] sm:$0xff]
    %v803 = vld [vmem:[#allocation11 + $0x1f0] sm:$0xff]
    %v804 = vld [vmem:[#allocation11 + $0x1f8] sm:$0xff]
    %v805 = vld [vmem:[#allocation11 + $0x200] sm:$0xff]
    %v806 = vld [vmem:[#allocation11 + $0x208] sm:$0xff]
    %v807 = vld [vmem:[#allocation11 + $0x210] sm:$0xff]
    %v808 = vld [vmem:[#allocation11 + $0x218] sm:$0xff]
    %v809 = vld [vmem:[#allocation11 + $0x220] sm:$0xff]
    %v810 = vld [vmem:[#allocation11 + $0x228] sm:$0xff]
    %v811 = vld [vmem:[#allocation11 + $0x230] sm:$0xff]
    %v812 = vld [vmem:[#allocation11 + $0x238] sm:$0xff]
    %v813 = vld [vmem:[#allocation11 + $0x240] sm:$0xff]
    %v814 = vld [vmem:[#allocation11 + $0x248] sm:$0xff]
    %v815 = vld [vmem:[#allocation11 + $0x250] sm:$0xff]
    %v816 = vld [vmem:[#allocation11 + $0x258] sm:$0xff]
    %v817 = vld [vmem:[#allocation11 + $0x260] sm:$0xff]
    %v818 = vld [vmem:[#allocation11 + $0x268] sm:$0xff]
    %v819 = vld [vmem:[#allocation11 + $0x270] sm:$0xff]
    %v820 = vld [vmem:[#allocation11 + $0x278] sm:$0xff]
    %v821 = vld [vmem:[#allocation11 + $0x280] sm:$0xff]
    %v822 = vld [vmem:[#allocation11 + $0x288] sm:$0xff]
    %v823 = vld [vmem:[#allocation11 + $0x290] sm:$0xff]
    %v824 = vld [vmem:[#allocation11 + $0x298] sm:$0xff]
    %v825 = vld [vmem:[#allocation11 + $0x2a0] sm:$0xff]
    %v826 = vld [vmem:[#allocation11 + $0x2a8] sm:$0xff]
    %v827 = vld [vmem:[#allocation11 + $0x2b0] sm:$0xff]
    %v828 = vld [vmem:[#allocation11 + $0x2b8] sm:$0xff]
    %v829 = vld [vmem:[#allocation11 + $0x2c0] sm:$0xff]
    %v830 = vld [vmem:[#allocation11 + $0x2c8] sm:$0xff]
    %v831 = vld [vmem:[#allocation11 + $0x2d0] sm:$0xff]
    %v832 = vld [vmem:[#allocation11 + $0x2d8] sm:$0xff]
    %v833 = vld [vmem:[#allocation11 + $0x2e0] sm:$0xff]
    %v834 = vld [vmem:[#allocation11 + $0x2e8] sm:$0xff]
    %v835 = vld [vmem:[#allocation11 + $0x2f0] sm:$0xff]
    %v836 = vld [vmem:[#allocation11 + $0x2f8] sm:$0xff]
    %v837 = vld [vmem:[#allocation11 + $0x300] sm:$0xff]
    %v838 = vld [vmem:[#allocation11 + $0x308] sm:$0xff]
    %v839 = vld [vmem:[#allocation11 + $0x310] sm:$0xff]
    %v840 = vld [vmem:[#allocation11 + $0x318] sm:$0xff]
    %v841 = vld [vmem:[#allocation11 + $0x320] sm:$0xff]
    %v842 = vld [vmem:[#allocation11 + $0x328] sm:$0xff]
    %v843 = vld [vmem:[#allocation11 + $0x330] sm:$0xff]
    %v844 = vld [vmem:[#allocation11 + $0x338] sm:$0xff]
    %v845 = vld [vmem:[#allocation11 + $0x340] sm:$0xff]
    %v846 = vld [vmem:[#allocation11 + $0x348] sm:$0xff]
    %v847 = vld [vmem:[#allocation11 + $0x350] sm:$0xff]
    %v848 = vld [vmem:[#allocation11 + $0x358] sm:$0xff]
    %v849 = vld [vmem:[#allocation11 + $0x360] sm:$0xff]
    %v850 = vld [vmem:[#allocation11 + $0x368] sm:$0xff]
    %v851 = vld [vmem:[#allocation11 + $0x370] sm:$0xff]
    %v852 = vld [vmem:[#allocation11 + $0x378] sm:$0xff]
    %v853 = vld [vmem:[#allocation11 + $0x380] sm:$0xff]
    %v854 = vld [vmem:[#allocation11 + $0x388] sm:$0xff]
    %v855 = vld [vmem:[#allocation11 + $0x390] sm:$0xff]
    %v856 = vld [vmem:[#allocation11 + $0x398] sm:$0xff]
    %v857 = vld [vmem:[#allocation11 + $0x3a0] sm:$0xff]
    %v858 = vld [vmem:[#allocation11 + $0x3a8] sm:$0xff]
    %v859 = vld [vmem:[#allocation11 + $0x3b0] sm:$0xff]
    %v860 = vld [vmem:[#allocation11 + $0x3b8] sm:$0xff]
    %v861 = vld [vmem:[#allocation11 + $0x3c0] sm:$0xff]
    %v862 = vld [vmem:[#allocation11 + $0x3c8] sm:$0xff]
    %v863 = vld [vmem:[#allocation11 + $0x3d0] sm:$0xff]
    %v864 = vld [vmem:[#allocation11 + $0x3d8] sm:$0xff]
    %v865 = vld [vmem:[#allocation11 + $0x3e0] sm:$0xff]
    %v866 = vld [vmem:[#allocation11 + $0x3e8] sm:$0xff]
    %v867 = vld [vmem:[#allocation11 + $0x3f0] sm:$0xff]
    %v868 = vld [vmem:[#allocation11 + $0x3f8] sm:$0xff]
    %v869 = vld [vmem:[#allocation11 + $0x400] sm:$0xff]
    %v870 = vld [vmem:[#allocation11 + $0x408] sm:$0xff]
    %v871 = vld [vmem:[#allocation11 + $0x410] sm:$0xff]
    %v872 = vld [vmem:[#allocation11 + $0x418] sm:$0xff]
    %v873 = vld [vmem:[#allocation11 + $0x420] sm:$0xff]
    %v874 = vld [vmem:[#allocation11 + $0x428] sm:$0xff]
    %v875 = vld [vmem:[#allocation11 + $0x430] sm:$0xff]
    %v876 = vld [vmem:[#allocation11 + $0x438] sm:$0xff]
    %v877 = vld [vmem:[#allocation11 + $0x440] sm:$0xff]
    %v878 = vld [vmem:[#allocation11 + $0x448] sm:$0xff]
    %v879 = vld [vmem:[#allocation11 + $0x450] sm:$0xff]
    %v880 = vld [vmem:[#allocation11 + $0x458] sm:$0xff]
    %v881 = vld [vmem:[#allocation11 + $0x460] sm:$0xff]
    %v882 = vld [vmem:[#allocation11 + $0x468] sm:$0xff]
    %v883 = vld [vmem:[#allocation11 + $0x470] sm:$0xff]
    %v884 = vld [vmem:[#allocation11 + $0x478] sm:$0xff]
    %v885 = vld [vmem:[#allocation11 + $0x480] sm:$0xff]
    %v886 = vld [vmem:[#allocation11 + $0x488] sm:$0xff]
    %v887 = vld [vmem:[#allocation11 + $0x490] sm:$0xff]
    %v888 = vld [vmem:[#allocation11 + $0x498] sm:$0xff]
    %v889 = vld [vmem:[#allocation11 + $0x4a0] sm:$0xff]
    %v890 = vld [vmem:[#allocation11 + $0x4a8] sm:$0xff]
    %v891 = vld [vmem:[#allocation11 + $0x4b0] sm:$0xff]
    %v892 = vld [vmem:[#allocation11 + $0x4b8] sm:$0xff]
    %v893 = vld [vmem:[#allocation11 + $0x4c0] sm:$0xff]
    %v894 = vld [vmem:[#allocation11 + $0x4c8] sm:$0xff]
    %v895 = vld [vmem:[#allocation11 + $0x4d0] sm:$0xff]
    %v896 = vld [vmem:[#allocation11 + $0x4d8] sm:$0xff]
    %v897 = vld [vmem:[#allocation11 + $0x4e0] sm:$0xff]
    %v898 = vld [vmem:[#allocation11 + $0x4e8] sm:$0xff]
    %v899 = vld [vmem:[#allocation11 + $0x4f0] sm:$0xff]
    %v900 = vld [vmem:[#allocation11 + $0x4f8] sm:$0xff]
    %v901 = vld [vmem:[#allocation11 + $0x500] sm:$0xff]
    %v902 = vld [vmem:[#allocation11 + $0x508] sm:$0xff]
    %v903 = vld [vmem:[#allocation11 + $0x510] sm:$0xff]
    %v904 = vld [vmem:[#allocation11 + $0x518] sm:$0xff]
    %v905 = vld [vmem:[#allocation11 + $0x520] sm:$0xff]
    %v906 = vld [vmem:[#allocation11 + $0x528] sm:$0xff]
    %v907 = vld [vmem:[#allocation11 + $0x530] sm:$0xff]
    %v908 = vld [vmem:[#allocation11 + $0x538] sm:$0xff]
    %v909 = vld [vmem:[#allocation11 + $0x540] sm:$0xff]
    %v910 = vld [vmem:[#allocation11 + $0x548] sm:$0xff]
    %v911 = vld [vmem:[#allocation11 + $0x550] sm:$0xff]
    %v912 = vld [vmem:[#allocation11 + $0x558] sm:$0xff]
    %v913 = vld [vmem:[#allocation11 + $0x560] sm:$0xff]
    %v914 = vld [vmem:[#allocation11 + $0x568] sm:$0xff]
    %v915 = vld [vmem:[#allocation11 + $0x570] sm:$0xff]
    %v916 = vld [vmem:[#allocation11 + $0x578] sm:$0xff]
    %v917 = vld [vmem:[#allocation11 + $0x580] sm:$0xff]
    %v918 = vld [vmem:[#allocation11 + $0x588] sm:$0xff]
    %v919 = vld [vmem:[#allocation11 + $0x590] sm:$0xff]
    %v920 = vld [vmem:[#allocation11 + $0x598] sm:$0xff]
    %v921 = vld [vmem:[#allocation11 + $0x5a0] sm:$0xff]
    %v922 = vld [vmem:[#allocation11 + $0x5a8] sm:$0xff]
    %v923 = vld [vmem:[#allocation11 + $0x5b0] sm:$0xff]
    %v924 = vld [vmem:[#allocation11 + $0x5b8] sm:$0xff]
    %v925 = vld [vmem:[#allocation11 + $0x5c0] sm:$0xff]
    %v926 = vld [vmem:[#allocation11 + $0x5c8] sm:$0xff]
    %v927 = vld [vmem:[#allocation11 + $0x5d0] sm:$0xff]
    %v928 = vld [vmem:[#allocation11 + $0x5d8] sm:$0xff]
    %v929 = vld [vmem:[#allocation11 + $0x5e0] sm:$0xff]
    %v930 = vld [vmem:[#allocation11 + $0x5e8] sm:$0xff]
    %v931 = vld [vmem:[#allocation11 + $0x5f0] sm:$0xff]
    %v932 = vld [vmem:[#allocation11 + $0x5f8] sm:$0xff]
    %v933 = vld [vmem:[#allocation11 + $0x600] sm:$0xff]
    %v934 = vld [vmem:[#allocation11 + $0x608] sm:$0xff]
    %v935 = vld [vmem:[#allocation11 + $0x610] sm:$0xff]
    %v936 = vld [vmem:[#allocation11 + $0x618] sm:$0xff]
    %v937 = vld [vmem:[#allocation11 + $0x620] sm:$0xff]
    %v938 = vld [vmem:[#allocation11 + $0x628] sm:$0xff]
    %v939 = vld [vmem:[#allocation11 + $0x630] sm:$0xff]
    %v940 = vld [vmem:[#allocation11 + $0x638] sm:$0xff]
    %v941 = vld [vmem:[#allocation11 + $0x640] sm:$0xff]
    %v942 = vld [vmem:[#allocation11 + $0x648] sm:$0xff]
    %v943 = vld [vmem:[#allocation11 + $0x650] sm:$0xff]
    %v944 = vld [vmem:[#allocation11 + $0x658] sm:$0xff]
    %v945 = vld [vmem:[#allocation11 + $0x660] sm:$0xff]
    %v946 = vld [vmem:[#allocation11 + $0x668] sm:$0xff]
    %v947 = vld [vmem:[#allocation11 + $0x670] sm:$0xff]
    %v948 = vld [vmem:[#allocation11 + $0x678] sm:$0xff]
    %v949 = vld [vmem:[#allocation11 + $0x680] sm:$0xff]
    %v950 = vld [vmem:[#allocation11 + $0x688] sm:$0xff]
    %v951 = vld [vmem:[#allocation11 + $0x690] sm:$0xff]
    %v952 = vld [vmem:[#allocation11 + $0x698] sm:$0xff]
    %v953 = vld [vmem:[#allocation11 + $0x6a0] sm:$0xff]
    %v954 = vld [vmem:[#allocation11 + $0x6a8] sm:$0xff]
    %v955 = vld [vmem:[#allocation11 + $0x6b0] sm:$0xff]
    %v956 = vld [vmem:[#allocation11 + $0x6b8] sm:$0xff]
    %v957 = vld [vmem:[#allocation11 + $0x6c0] sm:$0xff]
    %v958 = vld [vmem:[#allocation11 + $0x6c8] sm:$0xff]
    %v959 = vld [vmem:[#allocation11 + $0x6d0] sm:$0xff]
    %v960 = vld [vmem:[#allocation11 + $0x6d8] sm:$0xff]
    %v961 = vld [vmem:[#allocation11 + $0x6e0] sm:$0xff]
    %v962 = vld [vmem:[#allocation11 + $0x6e8] sm:$0xff]
    %v963 = vld [vmem:[#allocation11 + $0x6f0] sm:$0xff]
    %v964 = vld [vmem:[#allocation11 + $0x6f8] sm:$0xff]
    %v965 = vld [vmem:[#allocation11 + $0x700] sm:$0xff]
    %v966 = vld [vmem:[#allocation11 + $0x708] sm:$0xff]
    %v967 = vld [vmem:[#allocation11 + $0x710] sm:$0xff]
    %v968 = vld [vmem:[#allocation11 + $0x718] sm:$0xff]
    %v969 = vld [vmem:[#allocation11 + $0x720] sm:$0xff]
    %v970 = vld [vmem:[#allocation11 + $0x728] sm:$0xff]
    %v971 = vld [vmem:[#allocation11 + $0x730] sm:$0xff]
    %v972 = vld [vmem:[#allocation11 + $0x738] sm:$0xff]
    %v973 = vld [vmem:[#allocation11 + $0x740] sm:$0xff]
    %v974 = vld [vmem:[#allocation11 + $0x748] sm:$0xff]
    %v975 = vld [vmem:[#allocation11 + $0x750] sm:$0xff]
    %v976 = vld [vmem:[#allocation11 + $0x758] sm:$0xff]
    %v977 = vld [vmem:[#allocation11 + $0x760] sm:$0xff]
    %v978 = vld [vmem:[#allocation11 + $0x768] sm:$0xff]
    %v979 = vld [vmem:[#allocation11 + $0x770] sm:$0xff]
    %v980 = vld [vmem:[#allocation11 + $0x778] sm:$0xff]
    %v981 = vld [vmem:[#allocation11 + $0x780] sm:$0xff]
    %v982 = vld [vmem:[#allocation11 + $0x788] sm:$0xff]
    %v983 = vld [vmem:[#allocation11 + $0x790] sm:$0xff]
    %v984 = vld [vmem:[#allocation11 + $0x798] sm:$0xff]
    %v985 = vld [vmem:[#allocation11 + $0x7a0] sm:$0xff]
    %v986 = vld [vmem:[#allocation11 + $0x7a8] sm:$0xff]
    %v987 = vld [vmem:[#allocation11 + $0x7b0] sm:$0xff]
    %v988 = vld [vmem:[#allocation11 + $0x7b8] sm:$0xff]
    %v989 = vld [vmem:[#allocation11 + $0x7c0] sm:$0xff]
    %v990 = vld [vmem:[#allocation11 + $0x7c8] sm:$0xff]
    %v991 = vld [vmem:[#allocation11 + $0x7d0] sm:$0xff]
    %v992 = vld [vmem:[#allocation11 + $0x7d8] sm:$0xff]
    %v993 = vld [vmem:[#allocation11 + $0x7e0] sm:$0xff]
    %v994 = vld [vmem:[#allocation11 + $0x7e8] sm:$0xff]
    %v995 = vld [vmem:[#allocation11 + $0x7f0] sm:$0xff]
    %v996 = vld [vmem:[#allocation11 + $0x7f8] sm:$0xff]
    %v997 = vld [vmem:[#allocation13] sm:$0xff]
    %v999 = vlaneseq
    %v1000 = vshrl.u32 %v999, 7
    %v1001 = vsub.s32 0, %v1000
    %v1002 = vrot.slane %v997, %v1001
    %v1003 = vlaneseq
    %v1004 = vshrl.u32 %v1003, 7
    %v1005 = vsub.s32 1, %v1004
    %v1006 = vrot.slane %v997, %v1005
    %v1007 = vlaneseq
    %v1008 = vshrl.u32 %v1007, 7
    %v1009 = vsub.s32 2, %v1008
    %v1010 = vrot.slane %v997, %v1009
    %v1011 = vlaneseq
    %v1012 = vshrl.u32 %v1011, 7
    %v1013 = vsub.s32 3, %v1012
    %v1014 = vrot.slane %v997, %v1013
    %v1015 = vlaneseq
    %v1016 = vshrl.u32 %v1015, 7
    %v1017 = vsub.s32 4, %v1016
    %v1018 = vrot.slane %v997, %v1017
    %v1019 = vlaneseq
    %v1020 = vshrl.u32 %v1019, 7
    %v1021 = vsub.s32 5, %v1020
    %v1022 = vrot.slane %v997, %v1021
    %v1023 = vlaneseq
    %v1024 = vshrl.u32 %v1023, 7
    %v1025 = vsub.s32 6, %v1024
    %v1026 = vrot.slane %v997, %v1025
    %v1027 = vlaneseq
    %v1028 = vshrl.u32 %v1027, 7
    %v1029 = vsub.s32 7, %v1028
    %v1030 = vrot.slane %v997, %v1029
    %v1295 = vunpack.c.l.b16 %v741
    %v1296 = vunpack.c.h.b16 %v741
    %v1297 = vunpack.c.l.b16 %v742
    %v1298 = vunpack.c.h.b16 %v742
    %v1299 = vunpack.c.l.b16 %v743
    %v1300 = vunpack.c.h.b16 %v743
    %v1301 = vunpack.c.l.b16 %v744
    %v1302 = vunpack.c.h.b16 %v744
    %v1303 = vunpack.c.l.b16 %v745
    %v1304 = vunpack.c.h.b16 %v745
    %v1305 = vunpack.c.l.b16 %v746
    %v1306 = vunpack.c.h.b16 %v746
    %v1307 = vunpack.c.l.b16 %v747
    %v1308 = vunpack.c.h.b16 %v747
    %v1309 = vunpack.c.l.b16 %v748
    %v1310 = vunpack.c.h.b16 %v748
    %v1311 = vunpack.c.l.b16 %v749
    %v1312 = vunpack.c.h.b16 %v749
    %v1313 = vunpack.c.l.b16 %v750
    %v1314 = vunpack.c.h.b16 %v750
    %v1315 = vunpack.c.l.b16 %v751
    %v1316 = vunpack.c.h.b16 %v751
    %v1317 = vunpack.c.l.b16 %v752
    %v1318 = vunpack.c.h.b16 %v752
    %v1319 = vunpack.c.l.b16 %v753
    %v1320 = vunpack.c.h.b16 %v753
    %v1321 = vunpack.c.l.b16 %v754
    %v1322 = vunpack.c.h.b16 %v754
    %v1323 = vunpack.c.l.b16 %v755
    %v1324 = vunpack.c.h.b16 %v755
    %v1325 = vunpack.c.l.b16 %v756
    %v1326 = vunpack.c.h.b16 %v756
    %v1327 = vunpack.c.l.b16 %v757
    %v1328 = vunpack.c.h.b16 %v757
    %v1329 = vunpack.c.l.b16 %v758
    %v1330 = vunpack.c.h.b16 %v758
    %v1331 = vunpack.c.l.b16 %v759
    %v1332 = vunpack.c.h.b16 %v759
    %v1333 = vunpack.c.l.b16 %v760
    %v1334 = vunpack.c.h.b16 %v760
    %v1335 = vunpack.c.l.b16 %v761
    %v1336 = vunpack.c.h.b16 %v761
    %v1337 = vunpack.c.l.b16 %v762
    %v1338 = vunpack.c.h.b16 %v762
    %v1339 = vunpack.c.l.b16 %v763
    %v1340 = vunpack.c.h.b16 %v763
    %v1341 = vunpack.c.l.b16 %v764
    %v1342 = vunpack.c.h.b16 %v764
    %v1343 = vunpack.c.l.b16 %v765
    %v1344 = vunpack.c.h.b16 %v765
    %v1345 = vunpack.c.l.b16 %v766
    %v1346 = vunpack.c.h.b16 %v766
    %v1347 = vunpack.c.l.b16 %v767
    %v1348 = vunpack.c.h.b16 %v767
    %v1349 = vunpack.c.l.b16 %v768
    %v1350 = vunpack.c.h.b16 %v768
    %v1351 = vunpack.c.l.b16 %v769
    %v1352 = vunpack.c.h.b16 %v769
    %v1353 = vunpack.c.l.b16 %v770
    %v1354 = vunpack.c.h.b16 %v770
    %v1355 = vunpack.c.l.b16 %v771
    %v1356 = vunpack.c.h.b16 %v771
    %v1357 = vunpack.c.l.b16 %v772
    %v1358 = vunpack.c.h.b16 %v772
    %v1359 = vunpack.c.l.b16 %v773
    %v1360 = vunpack.c.h.b16 %v773
    %v1361 = vunpack.c.l.b16 %v774
    %v1362 = vunpack.c.h.b16 %v774
    %v1363 = vunpack.c.l.b16 %v775
    %v1364 = vunpack.c.h.b16 %v775
    %v1365 = vunpack.c.l.b16 %v776
    %v1366 = vunpack.c.h.b16 %v776
    %v1367 = vunpack.c.l.b16 %v777
    %v1368 = vunpack.c.h.b16 %v777
    %v1369 = vunpack.c.l.b16 %v778
    %v1370 = vunpack.c.h.b16 %v778
    %v1371 = vunpack.c.l.b16 %v779
    %v1372 = vunpack.c.h.b16 %v779
    %v1373 = vunpack.c.l.b16 %v780
    %v1374 = vunpack.c.h.b16 %v780
    %v1375 = vunpack.c.l.b16 %v781
    %v1376 = vunpack.c.h.b16 %v781
    %v1377 = vunpack.c.l.b16 %v782
    %v1378 = vunpack.c.h.b16 %v782
    %v1379 = vunpack.c.l.b16 %v783
    %v1380 = vunpack.c.h.b16 %v783
    %v1381 = vunpack.c.l.b16 %v784
    %v1382 = vunpack.c.h.b16 %v784
    %v1383 = vunpack.c.l.b16 %v785
    %v1384 = vunpack.c.h.b16 %v785
    %v1385 = vunpack.c.l.b16 %v786
    %v1386 = vunpack.c.h.b16 %v786
    %v1387 = vunpack.c.l.b16 %v787
    %v1388 = vunpack.c.h.b16 %v787
    %v1389 = vunpack.c.l.b16 %v788
    %v1390 = vunpack.c.h.b16 %v788
    %v1391 = vunpack.c.l.b16 %v789
    %v1392 = vunpack.c.h.b16 %v789
    %v1393 = vunpack.c.l.b16 %v790
    %v1394 = vunpack.c.h.b16 %v790
    %v1395 = vunpack.c.l.b16 %v791
    %v1396 = vunpack.c.h.b16 %v791
    %v1397 = vunpack.c.l.b16 %v792
    %v1398 = vunpack.c.h.b16 %v792
    %v1399 = vunpack.c.l.b16 %v793
    %v1400 = vunpack.c.h.b16 %v793
    %v1401 = vunpack.c.l.b16 %v794
    %v1402 = vunpack.c.h.b16 %v794
    %v1403 = vunpack.c.l.b16 %v795
    %v1404 = vunpack.c.h.b16 %v795
    %v1405 = vunpack.c.l.b16 %v796
    %v1406 = vunpack.c.h.b16 %v796
    %v1407 = vunpack.c.l.b16 %v797
    %v1408 = vunpack.c.h.b16 %v797
    %v1409 = vunpack.c.l.b16 %v798
    %v1410 = vunpack.c.h.b16 %v798
    %v1411 = vunpack.c.l.b16 %v799
    %v1412 = vunpack.c.h.b16 %v799
    %v1413 = vunpack.c.l.b16 %v800
    %v1414 = vunpack.c.h.b16 %v800
    %v1415 = vunpack.c.l.b16 %v801
    %v1416 = vunpack.c.h.b16 %v801
    %v1417 = vunpack.c.l.b16 %v802
    %v1418 = vunpack.c.h.b16 %v802
    %v1419 = vunpack.c.l.b16 %v803
    %v1420 = vunpack.c.h.b16 %v803
    %v1421 = vunpack.c.l.b16 %v804
    %v1422 = vunpack.c.h.b16 %v804
    %v1423 = vunpack.c.l.b16 %v805
    %v1424 = vunpack.c.h.b16 %v805
    %v1425 = vunpack.c.l.b16 %v806
    %v1426 = vunpack.c.h.b16 %v806
    %v1427 = vunpack.c.l.b16 %v807
    %v1428 = vunpack.c.h.b16 %v807
    %v1429 = vunpack.c.l.b16 %v808
    %v1430 = vunpack.c.h.b16 %v808
    %v1431 = vunpack.c.l.b16 %v809
    %v1432 = vunpack.c.h.b16 %v809
    %v1433 = vunpack.c.l.b16 %v810
    %v1434 = vunpack.c.h.b16 %v810
    %v1435 = vunpack.c.l.b16 %v811
    %v1436 = vunpack.c.h.b16 %v811
    %v1437 = vunpack.c.l.b16 %v812
    %v1438 = vunpack.c.h.b16 %v812
    %v1439 = vunpack.c.l.b16 %v813
    %v1440 = vunpack.c.h.b16 %v813
    %v1441 = vunpack.c.l.b16 %v814
    %v1442 = vunpack.c.h.b16 %v814
    %v1443 = vunpack.c.l.b16 %v815
    %v1444 = vunpack.c.h.b16 %v815
    %v1445 = vunpack.c.l.b16 %v816
    %v1446 = vunpack.c.h.b16 %v816
    %v1447 = vunpack.c.l.b16 %v817
    %v1448 = vunpack.c.h.b16 %v817
    %v1449 = vunpack.c.l.b16 %v818
    %v1450 = vunpack.c.h.b16 %v818
    %v1451 = vunpack.c.l.b16 %v819
    %v1452 = vunpack.c.h.b16 %v819
    %v1453 = vunpack.c.l.b16 %v820
    %v1454 = vunpack.c.h.b16 %v820
    %v1455 = vunpack.c.l.b16 %v821
    %v1456 = vunpack.c.h.b16 %v821
    %v1457 = vunpack.c.l.b16 %v822
    %v1458 = vunpack.c.h.b16 %v822
    %v1459 = vunpack.c.l.b16 %v823
    %v1460 = vunpack.c.h.b16 %v823
    %v1461 = vunpack.c.l.b16 %v824
    %v1462 = vunpack.c.h.b16 %v824
    %v1463 = vunpack.c.l.b16 %v825
    %v1464 = vunpack.c.h.b16 %v825
    %v1465 = vunpack.c.l.b16 %v826
    %v1466 = vunpack.c.h.b16 %v826
    %v1467 = vunpack.c.l.b16 %v827
    %v1468 = vunpack.c.h.b16 %v827
    %v1469 = vunpack.c.l.b16 %v828
    %v1470 = vunpack.c.h.b16 %v828
    %v1471 = vunpack.c.l.b16 %v829
    %v1472 = vunpack.c.h.b16 %v829
    %v1473 = vunpack.c.l.b16 %v830
    %v1474 = vunpack.c.h.b16 %v830
    %v1475 = vunpack.c.l.b16 %v831
    %v1476 = vunpack.c.h.b16 %v831
    %v1477 = vunpack.c.l.b16 %v832
    %v1478 = vunpack.c.h.b16 %v832
    %v1479 = vunpack.c.l.b16 %v833
    %v1480 = vunpack.c.h.b16 %v833
    %v1481 = vunpack.c.l.b16 %v834
    %v1482 = vunpack.c.h.b16 %v834
    %v1483 = vunpack.c.l.b16 %v835
    %v1484 = vunpack.c.h.b16 %v835
    %v1485 = vunpack.c.l.b16 %v836
    %v1486 = vunpack.c.h.b16 %v836
    %v1487 = vunpack.c.l.b16 %v837
    %v1488 = vunpack.c.h.b16 %v837
    %v1489 = vunpack.c.l.b16 %v838
    %v1490 = vunpack.c.h.b16 %v838
    %v1491 = vunpack.c.l.b16 %v839
    %v1492 = vunpack.c.h.b16 %v839
    %v1493 = vunpack.c.l.b16 %v840
    %v1494 = vunpack.c.h.b16 %v840
    %v1495 = vunpack.c.l.b16 %v841
    %v1496 = vunpack.c.h.b16 %v841
    %v1497 = vunpack.c.l.b16 %v842
    %v1498 = vunpack.c.h.b16 %v842
    %v1499 = vunpack.c.l.b16 %v843
    %v1500 = vunpack.c.h.b16 %v843
    %v1501 = vunpack.c.l.b16 %v844
    %v1502 = vunpack.c.h.b16 %v844
    %v1503 = vunpack.c.l.b16 %v845
    %v1504 = vunpack.c.h.b16 %v845
    %v1505 = vunpack.c.l.b16 %v846
    %v1506 = vunpack.c.h.b16 %v846
    %v1507 = vunpack.c.l.b16 %v847
    %v1508 = vunpack.c.h.b16 %v847
    %v1509 = vunpack.c.l.b16 %v848
    %v1510 = vunpack.c.h.b16 %v848
    %v1511 = vunpack.c.l.b16 %v849
    %v1512 = vunpack.c.h.b16 %v849
    %v1513 = vunpack.c.l.b16 %v850
    %v1514 = vunpack.c.h.b16 %v850
    %v1515 = vunpack.c.l.b16 %v851
    %v1516 = vunpack.c.h.b16 %v851
    %v1517 = vunpack.c.l.b16 %v852
    %v1518 = vunpack.c.h.b16 %v852
    %v1519 = vunpack.c.l.b16 %v853
    %v1520 = vunpack.c.h.b16 %v853
    %v1521 = vunpack.c.l.b16 %v854
    %v1522 = vunpack.c.h.b16 %v854
    %v1523 = vunpack.c.l.b16 %v855
    %v1524 = vunpack.c.h.b16 %v855
    %v1525 = vunpack.c.l.b16 %v856
    %v1526 = vunpack.c.h.b16 %v856
    %v1527 = vunpack.c.l.b16 %v857
    %v1528 = vunpack.c.h.b16 %v857
    %v1529 = vunpack.c.l.b16 %v858
    %v1530 = vunpack.c.h.b16 %v858
    %v1531 = vunpack.c.l.b16 %v859
    %v1532 = vunpack.c.h.b16 %v859
    %v1533 = vunpack.c.l.b16 %v860
    %v1534 = vunpack.c.h.b16 %v860
    %v1535 = vunpack.c.l.b16 %v861
    %v1536 = vunpack.c.h.b16 %v861
    %v1537 = vunpack.c.l.b16 %v862
    %v1538 = vunpack.c.h.b16 %v862
    %v1539 = vunpack.c.l.b16 %v863
    %v1540 = vunpack.c.h.b16 %v863
    %v1541 = vunpack.c.l.b16 %v864
    %v1542 = vunpack.c.h.b16 %v864
    %v1543 = vunpack.c.l.b16 %v865
    %v1544 = vunpack.c.h.b16 %v865
    %v1545 = vunpack.c.l.b16 %v866
    %v1546 = vunpack.c.h.b16 %v866
    %v1547 = vunpack.c.l.b16 %v867
    %v1548 = vunpack.c.h.b16 %v867
    %v1549 = vunpack.c.l.b16 %v868
    %v1550 = vunpack.c.h.b16 %v868
    %v1551 = vunpack.c.l.b16 %v869
    %v1552 = vunpack.c.h.b16 %v869
    %v1553 = vunpack.c.l.b16 %v870
    %v1554 = vunpack.c.h.b16 %v870
    %v1555 = vunpack.c.l.b16 %v871
    %v1556 = vunpack.c.h.b16 %v871
    %v1557 = vunpack.c.l.b16 %v872
    %v1558 = vunpack.c.h.b16 %v872
    %v1559 = vunpack.c.l.b16 %v873
    %v1560 = vunpack.c.h.b16 %v873
    %v1561 = vunpack.c.l.b16 %v874
    %v1562 = vunpack.c.h.b16 %v874
    %v1563 = vunpack.c.l.b16 %v875
    %v1564 = vunpack.c.h.b16 %v875
    %v1565 = vunpack.c.l.b16 %v876
    %v1566 = vunpack.c.h.b16 %v876
    %v1567 = vunpack.c.l.b16 %v877
    %v1568 = vunpack.c.h.b16 %v877
    %v1569 = vunpack.c.l.b16 %v878
    %v1570 = vunpack.c.h.b16 %v878
    %v1571 = vunpack.c.l.b16 %v879
    %v1572 = vunpack.c.h.b16 %v879
    %v1573 = vunpack.c.l.b16 %v880
    %v1574 = vunpack.c.h.b16 %v880
    %v1575 = vunpack.c.l.b16 %v881
    %v1576 = vunpack.c.h.b16 %v881
    %v1577 = vunpack.c.l.b16 %v882
    %v1578 = vunpack.c.h.b16 %v882
    %v1579 = vunpack.c.l.b16 %v883
    %v1580 = vunpack.c.h.b16 %v883
    %v1581 = vunpack.c.l.b16 %v884
    %v1582 = vunpack.c.h.b16 %v884
    %v1583 = vunpack.c.l.b16 %v885
    %v1584 = vunpack.c.h.b16 %v885
    %v1585 = vunpack.c.l.b16 %v886
    %v1586 = vunpack.c.h.b16 %v886
    %v1587 = vunpack.c.l.b16 %v887
    %v1588 = vunpack.c.h.b16 %v887
    %v1589 = vunpack.c.l.b16 %v888
    %v1590 = vunpack.c.h.b16 %v888
    %v1591 = vunpack.c.l.b16 %v889
    %v1592 = vunpack.c.h.b16 %v889
    %v1593 = vunpack.c.l.b16 %v890
    %v1594 = vunpack.c.h.b16 %v890
    %v1595 = vunpack.c.l.b16 %v891
    %v1596 = vunpack.c.h.b16 %v891
    %v1597 = vunpack.c.l.b16 %v892
    %v1598 = vunpack.c.h.b16 %v892
    %v1599 = vunpack.c.l.b16 %v893
    %v1600 = vunpack.c.h.b16 %v893
    %v1601 = vunpack.c.l.b16 %v894
    %v1602 = vunpack.c.h.b16 %v894
    %v1603 = vunpack.c.l.b16 %v895
    %v1604 = vunpack.c.h.b16 %v895
    %v1605 = vunpack.c.l.b16 %v896
    %v1606 = vunpack.c.h.b16 %v896
    %v1607 = vunpack.c.l.b16 %v897
    %v1608 = vunpack.c.h.b16 %v897
    %v1609 = vunpack.c.l.b16 %v898
    %v1610 = vunpack.c.h.b16 %v898
    %v1611 = vunpack.c.l.b16 %v899
    %v1612 = vunpack.c.h.b16 %v899
    %v1613 = vunpack.c.l.b16 %v900
    %v1614 = vunpack.c.h.b16 %v900
    %v1615 = vunpack.c.l.b16 %v901
    %v1616 = vunpack.c.h.b16 %v901
    %v1617 = vunpack.c.l.b16 %v902
    %v1618 = vunpack.c.h.b16 %v902
    %v1619 = vunpack.c.l.b16 %v903
    %v1620 = vunpack.c.h.b16 %v903
    %v1621 = vunpack.c.l.b16 %v904
    %v1622 = vunpack.c.h.b16 %v904
    %v1623 = vunpack.c.l.b16 %v905
    %v1624 = vunpack.c.h.b16 %v905
    %v1625 = vunpack.c.l.b16 %v906
    %v1626 = vunpack.c.h.b16 %v906
    %v1627 = vunpack.c.l.b16 %v907
    %v1628 = vunpack.c.h.b16 %v907
    %v1629 = vunpack.c.l.b16 %v908
    %v1630 = vunpack.c.h.b16 %v908
    %v1631 = vunpack.c.l.b16 %v909
    %v1632 = vunpack.c.h.b16 %v909
    %v1633 = vunpack.c.l.b16 %v910
    %v1634 = vunpack.c.h.b16 %v910
    %v1635 = vunpack.c.l.b16 %v911
    %v1636 = vunpack.c.h.b16 %v911
    %v1637 = vunpack.c.l.b16 %v912
    %v1638 = vunpack.c.h.b16 %v912
    %v1639 = vunpack.c.l.b16 %v913
    %v1640 = vunpack.c.h.b16 %v913
    %v1641 = vunpack.c.l.b16 %v914
    %v1642 = vunpack.c.h.b16 %v914
    %v1643 = vunpack.c.l.b16 %v915
    %v1644 = vunpack.c.h.b16 %v915
    %v1645 = vunpack.c.l.b16 %v916
    %v1646 = vunpack.c.h.b16 %v916
    %v1647 = vunpack.c.l.b16 %v917
    %v1648 = vunpack.c.h.b16 %v917
    %v1649 = vunpack.c.l.b16 %v918
    %v1650 = vunpack.c.h.b16 %v918
    %v1651 = vunpack.c.l.b16 %v919
    %v1652 = vunpack.c.h.b16 %v919
    %v1653 = vunpack.c.l.b16 %v920
    %v1654 = vunpack.c.h.b16 %v920
    %v1655 = vunpack.c.l.b16 %v921
    %v1656 = vunpack.c.h.b16 %v921
    %v1657 = vunpack.c.l.b16 %v922
    %v1658 = vunpack.c.h.b16 %v922
    %v1659 = vunpack.c.l.b16 %v923
    %v1660 = vunpack.c.h.b16 %v923
    %v1661 = vunpack.c.l.b16 %v924
    %v1662 = vunpack.c.h.b16 %v924
    %v1663 = vunpack.c.l.b16 %v925
    %v1664 = vunpack.c.h.b16 %v925
    %v1665 = vunpack.c.l.b16 %v926
    %v1666 = vunpack.c.h.b16 %v926
    %v1667 = vunpack.c.l.b16 %v927
    %v1668 = vunpack.c.h.b16 %v927
    %v1669 = vunpack.c.l.b16 %v928
    %v1670 = vunpack.c.h.b16 %v928
    %v1671 = vunpack.c.l.b16 %v929
    %v1672 = vunpack.c.h.b16 %v929
    %v1673 = vunpack.c.l.b16 %v930
    %v1674 = vunpack.c.h.b16 %v930
    %v1675 = vunpack.c.l.b16 %v931
    %v1676 = vunpack.c.h.b16 %v931
    %v1677 = vunpack.c.l.b16 %v932
    %v1678 = vunpack.c.h.b16 %v932
    %v1679 = vunpack.c.l.b16 %v933
    %v1680 = vunpack.c.h.b16 %v933
    %v1681 = vunpack.c.l.b16 %v934
    %v1682 = vunpack.c.h.b16 %v934
    %v1683 = vunpack.c.l.b16 %v935
    %v1684 = vunpack.c.h.b16 %v935
    %v1685 = vunpack.c.l.b16 %v936
    %v1686 = vunpack.c.h.b16 %v936
    %v1687 = vunpack.c.l.b16 %v937
    %v1688 = vunpack.c.h.b16 %v937
    %v1689 = vunpack.c.l.b16 %v938
    %v1690 = vunpack.c.h.b16 %v938
    %v1691 = vunpack.c.l.b16 %v939
    %v1692 = vunpack.c.h.b16 %v939
    %v1693 = vunpack.c.l.b16 %v940
    %v1694 = vunpack.c.h.b16 %v940
    %v1695 = vunpack.c.l.b16 %v941
    %v1696 = vunpack.c.h.b16 %v941
    %v1697 = vunpack.c.l.b16 %v942
    %v1698 = vunpack.c.h.b16 %v942
    %v1699 = vunpack.c.l.b16 %v943
    %v1700 = vunpack.c.h.b16 %v943
    %v1701 = vunpack.c.l.b16 %v944
    %v1702 = vunpack.c.h.b16 %v944
    %v1703 = vunpack.c.l.b16 %v945
    %v1704 = vunpack.c.h.b16 %v945
    %v1705 = vunpack.c.l.b16 %v946
    %v1706 = vunpack.c.h.b16 %v946
    %v1707 = vunpack.c.l.b16 %v947
    %v1708 = vunpack.c.h.b16 %v947
    %v1709 = vunpack.c.l.b16 %v948
    %v1710 = vunpack.c.h.b16 %v948
    %v1711 = vunpack.c.l.b16 %v949
    %v1712 = vunpack.c.h.b16 %v949
    %v1713 = vunpack.c.l.b16 %v950
    %v1714 = vunpack.c.h.b16 %v950
    %v1715 = vunpack.c.l.b16 %v951
    %v1716 = vunpack.c.h.b16 %v951
    %v1717 = vunpack.c.l.b16 %v952
    %v1718 = vunpack.c.h.b16 %v952
    %v1719 = vunpack.c.l.b16 %v953
    %v1720 = vunpack.c.h.b16 %v953
    %v1721 = vunpack.c.l.b16 %v954
    %v1722 = vunpack.c.h.b16 %v954
    %v1723 = vunpack.c.l.b16 %v955
    %v1724 = vunpack.c.h.b16 %v955
    %v1725 = vunpack.c.l.b16 %v956
    %v1726 = vunpack.c.h.b16 %v956
    %v1727 = vunpack.c.l.b16 %v957
    %v1728 = vunpack.c.h.b16 %v957
    %v1729 = vunpack.c.l.b16 %v958
    %v1730 = vunpack.c.h.b16 %v958
    %v1731 = vunpack.c.l.b16 %v959
    %v1732 = vunpack.c.h.b16 %v959
    %v1733 = vunpack.c.l.b16 %v960
    %v1734 = vunpack.c.h.b16 %v960
    %v1735 = vunpack.c.l.b16 %v961
    %v1736 = vunpack.c.h.b16 %v961
    %v1737 = vunpack.c.l.b16 %v962
    %v1738 = vunpack.c.h.b16 %v962
    %v1739 = vunpack.c.l.b16 %v963
    %v1740 = vunpack.c.h.b16 %v963
    %v1741 = vunpack.c.l.b16 %v964
    %v1742 = vunpack.c.h.b16 %v964
    %v1743 = vunpack.c.l.b16 %v965
    %v1744 = vunpack.c.h.b16 %v965
    %v1745 = vunpack.c.l.b16 %v966
    %v1746 = vunpack.c.h.b16 %v966
    %v1747 = vunpack.c.l.b16 %v967
    %v1748 = vunpack.c.h.b16 %v967
    %v1749 = vunpack.c.l.b16 %v968
    %v1750 = vunpack.c.h.b16 %v968
    %v1751 = vunpack.c.l.b16 %v969
    %v1752 = vunpack.c.h.b16 %v969
    %v1753 = vunpack.c.l.b16 %v970
    %v1754 = vunpack.c.h.b16 %v970
    %v1755 = vunpack.c.l.b16 %v971
    %v1756 = vunpack.c.h.b16 %v971
    %v1757 = vunpack.c.l.b16 %v972
    %v1758 = vunpack.c.h.b16 %v972
    %v1759 = vunpack.c.l.b16 %v973
    %v1760 = vunpack.c.h.b16 %v973
    %v1761 = vunpack.c.l.b16 %v974
    %v1762 = vunpack.c.h.b16 %v974
    %v1763 = vunpack.c.l.b16 %v975
    %v1764 = vunpack.c.h.b16 %v975
    %v1765 = vunpack.c.l.b16 %v976
    %v1766 = vunpack.c.h.b16 %v976
    %v1767 = vunpack.c.l.b16 %v977
    %v1768 = vunpack.c.h.b16 %v977
    %v1769 = vunpack.c.l.b16 %v978
    %v1770 = vunpack.c.h.b16 %v978
    %v1771 = vunpack.c.l.b16 %v979
    %v1772 = vunpack.c.h.b16 %v979
    %v1773 = vunpack.c.l.b16 %v980
    %v1774 = vunpack.c.h.b16 %v980
    %v1775 = vunpack.c.l.b16 %v981
    %v1776 = vunpack.c.h.b16 %v981
    %v1777 = vunpack.c.l.b16 %v982
    %v1778 = vunpack.c.h.b16 %v982
    %v1779 = vunpack.c.l.b16 %v983
    %v1780 = vunpack.c.h.b16 %v983
    %v1781 = vunpack.c.l.b16 %v984
    %v1782 = vunpack.c.h.b16 %v984
    %v1783 = vunpack.c.l.b16 %v985
    %v1784 = vunpack.c.h.b16 %v985
    %v1785 = vunpack.c.l.b16 %v986
    %v1786 = vunpack.c.h.b16 %v986
    %v1787 = vunpack.c.l.b16 %v987
    %v1788 = vunpack.c.h.b16 %v987
    %v1789 = vunpack.c.l.b16 %v988
    %v1790 = vunpack.c.h.b16 %v988
    %v1791 = vunpack.c.l.b16 %v989
    %v1792 = vunpack.c.h.b16 %v989
    %v1793 = vunpack.c.l.b16 %v990
    %v1794 = vunpack.c.h.b16 %v990
    %v1795 = vunpack.c.l.b16 %v991
    %v1796 = vunpack.c.h.b16 %v991
    %v1797 = vunpack.c.l.b16 %v992
    %v1798 = vunpack.c.h.b16 %v992
    %v1799 = vunpack.c.l.b16 %v993
    %v1800 = vunpack.c.h.b16 %v993
    %v1801 = vunpack.c.l.b16 %v994
    %v1802 = vunpack.c.h.b16 %v994
    %v1803 = vunpack.c.l.b16 %v995
    %v1804 = vunpack.c.h.b16 %v995
    %v1805 = vunpack.c.l.b16 %v996
    %v1806 = vunpack.c.h.b16 %v996
    %v1807 = vpack.c.b16 %v1303, %v1295
    %v1808 = vpack.c.b16 %v1304, %v1296
    %v1809 = vpack.c.b16 %v1305, %v1297
    %v1810 = vpack.c.b16 %v1306, %v1298
    %v1811 = vpack.c.b16 %v1307, %v1299
    %v1812 = vpack.c.b16 %v1308, %v1300
    %v1813 = vpack.c.b16 %v1309, %v1301
    %v1814 = vpack.c.b16 %v1310, %v1302
    %v1815 = vpack.c.b16 %v1319, %v1311
    %v1816 = vpack.c.b16 %v1320, %v1312
    %v1817 = vpack.c.b16 %v1321, %v1313
    %v1818 = vpack.c.b16 %v1322, %v1314
    %v1819 = vpack.c.b16 %v1323, %v1315
    %v1820 = vpack.c.b16 %v1324, %v1316
    %v1821 = vpack.c.b16 %v1325, %v1317
    %v1822 = vpack.c.b16 %v1326, %v1318
    %v1823 = vpack.c.b16 %v1335, %v1327
    %v1824 = vpack.c.b16 %v1336, %v1328
    %v1825 = vpack.c.b16 %v1337, %v1329
    %v1826 = vpack.c.b16 %v1338, %v1330
    %v1827 = vpack.c.b16 %v1339, %v1331
    %v1828 = vpack.c.b16 %v1340, %v1332
    %v1829 = vpack.c.b16 %v1341, %v1333
    %v1830 = vpack.c.b16 %v1342, %v1334
    %v1831 = vpack.c.b16 %v1351, %v1343
    %v1832 = vpack.c.b16 %v1352, %v1344
    %v1833 = vpack.c.b16 %v1353, %v1345
    %v1834 = vpack.c.b16 %v1354, %v1346
    %v1835 = vpack.c.b16 %v1355, %v1347
    %v1836 = vpack.c.b16 %v1356, %v1348
    %v1837 = vpack.c.b16 %v1357, %v1349
    %v1838 = vpack.c.b16 %v1358, %v1350
    %v1839 = vpack.c.b16 %v1367, %v1359
    %v1840 = vpack.c.b16 %v1368, %v1360
    %v1841 = vpack.c.b16 %v1369, %v1361
    %v1842 = vpack.c.b16 %v1370, %v1362
    %v1843 = vpack.c.b16 %v1371, %v1363
    %v1844 = vpack.c.b16 %v1372, %v1364
    %v1845 = vpack.c.b16 %v1373, %v1365
    %v1846 = vpack.c.b16 %v1374, %v1366
    %v1847 = vpack.c.b16 %v1383, %v1375
    %v1848 = vpack.c.b16 %v1384, %v1376
    %v1849 = vpack.c.b16 %v1385, %v1377
    %v1850 = vpack.c.b16 %v1386, %v1378
    %v1851 = vpack.c.b16 %v1387, %v1379
    %v1852 = vpack.c.b16 %v1388, %v1380
    %v1853 = vpack.c.b16 %v1389, %v1381
    %v1854 = vpack.c.b16 %v1390, %v1382
    %v1855 = vpack.c.b16 %v1399, %v1391
    %v1856 = vpack.c.b16 %v1400, %v1392
    %v1857 = vpack.c.b16 %v1401, %v1393
    %v1858 = vpack.c.b16 %v1402, %v1394
    %v1859 = vpack.c.b16 %v1403, %v1395
    %v1860 = vpack.c.b16 %v1404, %v1396
    %v1861 = vpack.c.b16 %v1405, %v1397
    %v1862 = vpack.c.b16 %v1406, %v1398
    %v1863 = vpack.c.b16 %v1415, %v1407
    %v1864 = vpack.c.b16 %v1416, %v1408
    %v1865 = vpack.c.b16 %v1417, %v1409
    %v1866 = vpack.c.b16 %v1418, %v1410
    %v1867 = vpack.c.b16 %v1419, %v1411
    %v1868 = vpack.c.b16 %v1420, %v1412
    %v1869 = vpack.c.b16 %v1421, %v1413
    %v1870 = vpack.c.b16 %v1422, %v1414
    %v1871 = vpack.c.b16 %v1431, %v1423
    %v1872 = vpack.c.b16 %v1432, %v1424
    %v1873 = vpack.c.b16 %v1433, %v1425
    %v1874 = vpack.c.b16 %v1434, %v1426
    %v1875 = vpack.c.b16 %v1435, %v1427
    %v1876 = vpack.c.b16 %v1436, %v1428
    %v1877 = vpack.c.b16 %v1437, %v1429
    %v1878 = vpack.c.b16 %v1438, %v1430
    %v1879 = vpack.c.b16 %v1447, %v1439
    %v1880 = vpack.c.b16 %v1448, %v1440
    %v1881 = vpack.c.b16 %v1449, %v1441
    %v1882 = vpack.c.b16 %v1450, %v1442
    %v1883 = vpack.c.b16 %v1451, %v1443
    %v1884 = vpack.c.b16 %v1452, %v1444
    %v1885 = vpack.c.b16 %v1453, %v1445
    %v1886 = vpack.c.b16 %v1454, %v1446
    %v1887 = vpack.c.b16 %v1463, %v1455
    %v1888 = vpack.c.b16 %v1464, %v1456
    %v1889 = vpack.c.b16 %v1465, %v1457
    %v1890 = vpack.c.b16 %v1466, %v1458
    %v1891 = vpack.c.b16 %v1467, %v1459
    %v1892 = vpack.c.b16 %v1468, %v1460
    %v1893 = vpack.c.b16 %v1469, %v1461
    %v1894 = vpack.c.b16 %v1470, %v1462
    %v1895 = vpack.c.b16 %v1479, %v1471
    %v1896 = vpack.c.b16 %v1480, %v1472
    %v1897 = vpack.c.b16 %v1481, %v1473
    %v1898 = vpack.c.b16 %v1482, %v1474
    %v1899 = vpack.c.b16 %v1483, %v1475
    %v1900 = vpack.c.b16 %v1484, %v1476
    %v1901 = vpack.c.b16 %v1485, %v1477
    %v1902 = vpack.c.b16 %v1486, %v1478
    %v1903 = vpack.c.b16 %v1495, %v1487
    %v1904 = vpack.c.b16 %v1496, %v1488
    %v1905 = vpack.c.b16 %v1497, %v1489
    %v1906 = vpack.c.b16 %v1498, %v1490
    %v1907 = vpack.c.b16 %v1499, %v1491
    %v1908 = vpack.c.b16 %v1500, %v1492
    %v1909 = vpack.c.b16 %v1501, %v1493
    %v1910 = vpack.c.b16 %v1502, %v1494
    %v1911 = vpack.c.b16 %v1511, %v1503
    %v1912 = vpack.c.b16 %v1512, %v1504
    %v1913 = vpack.c.b16 %v1513, %v1505
    %v1914 = vpack.c.b16 %v1514, %v1506
    %v1915 = vpack.c.b16 %v1515, %v1507
    %v1916 = vpack.c.b16 %v1516, %v1508
    %v1917 = vpack.c.b16 %v1517, %v1509
    %v1918 = vpack.c.b16 %v1518, %v1510
    %v1919 = vpack.c.b16 %v1527, %v1519
    %v1920 = vpack.c.b16 %v1528, %v1520
    %v1921 = vpack.c.b16 %v1529, %v1521
    %v1922 = vpack.c.b16 %v1530, %v1522
    %v1923 = vpack.c.b16 %v1531, %v1523
    %v1924 = vpack.c.b16 %v1532, %v1524
    %v1925 = vpack.c.b16 %v1533, %v1525
    %v1926 = vpack.c.b16 %v1534, %v1526
    %v1927 = vpack.c.b16 %v1543, %v1535
    %v1928 = vpack.c.b16 %v1544, %v1536
    %v1929 = vpack.c.b16 %v1545, %v1537
    %v1930 = vpack.c.b16 %v1546, %v1538
    %v1931 = vpack.c.b16 %v1547, %v1539
    %v1932 = vpack.c.b16 %v1548, %v1540
    %v1933 = vpack.c.b16 %v1549, %v1541
    %v1934 = vpack.c.b16 %v1550, %v1542
    %v1935 = vpack.c.b16 %v1559, %v1551
    %v1936 = vpack.c.b16 %v1560, %v1552
    %v1937 = vpack.c.b16 %v1561, %v1553
    %v1938 = vpack.c.b16 %v1562, %v1554
    %v1939 = vpack.c.b16 %v1563, %v1555
    %v1940 = vpack.c.b16 %v1564, %v1556
    %v1941 = vpack.c.b16 %v1565, %v1557
    %v1942 = vpack.c.b16 %v1566, %v1558
    %v1943 = vpack.c.b16 %v1575, %v1567
    %v1944 = vpack.c.b16 %v1576, %v1568
    %v1945 = vpack.c.b16 %v1577, %v1569
    %v1946 = vpack.c.b16 %v1578, %v1570
    %v1947 = vpack.c.b16 %v1579, %v1571
    %v1948 = vpack.c.b16 %v1580, %v1572
    %v1949 = vpack.c.b16 %v1581, %v1573
    %v1950 = vpack.c.b16 %v1582, %v1574
    %v1951 = vpack.c.b16 %v1591, %v1583
    %v1952 = vpack.c.b16 %v1592, %v1584
    %v1953 = vpack.c.b16 %v1593, %v1585
    %v1954 = vpack.c.b16 %v1594, %v1586
    %v1955 = vpack.c.b16 %v1595, %v1587
    %v1956 = vpack.c.b16 %v1596, %v1588
    %v1957 = vpack.c.b16 %v1597, %v1589
    %v1958 = vpack.c.b16 %v1598, %v1590
    %v1959 = vpack.c.b16 %v1607, %v1599
    %v1960 = vpack.c.b16 %v1608, %v1600
    %v1961 = vpack.c.b16 %v1609, %v1601
    %v1962 = vpack.c.b16 %v1610, %v1602
    %v1963 = vpack.c.b16 %v1611, %v1603
    %v1964 = vpack.c.b16 %v1612, %v1604
    %v1965 = vpack.c.b16 %v1613, %v1605
    %v1966 = vpack.c.b16 %v1614, %v1606
    %v1967 = vpack.c.b16 %v1623, %v1615
    %v1968 = vpack.c.b16 %v1624, %v1616
    %v1969 = vpack.c.b16 %v1625, %v1617
    %v1970 = vpack.c.b16 %v1626, %v1618
    %v1971 = vpack.c.b16 %v1627, %v1619
    %v1972 = vpack.c.b16 %v1628, %v1620
    %v1973 = vpack.c.b16 %v1629, %v1621
    %v1974 = vpack.c.b16 %v1630, %v1622
    %v1975 = vpack.c.b16 %v1639, %v1631
    %v1976 = vpack.c.b16 %v1640, %v1632
    %v1977 = vpack.c.b16 %v1641, %v1633
    %v1978 = vpack.c.b16 %v1642, %v1634
    %v1979 = vpack.c.b16 %v1643, %v1635
    %v1980 = vpack.c.b16 %v1644, %v1636
    %v1981 = vpack.c.b16 %v1645, %v1637
    %v1982 = vpack.c.b16 %v1646, %v1638
    %v1983 = vpack.c.b16 %v1655, %v1647
    %v1984 = vpack.c.b16 %v1656, %v1648
    %v1985 = vpack.c.b16 %v1657, %v1649
    %v1986 = vpack.c.b16 %v1658, %v1650
    %v1987 = vpack.c.b16 %v1659, %v1651
    %v1988 = vpack.c.b16 %v1660, %v1652
    %v1989 = vpack.c.b16 %v1661, %v1653
    %v1990 = vpack.c.b16 %v1662, %v1654
    %v1991 = vpack.c.b16 %v1671, %v1663
    %v1992 = vpack.c.b16 %v1672, %v1664
    %v1993 = vpack.c.b16 %v1673, %v1665
    %v1994 = vpack.c.b16 %v1674, %v1666
    %v1995 = vpack.c.b16 %v1675, %v1667
    %v1996 = vpack.c.b16 %v1676, %v1668
    %v1997 = vpack.c.b16 %v1677, %v1669
    %v1998 = vpack.c.b16 %v1678, %v1670
    %v1999 = vpack.c.b16 %v1687, %v1679
    %v2000 = vpack.c.b16 %v1688, %v1680
    %v2001 = vpack.c.b16 %v1689, %v1681
    %v2002 = vpack.c.b16 %v1690, %v1682
    %v2003 = vpack.c.b16 %v1691, %v1683
    %v2004 = vpack.c.b16 %v1692, %v1684
    %v2005 = vpack.c.b16 %v1693, %v1685
    %v2006 = vpack.c.b16 %v1694, %v1686
    %v2007 = vpack.c.b16 %v1703, %v1695
    %v2008 = vpack.c.b16 %v1704, %v1696
    %v2009 = vpack.c.b16 %v1705, %v1697
    %v2010 = vpack.c.b16 %v1706, %v1698
    %v2011 = vpack.c.b16 %v1707, %v1699
    %v2012 = vpack.c.b16 %v1708, %v1700
    %v2013 = vpack.c.b16 %v1709, %v1701
    %v2014 = vpack.c.b16 %v1710, %v1702
    %v2015 = vpack.c.b16 %v1719, %v1711
    %v2016 = vpack.c.b16 %v1720, %v1712
    %v2017 = vpack.c.b16 %v1721, %v1713
    %v2018 = vpack.c.b16 %v1722, %v1714
    %v2019 = vpack.c.b16 %v1723, %v1715
    %v2020 = vpack.c.b16 %v1724, %v1716
    %v2021 = vpack.c.b16 %v1725, %v1717
    %v2022 = vpack.c.b16 %v1726, %v1718
    %v2023 = vpack.c.b16 %v1735, %v1727
    %v2024 = vpack.c.b16 %v1736, %v1728
    %v2025 = vpack.c.b16 %v1737, %v1729
    %v2026 = vpack.c.b16 %v1738, %v1730
    %v2027 = vpack.c.b16 %v1739, %v1731
    %v2028 = vpack.c.b16 %v1740, %v1732
    %v2029 = vpack.c.b16 %v1741, %v1733
    %v2030 = vpack.c.b16 %v1742, %v1734
    %v2031 = vpack.c.b16 %v1751, %v1743
    %v2032 = vpack.c.b16 %v1752, %v1744
    %v2033 = vpack.c.b16 %v1753, %v1745
    %v2034 = vpack.c.b16 %v1754, %v1746
    %v2035 = vpack.c.b16 %v1755, %v1747
    %v2036 = vpack.c.b16 %v1756, %v1748
    %v2037 = vpack.c.b16 %v1757, %v1749
    %v2038 = vpack.c.b16 %v1758, %v1750
    %v2039 = vpack.c.b16 %v1767, %v1759
    %v2040 = vpack.c.b16 %v1768, %v1760
    %v2041 = vpack.c.b16 %v1769, %v1761
    %v2042 = vpack.c.b16 %v1770, %v1762
    %v2043 = vpack.c.b16 %v1771, %v1763
    %v2044 = vpack.c.b16 %v1772, %v1764
    %v2045 = vpack.c.b16 %v1773, %v1765
    %v2046 = vpack.c.b16 %v1774, %v1766
    %v2047 = vpack.c.b16 %v1783, %v1775
    %v2048 = vpack.c.b16 %v1784, %v1776
    %v2049 = vpack.c.b16 %v1785, %v1777
    %v2050 = vpack.c.b16 %v1786, %v1778
    %v2051 = vpack.c.b16 %v1787, %v1779
    %v2052 = vpack.c.b16 %v1788, %v1780
    %v2053 = vpack.c.b16 %v1789, %v1781
    %v2054 = vpack.c.b16 %v1790, %v1782
    %v2055 = vpack.c.b16 %v1799, %v1791
    %v2056 = vpack.c.b16 %v1800, %v1792
    %v2057 = vpack.c.b16 %v1801, %v1793
    %v2058 = vpack.c.b16 %v1802, %v1794
    %v2059 = vpack.c.b16 %v1803, %v1795
    %v2060 = vpack.c.b16 %v1804, %v1796
    %v2061 = vpack.c.b16 %v1805, %v1797
    %v2062 = vpack.c.b16 %v1806, %v1798
    %2319 = vmatprep.subr.bf16.mxu0 %v1864
    %2320 = vmatpush1.bf16.msra.mxu0 %v1863
    %2321 = vmatprep.subr.bf16.mxu0 %v1856
    %2322 = vmatpush1.bf16.msra.mxu0 %v1855
    %2323 = vmatprep.subr.bf16.mxu0 %v1848
    %2324 = vmatpush1.bf16.msra.mxu0 %v1847
    %2325 = vmatprep.subr.bf16.mxu0 %v1840
    %2326 = vmatpush1.bf16.msra.mxu0 %v1839
    %2327 = vmatprep.subr.bf16.mxu0 %v1832
    %2328 = vmatpush1.bf16.msra.mxu0 %v1831
    %2329 = vmatprep.subr.bf16.mxu0 %v1824
    %2330 = vmatpush1.bf16.msra.mxu0 %v1823
    %2331 = vmatprep.subr.bf16.mxu0 %v1816
    %2332 = vmatpush1.bf16.msra.mxu0 %v1815
    %2333 = vmatprep.subr.bf16.mxu0 %v1808
    %2334 = vmatpush1.bf16.msra.mxu0 %v1807
    %2335 = vmatprep.subr.bf16.mxu0 %v1928
    %2336 = vmatpush2.bf16.msra.mxu0 %v1927
    %2337 = vmatprep.subr.bf16.mxu0 %v1920
    %2338 = vmatpush2.bf16.msra.mxu0 %v1919
    %2339 = vmatprep.subr.bf16.mxu0 %v1912
    %2340 = vmatpush2.bf16.msra.mxu0 %v1911
    %2341 = vmatprep.subr.bf16.mxu0 %v1904
    %2342 = vmatpush2.bf16.msra.mxu0 %v1903
    %2343 = vmatprep.subr.bf16.mxu0 %v1896
    %2344 = vmatpush2.bf16.msra.mxu0 %v1895
    %2345 = vmatprep.subr.bf16.mxu0 %v1888
    %2346 = vmatpush2.bf16.msra.mxu0 %v1887
    %2347 = vmatprep.subr.bf16.mxu0 %v1880
    %2348 = vmatpush2.bf16.msra.mxu0 %v1879
    %2349 = vmatprep.subr.bf16.mxu0 %v1872
    %2350 = vmatpush2.bf16.msra.mxu0 %v1871
    %2351 = vmatprep.mubr.bf16.mxu0 %v738
    %2352 = vmatmul.mubr.bf16.gmra.mxu0 %v737
    %v2353 = vpop.f32.mrf.mxu0
    %v2354 = vadd.f32 %v1002, %v2353
    %v2355 = vpop.f32.mrf.mxu0
    %v2356 = vadd.f32 %v1006, %v2355
    %v2357 = vpop.f32.mrf.mxu0
    %v2358 = vpop.f32.mrf.mxu0
    %2359 = vdwg.mxu0
    %2360 = vmatprep.subr.bf16.mxu0 %v1992
    %2361 = vmatpush1.bf16.msra.mxu0 %v1991
    %2362 = vmatprep.subr.bf16.mxu0 %v1984
    %2363 = vmatpush1.bf16.msra.mxu0 %v1983
    %2364 = vmatprep.subr.bf16.mxu0 %v1976
    %2365 = vmatpush1.bf16.msra.mxu0 %v1975
    %2366 = vmatprep.subr.bf16.mxu0 %v1968
    %2367 = vmatpush1.bf16.msra.mxu0 %v1967
    %2368 = vmatprep.subr.bf16.mxu0 %v1960
    %2369 = vmatpush1.bf16.msra.mxu0 %v1959
    %2370 = vmatprep.subr.bf16.mxu0 %v1952
    %2371 = vmatpush1.bf16.msra.mxu0 %v1951
    %2372 = vmatprep.subr.bf16.mxu0 %v1944
    %2373 = vmatpush1.bf16.msra.mxu0 %v1943
    %2374 = vmatprep.subr.bf16.mxu0 %v1936
    %2375 = vmatpush1.bf16.msra.mxu0 %v1935
    %2376 = vmatprep.subr.bf16.mxu0 %v2056
    %2377 = vmatpush2.bf16.msra.mxu0 %v2055
    %2378 = vmatprep.subr.bf16.mxu0 %v2048
    %2379 = vmatpush2.bf16.msra.mxu0 %v2047
    %2380 = vmatprep.subr.bf16.mxu0 %v2040
    %2381 = vmatpush2.bf16.msra.mxu0 %v2039
    %2382 = vmatprep.subr.bf16.mxu0 %v2032
    %2383 = vmatpush2.bf16.msra.mxu0 %v2031
    %2384 = vmatprep.subr.bf16.mxu0 %v2024
    %2385 = vmatpush2.bf16.msra.mxu0 %v2023
    %2386 = vmatprep.subr.bf16.mxu0 %v2016
    %2387 = vmatpush2.bf16.msra.mxu0 %v2015
    %2388 = vmatprep.subr.bf16.mxu0 %v2008
    %2389 = vmatpush2.bf16.msra.mxu0 %v2007
    %2390 = vmatprep.subr.bf16.mxu0 %v2000
    %2391 = vmatpush2.bf16.msra.mxu0 %v1999
    %2392 = vmatprep.mubr.bf16.mxu0 %v740
    %2393 = vmatmul.mubr.bf16.gmra.mxu0 %v739
    %v2394 = vpop.f32.mrf.mxu0
    %v2395 = vadd.f32 %v2354, %v2394
    %v2396 = vpop.f32.mrf.mxu0
    %v2397 = vadd.f32 %v2356, %v2396
    %v2398 = vpop.f32.mrf.mxu0
    %v2399 = vpop.f32.mrf.mxu0
    %2400 = vdwg.mxu0
    %2401 = vmatprep.subr.bf16.mxu0 %v1866
    %2402 = vmatpush1.bf16.msra.mxu0 %v1865
    %2403 = vmatprep.subr.bf16.mxu0 %v1858
    %2404 = vmatpush1.bf16.msra.mxu0 %v1857
    %2405 = vmatprep.subr.bf16.mxu0 %v1850
    %2406 = vmatpush1.bf16.msra.mxu0 %v1849
    %2407 = vmatprep.subr.bf16.mxu0 %v1842
    %2408 = vmatpush1.bf16.msra.mxu0 %v1841
    %2409 = vmatprep.subr.bf16.mxu0 %v1834
    %2410 = vmatpush1.bf16.msra.mxu0 %v1833
    %2411 = vmatprep.subr.bf16.mxu0 %v1826
    %2412 = vmatpush1.bf16.msra.mxu0 %v1825
    %2413 = vmatprep.subr.bf16.mxu0 %v1818
    %2414 = vmatpush1.bf16.msra.mxu0 %v1817
    %2415 = vmatprep.subr.bf16.mxu0 %v1810
    %2416 = vmatpush1.bf16.msra.mxu0 %v1809
    %2417 = vmatprep.subr.bf16.mxu0 %v1930
    %2418 = vmatpush2.bf16.msra.mxu0 %v1929
    %2419 = vmatprep.subr.bf16.mxu0 %v1922
    %2420 = vmatpush2.bf16.msra.mxu0 %v1921
    %2421 = vmatprep.subr.bf16.mxu0 %v1914
    %2422 = vmatpush2.bf16.msra.mxu0 %v1913
    %2423 = vmatprep.subr.bf16.mxu0 %v1906
    %2424 = vmatpush2.bf16.msra.mxu0 %v1905
    %2425 = vmatprep.subr.bf16.mxu0 %v1898
    %2426 = vmatpush2.bf16.msra.mxu0 %v1897
    %2427 = vmatprep.subr.bf16.mxu0 %v1890
    %2428 = vmatpush2.bf16.msra.mxu0 %v1889
    %2429 = vmatprep.subr.bf16.mxu0 %v1882
    %2430 = vmatpush2.bf16.msra.mxu0 %v1881
    %2431 = vmatprep.subr.bf16.mxu0 %v1874
    %2432 = vmatpush2.bf16.msra.mxu0 %v1873
    %2433 = vmatprep.mubr.bf16.mxu0 %v738
    %2434 = vmatmul.mubr.bf16.gmra.mxu0 %v737
    %v2435 = vpop.f32.mrf.mxu0
    %v2436 = vadd.f32 %v1010, %v2435
    %v2437 = vpop.f32.mrf.mxu0
    %v2438 = vadd.f32 %v1014, %v2437
    %v2439 = vpop.f32.mrf.mxu0
    %v2440 = vpop.f32.mrf.mxu0
    %2441 = vdwg.mxu0
    %2442 = vmatprep.subr.bf16.mxu0 %v1994
    %2443 = vmatpush1.bf16.msra.mxu0 %v1993
    %2444 = vmatprep.subr.bf16.mxu0 %v1986
    %2445 = vmatpush1.bf16.msra.mxu0 %v1985
    %2446 = vmatprep.subr.bf16.mxu0 %v1978
    %2447 = vmatpush1.bf16.msra.mxu0 %v1977
    %2448 = vmatprep.subr.bf16.mxu0 %v1970
    %2449 = vmatpush1.bf16.msra.mxu0 %v1969
    %2450 = vmatprep.subr.bf16.mxu0 %v1962
    %2451 = vmatpush1.bf16.msra.mxu0 %v1961
    %2452 = vmatprep.subr.bf16.mxu0 %v1954
    %2453 = vmatpush1.bf16.msra.mxu0 %v1953
    %2454 = vmatprep.subr.bf16.mxu0 %v1946
    %2455 = vmatpush1.bf16.msra.mxu0 %v1945
    %2456 = vmatprep.subr.bf16.mxu0 %v1938
    %2457 = vmatpush1.bf16.msra.mxu0 %v1937
    %2458 = vmatprep.subr.bf16.mxu0 %v2058
    %2459 = vmatpush2.bf16.msra.mxu0 %v2057
    %2460 = vmatprep.subr.bf16.mxu0 %v2050
    %2461 = vmatpush2.bf16.msra.mxu0 %v2049
    %2462 = vmatprep.subr.bf16.mxu0 %v2042
    %2463 = vmatpush2.bf16.msra.mxu0 %v2041
    %2464 = vmatprep.subr.bf16.mxu0 %v2034
    %2465 = vmatpush2.bf16.msra.mxu0 %v2033
    %2466 = vmatprep.subr.bf16.mxu0 %v2026
    %2467 = vmatpush2.bf16.msra.mxu0 %v2025
    %2468 = vmatprep.subr.bf16.mxu0 %v2018
    %2469 = vmatpush2.bf16.msra.mxu0 %v2017
    %2470 = vmatprep.subr.bf16.mxu0 %v2010
    %2471 = vmatpush2.bf16.msra.mxu0 %v2009
    %2472 = vmatprep.subr.bf16.mxu0 %v2002
    %2473 = vmatpush2.bf16.msra.mxu0 %v2001
    %2474 = vmatprep.mubr.bf16.mxu0 %v740
    %2475 = vmatmul.mubr.bf16.gmra.mxu0 %v739
    %v2476 = vpop.f32.mrf.mxu0
    %v2477 = vadd.f32 %v2436, %v2476
    %v2478 = vpop.f32.mrf.mxu0
    %v2479 = vadd.f32 %v2438, %v2478
    %v2480 = vpop.f32.mrf.mxu0
    %v2481 = vpop.f32.mrf.mxu0
    %2482 = vdwg.mxu0
    %2483 = vmatprep.subr.bf16.mxu0 %v1868
    %2484 = vmatpush1.bf16.msra.mxu0 %v1867
    %2485 = vmatprep.subr.bf16.mxu0 %v1860
    %2486 = vmatpush1.bf16.msra.mxu0 %v1859
    %2487 = vmatprep.subr.bf16.mxu0 %v1852
    %2488 = vmatpush1.bf16.msra.mxu0 %v1851
    %2489 = vmatprep.subr.bf16.mxu0 %v1844
    %2490 = vmatpush1.bf16.msra.mxu0 %v1843
    %2491 = vmatprep.subr.bf16.mxu0 %v1836
    %2492 = vmatpush1.bf16.msra.mxu0 %v1835
    %2493 = vmatprep.subr.bf16.mxu0 %v1828
    %2494 = vmatpush1.bf16.msra.mxu0 %v1827
    %2495 = vmatprep.subr.bf16.mxu0 %v1820
    %2496 = vmatpush1.bf16.msra.mxu0 %v1819
    %2497 = vmatprep.subr.bf16.mxu0 %v1812
    %2498 = vmatpush1.bf16.msra.mxu0 %v1811
    %2499 = vmatprep.subr.bf16.mxu0 %v1932
    %2500 = vmatpush2.bf16.msra.mxu0 %v1931
    %2501 = vmatprep.subr.bf16.mxu0 %v1924
    %2502 = vmatpush2.bf16.msra.mxu0 %v1923
    %2503 = vmatprep.subr.bf16.mxu0 %v1916
    %2504 = vmatpush2.bf16.msra.mxu0 %v1915
    %2505 = vmatprep.subr.bf16.mxu0 %v1908
    %2506 = vmatpush2.bf16.msra.mxu0 %v1907
    %2507 = vmatprep.subr.bf16.mxu0 %v1900
    %2508 = vmatpush2.bf16.msra.mxu0 %v1899
    %2509 = vmatprep.subr.bf16.mxu0 %v1892
    %2510 = vmatpush2.bf16.msra.mxu0 %v1891
    %2511 = vmatprep.subr.bf16.mxu0 %v1884
    %2512 = vmatpush2.bf16.msra.mxu0 %v1883
    %2513 = vmatprep.subr.bf16.mxu0 %v1876
    %2514 = vmatpush2.bf16.msra.mxu0 %v1875
    %2515 = vmatprep.mubr.bf16.mxu0 %v738
    %2516 = vmatmul.mubr.bf16.gmra.mxu0 %v737
    %v2517 = vpop.f32.mrf.mxu0
    %v2518 = vadd.f32 %v1018, %v2517
    %v2519 = vpop.f32.mrf.mxu0
    %v2520 = vadd.f32 %v1022, %v2519
    %v2521 = vpop.f32.mrf.mxu0
    %v2522 = vpop.f32.mrf.mxu0
    %2523 = vdwg.mxu0
    %2524 = vmatprep.subr.bf16.mxu0 %v1996
    %2525 = vmatpush1.bf16.msra.mxu0 %v1995
    %2526 = vmatprep.subr.bf16.mxu0 %v1988
    %2527 = vmatpush1.bf16.msra.mxu0 %v1987
    %2528 = vmatprep.subr.bf16.mxu0 %v1980
    %2529 = vmatpush1.bf16.msra.mxu0 %v1979
    %2530 = vmatprep.subr.bf16.mxu0 %v1972
    %2531 = vmatpush1.bf16.msra.mxu0 %v1971
    %2532 = vmatprep.subr.bf16.mxu0 %v1964
    %2533 = vmatpush1.bf16.msra.mxu0 %v1963
    %2534 = vmatprep.subr.bf16.mxu0 %v1956
    %2535 = vmatpush1.bf16.msra.mxu0 %v1955
    %2536 = vmatprep.subr.bf16.mxu0 %v1948
    %2537 = vmatpush1.bf16.msra.mxu0 %v1947
    %2538 = vmatprep.subr.bf16.mxu0 %v1940
    %2539 = vmatpush1.bf16.msra.mxu0 %v1939
    %2540 = vmatprep.subr.bf16.mxu0 %v2060
    %2541 = vmatpush2.bf16.msra.mxu0 %v2059
    %2542 = vmatprep.subr.bf16.mxu0 %v2052
    %2543 = vmatpush2.bf16.msra.mxu0 %v2051
    %2544 = vmatprep.subr.bf16.mxu0 %v2044
    %2545 = vmatpush2.bf16.msra.mxu0 %v2043
    %2546 = vmatprep.subr.bf16.mxu0 %v2036
    %2547 = vmatpush2.bf16.msra.mxu0 %v2035
    %2548 = vmatprep.subr.bf16.mxu0 %v2028
    %2549 = vmatpush2.bf16.msra.mxu0 %v2027
    %2550 = vmatprep.subr.bf16.mxu0 %v2020
    %2551 = vmatpush2.bf16.msra.mxu0 %v2019
    %2552 = vmatprep.subr.bf16.mxu0 %v2012
    %2553 = vmatpush2.bf16.msra.mxu0 %v2011
    %2554 = vmatprep.subr.bf16.mxu0 %v2004
    %2555 = vmatpush2.bf16.msra.mxu0 %v2003
    %2556 = vmatprep.mubr.bf16.mxu0 %v740
    %2557 = vmatmul.mubr.bf16.gmra.mxu0 %v739
    %v2558 = vpop.f32.mrf.mxu0
    %v2559 = vadd.f32 %v2518, %v2558
    %v2560 = vpop.f32.mrf.mxu0
    %v2561 = vadd.f32 %v2520, %v2560
    %v2562 = vpop.f32.mrf.mxu0
    %v2563 = vpop.f32.mrf.mxu0
    %2564 = vdwg.mxu0
    %2565 = vmatprep.subr.bf16.mxu0 %v1870
    %2566 = vmatpush1.bf16.msra.mxu0 %v1869
    %2567 = vmatprep.subr.bf16.mxu0 %v1862
    %2568 = vmatpush1.bf16.msra.mxu0 %v1861
    %2569 = vmatprep.subr.bf16.mxu0 %v1854
    %2570 = vmatpush1.bf16.msra.mxu0 %v1853
    %2571 = vmatprep.subr.bf16.mxu0 %v1846
    %2572 = vmatpush1.bf16.msra.mxu0 %v1845
    %2573 = vmatprep.subr.bf16.mxu0 %v1838
    %2574 = vmatpush1.bf16.msra.mxu0 %v1837
    %2575 = vmatprep.subr.bf16.mxu0 %v1830
    %2576 = vmatpush1.bf16.msra.mxu0 %v1829
    %2577 = vmatprep.subr.bf16.mxu0 %v1822
    %2578 = vmatpush1.bf16.msra.mxu0 %v1821
    %2579 = vmatprep.subr.bf16.mxu0 %v1814
    %2580 = vmatpush1.bf16.msra.mxu0 %v1813
    %2581 = vmatprep.subr.bf16.mxu0 %v1934
    %2582 = vmatpush2.bf16.msra.mxu0 %v1933
    %2583 = vmatprep.subr.bf16.mxu0 %v1926
    %2584 = vmatpush2.bf16.msra.mxu0 %v1925
    %2585 = vmatprep.subr.bf16.mxu0 %v1918
    %2586 = vmatpush2.bf16.msra.mxu0 %v1917
    %2587 = vmatprep.subr.bf16.mxu0 %v1910
    %2588 = vmatpush2.bf16.msra.mxu0 %v1909
    %2589 = vmatprep.subr.bf16.mxu0 %v1902
    %2590 = vmatpush2.bf16.msra.mxu0 %v1901
    %2591 = vmatprep.subr.bf16.mxu0 %v1894
    %2592 = vmatpush2.bf16.msra.mxu0 %v1893
    %2593 = vmatprep.subr.bf16.mxu0 %v1886
    %2594 = vmatpush2.bf16.msra.mxu0 %v1885
    %2595 = vmatprep.subr.bf16.mxu0 %v1878
    %2596 = vmatpush2.bf16.msra.mxu0 %v1877
    %2597 = vmatprep.mubr.bf16.mxu0 %v738
    %2598 = vmatmul.mubr.bf16.gmra.mxu0 %v737
    %v2599 = vpop.f32.mrf.mxu0
    %v2600 = vadd.f32 %v1026, %v2599
    %v2601 = vpop.f32.mrf.mxu0
    %v2602 = vadd.f32 %v1030, %v2601
    %v2603 = vpop.f32.mrf.mxu0
    %v2604 = vpop.f32.mrf.mxu0
    %2605 = vdwg.mxu0
    %2606 = vmatprep.subr.bf16.mxu0 %v1998
    %2607 = vmatpush1.bf16.msra.mxu0 %v1997
    %2608 = vmatprep.subr.bf16.mxu0 %v1990
    %2609 = vmatpush1.bf16.msra.mxu0 %v1989
    %2610 = vmatprep.subr.bf16.mxu0 %v1982
    %2611 = vmatpush1.bf16.msra.mxu0 %v1981
    %2612 = vmatprep.subr.bf16.mxu0 %v1974
    %2613 = vmatpush1.bf16.msra.mxu0 %v1973
    %2614 = vmatprep.subr.bf16.mxu0 %v1966
    %2615 = vmatpush1.bf16.msra.mxu0 %v1965
    %2616 = vmatprep.subr.bf16.mxu0 %v1958
    %2617 = vmatpush1.bf16.msra.mxu0 %v1957
    %2618 = vmatprep.subr.bf16.mxu0 %v1950
    %2619 = vmatpush1.bf16.msra.mxu0 %v1949
    %2620 = vmatprep.subr.bf16.mxu0 %v1942
    %2621 = vmatpush1.bf16.msra.mxu0 %v1941
    %2622 = vmatprep.subr.bf16.mxu0 %v2062
    %2623 = vmatpush2.bf16.msra.mxu0 %v2061
    %2624 = vmatprep.subr.bf16.mxu0 %v2054
    %2625 = vmatpush2.bf16.msra.mxu0 %v2053
    %2626 = vmatprep.subr.bf16.mxu0 %v2046
    %2627 = vmatpush2.bf16.msra.mxu0 %v2045
    %2628 = vmatprep.subr.bf16.mxu0 %v2038
    %2629 = vmatpush2.bf16.msra.mxu0 %v2037
    %2630 = vmatprep.subr.bf16.mxu0 %v2030
    %2631 = vmatpush2.bf16.msra.mxu0 %v2029
    %2632 = vmatprep.subr.bf16.mxu0 %v2022
    %2633 = vmatpush2.bf16.msra.mxu0 %v2021
    %2634 = vmatprep.subr.bf16.mxu0 %v2014
    %2635 = vmatpush2.bf16.msra.mxu0 %v2013
    %2636 = vmatprep.subr.bf16.mxu0 %v2006
    %2637 = vmatpush2.bf16.msra.mxu0 %v2005
    %2638 = vmatprep.mubr.bf16.mxu0 %v740
    %2639 = vmatmul.mubr.bf16.gmra.mxu0 %v739
    %v2640 = vpop.f32.mrf.mxu0
    %v2641 = vadd.f32 %v2600, %v2640
    %v2642 = vpop.f32.mrf.mxu0
    %v2643 = vadd.f32 %v2602, %v2642
    %v2644 = vpop.f32.mrf.mxu0
    %v2645 = vpop.f32.mrf.mxu0
    %2646 = vdwg.mxu0
    %vm2647 = vcmp.gt.f32.partialorder %v2395, 0.0
    %vm2648 = vcmp.gt.f32.partialorder %v2397, 0.0
    %vm2649 = vcmp.gt.f32.partialorder %v2477, 0.0
    %vm2650 = vcmp.gt.f32.partialorder %v2479, 0.0
    %vm2651 = vcmp.gt.f32.partialorder %v2559, 0.0
    %vm2652 = vcmp.gt.f32.partialorder %v2561, 0.0
    %vm2653 = vcmp.gt.f32.partialorder %v2641, 0.0
    %vm2654 = vcmp.gt.f32.partialorder %v2643, 0.0
    %v2655 = vmul.f32 %v2395, 0.2
    %v2656 = vmul.f32 %v2397, 0.2
    %v2657 = vmul.f32 %v2477, 0.2
    %v2658 = vmul.f32 %v2479, 0.2
    %v2659 = vmul.f32 %v2559, 0.2
    %v2660 = vmul.f32 %v2561, 0.2
    %v2661 = vmul.f32 %v2641, 0.2
    %v2662 = vmul.f32 %v2643, 0.2
    %v2663 = vsel %vm2647, %v2395, %v2655
    %v2664 = vsel %vm2648, %v2397, %v2656
    %v2665 = vsel %vm2649, %v2477, %v2657
    %v2666 = vsel %vm2650, %v2479, %v2658
    %v2667 = vsel %vm2651, %v2559, %v2659
    %v2668 = vsel %vm2652, %v2561, %v2660
    %v2669 = vsel %vm2653, %v2641, %v2661
    %v2670 = vsel %vm2654, %v2643, %v2662
    %v2671 = vpack.c.bf16 %v2663, %v2663
    %v2672 = vpack.c.bf16 %v2664, %v2664
    %v2673 = vpack.c.bf16 %v2665, %v2665
    %v2674 = vpack.c.bf16 %v2666, %v2666
    %v2675 = vpack.c.bf16 %v2667, %v2667
    %v2676 = vpack.c.bf16 %v2668, %v2668
    %v2677 = vpack.c.bf16 %v2669, %v2669
    %v2678 = vpack.c.bf16 %v2670, %v2670
    %v2679 = vld [vmem:[#allocation14] sm:$0xff]
    %v2680 = vld [vmem:[#allocation14 + $0x8] sm:$0xff]
    %v2681 = vld [vmem:[#allocation14 + $0x10] sm:$0xff]
    %v2682 = vld [vmem:[#allocation14 + $0x18] sm:$0xf]
    %v2683 = vld [vmem:[#allocation14 + $0x1c] sm:$0xff]
    %v2684 = vld [vmem:[#allocation14 + $0x24] sm:$0xff]
    %v2685 = vld [vmem:[#allocation14 + $0x2c] sm:$0xff]
    %v2686 = vld [vmem:[#allocation14 + $0x34] sm:$0xf]
    %v2687 = vld [vmem:[#allocation14 + $0x38] sm:$0xff]
    %v2688 = vld [vmem:[#allocation14 + $0x40] sm:$0xff]
    %v2689 = vld [vmem:[#allocation14 + $0x48] sm:$0xff]
    %v2690 = vld [vmem:[#allocation14 + $0x50] sm:$0xf]
    %v2691 = vld [vmem:[#allocation14 + $0x54] sm:$0xff]
    %v2692 = vld [vmem:[#allocation14 + $0x5c] sm:$0xff]
    %v2693 = vld [vmem:[#allocation14 + $0x64] sm:$0xff]
    %v2694 = vld [vmem:[#allocation14 + $0x6c] sm:$0xf]
    %v2695 = vld [vmem:[#allocation14 + $0x70] sm:$0xff]
    %v2696 = vld [vmem:[#allocation14 + $0x78] sm:$0xff]
    %v2697 = vld [vmem:[#allocation14 + $0x80] sm:$0xff]
    %v2698 = vld [vmem:[#allocation14 + $0x88] sm:$0xf]
    %v2699 = vld [vmem:[#allocation14 + $0x8c] sm:$0xff]
    %v2700 = vld [vmem:[#allocation14 + $0x94] sm:$0xff]
    %v2701 = vld [vmem:[#allocation14 + $0x9c] sm:$0xff]
    %v2702 = vld [vmem:[#allocation14 + $0xa4] sm:$0xf]
    %v2703 = vld [vmem:[#allocation14 + $0xa8] sm:$0xff]
    %v2704 = vld [vmem:[#allocation14 + $0xb0] sm:$0xff]
    %v2705 = vld [vmem:[#allocation14 + $0xb8] sm:$0xff]
    %v2706 = vld [vmem:[#allocation14 + $0xc0] sm:$0xf]
    %v2707 = vld [vmem:[#allocation14 + $0xc4] sm:$0xff]
    %v2708 = vld [vmem:[#allocation14 + $0xcc] sm:$0xff]
    %v2709 = vld [vmem:[#allocation14 + $0xd4] sm:$0xff]
    %v2710 = vld [vmem:[#allocation14 + $0xdc] sm:$0xf]
    %v2711 = vld [vmem:[#allocation14 + $0xe0] sm:$0xff]
    %v2712 = vld [vmem:[#allocation14 + $0xe8] sm:$0xff]
    %v2713 = vld [vmem:[#allocation14 + $0xf0] sm:$0xff]
    %v2714 = vld [vmem:[#allocation14 + $0xf8] sm:$0xf]
    %v2715 = vld [vmem:[#allocation14 + $0xfc] sm:$0xff]
    %v2716 = vld [vmem:[#allocation14 + $0x104] sm:$0xff]
    %v2717 = vld [vmem:[#allocation14 + $0x10c] sm:$0xff]
    %v2718 = vld [vmem:[#allocation14 + $0x114] sm:$0xf]
    %v2719 = vld [vmem:[#allocation14 + $0x118] sm:$0xff]
    %v2720 = vld [vmem:[#allocation14 + $0x120] sm:$0xff]
    %v2721 = vld [vmem:[#allocation14 + $0x128] sm:$0xff]
    %v2722 = vld [vmem:[#allocation14 + $0x130] sm:$0xf]
    %v2723 = vld [vmem:[#allocation14 + $0x134] sm:$0xff]
    %v2724 = vld [vmem:[#allocation14 + $0x13c] sm:$0xff]
    %v2725 = vld [vmem:[#allocation14 + $0x144] sm:$0xff]
    %v2726 = vld [vmem:[#allocation14 + $0x14c] sm:$0xf]
    %v2727 = vld [vmem:[#allocation14 + $0x150] sm:$0xff]
    %v2728 = vld [vmem:[#allocation14 + $0x158] sm:$0xff]
    %v2729 = vld [vmem:[#allocation14 + $0x160] sm:$0xff]
    %v2730 = vld [vmem:[#allocation14 + $0x168] sm:$0xf]
    %v2731 = vld [vmem:[#allocation14 + $0x16c] sm:$0xff]
    %v2732 = vld [vmem:[#allocation14 + $0x174] sm:$0xff]
    %v2733 = vld [vmem:[#allocation14 + $0x17c] sm:$0xff]
    %v2734 = vld [vmem:[#allocation14 + $0x184] sm:$0xf]
    %v2735 = vld [vmem:[#allocation14 + $0x188] sm:$0xff]
    %v2736 = vld [vmem:[#allocation14 + $0x190] sm:$0xff]
    %v2737 = vld [vmem:[#allocation14 + $0x198] sm:$0xff]
    %v2738 = vld [vmem:[#allocation14 + $0x1a0] sm:$0xf]
    %v2739 = vld [vmem:[#allocation14 + $0x1a4] sm:$0xff]
    %v2740 = vld [vmem:[#allocation14 + $0x1ac] sm:$0xff]
    %v2741 = vld [vmem:[#allocation14 + $0x1b4] sm:$0xff]
    %v2742 = vld [vmem:[#allocation14 + $0x1bc] sm:$0xf]
    %v2743 = vld [vmem:[#allocation14 + $0x1c0] sm:$0xff]
    %v2744 = vld [vmem:[#allocation14 + $0x1c8] sm:$0xff]
    %v2745 = vld [vmem:[#allocation14 + $0x1d0] sm:$0xff]
    %v2746 = vld [vmem:[#allocation14 + $0x1d8] sm:$0xf]
    %v2747 = vld [vmem:[#allocation14 + $0x1dc] sm:$0xff]
    %v2748 = vld [vmem:[#allocation14 + $0x1e4] sm:$0xff]
    %v2749 = vld [vmem:[#allocation14 + $0x1ec] sm:$0xff]
    %v2750 = vld [vmem:[#allocation14 + $0x1f4] sm:$0xf]
    %v2751 = vld [vmem:[#allocation14 + $0x1f8] sm:$0xff]
    %v2752 = vld [vmem:[#allocation14 + $0x200] sm:$0xff]
    %v2753 = vld [vmem:[#allocation14 + $0x208] sm:$0xff]
    %v2754 = vld [vmem:[#allocation14 + $0x210] sm:$0xf]
    %v2755 = vld [vmem:[#allocation14 + $0x214] sm:$0xff]
    %v2756 = vld [vmem:[#allocation14 + $0x21c] sm:$0xff]
    %v2757 = vld [vmem:[#allocation14 + $0x224] sm:$0xff]
    %v2758 = vld [vmem:[#allocation14 + $0x22c] sm:$0xf]
    %v2759 = vld [vmem:[#allocation14 + $0x230] sm:$0xff]
    %v2760 = vld [vmem:[#allocation14 + $0x238] sm:$0xff]
    %v2761 = vld [vmem:[#allocation14 + $0x240] sm:$0xff]
    %v2762 = vld [vmem:[#allocation14 + $0x248] sm:$0xf]
    %v2763 = vld [vmem:[#allocation14 + $0x24c] sm:$0xff]
    %v2764 = vld [vmem:[#allocation14 + $0x254] sm:$0xff]
    %v2765 = vld [vmem:[#allocation14 + $0x25c] sm:$0xff]
    %v2766 = vld [vmem:[#allocation14 + $0x264] sm:$0xf]
    %v2767 = vld [vmem:[#allocation14 + $0x268] sm:$0xff]
    %v2768 = vld [vmem:[#allocation14 + $0x270] sm:$0xff]
    %v2769 = vld [vmem:[#allocation14 + $0x278] sm:$0xff]
    %v2770 = vld [vmem:[#allocation14 + $0x280] sm:$0xf]
    %v2771 = vld [vmem:[#allocation14 + $0x284] sm:$0xff]
    %v2772 = vld [vmem:[#allocation14 + $0x28c] sm:$0xff]
    %v2773 = vld [vmem:[#allocation14 + $0x294] sm:$0xff]
    %v2774 = vld [vmem:[#allocation14 + $0x29c] sm:$0xf]
    %v2775 = vld [vmem:[#allocation14 + $0x2a0] sm:$0xff]
    %v2776 = vld [vmem:[#allocation14 + $0x2a8] sm:$0xff]
    %v2777 = vld [vmem:[#allocation14 + $0x2b0] sm:$0xff]
    %v2778 = vld [vmem:[#allocation14 + $0x2b8] sm:$0xf]
    %v2779 = vld [vmem:[#allocation14 + $0x2bc] sm:$0xff]
    %v2780 = vld [vmem:[#allocation14 + $0x2c4] sm:$0xff]
    %v2781 = vld [vmem:[#allocation14 + $0x2cc] sm:$0xff]
    %v2782 = vld [vmem:[#allocation14 + $0x2d4] sm:$0xf]
    %v2783 = vld [vmem:[#allocation14 + $0x2d8] sm:$0xff]
    %v2784 = vld [vmem:[#allocation14 + $0x2e0] sm:$0xff]
    %v2785 = vld [vmem:[#allocation14 + $0x2e8] sm:$0xff]
    %v2786 = vld [vmem:[#allocation14 + $0x2f0] sm:$0xf]
    %v2787 = vld [vmem:[#allocation14 + $0x2f4] sm:$0xff]
    %v2788 = vld [vmem:[#allocation14 + $0x2fc] sm:$0xff]
    %v2789 = vld [vmem:[#allocation14 + $0x304] sm:$0xff]
    %v2790 = vld [vmem:[#allocation14 + $0x30c] sm:$0xf]
    %v2791 = vld [vmem:[#allocation14 + $0x310] sm:$0xff]
    %v2792 = vld [vmem:[#allocation14 + $0x318] sm:$0xff]
    %v2793 = vld [vmem:[#allocation14 + $0x320] sm:$0xff]
    %v2794 = vld [vmem:[#allocation14 + $0x328] sm:$0xf]
    %v2795 = vld [vmem:[#allocation14 + $0x32c] sm:$0xff]
    %v2796 = vld [vmem:[#allocation14 + $0x334] sm:$0xff]
    %v2797 = vld [vmem:[#allocation14 + $0x33c] sm:$0xff]
    %v2798 = vld [vmem:[#allocation14 + $0x344] sm:$0xf]
    %v2799 = vld [vmem:[#allocation14 + $0x348] sm:$0xff]
    %v2800 = vld [vmem:[#allocation14 + $0x350] sm:$0xff]
    %v2801 = vld [vmem:[#allocation14 + $0x358] sm:$0xff]
    %v2802 = vld [vmem:[#allocation14 + $0x360] sm:$0xf]
    %v2803 = vld [vmem:[#allocation14 + $0x364] sm:$0xff]
    %v2804 = vld [vmem:[#allocation14 + $0x36c] sm:$0xff]
    %v2805 = vld [vmem:[#allocation14 + $0x374] sm:$0xff]
    %v2806 = vld [vmem:[#allocation14 + $0x37c] sm:$0xf]
    %v2807 = vld [vmem:[#allocation14 + $0x380] sm:$0xff]
    %v2808 = vld [vmem:[#allocation14 + $0x388] sm:$0xff]
    %v2809 = vld [vmem:[#allocation14 + $0x390] sm:$0xff]
    %v2810 = vld [vmem:[#allocation14 + $0x398] sm:$0xf]
    %v2811 = vld [vmem:[#allocation14 + $0x39c] sm:$0xff]
    %v2812 = vld [vmem:[#allocation14 + $0x3a4] sm:$0xff]
    %v2813 = vld [vmem:[#allocation14 + $0x3ac] sm:$0xff]
    %v2814 = vld [vmem:[#allocation14 + $0x3b4] sm:$0xf]
    %v2815 = vld [vmem:[#allocation14 + $0x3b8] sm:$0xff]
    %v2816 = vld [vmem:[#allocation14 + $0x3c0] sm:$0xff]
    %v2817 = vld [vmem:[#allocation14 + $0x3c8] sm:$0xff]
    %v2818 = vld [vmem:[#allocation14 + $0x3d0] sm:$0xf]
    %v2819 = vld [vmem:[#allocation14 + $0x3d4] sm:$0xff]
    %v2820 = vld [vmem:[#allocation14 + $0x3dc] sm:$0xff]
    %v2821 = vld [vmem:[#allocation14 + $0x3e4] sm:$0xff]
    %v2822 = vld [vmem:[#allocation14 + $0x3ec] sm:$0xf]
    %v2823 = vld [vmem:[#allocation14 + $0x3f0] sm:$0xff]
    %v2824 = vld [vmem:[#allocation14 + $0x3f8] sm:$0xff]
    %v2825 = vld [vmem:[#allocation14 + $0x400] sm:$0xff]
    %v2826 = vld [vmem:[#allocation14 + $0x408] sm:$0xf]
    %v2827 = vld [vmem:[#allocation14 + $0x40c] sm:$0xff]
    %v2828 = vld [vmem:[#allocation14 + $0x414] sm:$0xff]
    %v2829 = vld [vmem:[#allocation14 + $0x41c] sm:$0xff]
    %v2830 = vld [vmem:[#allocation14 + $0x424] sm:$0xf]
    %v2831 = vld [vmem:[#allocation14 + $0x428] sm:$0xff]
    %v2832 = vld [vmem:[#allocation14 + $0x430] sm:$0xff]
    %v2833 = vld [vmem:[#allocation14 + $0x438] sm:$0xff]
    %v2834 = vld [vmem:[#allocation14 + $0x440] sm:$0xf]
    %v2835 = vld [vmem:[#allocation14 + $0x444] sm:$0xff]
    %v2836 = vld [vmem:[#allocation14 + $0x44c] sm:$0xff]
    %v2837 = vld [vmem:[#allocation14 + $0x454] sm:$0xff]
    %v2838 = vld [vmem:[#allocation14 + $0x45c] sm:$0xf]
    %v2839 = vld [vmem:[#allocation14 + $0x460] sm:$0xff]
    %v2840 = vld [vmem:[#allocation14 + $0x468] sm:$0xff]
    %v2841 = vld [vmem:[#allocation14 + $0x470] sm:$0xff]
    %v2842 = vld [vmem:[#allocation14 + $0x478] sm:$0xf]
    %v2843 = vld [vmem:[#allocation14 + $0x47c] sm:$0xff]
    %v2844 = vld [vmem:[#allocation14 + $0x484] sm:$0xff]
    %v2845 = vld [vmem:[#allocation14 + $0x48c] sm:$0xff]
    %v2846 = vld [vmem:[#allocation14 + $0x494] sm:$0xf]
    %v2847 = vld [vmem:[#allocation14 + $0x498] sm:$0xff]
    %v2848 = vld [vmem:[#allocation14 + $0x4a0] sm:$0xff]
    %v2849 = vld [vmem:[#allocation14 + $0x4a8] sm:$0xff]
    %v2850 = vld [vmem:[#allocation14 + $0x4b0] sm:$0xf]
    %v2851 = vld [vmem:[#allocation14 + $0x4b4] sm:$0xff]
    %v2852 = vld [vmem:[#allocation14 + $0x4bc] sm:$0xff]
    %v2853 = vld [vmem:[#allocation14 + $0x4c4] sm:$0xff]
    %v2854 = vld [vmem:[#allocation14 + $0x4cc] sm:$0xf]
    %v2855 = vld [vmem:[#allocation14 + $0x4d0] sm:$0xff]
    %v2856 = vld [vmem:[#allocation14 + $0x4d8] sm:$0xff]
    %v2857 = vld [vmem:[#allocation14 + $0x4e0] sm:$0xff]
    %v2858 = vld [vmem:[#allocation14 + $0x4e8] sm:$0xf]
    %v2859 = vld [vmem:[#allocation14 + $0x4ec] sm:$0xff]
    %v2860 = vld [vmem:[#allocation14 + $0x4f4] sm:$0xff]
    %v2861 = vld [vmem:[#allocation14 + $0x4fc] sm:$0xff]
    %v2862 = vld [vmem:[#allocation14 + $0x504] sm:$0xf]
    %v2863 = vld [vmem:[#allocation14 + $0x508] sm:$0xff]
    %v2864 = vld [vmem:[#allocation14 + $0x510] sm:$0xff]
    %v2865 = vld [vmem:[#allocation14 + $0x518] sm:$0xff]
    %v2866 = vld [vmem:[#allocation14 + $0x520] sm:$0xf]
    %v2867 = vld [vmem:[#allocation14 + $0x524] sm:$0xff]
    %v2868 = vld [vmem:[#allocation14 + $0x52c] sm:$0xff]
    %v2869 = vld [vmem:[#allocation14 + $0x534] sm:$0xff]
    %v2870 = vld [vmem:[#allocation14 + $0x53c] sm:$0xf]
    %v2871 = vld [vmem:[#allocation14 + $0x540] sm:$0xff]
    %v2872 = vld [vmem:[#allocation14 + $0x548] sm:$0xff]
    %v2873 = vld [vmem:[#allocation14 + $0x550] sm:$0xff]
    %v2874 = vld [vmem:[#allocation14 + $0x558] sm:$0xf]
    %v2875 = vld [vmem:[#allocation14 + $0x55c] sm:$0xff]
    %v2876 = vld [vmem:[#allocation14 + $0x564] sm:$0xff]
    %v2877 = vld [vmem:[#allocation14 + $0x56c] sm:$0xff]
    %v2878 = vld [vmem:[#allocation14 + $0x574] sm:$0xf]
    %v2879 = vld [vmem:[#allocation14 + $0x578] sm:$0xff]
    %v2880 = vld [vmem:[#allocation14 + $0x580] sm:$0xff]
    %v2881 = vld [vmem:[#allocation14 + $0x588] sm:$0xff]
    %v2882 = vld [vmem:[#allocation14 + $0x590] sm:$0xf]
    %v2883 = vld [vmem:[#allocation14 + $0x594] sm:$0xff]
    %v2884 = vld [vmem:[#allocation14 + $0x59c] sm:$0xff]
    %v2885 = vld [vmem:[#allocation14 + $0x5a4] sm:$0xff]
    %v2886 = vld [vmem:[#allocation14 + $0x5ac] sm:$0xf]
    %v2887 = vld [vmem:[#allocation14 + $0x5b0] sm:$0xff]
    %v2888 = vld [vmem:[#allocation14 + $0x5b8] sm:$0xff]
    %v2889 = vld [vmem:[#allocation14 + $0x5c0] sm:$0xff]
    %v2890 = vld [vmem:[#allocation14 + $0x5c8] sm:$0xf]
    %v2891 = vld [vmem:[#allocation14 + $0x5cc] sm:$0xff]
    %v2892 = vld [vmem:[#allocation14 + $0x5d4] sm:$0xff]
    %v2893 = vld [vmem:[#allocation14 + $0x5dc] sm:$0xff]
    %v2894 = vld [vmem:[#allocation14 + $0x5e4] sm:$0xf]
    %v2895 = vld [vmem:[#allocation14 + $0x5e8] sm:$0xff]
    %v2896 = vld [vmem:[#allocation14 + $0x5f0] sm:$0xff]
    %v2897 = vld [vmem:[#allocation14 + $0x5f8] sm:$0xff]
    %v2898 = vld [vmem:[#allocation14 + $0x600] sm:$0xf]
    %v2899 = vld [vmem:[#allocation14 + $0x604] sm:$0xff]
    %v2900 = vld [vmem:[#allocation14 + $0x60c] sm:$0xff]
    %v2901 = vld [vmem:[#allocation14 + $0x614] sm:$0xff]
    %v2902 = vld [vmem:[#allocation14 + $0x61c] sm:$0xf]
    %v2903 = vld [vmem:[#allocation14 + $0x620] sm:$0xff]
    %v2904 = vld [vmem:[#allocation14 + $0x628] sm:$0xff]
    %v2905 = vld [vmem:[#allocation14 + $0x630] sm:$0xff]
    %v2906 = vld [vmem:[#allocation14 + $0x638] sm:$0xf]
    %v2907 = vld [vmem:[#allocation14 + $0x63c] sm:$0xff]
    %v2908 = vld [vmem:[#allocation14 + $0x644] sm:$0xff]
    %v2909 = vld [vmem:[#allocation14 + $0x64c] sm:$0xff]
    %v2910 = vld [vmem:[#allocation14 + $0x654] sm:$0xf]
    %v2911 = vld [vmem:[#allocation14 + $0x658] sm:$0xff]
    %v2912 = vld [vmem:[#allocation14 + $0x660] sm:$0xff]
    %v2913 = vld [vmem:[#allocation14 + $0x668] sm:$0xff]
    %v2914 = vld [vmem:[#allocation14 + $0x670] sm:$0xf]
    %v2915 = vld [vmem:[#allocation14 + $0x674] sm:$0xff]
    %v2916 = vld [vmem:[#allocation14 + $0x67c] sm:$0xff]
    %v2917 = vld [vmem:[#allocation14 + $0x684] sm:$0xff]
    %v2918 = vld [vmem:[#allocation14 + $0x68c] sm:$0xf]
    %v2919 = vld [vmem:[#allocation14 + $0x690] sm:$0xff]
    %v2920 = vld [vmem:[#allocation14 + $0x698] sm:$0xff]
    %v2921 = vld [vmem:[#allocation14 + $0x6a0] sm:$0xff]
    %v2922 = vld [vmem:[#allocation14 + $0x6a8] sm:$0xf]
    %v2923 = vld [vmem:[#allocation14 + $0x6ac] sm:$0xff]
    %v2924 = vld [vmem:[#allocation14 + $0x6b4] sm:$0xff]
    %v2925 = vld [vmem:[#allocation14 + $0x6bc] sm:$0xff]
    %v2926 = vld [vmem:[#allocation14 + $0x6c4] sm:$0xf]
    %v2927 = vld [vmem:[#allocation14 + $0x6c8] sm:$0xff]
    %v2928 = vld [vmem:[#allocation14 + $0x6d0] sm:$0xff]
    %v2929 = vld [vmem:[#allocation14 + $0x6d8] sm:$0xff]
    %v2930 = vld [vmem:[#allocation14 + $0x6e0] sm:$0xf]
    %v2931 = vld [vmem:[#allocation14 + $0x6e4] sm:$0xff]
    %v2932 = vld [vmem:[#allocation14 + $0x6ec] sm:$0xff]
    %v2933 = vld [vmem:[#allocation14 + $0x6f4] sm:$0xff]
    %v2934 = vld [vmem:[#allocation14 + $0x6fc] sm:$0xf]
    %v2935 = vld [vmem:[#allocation14 + $0x700] sm:$0xff]
    %v2936 = vld [vmem:[#allocation14 + $0x708] sm:$0xff]
    %v2937 = vld [vmem:[#allocation14 + $0x710] sm:$0xff]
    %v2938 = vld [vmem:[#allocation14 + $0x718] sm:$0xf]
    %v2939 = vld [vmem:[#allocation14 + $0x71c] sm:$0xff]
    %v2940 = vld [vmem:[#allocation14 + $0x724] sm:$0xff]
    %v2941 = vld [vmem:[#allocation14 + $0x72c] sm:$0xff]
    %v2942 = vld [vmem:[#allocation14 + $0x734] sm:$0xf]
    %v2943 = vld [vmem:[#allocation14 + $0x738] sm:$0xff]
    %v2944 = vld [vmem:[#allocation14 + $0x740] sm:$0xff]
    %v2945 = vld [vmem:[#allocation14 + $0x748] sm:$0xff]
    %v2946 = vld [vmem:[#allocation14 + $0x750] sm:$0xf]
    %v2947 = vld [vmem:[#allocation14 + $0x754] sm:$0xff]
    %v2948 = vld [vmem:[#allocation14 + $0x75c] sm:$0xff]
    %v2949 = vld [vmem:[#allocation14 + $0x764] sm:$0xff]
    %v2950 = vld [vmem:[#allocation14 + $0x76c] sm:$0xf]
    %v2951 = vld [vmem:[#allocation14 + $0x770] sm:$0xff]
    %v2952 = vld [vmem:[#allocation14 + $0x778] sm:$0xff]
    %v2953 = vld [vmem:[#allocation14 + $0x780] sm:$0xff]
    %v2954 = vld [vmem:[#allocation14 + $0x788] sm:$0xf]
    %v2955 = vld [vmem:[#allocation14 + $0x78c] sm:$0xff]
    %v2956 = vld [vmem:[#allocation14 + $0x794] sm:$0xff]
    %v2957 = vld [vmem:[#allocation14 + $0x79c] sm:$0xff]
    %v2958 = vld [vmem:[#allocation14 + $0x7a4] sm:$0xf]
    %v2959 = vld [vmem:[#allocation14 + $0x7a8] sm:$0xff]
    %v2960 = vld [vmem:[#allocation14 + $0x7b0] sm:$0xff]
    %v2961 = vld [vmem:[#allocation14 + $0x7b8] sm:$0xff]
    %v2962 = vld [vmem:[#allocation14 + $0x7c0] sm:$0xf]
    %v2963 = vld [vmem:[#allocation14 + $0x7c4] sm:$0xff]
    %v2964 = vld [vmem:[#allocation14 + $0x7cc] sm:$0xff]
    %v2965 = vld [vmem:[#allocation14 + $0x7d4] sm:$0xff]
    %v2966 = vld [vmem:[#allocation14 + $0x7dc] sm:$0xf]
    %v2967 = vld [vmem:[#allocation14 + $0x7e0] sm:$0xff]
    %v2968 = vld [vmem:[#allocation14 + $0x7e8] sm:$0xff]
    %v2969 = vld [vmem:[#allocation14 + $0x7f0] sm:$0xff]
    %v2970 = vld [vmem:[#allocation14 + $0x7f8] sm:$0xf]
    %v2971 = vld [vmem:[#allocation14 + $0x7fc] sm:$0xff]
    %v2972 = vld [vmem:[#allocation14 + $0x804] sm:$0xff]
    %v2973 = vld [vmem:[#allocation14 + $0x80c] sm:$0xff]
    %v2974 = vld [vmem:[#allocation14 + $0x814] sm:$0xf]
    %v2975 = vld [vmem:[#allocation14 + $0x818] sm:$0xff]
    %v2976 = vld [vmem:[#allocation14 + $0x820] sm:$0xff]
    %v2977 = vld [vmem:[#allocation14 + $0x828] sm:$0xff]
    %v2978 = vld [vmem:[#allocation14 + $0x830] sm:$0xf]
    %v2979 = vld [vmem:[#allocation14 + $0x834] sm:$0xff]
    %v2980 = vld [vmem:[#allocation14 + $0x83c] sm:$0xff]
    %v2981 = vld [vmem:[#allocation14 + $0x844] sm:$0xff]
    %v2982 = vld [vmem:[#allocation14 + $0x84c] sm:$0xf]
    %v2983 = vld [vmem:[#allocation14 + $0x850] sm:$0xff]
    %v2984 = vld [vmem:[#allocation14 + $0x858] sm:$0xff]
    %v2985 = vld [vmem:[#allocation14 + $0x860] sm:$0xff]
    %v2986 = vld [vmem:[#allocation14 + $0x868] sm:$0xf]
    %v2987 = vld [vmem:[#allocation14 + $0x86c] sm:$0xff]
    %v2988 = vld [vmem:[#allocation14 + $0x874] sm:$0xff]
    %v2989 = vld [vmem:[#allocation14 + $0x87c] sm:$0xff]
    %v2990 = vld [vmem:[#allocation14 + $0x884] sm:$0xf]
    %v2991 = vld [vmem:[#allocation14 + $0x888] sm:$0xff]
    %v2992 = vld [vmem:[#allocation14 + $0x890] sm:$0xff]
    %v2993 = vld [vmem:[#allocation14 + $0x898] sm:$0xff]
    %v2994 = vld [vmem:[#allocation14 + $0x8a0] sm:$0xf]
    %v2995 = vld [vmem:[#allocation14 + $0x8a4] sm:$0xff]
    %v2996 = vld [vmem:[#allocation14 + $0x8ac] sm:$0xff]
    %v2997 = vld [vmem:[#allocation14 + $0x8b4] sm:$0xff]
    %v2998 = vld [vmem:[#allocation14 + $0x8bc] sm:$0xf]
    %v2999 = vld [vmem:[#allocation14 + $0x8c0] sm:$0xff]
    %v3000 = vld [vmem:[#allocation14 + $0x8c8] sm:$0xff]
    %v3001 = vld [vmem:[#allocation14 + $0x8d0] sm:$0xff]
    %v3002 = vld [vmem:[#allocation14 + $0x8d8] sm:$0xf]
    %v3003 = vld [vmem:[#allocation14 + $0x8dc] sm:$0xff]
    %v3004 = vld [vmem:[#allocation14 + $0x8e4] sm:$0xff]
    %v3005 = vld [vmem:[#allocation14 + $0x8ec] sm:$0xff]
    %v3006 = vld [vmem:[#allocation14 + $0x8f4] sm:$0xf]
    %v3007 = vld [vmem:[#allocation14 + $0x8f8] sm:$0xff]
    %v3008 = vld [vmem:[#allocation14 + $0x900] sm:$0xff]
    %v3009 = vld [vmem:[#allocation14 + $0x908] sm:$0xff]
    %v3010 = vld [vmem:[#allocation14 + $0x910] sm:$0xf]
    %v3011 = vld [vmem:[#allocation14 + $0x914] sm:$0xff]
    %v3012 = vld [vmem:[#allocation14 + $0x91c] sm:$0xff]
    %v3013 = vld [vmem:[#allocation14 + $0x924] sm:$0xff]
    %v3014 = vld [vmem:[#allocation14 + $0x92c] sm:$0xf]
    %v3015 = vld [vmem:[#allocation14 + $0x930] sm:$0xff]
    %v3016 = vld [vmem:[#allocation14 + $0x938] sm:$0xff]
    %v3017 = vld [vmem:[#allocation14 + $0x940] sm:$0xff]
    %v3018 = vld [vmem:[#allocation14 + $0x948] sm:$0xf]
    %v3019 = vld [vmem:[#allocation14 + $0x94c] sm:$0xff]
    %v3020 = vld [vmem:[#allocation14 + $0x954] sm:$0xff]
    %v3021 = vld [vmem:[#allocation14 + $0x95c] sm:$0xff]
    %v3022 = vld [vmem:[#allocation14 + $0x964] sm:$0xf]
    %v3023 = vld [vmem:[#allocation14 + $0x968] sm:$0xff]
    %v3024 = vld [vmem:[#allocation14 + $0x970] sm:$0xff]
    %v3025 = vld [vmem:[#allocation14 + $0x978] sm:$0xff]
    %v3026 = vld [vmem:[#allocation14 + $0x980] sm:$0xf]
    %v3027 = vld [vmem:[#allocation14 + $0x984] sm:$0xff]
    %v3028 = vld [vmem:[#allocation14 + $0x98c] sm:$0xff]
    %v3029 = vld [vmem:[#allocation14 + $0x994] sm:$0xff]
    %v3030 = vld [vmem:[#allocation14 + $0x99c] sm:$0xf]
    %v3031 = vld [vmem:[#allocation14 + $0x9a0] sm:$0xff]
    %v3032 = vld [vmem:[#allocation14 + $0x9a8] sm:$0xff]
    %v3033 = vld [vmem:[#allocation14 + $0x9b0] sm:$0xff]
    %v3034 = vld [vmem:[#allocation14 + $0x9b8] sm:$0xf]
    %v3035 = vld [vmem:[#allocation14 + $0x9bc] sm:$0xff]
    %v3036 = vld [vmem:[#allocation14 + $0x9c4] sm:$0xff]
    %v3037 = vld [vmem:[#allocation14 + $0x9cc] sm:$0xff]
    %v3038 = vld [vmem:[#allocation14 + $0x9d4] sm:$0xf]
    %v3039 = vld [vmem:[#allocation14 + $0x9d8] sm:$0xff]
    %v3040 = vld [vmem:[#allocation14 + $0x9e0] sm:$0xff]
    %v3041 = vld [vmem:[#allocation14 + $0x9e8] sm:$0xff]
    %v3042 = vld [vmem:[#allocation14 + $0x9f0] sm:$0xf]
    %v3043 = vld [vmem:[#allocation14 + $0x9f4] sm:$0xff]
    %v3044 = vld [vmem:[#allocation14 + $0x9fc] sm:$0xff]
    %v3045 = vld [vmem:[#allocation14 + $0xa04] sm:$0xff]
    %v3046 = vld [vmem:[#allocation14 + $0xa0c] sm:$0xf]
    %v3047 = vld [vmem:[#allocation14 + $0xa10] sm:$0xff]
    %v3048 = vld [vmem:[#allocation14 + $0xa18] sm:$0xff]
    %v3049 = vld [vmem:[#allocation14 + $0xa20] sm:$0xff]
    %v3050 = vld [vmem:[#allocation14 + $0xa28] sm:$0xf]
    %v3051 = vld [vmem:[#allocation14 + $0xa2c] sm:$0xff]
    %v3052 = vld [vmem:[#allocation14 + $0xa34] sm:$0xff]
    %v3053 = vld [vmem:[#allocation14 + $0xa3c] sm:$0xff]
    %v3054 = vld [vmem:[#allocation14 + $0xa44] sm:$0xf]
    %v3055 = vld [vmem:[#allocation14 + $0xa48] sm:$0xff]
    %v3056 = vld [vmem:[#allocation14 + $0xa50] sm:$0xff]
    %v3057 = vld [vmem:[#allocation14 + $0xa58] sm:$0xff]
    %v3058 = vld [vmem:[#allocation14 + $0xa60] sm:$0xf]
    %v3059 = vld [vmem:[#allocation14 + $0xa64] sm:$0xff]
    %v3060 = vld [vmem:[#allocation14 + $0xa6c] sm:$0xff]
    %v3061 = vld [vmem:[#allocation14 + $0xa74] sm:$0xff]
    %v3062 = vld [vmem:[#allocation14 + $0xa7c] sm:$0xf]
    %v3063 = vld [vmem:[#allocation14 + $0xa80] sm:$0xff]
    %v3064 = vld [vmem:[#allocation14 + $0xa88] sm:$0xff]
    %v3065 = vld [vmem:[#allocation14 + $0xa90] sm:$0xff]
    %v3066 = vld [vmem:[#allocation14 + $0xa98] sm:$0xf]
    %v3067 = vld [vmem:[#allocation14 + $0xa9c] sm:$0xff]
    %v3068 = vld [vmem:[#allocation14 + $0xaa4] sm:$0xff]
    %v3069 = vld [vmem:[#allocation14 + $0xaac] sm:$0xff]
    %v3070 = vld [vmem:[#allocation14 + $0xab4] sm:$0xf]
    %v3071 = vld [vmem:[#allocation14 + $0xab8] sm:$0xff]
    %v3072 = vld [vmem:[#allocation14 + $0xac0] sm:$0xff]
    %v3073 = vld [vmem:[#allocation14 + $0xac8] sm:$0xff]
    %v3074 = vld [vmem:[#allocation14 + $0xad0] sm:$0xf]
    %v3075 = vld [vmem:[#allocation14 + $0xad4] sm:$0xff]
    %v3076 = vld [vmem:[#allocation14 + $0xadc] sm:$0xff]
    %v3077 = vld [vmem:[#allocation14 + $0xae4] sm:$0xff]
    %v3078 = vld [vmem:[#allocation14 + $0xaec] sm:$0xf]
    %v3079 = vld [vmem:[#allocation14 + $0xaf0] sm:$0xff]
    %v3080 = vld [vmem:[#allocation14 + $0xaf8] sm:$0xff]
    %v3081 = vld [vmem:[#allocation14 + $0xb00] sm:$0xff]
    %v3082 = vld [vmem:[#allocation14 + $0xb08] sm:$0xf]
    %v3083 = vld [vmem:[#allocation14 + $0xb0c] sm:$0xff]
    %v3084 = vld [vmem:[#allocation14 + $0xb14] sm:$0xff]
    %v3085 = vld [vmem:[#allocation14 + $0xb1c] sm:$0xff]
    %v3086 = vld [vmem:[#allocation14 + $0xb24] sm:$0xf]
    %v3087 = vld [vmem:[#allocation14 + $0xb28] sm:$0xff]
    %v3088 = vld [vmem:[#allocation14 + $0xb30] sm:$0xff]
    %v3089 = vld [vmem:[#allocation14 + $0xb38] sm:$0xff]
    %v3090 = vld [vmem:[#allocation14 + $0xb40] sm:$0xf]
    %v3091 = vld [vmem:[#allocation14 + $0xb44] sm:$0xff]
    %v3092 = vld [vmem:[#allocation14 + $0xb4c] sm:$0xff]
    %v3093 = vld [vmem:[#allocation14 + $0xb54] sm:$0xff]
    %v3094 = vld [vmem:[#allocation14 + $0xb5c] sm:$0xf]
    %v3095 = vld [vmem:[#allocation14 + $0xb60] sm:$0xff]
    %v3096 = vld [vmem:[#allocation14 + $0xb68] sm:$0xff]
    %v3097 = vld [vmem:[#allocation14 + $0xb70] sm:$0xff]
    %v3098 = vld [vmem:[#allocation14 + $0xb78] sm:$0xf]
    %v3099 = vld [vmem:[#allocation14 + $0xb7c] sm:$0xff]
    %v3100 = vld [vmem:[#allocation14 + $0xb84] sm:$0xff]
    %v3101 = vld [vmem:[#allocation14 + $0xb8c] sm:$0xff]
    %v3102 = vld [vmem:[#allocation14 + $0xb94] sm:$0xf]
    %v3103 = vld [vmem:[#allocation14 + $0xb98] sm:$0xff]
    %v3104 = vld [vmem:[#allocation14 + $0xba0] sm:$0xff]
    %v3105 = vld [vmem:[#allocation14 + $0xba8] sm:$0xff]
    %v3106 = vld [vmem:[#allocation14 + $0xbb0] sm:$0xf]
    %v3107 = vld [vmem:[#allocation14 + $0xbb4] sm:$0xff]
    %v3108 = vld [vmem:[#allocation14 + $0xbbc] sm:$0xff]
    %v3109 = vld [vmem:[#allocation14 + $0xbc4] sm:$0xff]
    %v3110 = vld [vmem:[#allocation14 + $0xbcc] sm:$0xf]
    %v3111 = vld [vmem:[#allocation14 + $0xbd0] sm:$0xff]
    %v3112 = vld [vmem:[#allocation14 + $0xbd8] sm:$0xff]
    %v3113 = vld [vmem:[#allocation14 + $0xbe0] sm:$0xff]
    %v3114 = vld [vmem:[#allocation14 + $0xbe8] sm:$0xf]
    %v3115 = vld [vmem:[#allocation14 + $0xbec] sm:$0xff]
    %v3116 = vld [vmem:[#allocation14 + $0xbf4] sm:$0xff]
    %v3117 = vld [vmem:[#allocation14 + $0xbfc] sm:$0xff]
    %v3118 = vld [vmem:[#allocation14 + $0xc04] sm:$0xf]
    %v3119 = vld [vmem:[#allocation14 + $0xc08] sm:$0xff]
    %v3120 = vld [vmem:[#allocation14 + $0xc10] sm:$0xff]
    %v3121 = vld [vmem:[#allocation14 + $0xc18] sm:$0xff]
    %v3122 = vld [vmem:[#allocation14 + $0xc20] sm:$0xf]
    %v3123 = vld [vmem:[#allocation14 + $0xc24] sm:$0xff]
    %v3124 = vld [vmem:[#allocation14 + $0xc2c] sm:$0xff]
    %v3125 = vld [vmem:[#allocation14 + $0xc34] sm:$0xff]
    %v3126 = vld [vmem:[#allocation14 + $0xc3c] sm:$0xf]
    %v3127 = vld [vmem:[#allocation14 + $0xc40] sm:$0xff]
    %v3128 = vld [vmem:[#allocation14 + $0xc48] sm:$0xff]
    %v3129 = vld [vmem:[#allocation14 + $0xc50] sm:$0xff]
    %v3130 = vld [vmem:[#allocation14 + $0xc58] sm:$0xf]
    %v3131 = vld [vmem:[#allocation14 + $0xc5c] sm:$0xff]
    %v3132 = vld [vmem:[#allocation14 + $0xc64] sm:$0xff]
    %v3133 = vld [vmem:[#allocation14 + $0xc6c] sm:$0xff]
    %v3134 = vld [vmem:[#allocation14 + $0xc74] sm:$0xf]
    %v3135 = vld [vmem:[#allocation14 + $0xc78] sm:$0xff]
    %v3136 = vld [vmem:[#allocation14 + $0xc80] sm:$0xff]
    %v3137 = vld [vmem:[#allocation14 + $0xc88] sm:$0xff]
    %v3138 = vld [vmem:[#allocation14 + $0xc90] sm:$0xf]
    %v3139 = vld [vmem:[#allocation14 + $0xc94] sm:$0xff]
    %v3140 = vld [vmem:[#allocation14 + $0xc9c] sm:$0xff]
    %v3141 = vld [vmem:[#allocation14 + $0xca4] sm:$0xff]
    %v3142 = vld [vmem:[#allocation14 + $0xcac] sm:$0xf]
    %v3143 = vld [vmem:[#allocation14 + $0xcb0] sm:$0xff]
    %v3144 = vld [vmem:[#allocation14 + $0xcb8] sm:$0xff]
    %v3145 = vld [vmem:[#allocation14 + $0xcc0] sm:$0xff]
    %v3146 = vld [vmem:[#allocation14 + $0xcc8] sm:$0xf]
    %v3147 = vld [vmem:[#allocation14 + $0xccc] sm:$0xff]
    %v3148 = vld [vmem:[#allocation14 + $0xcd4] sm:$0xff]
    %v3149 = vld [vmem:[#allocation14 + $0xcdc] sm:$0xff]
    %v3150 = vld [vmem:[#allocation14 + $0xce4] sm:$0xf]
    %v3151 = vld [vmem:[#allocation14 + $0xce8] sm:$0xff]
    %v3152 = vld [vmem:[#allocation14 + $0xcf0] sm:$0xff]
    %v3153 = vld [vmem:[#allocation14 + $0xcf8] sm:$0xff]
    %v3154 = vld [vmem:[#allocation14 + $0xd00] sm:$0xf]
    %v3155 = vld [vmem:[#allocation14 + $0xd04] sm:$0xff]
    %v3156 = vld [vmem:[#allocation14 + $0xd0c] sm:$0xff]
    %v3157 = vld [vmem:[#allocation14 + $0xd14] sm:$0xff]
    %v3158 = vld [vmem:[#allocation14 + $0xd1c] sm:$0xf]
    %v3159 = vld [vmem:[#allocation14 + $0xd20] sm:$0xff]
    %v3160 = vld [vmem:[#allocation14 + $0xd28] sm:$0xff]
    %v3161 = vld [vmem:[#allocation14 + $0xd30] sm:$0xff]
    %v3162 = vld [vmem:[#allocation14 + $0xd38] sm:$0xf]
    %v3163 = vld [vmem:[#allocation14 + $0xd3c] sm:$0xff]
    %v3164 = vld [vmem:[#allocation14 + $0xd44] sm:$0xff]
    %v3165 = vld [vmem:[#allocation14 + $0xd4c] sm:$0xff]
    %v3166 = vld [vmem:[#allocation14 + $0xd54] sm:$0xf]
    %v3167 = vld [vmem:[#allocation14 + $0xd58] sm:$0xff]
    %v3168 = vld [vmem:[#allocation14 + $0xd60] sm:$0xff]
    %v3169 = vld [vmem:[#allocation14 + $0xd68] sm:$0xff]
    %v3170 = vld [vmem:[#allocation14 + $0xd70] sm:$0xf]
    %v3171 = vld [vmem:[#allocation14 + $0xd74] sm:$0xff]
    %v3172 = vld [vmem:[#allocation14 + $0xd7c] sm:$0xff]
    %v3173 = vld [vmem:[#allocation14 + $0xd84] sm:$0xff]
    %v3174 = vld [vmem:[#allocation14 + $0xd8c] sm:$0xf]
    %v3175 = vld [vmem:[#allocation14 + $0xd90] sm:$0xff]
    %v3176 = vld [vmem:[#allocation14 + $0xd98] sm:$0xff]
    %v3177 = vld [vmem:[#allocation14 + $0xda0] sm:$0xff]
    %v3178 = vld [vmem:[#allocation14 + $0xda8] sm:$0xf]
    %v3179 = vld [vmem:[#allocation14 + $0xdac] sm:$0xff]
    %v3180 = vld [vmem:[#allocation14 + $0xdb4] sm:$0xff]
    %v3181 = vld [vmem:[#allocation14 + $0xdbc] sm:$0xff]
    %v3182 = vld [vmem:[#allocation14 + $0xdc4] sm:$0xf]
    %v3183 = vld [vmem:[#allocation14 + $0xdc8] sm:$0xff]
    %v3184 = vld [vmem:[#allocation14 + $0xdd0] sm:$0xff]
    %v3185 = vld [vmem:[#allocation14 + $0xdd8] sm:$0xff]
    %v3186 = vld [vmem:[#allocation14 + $0xde0] sm:$0xf]
    %v3187 = vld [vmem:[#allocation14 + $0xde4] sm:$0xff]
    %v3188 = vld [vmem:[#allocation14 + $0xdec] sm:$0xff]
    %v3189 = vld [vmem:[#allocation14 + $0xdf4] sm:$0xff]
    %v3190 = vld [vmem:[#allocation14 + $0xdfc] sm:$0xf]
    %v3191 = vld [vmem:[#allocation16] sm:$0xff]
    %v3193 = vlaneseq
    %v3194 = vshrl.u32 %v3193, 7
    %v3195 = vsub.s32 0, %v3194
    %v3196 = vrot.slane %v3191, %v3195
    %v3197 = vlaneseq
    %v3198 = vshrl.u32 %v3197, 7
    %v3199 = vsub.s32 1, %v3198
    %v3200 = vrot.slane %v3191, %v3199
    %v3201 = vlaneseq
    %v3202 = vshrl.u32 %v3201, 7
    %v3203 = vsub.s32 2, %v3202
    %v3204 = vrot.slane %v3191, %v3203
    %v3205 = vlaneseq
    %v3206 = vshrl.u32 %v3205, 7
    %v3207 = vsub.s32 3, %v3206
    %v3208 = vrot.slane %v3191, %v3207
    %v3209 = vlaneseq
    %v3210 = vshrl.u32 %v3209, 7
    %v3211 = vsub.s32 4, %v3210
    %v3212 = vrot.slane %v3191, %v3211
    %v3213 = vlaneseq
    %v3214 = vshrl.u32 %v3213, 7
    %v3215 = vsub.s32 5, %v3214
    %v3216 = vrot.slane %v3191, %v3215
    %v3217 = vlaneseq
    %v3218 = vshrl.u32 %v3217, 7
    %v3219 = vsub.s32 6, %v3218
    %v3220 = vrot.slane %v3191, %v3219
    %v3740 = vunpack.c.l.b16 %v2679
    %v3741 = vunpack.c.h.b16 %v2679
    %v3742 = vunpack.c.l.b16 %v2680
    %v3743 = vunpack.c.h.b16 %v2680
    %v3744 = vunpack.c.l.b16 %v2681
    %v3745 = vunpack.c.h.b16 %v2681
    %v3746 = vunpack.c.l.b16 %v2682
    %v3747 = vunpack.c.l.b16 %v2683
    %v3748 = vunpack.c.h.b16 %v2683
    %v3749 = vunpack.c.l.b16 %v2684
    %v3750 = vunpack.c.h.b16 %v2684
    %v3751 = vunpack.c.l.b16 %v2685
    %v3752 = vunpack.c.h.b16 %v2685
    %v3753 = vunpack.c.l.b16 %v2686
    %v3754 = vunpack.c.l.b16 %v2687
    %v3755 = vunpack.c.h.b16 %v2687
    %v3756 = vunpack.c.l.b16 %v2688
    %v3757 = vunpack.c.h.b16 %v2688
    %v3758 = vunpack.c.l.b16 %v2689
    %v3759 = vunpack.c.h.b16 %v2689
    %v3760 = vunpack.c.l.b16 %v2690
    %v3761 = vunpack.c.l.b16 %v2691
    %v3762 = vunpack.c.h.b16 %v2691
    %v3763 = vunpack.c.l.b16 %v2692
    %v3764 = vunpack.c.h.b16 %v2692
    %v3765 = vunpack.c.l.b16 %v2693
    %v3766 = vunpack.c.h.b16 %v2693
    %v3767 = vunpack.c.l.b16 %v2694
    %v3768 = vunpack.c.l.b16 %v2695
    %v3769 = vunpack.c.h.b16 %v2695
    %v3770 = vunpack.c.l.b16 %v2696
    %v3771 = vunpack.c.h.b16 %v2696
    %v3772 = vunpack.c.l.b16 %v2697
    %v3773 = vunpack.c.h.b16 %v2697
    %v3774 = vunpack.c.l.b16 %v2698
    %v3775 = vunpack.c.l.b16 %v2699
    %v3776 = vunpack.c.h.b16 %v2699
    %v3777 = vunpack.c.l.b16 %v2700
    %v3778 = vunpack.c.h.b16 %v2700
    %v3779 = vunpack.c.l.b16 %v2701
    %v3780 = vunpack.c.h.b16 %v2701
    %v3781 = vunpack.c.l.b16 %v2702
    %v3782 = vunpack.c.l.b16 %v2703
    %v3783 = vunpack.c.h.b16 %v2703
    %v3784 = vunpack.c.l.b16 %v2704
    %v3785 = vunpack.c.h.b16 %v2704
    %v3786 = vunpack.c.l.b16 %v2705
    %v3787 = vunpack.c.h.b16 %v2705
    %v3788 = vunpack.c.l.b16 %v2706
    %v3789 = vunpack.c.l.b16 %v2707
    %v3790 = vunpack.c.h.b16 %v2707
    %v3791 = vunpack.c.l.b16 %v2708
    %v3792 = vunpack.c.h.b16 %v2708
    %v3793 = vunpack.c.l.b16 %v2709
    %v3794 = vunpack.c.h.b16 %v2709
    %v3795 = vunpack.c.l.b16 %v2710
    %v3796 = vunpack.c.l.b16 %v2711
    %v3797 = vunpack.c.h.b16 %v2711
    %v3798 = vunpack.c.l.b16 %v2712
    %v3799 = vunpack.c.h.b16 %v2712
    %v3800 = vunpack.c.l.b16 %v2713
    %v3801 = vunpack.c.h.b16 %v2713
    %v3802 = vunpack.c.l.b16 %v2714
    %v3803 = vunpack.c.l.b16 %v2715
    %v3804 = vunpack.c.h.b16 %v2715
    %v3805 = vunpack.c.l.b16 %v2716
    %v3806 = vunpack.c.h.b16 %v2716
    %v3807 = vunpack.c.l.b16 %v2717
    %v3808 = vunpack.c.h.b16 %v2717
    %v3809 = vunpack.c.l.b16 %v2718
    %v3810 = vunpack.c.l.b16 %v2719
    %v3811 = vunpack.c.h.b16 %v2719
    %v3812 = vunpack.c.l.b16 %v2720
    %v3813 = vunpack.c.h.b16 %v2720
    %v3814 = vunpack.c.l.b16 %v2721
    %v3815 = vunpack.c.h.b16 %v2721
    %v3816 = vunpack.c.l.b16 %v2722
    %v3817 = vunpack.c.l.b16 %v2723
    %v3818 = vunpack.c.h.b16 %v2723
    %v3819 = vunpack.c.l.b16 %v2724
    %v3820 = vunpack.c.h.b16 %v2724
    %v3821 = vunpack.c.l.b16 %v2725
    %v3822 = vunpack.c.h.b16 %v2725
    %v3823 = vunpack.c.l.b16 %v2726
    %v3824 = vunpack.c.l.b16 %v2727
    %v3825 = vunpack.c.h.b16 %v2727
    %v3826 = vunpack.c.l.b16 %v2728
    %v3827 = vunpack.c.h.b16 %v2728
    %v3828 = vunpack.c.l.b16 %v2729
    %v3829 = vunpack.c.h.b16 %v2729
    %v3830 = vunpack.c.l.b16 %v2730
    %v3831 = vunpack.c.l.b16 %v2731
    %v3832 = vunpack.c.h.b16 %v2731
    %v3833 = vunpack.c.l.b16 %v2732
    %v3834 = vunpack.c.h.b16 %v2732
    %v3835 = vunpack.c.l.b16 %v2733
    %v3836 = vunpack.c.h.b16 %v2733
    %v3837 = vunpack.c.l.b16 %v2734
    %v3838 = vunpack.c.l.b16 %v2735
    %v3839 = vunpack.c.h.b16 %v2735
    %v3840 = vunpack.c.l.b16 %v2736
    %v3841 = vunpack.c.h.b16 %v2736
    %v3842 = vunpack.c.l.b16 %v2737
    %v3843 = vunpack.c.h.b16 %v2737
    %v3844 = vunpack.c.l.b16 %v2738
    %v3845 = vunpack.c.l.b16 %v2739
    %v3846 = vunpack.c.h.b16 %v2739
    %v3847 = vunpack.c.l.b16 %v2740
    %v3848 = vunpack.c.h.b16 %v2740
    %v3849 = vunpack.c.l.b16 %v2741
    %v3850 = vunpack.c.h.b16 %v2741
    %v3851 = vunpack.c.l.b16 %v2742
    %v3852 = vunpack.c.l.b16 %v2743
    %v3853 = vunpack.c.h.b16 %v2743
    %v3854 = vunpack.c.l.b16 %v2744
    %v3855 = vunpack.c.h.b16 %v2744
    %v3856 = vunpack.c.l.b16 %v2745
    %v3857 = vunpack.c.h.b16 %v2745
    %v3858 = vunpack.c.l.b16 %v2746
    %v3859 = vunpack.c.l.b16 %v2747
    %v3860 = vunpack.c.h.b16 %v2747
    %v3861 = vunpack.c.l.b16 %v2748
    %v3862 = vunpack.c.h.b16 %v2748
    %v3863 = vunpack.c.l.b16 %v2749
    %v3864 = vunpack.c.h.b16 %v2749
    %v3865 = vunpack.c.l.b16 %v2750
    %v3866 = vunpack.c.l.b16 %v2751
    %v3867 = vunpack.c.h.b16 %v2751
    %v3868 = vunpack.c.l.b16 %v2752
    %v3869 = vunpack.c.h.b16 %v2752
    %v3870 = vunpack.c.l.b16 %v2753
    %v3871 = vunpack.c.h.b16 %v2753
    %v3872 = vunpack.c.l.b16 %v2754
    %v3873 = vunpack.c.l.b16 %v2755
    %v3874 = vunpack.c.h.b16 %v2755
    %v3875 = vunpack.c.l.b16 %v2756
    %v3876 = vunpack.c.h.b16 %v2756
    %v3877 = vunpack.c.l.b16 %v2757
    %v3878 = vunpack.c.h.b16 %v2757
    %v3879 = vunpack.c.l.b16 %v2758
    %v3880 = vunpack.c.l.b16 %v2759
    %v3881 = vunpack.c.h.b16 %v2759
    %v3882 = vunpack.c.l.b16 %v2760
    %v3883 = vunpack.c.h.b16 %v2760
    %v3884 = vunpack.c.l.b16 %v2761
    %v3885 = vunpack.c.h.b16 %v2761
    %v3886 = vunpack.c.l.b16 %v2762
    %v3887 = vunpack.c.l.b16 %v2763
    %v3888 = vunpack.c.h.b16 %v2763
    %v3889 = vunpack.c.l.b16 %v2764
    %v3890 = vunpack.c.h.b16 %v2764
    %v3891 = vunpack.c.l.b16 %v2765
    %v3892 = vunpack.c.h.b16 %v2765
    %v3893 = vunpack.c.l.b16 %v2766
    %v3894 = vunpack.c.l.b16 %v2767
    %v3895 = vunpack.c.h.b16 %v2767
    %v3896 = vunpack.c.l.b16 %v2768
    %v3897 = vunpack.c.h.b16 %v2768
    %v3898 = vunpack.c.l.b16 %v2769
    %v3899 = vunpack.c.h.b16 %v2769
    %v3900 = vunpack.c.l.b16 %v2770
    %v3901 = vunpack.c.l.b16 %v2771
    %v3902 = vunpack.c.h.b16 %v2771
    %v3903 = vunpack.c.l.b16 %v2772
    %v3904 = vunpack.c.h.b16 %v2772
    %v3905 = vunpack.c.l.b16 %v2773
    %v3906 = vunpack.c.h.b16 %v2773
    %v3907 = vunpack.c.l.b16 %v2774
    %v3908 = vunpack.c.l.b16 %v2775
    %v3909 = vunpack.c.h.b16 %v2775
    %v3910 = vunpack.c.l.b16 %v2776
    %v3911 = vunpack.c.h.b16 %v2776
    %v3912 = vunpack.c.l.b16 %v2777
    %v3913 = vunpack.c.h.b16 %v2777
    %v3914 = vunpack.c.l.b16 %v2778
    %v3915 = vunpack.c.l.b16 %v2779
    %v3916 = vunpack.c.h.b16 %v2779
    %v3917 = vunpack.c.l.b16 %v2780
    %v3918 = vunpack.c.h.b16 %v2780
    %v3919 = vunpack.c.l.b16 %v2781
    %v3920 = vunpack.c.h.b16 %v2781
    %v3921 = vunpack.c.l.b16 %v2782
    %v3922 = vunpack.c.l.b16 %v2783
    %v3923 = vunpack.c.h.b16 %v2783
    %v3924 = vunpack.c.l.b16 %v2784
    %v3925 = vunpack.c.h.b16 %v2784
    %v3926 = vunpack.c.l.b16 %v2785
    %v3927 = vunpack.c.h.b16 %v2785
    %v3928 = vunpack.c.l.b16 %v2786
    %v3929 = vunpack.c.l.b16 %v2787
    %v3930 = vunpack.c.h.b16 %v2787
    %v3931 = vunpack.c.l.b16 %v2788
    %v3932 = vunpack.c.h.b16 %v2788
    %v3933 = vunpack.c.l.b16 %v2789
    %v3934 = vunpack.c.h.b16 %v2789
    %v3935 = vunpack.c.l.b16 %v2790
    %v3936 = vunpack.c.l.b16 %v2791
    %v3937 = vunpack.c.h.b16 %v2791
    %v3938 = vunpack.c.l.b16 %v2792
    %v3939 = vunpack.c.h.b16 %v2792
    %v3940 = vunpack.c.l.b16 %v2793
    %v3941 = vunpack.c.h.b16 %v2793
    %v3942 = vunpack.c.l.b16 %v2794
    %v3943 = vunpack.c.l.b16 %v2795
    %v3944 = vunpack.c.h.b16 %v2795
    %v3945 = vunpack.c.l.b16 %v2796
    %v3946 = vunpack.c.h.b16 %v2796
    %v3947 = vunpack.c.l.b16 %v2797
    %v3948 = vunpack.c.h.b16 %v2797
    %v3949 = vunpack.c.l.b16 %v2798
    %v3950 = vunpack.c.l.b16 %v2799
    %v3951 = vunpack.c.h.b16 %v2799
    %v3952 = vunpack.c.l.b16 %v2800
    %v3953 = vunpack.c.h.b16 %v2800
    %v3954 = vunpack.c.l.b16 %v2801
    %v3955 = vunpack.c.h.b16 %v2801
    %v3956 = vunpack.c.l.b16 %v2802
    %v3957 = vunpack.c.l.b16 %v2803
    %v3958 = vunpack.c.h.b16 %v2803
    %v3959 = vunpack.c.l.b16 %v2804
    %v3960 = vunpack.c.h.b16 %v2804
    %v3961 = vunpack.c.l.b16 %v2805
    %v3962 = vunpack.c.h.b16 %v2805
    %v3963 = vunpack.c.l.b16 %v2806
    %v3964 = vunpack.c.l.b16 %v2807
    %v3965 = vunpack.c.h.b16 %v2807
    %v3966 = vunpack.c.l.b16 %v2808
    %v3967 = vunpack.c.h.b16 %v2808
    %v3968 = vunpack.c.l.b16 %v2809
    %v3969 = vunpack.c.h.b16 %v2809
    %v3970 = vunpack.c.l.b16 %v2810
    %v3971 = vunpack.c.l.b16 %v2811
    %v3972 = vunpack.c.h.b16 %v2811
    %v3973 = vunpack.c.l.b16 %v2812
    %v3974 = vunpack.c.h.b16 %v2812
    %v3975 = vunpack.c.l.b16 %v2813
    %v3976 = vunpack.c.h.b16 %v2813
    %v3977 = vunpack.c.l.b16 %v2814
    %v3978 = vunpack.c.l.b16 %v2815
    %v3979 = vunpack.c.h.b16 %v2815
    %v3980 = vunpack.c.l.b16 %v2816
    %v3981 = vunpack.c.h.b16 %v2816
    %v3982 = vunpack.c.l.b16 %v2817
    %v3983 = vunpack.c.h.b16 %v2817
    %v3984 = vunpack.c.l.b16 %v2818
    %v3985 = vunpack.c.l.b16 %v2819
    %v3986 = vunpack.c.h.b16 %v2819
    %v3987 = vunpack.c.l.b16 %v2820
    %v3988 = vunpack.c.h.b16 %v2820
    %v3989 = vunpack.c.l.b16 %v2821
    %v3990 = vunpack.c.h.b16 %v2821
    %v3991 = vunpack.c.l.b16 %v2822
    %v3992 = vunpack.c.l.b16 %v2823
    %v3993 = vunpack.c.h.b16 %v2823
    %v3994 = vunpack.c.l.b16 %v2824
    %v3995 = vunpack.c.h.b16 %v2824
    %v3996 = vunpack.c.l.b16 %v2825
    %v3997 = vunpack.c.h.b16 %v2825
    %v3998 = vunpack.c.l.b16 %v2826
    %v3999 = vunpack.c.l.b16 %v2827
    %v4000 = vunpack.c.h.b16 %v2827
    %v4001 = vunpack.c.l.b16 %v2828
    %v4002 = vunpack.c.h.b16 %v2828
    %v4003 = vunpack.c.l.b16 %v2829
    %v4004 = vunpack.c.h.b16 %v2829
    %v4005 = vunpack.c.l.b16 %v2830
    %v4006 = vunpack.c.l.b16 %v2831
    %v4007 = vunpack.c.h.b16 %v2831
    %v4008 = vunpack.c.l.b16 %v2832
    %v4009 = vunpack.c.h.b16 %v2832
    %v4010 = vunpack.c.l.b16 %v2833
    %v4011 = vunpack.c.h.b16 %v2833
    %v4012 = vunpack.c.l.b16 %v2834
    %v4013 = vunpack.c.l.b16 %v2835
    %v4014 = vunpack.c.h.b16 %v2835
    %v4015 = vunpack.c.l.b16 %v2836
    %v4016 = vunpack.c.h.b16 %v2836
    %v4017 = vunpack.c.l.b16 %v2837
    %v4018 = vunpack.c.h.b16 %v2837
    %v4019 = vunpack.c.l.b16 %v2838
    %v4020 = vunpack.c.l.b16 %v2839
    %v4021 = vunpack.c.h.b16 %v2839
    %v4022 = vunpack.c.l.b16 %v2840
    %v4023 = vunpack.c.h.b16 %v2840
    %v4024 = vunpack.c.l.b16 %v2841
    %v4025 = vunpack.c.h.b16 %v2841
    %v4026 = vunpack.c.l.b16 %v2842
    %v4027 = vunpack.c.l.b16 %v2843
    %v4028 = vunpack.c.h.b16 %v2843
    %v4029 = vunpack.c.l.b16 %v2844
    %v4030 = vunpack.c.h.b16 %v2844
    %v4031 = vunpack.c.l.b16 %v2845
    %v4032 = vunpack.c.h.b16 %v2845
    %v4033 = vunpack.c.l.b16 %v2846
    %v4034 = vunpack.c.l.b16 %v2847
    %v4035 = vunpack.c.h.b16 %v2847
    %v4036 = vunpack.c.l.b16 %v2848
    %v4037 = vunpack.c.h.b16 %v2848
    %v4038 = vunpack.c.l.b16 %v2849
    %v4039 = vunpack.c.h.b16 %v2849
    %v4040 = vunpack.c.l.b16 %v2850
    %v4041 = vunpack.c.l.b16 %v2851
    %v4042 = vunpack.c.h.b16 %v2851
    %v4043 = vunpack.c.l.b16 %v2852
    %v4044 = vunpack.c.h.b16 %v2852
    %v4045 = vunpack.c.l.b16 %v2853
    %v4046 = vunpack.c.h.b16 %v2853
    %v4047 = vunpack.c.l.b16 %v2854
    %v4048 = vunpack.c.l.b16 %v2855
    %v4049 = vunpack.c.h.b16 %v2855
    %v4050 = vunpack.c.l.b16 %v2856
    %v4051 = vunpack.c.h.b16 %v2856
    %v4052 = vunpack.c.l.b16 %v2857
    %v4053 = vunpack.c.h.b16 %v2857
    %v4054 = vunpack.c.l.b16 %v2858
    %v4055 = vunpack.c.l.b16 %v2859
    %v4056 = vunpack.c.h.b16 %v2859
    %v4057 = vunpack.c.l.b16 %v2860
    %v4058 = vunpack.c.h.b16 %v2860
    %v4059 = vunpack.c.l.b16 %v2861
    %v4060 = vunpack.c.h.b16 %v2861
    %v4061 = vunpack.c.l.b16 %v2862
    %v4062 = vunpack.c.l.b16 %v2863
    %v4063 = vunpack.c.h.b16 %v2863
    %v4064 = vunpack.c.l.b16 %v2864
    %v4065 = vunpack.c.h.b16 %v2864
    %v4066 = vunpack.c.l.b16 %v2865
    %v4067 = vunpack.c.h.b16 %v2865
    %v4068 = vunpack.c.l.b16 %v2866
    %v4069 = vunpack.c.l.b16 %v2867
    %v4070 = vunpack.c.h.b16 %v2867
    %v4071 = vunpack.c.l.b16 %v2868
    %v4072 = vunpack.c.h.b16 %v2868
    %v4073 = vunpack.c.l.b16 %v2869
    %v4074 = vunpack.c.h.b16 %v2869
    %v4075 = vunpack.c.l.b16 %v2870
    %v4076 = vunpack.c.l.b16 %v2871
    %v4077 = vunpack.c.h.b16 %v2871
    %v4078 = vunpack.c.l.b16 %v2872
    %v4079 = vunpack.c.h.b16 %v2872
    %v4080 = vunpack.c.l.b16 %v2873
    %v4081 = vunpack.c.h.b16 %v2873
    %v4082 = vunpack.c.l.b16 %v2874
    %v4083 = vunpack.c.l.b16 %v2875
    %v4084 = vunpack.c.h.b16 %v2875
    %v4085 = vunpack.c.l.b16 %v2876
    %v4086 = vunpack.c.h.b16 %v2876
    %v4087 = vunpack.c.l.b16 %v2877
    %v4088 = vunpack.c.h.b16 %v2877
    %v4089 = vunpack.c.l.b16 %v2878
    %v4090 = vunpack.c.l.b16 %v2879
    %v4091 = vunpack.c.h.b16 %v2879
    %v4092 = vunpack.c.l.b16 %v2880
    %v4093 = vunpack.c.h.b16 %v2880
    %v4094 = vunpack.c.l.b16 %v2881
    %v4095 = vunpack.c.h.b16 %v2881
    %v4096 = vunpack.c.l.b16 %v2882
    %v4097 = vunpack.c.l.b16 %v2883
    %v4098 = vunpack.c.h.b16 %v2883
    %v4099 = vunpack.c.l.b16 %v2884
    %v4100 = vunpack.c.h.b16 %v2884
    %v4101 = vunpack.c.l.b16 %v2885
    %v4102 = vunpack.c.h.b16 %v2885
    %v4103 = vunpack.c.l.b16 %v2886
    %v4104 = vunpack.c.l.b16 %v2887
    %v4105 = vunpack.c.h.b16 %v2887
    %v4106 = vunpack.c.l.b16 %v2888
    %v4107 = vunpack.c.h.b16 %v2888
    %v4108 = vunpack.c.l.b16 %v2889
    %v4109 = vunpack.c.h.b16 %v2889
    %v4110 = vunpack.c.l.b16 %v2890
    %v4111 = vunpack.c.l.b16 %v2891
    %v4112 = vunpack.c.h.b16 %v2891
    %v4113 = vunpack.c.l.b16 %v2892
    %v4114 = vunpack.c.h.b16 %v2892
    %v4115 = vunpack.c.l.b16 %v2893
    %v4116 = vunpack.c.h.b16 %v2893
    %v4117 = vunpack.c.l.b16 %v2894
    %v4118 = vunpack.c.l.b16 %v2895
    %v4119 = vunpack.c.h.b16 %v2895
    %v4120 = vunpack.c.l.b16 %v2896
    %v4121 = vunpack.c.h.b16 %v2896
    %v4122 = vunpack.c.l.b16 %v2897
    %v4123 = vunpack.c.h.b16 %v2897
    %v4124 = vunpack.c.l.b16 %v2898
    %v4125 = vunpack.c.l.b16 %v2899
    %v4126 = vunpack.c.h.b16 %v2899
    %v4127 = vunpack.c.l.b16 %v2900
    %v4128 = vunpack.c.h.b16 %v2900
    %v4129 = vunpack.c.l.b16 %v2901
    %v4130 = vunpack.c.h.b16 %v2901
    %v4131 = vunpack.c.l.b16 %v2902
    %v4132 = vunpack.c.l.b16 %v2903
    %v4133 = vunpack.c.h.b16 %v2903
    %v4134 = vunpack.c.l.b16 %v2904
    %v4135 = vunpack.c.h.b16 %v2904
    %v4136 = vunpack.c.l.b16 %v2905
    %v4137 = vunpack.c.h.b16 %v2905
    %v4138 = vunpack.c.l.b16 %v2906
    %v4139 = vunpack.c.l.b16 %v2907
    %v4140 = vunpack.c.h.b16 %v2907
    %v4141 = vunpack.c.l.b16 %v2908
    %v4142 = vunpack.c.h.b16 %v2908
    %v4143 = vunpack.c.l.b16 %v2909
    %v4144 = vunpack.c.h.b16 %v2909
    %v4145 = vunpack.c.l.b16 %v2910
    %v4146 = vunpack.c.l.b16 %v2911
    %v4147 = vunpack.c.h.b16 %v2911
    %v4148 = vunpack.c.l.b16 %v2912
    %v4149 = vunpack.c.h.b16 %v2912
    %v4150 = vunpack.c.l.b16 %v2913
    %v4151 = vunpack.c.h.b16 %v2913
    %v4152 = vunpack.c.l.b16 %v2914
    %v4153 = vunpack.c.l.b16 %v2915
    %v4154 = vunpack.c.h.b16 %v2915
    %v4155 = vunpack.c.l.b16 %v2916
    %v4156 = vunpack.c.h.b16 %v2916
    %v4157 = vunpack.c.l.b16 %v2917
    %v4158 = vunpack.c.h.b16 %v2917
    %v4159 = vunpack.c.l.b16 %v2918
    %v4160 = vunpack.c.l.b16 %v2919
    %v4161 = vunpack.c.h.b16 %v2919
    %v4162 = vunpack.c.l.b16 %v2920
    %v4163 = vunpack.c.h.b16 %v2920
    %v4164 = vunpack.c.l.b16 %v2921
    %v4165 = vunpack.c.h.b16 %v2921
    %v4166 = vunpack.c.l.b16 %v2922
    %v4167 = vunpack.c.l.b16 %v2923
    %v4168 = vunpack.c.h.b16 %v2923
    %v4169 = vunpack.c.l.b16 %v2924
    %v4170 = vunpack.c.h.b16 %v2924
    %v4171 = vunpack.c.l.b16 %v2925
    %v4172 = vunpack.c.h.b16 %v2925
    %v4173 = vunpack.c.l.b16 %v2926
    %v4174 = vunpack.c.l.b16 %v2927
    %v4175 = vunpack.c.h.b16 %v2927
    %v4176 = vunpack.c.l.b16 %v2928
    %v4177 = vunpack.c.h.b16 %v2928
    %v4178 = vunpack.c.l.b16 %v2929
    %v4179 = vunpack.c.h.b16 %v2929
    %v4180 = vunpack.c.l.b16 %v2930
    %v4181 = vunpack.c.l.b16 %v2931
    %v4182 = vunpack.c.h.b16 %v2931
    %v4183 = vunpack.c.l.b16 %v2932
    %v4184 = vunpack.c.h.b16 %v2932
    %v4185 = vunpack.c.l.b16 %v2933
    %v4186 = vunpack.c.h.b16 %v2933
    %v4187 = vunpack.c.l.b16 %v2934
    %v4188 = vunpack.c.l.b16 %v2935
    %v4189 = vunpack.c.h.b16 %v2935
    %v4190 = vunpack.c.l.b16 %v2936
    %v4191 = vunpack.c.h.b16 %v2936
    %v4192 = vunpack.c.l.b16 %v2937
    %v4193 = vunpack.c.h.b16 %v2937
    %v4194 = vunpack.c.l.b16 %v2938
    %v4195 = vunpack.c.l.b16 %v2939
    %v4196 = vunpack.c.h.b16 %v2939
    %v4197 = vunpack.c.l.b16 %v2940
    %v4198 = vunpack.c.h.b16 %v2940
    %v4199 = vunpack.c.l.b16 %v2941
    %v4200 = vunpack.c.h.b16 %v2941
    %v4201 = vunpack.c.l.b16 %v2942
    %v4202 = vunpack.c.l.b16 %v2943
    %v4203 = vunpack.c.h.b16 %v2943
    %v4204 = vunpack.c.l.b16 %v2944
    %v4205 = vunpack.c.h.b16 %v2944
    %v4206 = vunpack.c.l.b16 %v2945
    %v4207 = vunpack.c.h.b16 %v2945
    %v4208 = vunpack.c.l.b16 %v2946
    %v4209 = vunpack.c.l.b16 %v2947
    %v4210 = vunpack.c.h.b16 %v2947
    %v4211 = vunpack.c.l.b16 %v2948
    %v4212 = vunpack.c.h.b16 %v2948
    %v4213 = vunpack.c.l.b16 %v2949
    %v4214 = vunpack.c.h.b16 %v2949
    %v4215 = vunpack.c.l.b16 %v2950
    %v4216 = vunpack.c.l.b16 %v2951
    %v4217 = vunpack.c.h.b16 %v2951
    %v4218 = vunpack.c.l.b16 %v2952
    %v4219 = vunpack.c.h.b16 %v2952
    %v4220 = vunpack.c.l.b16 %v2953
    %v4221 = vunpack.c.h.b16 %v2953
    %v4222 = vunpack.c.l.b16 %v2954
    %v4223 = vunpack.c.l.b16 %v2955
    %v4224 = vunpack.c.h.b16 %v2955
    %v4225 = vunpack.c.l.b16 %v2956
    %v4226 = vunpack.c.h.b16 %v2956
    %v4227 = vunpack.c.l.b16 %v2957
    %v4228 = vunpack.c.h.b16 %v2957
    %v4229 = vunpack.c.l.b16 %v2958
    %v4230 = vunpack.c.l.b16 %v2959
    %v4231 = vunpack.c.h.b16 %v2959
    %v4232 = vunpack.c.l.b16 %v2960
    %v4233 = vunpack.c.h.b16 %v2960
    %v4234 = vunpack.c.l.b16 %v2961
    %v4235 = vunpack.c.h.b16 %v2961
    %v4236 = vunpack.c.l.b16 %v2962
    %v4237 = vunpack.c.l.b16 %v2963
    %v4238 = vunpack.c.h.b16 %v2963
    %v4239 = vunpack.c.l.b16 %v2964
    %v4240 = vunpack.c.h.b16 %v2964
    %v4241 = vunpack.c.l.b16 %v2965
    %v4242 = vunpack.c.h.b16 %v2965
    %v4243 = vunpack.c.l.b16 %v2966
    %v4244 = vunpack.c.l.b16 %v2967
    %v4245 = vunpack.c.h.b16 %v2967
    %v4246 = vunpack.c.l.b16 %v2968
    %v4247 = vunpack.c.h.b16 %v2968
    %v4248 = vunpack.c.l.b16 %v2969
    %v4249 = vunpack.c.h.b16 %v2969
    %v4250 = vunpack.c.l.b16 %v2970
    %v4251 = vunpack.c.l.b16 %v2971
    %v4252 = vunpack.c.h.b16 %v2971
    %v4253 = vunpack.c.l.b16 %v2972
    %v4254 = vunpack.c.h.b16 %v2972
    %v4255 = vunpack.c.l.b16 %v2973
    %v4256 = vunpack.c.h.b16 %v2973
    %v4257 = vunpack.c.l.b16 %v2974
    %v4258 = vunpack.c.l.b16 %v2975
    %v4259 = vunpack.c.h.b16 %v2975
    %v4260 = vunpack.c.l.b16 %v2976
    %v4261 = vunpack.c.h.b16 %v2976
    %v4262 = vunpack.c.l.b16 %v2977
    %v4263 = vunpack.c.h.b16 %v2977
    %v4264 = vunpack.c.l.b16 %v2978
    %v4265 = vunpack.c.l.b16 %v2979
    %v4266 = vunpack.c.h.b16 %v2979
    %v4267 = vunpack.c.l.b16 %v2980
    %v4268 = vunpack.c.h.b16 %v2980
    %v4269 = vunpack.c.l.b16 %v2981
    %v4270 = vunpack.c.h.b16 %v2981
    %v4271 = vunpack.c.l.b16 %v2982
    %v4272 = vunpack.c.l.b16 %v2983
    %v4273 = vunpack.c.h.b16 %v2983
    %v4274 = vunpack.c.l.b16 %v2984
    %v4275 = vunpack.c.h.b16 %v2984
    %v4276 = vunpack.c.l.b16 %v2985
    %v4277 = vunpack.c.h.b16 %v2985
    %v4278 = vunpack.c.l.b16 %v2986
    %v4279 = vunpack.c.l.b16 %v2987
    %v4280 = vunpack.c.h.b16 %v2987
    %v4281 = vunpack.c.l.b16 %v2988
    %v4282 = vunpack.c.h.b16 %v2988
    %v4283 = vunpack.c.l.b16 %v2989
    %v4284 = vunpack.c.h.b16 %v2989
    %v4285 = vunpack.c.l.b16 %v2990
    %v4286 = vunpack.c.l.b16 %v2991
    %v4287 = vunpack.c.h.b16 %v2991
    %v4288 = vunpack.c.l.b16 %v2992
    %v4289 = vunpack.c.h.b16 %v2992
    %v4290 = vunpack.c.l.b16 %v2993
    %v4291 = vunpack.c.h.b16 %v2993
    %v4292 = vunpack.c.l.b16 %v2994
    %v4293 = vunpack.c.l.b16 %v2995
    %v4294 = vunpack.c.h.b16 %v2995
    %v4295 = vunpack.c.l.b16 %v2996
    %v4296 = vunpack.c.h.b16 %v2996
    %v4297 = vunpack.c.l.b16 %v2997
    %v4298 = vunpack.c.h.b16 %v2997
    %v4299 = vunpack.c.l.b16 %v2998
    %v4300 = vunpack.c.l.b16 %v2999
    %v4301 = vunpack.c.h.b16 %v2999
    %v4302 = vunpack.c.l.b16 %v3000
    %v4303 = vunpack.c.h.b16 %v3000
    %v4304 = vunpack.c.l.b16 %v3001
    %v4305 = vunpack.c.h.b16 %v3001
    %v4306 = vunpack.c.l.b16 %v3002
    %v4307 = vunpack.c.l.b16 %v3003
    %v4308 = vunpack.c.h.b16 %v3003
    %v4309 = vunpack.c.l.b16 %v3004
    %v4310 = vunpack.c.h.b16 %v3004
    %v4311 = vunpack.c.l.b16 %v3005
    %v4312 = vunpack.c.h.b16 %v3005
    %v4313 = vunpack.c.l.b16 %v3006
    %v4314 = vunpack.c.l.b16 %v3007
    %v4315 = vunpack.c.h.b16 %v3007
    %v4316 = vunpack.c.l.b16 %v3008
    %v4317 = vunpack.c.h.b16 %v3008
    %v4318 = vunpack.c.l.b16 %v3009
    %v4319 = vunpack.c.h.b16 %v3009
    %v4320 = vunpack.c.l.b16 %v3010
    %v4321 = vunpack.c.l.b16 %v3011
    %v4322 = vunpack.c.h.b16 %v3011
    %v4323 = vunpack.c.l.b16 %v3012
    %v4324 = vunpack.c.h.b16 %v3012
    %v4325 = vunpack.c.l.b16 %v3013
    %v4326 = vunpack.c.h.b16 %v3013
    %v4327 = vunpack.c.l.b16 %v3014
    %v4328 = vunpack.c.l.b16 %v3015
    %v4329 = vunpack.c.h.b16 %v3015
    %v4330 = vunpack.c.l.b16 %v3016
    %v4331 = vunpack.c.h.b16 %v3016
    %v4332 = vunpack.c.l.b16 %v3017
    %v4333 = vunpack.c.h.b16 %v3017
    %v4334 = vunpack.c.l.b16 %v3018
    %v4335 = vunpack.c.l.b16 %v3019
    %v4336 = vunpack.c.h.b16 %v3019
    %v4337 = vunpack.c.l.b16 %v3020
    %v4338 = vunpack.c.h.b16 %v3020
    %v4339 = vunpack.c.l.b16 %v3021
    %v4340 = vunpack.c.h.b16 %v3021
    %v4341 = vunpack.c.l.b16 %v3022
    %v4342 = vunpack.c.l.b16 %v3023
    %v4343 = vunpack.c.h.b16 %v3023
    %v4344 = vunpack.c.l.b16 %v3024
    %v4345 = vunpack.c.h.b16 %v3024
    %v4346 = vunpack.c.l.b16 %v3025
    %v4347 = vunpack.c.h.b16 %v3025
    %v4348 = vunpack.c.l.b16 %v3026
    %v4349 = vunpack.c.l.b16 %v3027
    %v4350 = vunpack.c.h.b16 %v3027
    %v4351 = vunpack.c.l.b16 %v3028
    %v4352 = vunpack.c.h.b16 %v3028
    %v4353 = vunpack.c.l.b16 %v3029
    %v4354 = vunpack.c.h.b16 %v3029
    %v4355 = vunpack.c.l.b16 %v3030
    %v4356 = vunpack.c.l.b16 %v3031
    %v4357 = vunpack.c.h.b16 %v3031
    %v4358 = vunpack.c.l.b16 %v3032
    %v4359 = vunpack.c.h.b16 %v3032
    %v4360 = vunpack.c.l.b16 %v3033
    %v4361 = vunpack.c.h.b16 %v3033
    %v4362 = vunpack.c.l.b16 %v3034
    %v4363 = vunpack.c.l.b16 %v3035
    %v4364 = vunpack.c.h.b16 %v3035
    %v4365 = vunpack.c.l.b16 %v3036
    %v4366 = vunpack.c.h.b16 %v3036
    %v4367 = vunpack.c.l.b16 %v3037
    %v4368 = vunpack.c.h.b16 %v3037
    %v4369 = vunpack.c.l.b16 %v3038
    %v4370 = vunpack.c.l.b16 %v3039
    %v4371 = vunpack.c.h.b16 %v3039
    %v4372 = vunpack.c.l.b16 %v3040
    %v4373 = vunpack.c.h.b16 %v3040
    %v4374 = vunpack.c.l.b16 %v3041
    %v4375 = vunpack.c.h.b16 %v3041
    %v4376 = vunpack.c.l.b16 %v3042
    %v4377 = vunpack.c.l.b16 %v3043
    %v4378 = vunpack.c.h.b16 %v3043
    %v4379 = vunpack.c.l.b16 %v3044
    %v4380 = vunpack.c.h.b16 %v3044
    %v4381 = vunpack.c.l.b16 %v3045
    %v4382 = vunpack.c.h.b16 %v3045
    %v4383 = vunpack.c.l.b16 %v3046
    %v4384 = vunpack.c.l.b16 %v3047
    %v4385 = vunpack.c.h.b16 %v3047
    %v4386 = vunpack.c.l.b16 %v3048
    %v4387 = vunpack.c.h.b16 %v3048
    %v4388 = vunpack.c.l.b16 %v3049
    %v4389 = vunpack.c.h.b16 %v3049
    %v4390 = vunpack.c.l.b16 %v3050
    %v4391 = vunpack.c.l.b16 %v3051
    %v4392 = vunpack.c.h.b16 %v3051
    %v4393 = vunpack.c.l.b16 %v3052
    %v4394 = vunpack.c.h.b16 %v3052
    %v4395 = vunpack.c.l.b16 %v3053
    %v4396 = vunpack.c.h.b16 %v3053
    %v4397 = vunpack.c.l.b16 %v3054
    %v4398 = vunpack.c.l.b16 %v3055
    %v4399 = vunpack.c.h.b16 %v3055
    %v4400 = vunpack.c.l.b16 %v3056
    %v4401 = vunpack.c.h.b16 %v3056
    %v4402 = vunpack.c.l.b16 %v3057
    %v4403 = vunpack.c.h.b16 %v3057
    %v4404 = vunpack.c.l.b16 %v3058
    %v4405 = vunpack.c.l.b16 %v3059
    %v4406 = vunpack.c.h.b16 %v3059
    %v4407 = vunpack.c.l.b16 %v3060
    %v4408 = vunpack.c.h.b16 %v3060
    %v4409 = vunpack.c.l.b16 %v3061
    %v4410 = vunpack.c.h.b16 %v3061
    %v4411 = vunpack.c.l.b16 %v3062
    %v4412 = vunpack.c.l.b16 %v3063
    %v4413 = vunpack.c.h.b16 %v3063
    %v4414 = vunpack.c.l.b16 %v3064
    %v4415 = vunpack.c.h.b16 %v3064
    %v4416 = vunpack.c.l.b16 %v3065
    %v4417 = vunpack.c.h.b16 %v3065
    %v4418 = vunpack.c.l.b16 %v3066
    %v4419 = vunpack.c.l.b16 %v3067
    %v4420 = vunpack.c.h.b16 %v3067
    %v4421 = vunpack.c.l.b16 %v3068
    %v4422 = vunpack.c.h.b16 %v3068
    %v4423 = vunpack.c.l.b16 %v3069
    %v4424 = vunpack.c.h.b16 %v3069
    %v4425 = vunpack.c.l.b16 %v3070
    %v4426 = vunpack.c.l.b16 %v3071
    %v4427 = vunpack.c.h.b16 %v3071
    %v4428 = vunpack.c.l.b16 %v3072
    %v4429 = vunpack.c.h.b16 %v3072
    %v4430 = vunpack.c.l.b16 %v3073
    %v4431 = vunpack.c.h.b16 %v3073
    %v4432 = vunpack.c.l.b16 %v3074
    %v4433 = vunpack.c.l.b16 %v3075
    %v4434 = vunpack.c.h.b16 %v3075
    %v4435 = vunpack.c.l.b16 %v3076
    %v4436 = vunpack.c.h.b16 %v3076
    %v4437 = vunpack.c.l.b16 %v3077
    %v4438 = vunpack.c.h.b16 %v3077
    %v4439 = vunpack.c.l.b16 %v3078
    %v4440 = vunpack.c.l.b16 %v3079
    %v4441 = vunpack.c.h.b16 %v3079
    %v4442 = vunpack.c.l.b16 %v3080
    %v4443 = vunpack.c.h.b16 %v3080
    %v4444 = vunpack.c.l.b16 %v3081
    %v4445 = vunpack.c.h.b16 %v3081
    %v4446 = vunpack.c.l.b16 %v3082
    %v4447 = vunpack.c.l.b16 %v3083
    %v4448 = vunpack.c.h.b16 %v3083
    %v4449 = vunpack.c.l.b16 %v3084
    %v4450 = vunpack.c.h.b16 %v3084
    %v4451 = vunpack.c.l.b16 %v3085
    %v4452 = vunpack.c.h.b16 %v3085
    %v4453 = vunpack.c.l.b16 %v3086
    %v4454 = vunpack.c.l.b16 %v3087
    %v4455 = vunpack.c.h.b16 %v3087
    %v4456 = vunpack.c.l.b16 %v3088
    %v4457 = vunpack.c.h.b16 %v3088
    %v4458 = vunpack.c.l.b16 %v3089
    %v4459 = vunpack.c.h.b16 %v3089
    %v4460 = vunpack.c.l.b16 %v3090
    %v4461 = vunpack.c.l.b16 %v3091
    %v4462 = vunpack.c.h.b16 %v3091
    %v4463 = vunpack.c.l.b16 %v3092
    %v4464 = vunpack.c.h.b16 %v3092
    %v4465 = vunpack.c.l.b16 %v3093
    %v4466 = vunpack.c.h.b16 %v3093
    %v4467 = vunpack.c.l.b16 %v3094
    %v4468 = vunpack.c.l.b16 %v3095
    %v4469 = vunpack.c.h.b16 %v3095
    %v4470 = vunpack.c.l.b16 %v3096
    %v4471 = vunpack.c.h.b16 %v3096
    %v4472 = vunpack.c.l.b16 %v3097
    %v4473 = vunpack.c.h.b16 %v3097
    %v4474 = vunpack.c.l.b16 %v3098
    %v4475 = vunpack.c.l.b16 %v3099
    %v4476 = vunpack.c.h.b16 %v3099
    %v4477 = vunpack.c.l.b16 %v3100
    %v4478 = vunpack.c.h.b16 %v3100
    %v4479 = vunpack.c.l.b16 %v3101
    %v4480 = vunpack.c.h.b16 %v3101
    %v4481 = vunpack.c.l.b16 %v3102
    %v4482 = vunpack.c.l.b16 %v3103
    %v4483 = vunpack.c.h.b16 %v3103
    %v4484 = vunpack.c.l.b16 %v3104
    %v4485 = vunpack.c.h.b16 %v3104
    %v4486 = vunpack.c.l.b16 %v3105
    %v4487 = vunpack.c.h.b16 %v3105
    %v4488 = vunpack.c.l.b16 %v3106
    %v4489 = vunpack.c.l.b16 %v3107
    %v4490 = vunpack.c.h.b16 %v3107
    %v4491 = vunpack.c.l.b16 %v3108
    %v4492 = vunpack.c.h.b16 %v3108
    %v4493 = vunpack.c.l.b16 %v3109
    %v4494 = vunpack.c.h.b16 %v3109
    %v4495 = vunpack.c.l.b16 %v3110
    %v4496 = vunpack.c.l.b16 %v3111
    %v4497 = vunpack.c.h.b16 %v3111
    %v4498 = vunpack.c.l.b16 %v3112
    %v4499 = vunpack.c.h.b16 %v3112
    %v4500 = vunpack.c.l.b16 %v3113
    %v4501 = vunpack.c.h.b16 %v3113
    %v4502 = vunpack.c.l.b16 %v3114
    %v4503 = vunpack.c.l.b16 %v3115
    %v4504 = vunpack.c.h.b16 %v3115
    %v4505 = vunpack.c.l.b16 %v3116
    %v4506 = vunpack.c.h.b16 %v3116
    %v4507 = vunpack.c.l.b16 %v3117
    %v4508 = vunpack.c.h.b16 %v3117
    %v4509 = vunpack.c.l.b16 %v3118
    %v4510 = vunpack.c.l.b16 %v3119
    %v4511 = vunpack.c.h.b16 %v3119
    %v4512 = vunpack.c.l.b16 %v3120
    %v4513 = vunpack.c.h.b16 %v3120
    %v4514 = vunpack.c.l.b16 %v3121
    %v4515 = vunpack.c.h.b16 %v3121
    %v4516 = vunpack.c.l.b16 %v3122
    %v4517 = vunpack.c.l.b16 %v3123
    %v4518 = vunpack.c.h.b16 %v3123
    %v4519 = vunpack.c.l.b16 %v3124
    %v4520 = vunpack.c.h.b16 %v3124
    %v4521 = vunpack.c.l.b16 %v3125
    %v4522 = vunpack.c.h.b16 %v3125
    %v4523 = vunpack.c.l.b16 %v3126
    %v4524 = vunpack.c.l.b16 %v3127
    %v4525 = vunpack.c.h.b16 %v3127
    %v4526 = vunpack.c.l.b16 %v3128
    %v4527 = vunpack.c.h.b16 %v3128
    %v4528 = vunpack.c.l.b16 %v3129
    %v4529 = vunpack.c.h.b16 %v3129
    %v4530 = vunpack.c.l.b16 %v3130
    %v4531 = vunpack.c.l.b16 %v3131
    %v4532 = vunpack.c.h.b16 %v3131
    %v4533 = vunpack.c.l.b16 %v3132
    %v4534 = vunpack.c.h.b16 %v3132
    %v4535 = vunpack.c.l.b16 %v3133
    %v4536 = vunpack.c.h.b16 %v3133
    %v4537 = vunpack.c.l.b16 %v3134
    %v4538 = vunpack.c.l.b16 %v3135
    %v4539 = vunpack.c.h.b16 %v3135
    %v4540 = vunpack.c.l.b16 %v3136
    %v4541 = vunpack.c.h.b16 %v3136
    %v4542 = vunpack.c.l.b16 %v3137
    %v4543 = vunpack.c.h.b16 %v3137
    %v4544 = vunpack.c.l.b16 %v3138
    %v4545 = vunpack.c.l.b16 %v3139
    %v4546 = vunpack.c.h.b16 %v3139
    %v4547 = vunpack.c.l.b16 %v3140
    %v4548 = vunpack.c.h.b16 %v3140
    %v4549 = vunpack.c.l.b16 %v3141
    %v4550 = vunpack.c.h.b16 %v3141
    %v4551 = vunpack.c.l.b16 %v3142
    %v4552 = vunpack.c.l.b16 %v3143
    %v4553 = vunpack.c.h.b16 %v3143
    %v4554 = vunpack.c.l.b16 %v3144
    %v4555 = vunpack.c.h.b16 %v3144
    %v4556 = vunpack.c.l.b16 %v3145
    %v4557 = vunpack.c.h.b16 %v3145
    %v4558 = vunpack.c.l.b16 %v3146
    %v4559 = vunpack.c.l.b16 %v3147
    %v4560 = vunpack.c.h.b16 %v3147
    %v4561 = vunpack.c.l.b16 %v3148
    %v4562 = vunpack.c.h.b16 %v3148
    %v4563 = vunpack.c.l.b16 %v3149
    %v4564 = vunpack.c.h.b16 %v3149
    %v4565 = vunpack.c.l.b16 %v3150
    %v4566 = vunpack.c.l.b16 %v3151
    %v4567 = vunpack.c.h.b16 %v3151
    %v4568 = vunpack.c.l.b16 %v3152
    %v4569 = vunpack.c.h.b16 %v3152
    %v4570 = vunpack.c.l.b16 %v3153
    %v4571 = vunpack.c.h.b16 %v3153
    %v4572 = vunpack.c.l.b16 %v3154
    %v4573 = vunpack.c.l.b16 %v3155
    %v4574 = vunpack.c.h.b16 %v3155
    %v4575 = vunpack.c.l.b16 %v3156
    %v4576 = vunpack.c.h.b16 %v3156
    %v4577 = vunpack.c.l.b16 %v3157
    %v4578 = vunpack.c.h.b16 %v3157
    %v4579 = vunpack.c.l.b16 %v3158
    %v4580 = vunpack.c.l.b16 %v3159
    %v4581 = vunpack.c.h.b16 %v3159
    %v4582 = vunpack.c.l.b16 %v3160
    %v4583 = vunpack.c.h.b16 %v3160
    %v4584 = vunpack.c.l.b16 %v3161
    %v4585 = vunpack.c.h.b16 %v3161
    %v4586 = vunpack.c.l.b16 %v3162
    %v4587 = vunpack.c.l.b16 %v3163
    %v4588 = vunpack.c.h.b16 %v3163
    %v4589 = vunpack.c.l.b16 %v3164
    %v4590 = vunpack.c.h.b16 %v3164
    %v4591 = vunpack.c.l.b16 %v3165
    %v4592 = vunpack.c.h.b16 %v3165
    %v4593 = vunpack.c.l.b16 %v3166
    %v4594 = vunpack.c.l.b16 %v3167
    %v4595 = vunpack.c.h.b16 %v3167
    %v4596 = vunpack.c.l.b16 %v3168
    %v4597 = vunpack.c.h.b16 %v3168
    %v4598 = vunpack.c.l.b16 %v3169
    %v4599 = vunpack.c.h.b16 %v3169
    %v4600 = vunpack.c.l.b16 %v3170
    %v4601 = vunpack.c.l.b16 %v3171
    %v4602 = vunpack.c.h.b16 %v3171
    %v4603 = vunpack.c.l.b16 %v3172
    %v4604 = vunpack.c.h.b16 %v3172
    %v4605 = vunpack.c.l.b16 %v3173
    %v4606 = vunpack.c.h.b16 %v3173
    %v4607 = vunpack.c.l.b16 %v3174
    %v4608 = vunpack.c.l.b16 %v3175
    %v4609 = vunpack.c.h.b16 %v3175
    %v4610 = vunpack.c.l.b16 %v3176
    %v4611 = vunpack.c.h.b16 %v3176
    %v4612 = vunpack.c.l.b16 %v3177
    %v4613 = vunpack.c.h.b16 %v3177
    %v4614 = vunpack.c.l.b16 %v3178
    %v4615 = vunpack.c.l.b16 %v3179
    %v4616 = vunpack.c.h.b16 %v3179
    %v4617 = vunpack.c.l.b16 %v3180
    %v4618 = vunpack.c.h.b16 %v3180
    %v4619 = vunpack.c.l.b16 %v3181
    %v4620 = vunpack.c.h.b16 %v3181
    %v4621 = vunpack.c.l.b16 %v3182
    %v4622 = vunpack.c.l.b16 %v3183
    %v4623 = vunpack.c.h.b16 %v3183
    %v4624 = vunpack.c.l.b16 %v3184
    %v4625 = vunpack.c.h.b16 %v3184
    %v4626 = vunpack.c.l.b16 %v3185
    %v4627 = vunpack.c.h.b16 %v3185
    %v4628 = vunpack.c.l.b16 %v3186
    %v4629 = vunpack.c.l.b16 %v3187
    %v4630 = vunpack.c.h.b16 %v3187
    %v4631 = vunpack.c.l.b16 %v3188
    %v4632 = vunpack.c.h.b16 %v3188
    %v4633 = vunpack.c.l.b16 %v3189
    %v4634 = vunpack.c.h.b16 %v3189
    %v4635 = vunpack.c.l.b16 %v3190
    %v4636 = vpack.c.b16 %v3747, %v3740
    %v4637 = vpack.c.b16 %v3748, %v3741
    %v4638 = vpack.c.b16 %v3749, %v3742
    %v4639 = vpack.c.b16 %v3750, %v3743
    %v4640 = vpack.c.b16 %v3751, %v3744
    %v4641 = vpack.c.b16 %v3752, %v3745
    %v4642 = vpack.c.b16 %v3753, %v3746
    %v4643 = vpack.c.b16 %v3761, %v3754
    %v4644 = vpack.c.b16 %v3762, %v3755
    %v4645 = vpack.c.b16 %v3763, %v3756
    %v4646 = vpack.c.b16 %v3764, %v3757
    %v4647 = vpack.c.b16 %v3765, %v3758
    %v4648 = vpack.c.b16 %v3766, %v3759
    %v4649 = vpack.c.b16 %v3767, %v3760
    %v4650 = vpack.c.b16 %v3775, %v3768
    %v4651 = vpack.c.b16 %v3776, %v3769
    %v4652 = vpack.c.b16 %v3777, %v3770
    %v4653 = vpack.c.b16 %v3778, %v3771
    %v4654 = vpack.c.b16 %v3779, %v3772
    %v4655 = vpack.c.b16 %v3780, %v3773
    %v4656 = vpack.c.b16 %v3781, %v3774
    %v4657 = vpack.c.b16 %v3789, %v3782
    %v4658 = vpack.c.b16 %v3790, %v3783
    %v4659 = vpack.c.b16 %v3791, %v3784
    %v4660 = vpack.c.b16 %v3792, %v3785
    %v4661 = vpack.c.b16 %v3793, %v3786
    %v4662 = vpack.c.b16 %v3794, %v3787
    %v4663 = vpack.c.b16 %v3795, %v3788
    %v4664 = vpack.c.b16 %v3803, %v3796
    %v4665 = vpack.c.b16 %v3804, %v3797
    %v4666 = vpack.c.b16 %v3805, %v3798
    %v4667 = vpack.c.b16 %v3806, %v3799
    %v4668 = vpack.c.b16 %v3807, %v3800
    %v4669 = vpack.c.b16 %v3808, %v3801
    %v4670 = vpack.c.b16 %v3809, %v3802
    %v4671 = vpack.c.b16 %v3817, %v3810
    %v4672 = vpack.c.b16 %v3818, %v3811
    %v4673 = vpack.c.b16 %v3819, %v3812
    %v4674 = vpack.c.b16 %v3820, %v3813
    %v4675 = vpack.c.b16 %v3821, %v3814
    %v4676 = vpack.c.b16 %v3822, %v3815
    %v4677 = vpack.c.b16 %v3823, %v3816
    %v4678 = vpack.c.b16 %v3831, %v3824
    %v4679 = vpack.c.b16 %v3832, %v3825
    %v4680 = vpack.c.b16 %v3833, %v3826
    %v4681 = vpack.c.b16 %v3834, %v3827
    %v4682 = vpack.c.b16 %v3835, %v3828
    %v4683 = vpack.c.b16 %v3836, %v3829
    %v4684 = vpack.c.b16 %v3837, %v3830
    %v4685 = vpack.c.b16 %v3845, %v3838
    %v4686 = vpack.c.b16 %v3846, %v3839
    %v4687 = vpack.c.b16 %v3847, %v3840
    %v4688 = vpack.c.b16 %v3848, %v3841
    %v4689 = vpack.c.b16 %v3849, %v3842
    %v4690 = vpack.c.b16 %v3850, %v3843
    %v4691 = vpack.c.b16 %v3851, %v3844
    %v4692 = vpack.c.b16 %v3859, %v3852
    %v4693 = vpack.c.b16 %v3860, %v3853
    %v4694 = vpack.c.b16 %v3861, %v3854
    %v4695 = vpack.c.b16 %v3862, %v3855
    %v4696 = vpack.c.b16 %v3863, %v3856
    %v4697 = vpack.c.b16 %v3864, %v3857
    %v4698 = vpack.c.b16 %v3865, %v3858
    %v4699 = vpack.c.b16 %v3873, %v3866
    %v4700 = vpack.c.b16 %v3874, %v3867
    %v4701 = vpack.c.b16 %v3875, %v3868
    %v4702 = vpack.c.b16 %v3876, %v3869
    %v4703 = vpack.c.b16 %v3877, %v3870
    %v4704 = vpack.c.b16 %v3878, %v3871
    %v4705 = vpack.c.b16 %v3879, %v3872
    %v4706 = vpack.c.b16 %v3887, %v3880
    %v4707 = vpack.c.b16 %v3888, %v3881
    %v4708 = vpack.c.b16 %v3889, %v3882
    %v4709 = vpack.c.b16 %v3890, %v3883
    %v4710 = vpack.c.b16 %v3891, %v3884
    %v4711 = vpack.c.b16 %v3892, %v3885
    %v4712 = vpack.c.b16 %v3893, %v3886
    %v4713 = vpack.c.b16 %v3901, %v3894
    %v4714 = vpack.c.b16 %v3902, %v3895
    %v4715 = vpack.c.b16 %v3903, %v3896
    %v4716 = vpack.c.b16 %v3904, %v3897
    %v4717 = vpack.c.b16 %v3905, %v3898
    %v4718 = vpack.c.b16 %v3906, %v3899
    %v4719 = vpack.c.b16 %v3907, %v3900
    %v4720 = vpack.c.b16 %v3915, %v3908
    %v4721 = vpack.c.b16 %v3916, %v3909
    %v4722 = vpack.c.b16 %v3917, %v3910
    %v4723 = vpack.c.b16 %v3918, %v3911
    %v4724 = vpack.c.b16 %v3919, %v3912
    %v4725 = vpack.c.b16 %v3920, %v3913
    %v4726 = vpack.c.b16 %v3921, %v3914
    %v4727 = vpack.c.b16 %v3929, %v3922
    %v4728 = vpack.c.b16 %v3930, %v3923
    %v4729 = vpack.c.b16 %v3931, %v3924
    %v4730 = vpack.c.b16 %v3932, %v3925
    %v4731 = vpack.c.b16 %v3933, %v3926
    %v4732 = vpack.c.b16 %v3934, %v3927
    %v4733 = vpack.c.b16 %v3935, %v3928
    %v4734 = vpack.c.b16 %v3943, %v3936
    %v4735 = vpack.c.b16 %v3944, %v3937
    %v4736 = vpack.c.b16 %v3945, %v3938
    %v4737 = vpack.c.b16 %v3946, %v3939
    %v4738 = vpack.c.b16 %v3947, %v3940
    %v4739 = vpack.c.b16 %v3948, %v3941
    %v4740 = vpack.c.b16 %v3949, %v3942
    %v4741 = vpack.c.b16 %v3957, %v3950
    %v4742 = vpack.c.b16 %v3958, %v3951
    %v4743 = vpack.c.b16 %v3959, %v3952
    %v4744 = vpack.c.b16 %v3960, %v3953
    %v4745 = vpack.c.b16 %v3961, %v3954
    %v4746 = vpack.c.b16 %v3962, %v3955
    %v4747 = vpack.c.b16 %v3963, %v3956
    %v4748 = vpack.c.b16 %v3971, %v3964
    %v4749 = vpack.c.b16 %v3972, %v3965
    %v4750 = vpack.c.b16 %v3973, %v3966
    %v4751 = vpack.c.b16 %v3974, %v3967
    %v4752 = vpack.c.b16 %v3975, %v3968
    %v4753 = vpack.c.b16 %v3976, %v3969
    %v4754 = vpack.c.b16 %v3977, %v3970
    %v4755 = vpack.c.b16 %v3985, %v3978
    %v4756 = vpack.c.b16 %v3986, %v3979
    %v4757 = vpack.c.b16 %v3987, %v3980
    %v4758 = vpack.c.b16 %v3988, %v3981
    %v4759 = vpack.c.b16 %v3989, %v3982
    %v4760 = vpack.c.b16 %v3990, %v3983
    %v4761 = vpack.c.b16 %v3991, %v3984
    %v4762 = vpack.c.b16 %v3999, %v3992
    %v4763 = vpack.c.b16 %v4000, %v3993
    %v4764 = vpack.c.b16 %v4001, %v3994
    %v4765 = vpack.c.b16 %v4002, %v3995
    %v4766 = vpack.c.b16 %v4003, %v3996
    %v4767 = vpack.c.b16 %v4004, %v3997
    %v4768 = vpack.c.b16 %v4005, %v3998
    %v4769 = vpack.c.b16 %v4013, %v4006
    %v4770 = vpack.c.b16 %v4014, %v4007
    %v4771 = vpack.c.b16 %v4015, %v4008
    %v4772 = vpack.c.b16 %v4016, %v4009
    %v4773 = vpack.c.b16 %v4017, %v4010
    %v4774 = vpack.c.b16 %v4018, %v4011
    %v4775 = vpack.c.b16 %v4019, %v4012
    %v4776 = vpack.c.b16 %v4027, %v4020
    %v4777 = vpack.c.b16 %v4028, %v4021
    %v4778 = vpack.c.b16 %v4029, %v4022
    %v4779 = vpack.c.b16 %v4030, %v4023
    %v4780 = vpack.c.b16 %v4031, %v4024
    %v4781 = vpack.c.b16 %v4032, %v4025
    %v4782 = vpack.c.b16 %v4033, %v4026
    %v4783 = vpack.c.b16 %v4041, %v4034
    %v4784 = vpack.c.b16 %v4042, %v4035
    %v4785 = vpack.c.b16 %v4043, %v4036
    %v4786 = vpack.c.b16 %v4044, %v4037
    %v4787 = vpack.c.b16 %v4045, %v4038
    %v4788 = vpack.c.b16 %v4046, %v4039
    %v4789 = vpack.c.b16 %v4047, %v4040
    %v4790 = vpack.c.b16 %v4055, %v4048
    %v4791 = vpack.c.b16 %v4056, %v4049
    %v4792 = vpack.c.b16 %v4057, %v4050
    %v4793 = vpack.c.b16 %v4058, %v4051
    %v4794 = vpack.c.b16 %v4059, %v4052
    %v4795 = vpack.c.b16 %v4060, %v4053
    %v4796 = vpack.c.b16 %v4061, %v4054
    %v4797 = vpack.c.b16 %v4069, %v4062
    %v4798 = vpack.c.b16 %v4070, %v4063
    %v4799 = vpack.c.b16 %v4071, %v4064
    %v4800 = vpack.c.b16 %v4072, %v4065
    %v4801 = vpack.c.b16 %v4073, %v4066
    %v4802 = vpack.c.b16 %v4074, %v4067
    %v4803 = vpack.c.b16 %v4075, %v4068
    %v4804 = vpack.c.b16 %v4083, %v4076
    %v4805 = vpack.c.b16 %v4084, %v4077
    %v4806 = vpack.c.b16 %v4085, %v4078
    %v4807 = vpack.c.b16 %v4086, %v4079
    %v4808 = vpack.c.b16 %v4087, %v4080
    %v4809 = vpack.c.b16 %v4088, %v4081
    %v4810 = vpack.c.b16 %v4089, %v4082
    %v4811 = vpack.c.b16 %v4097, %v4090
    %v4812 = vpack.c.b16 %v4098, %v4091
    %v4813 = vpack.c.b16 %v4099, %v4092
    %v4814 = vpack.c.b16 %v4100, %v4093
    %v4815 = vpack.c.b16 %v4101, %v4094
    %v4816 = vpack.c.b16 %v4102, %v4095
    %v4817 = vpack.c.b16 %v4103, %v4096
    %v4818 = vpack.c.b16 %v4111, %v4104
    %v4819 = vpack.c.b16 %v4112, %v4105
    %v4820 = vpack.c.b16 %v4113, %v4106
    %v4821 = vpack.c.b16 %v4114, %v4107
    %v4822 = vpack.c.b16 %v4115, %v4108
    %v4823 = vpack.c.b16 %v4116, %v4109
    %v4824 = vpack.c.b16 %v4117, %v4110
    %v4825 = vpack.c.b16 %v4125, %v4118
    %v4826 = vpack.c.b16 %v4126, %v4119
    %v4827 = vpack.c.b16 %v4127, %v4120
    %v4828 = vpack.c.b16 %v4128, %v4121
    %v4829 = vpack.c.b16 %v4129, %v4122
    %v4830 = vpack.c.b16 %v4130, %v4123
    %v4831 = vpack.c.b16 %v4131, %v4124
    %v4832 = vpack.c.b16 %v4139, %v4132
    %v4833 = vpack.c.b16 %v4140, %v4133
    %v4834 = vpack.c.b16 %v4141, %v4134
    %v4835 = vpack.c.b16 %v4142, %v4135
    %v4836 = vpack.c.b16 %v4143, %v4136
    %v4837 = vpack.c.b16 %v4144, %v4137
    %v4838 = vpack.c.b16 %v4145, %v4138
    %v4839 = vpack.c.b16 %v4153, %v4146
    %v4840 = vpack.c.b16 %v4154, %v4147
    %v4841 = vpack.c.b16 %v4155, %v4148
    %v4842 = vpack.c.b16 %v4156, %v4149
    %v4843 = vpack.c.b16 %v4157, %v4150
    %v4844 = vpack.c.b16 %v4158, %v4151
    %v4845 = vpack.c.b16 %v4159, %v4152
    %v4846 = vpack.c.b16 %v4167, %v4160
    %v4847 = vpack.c.b16 %v4168, %v4161
    %v4848 = vpack.c.b16 %v4169, %v4162
    %v4849 = vpack.c.b16 %v4170, %v4163
    %v4850 = vpack.c.b16 %v4171, %v4164
    %v4851 = vpack.c.b16 %v4172, %v4165
    %v4852 = vpack.c.b16 %v4173, %v4166
    %v4853 = vpack.c.b16 %v4181, %v4174
    %v4854 = vpack.c.b16 %v4182, %v4175
    %v4855 = vpack.c.b16 %v4183, %v4176
    %v4856 = vpack.c.b16 %v4184, %v4177
    %v4857 = vpack.c.b16 %v4185, %v4178
    %v4858 = vpack.c.b16 %v4186, %v4179
    %v4859 = vpack.c.b16 %v4187, %v4180
    %v4860 = vpack.c.b16 %v4195, %v4188
    %v4861 = vpack.c.b16 %v4196, %v4189
    %v4862 = vpack.c.b16 %v4197, %v4190
    %v4863 = vpack.c.b16 %v4198, %v4191
    %v4864 = vpack.c.b16 %v4199, %v4192
    %v4865 = vpack.c.b16 %v4200, %v4193
    %v4866 = vpack.c.b16 %v4201, %v4194
    %v4867 = vpack.c.b16 %v4209, %v4202
    %v4868 = vpack.c.b16 %v4210, %v4203
    %v4869 = vpack.c.b16 %v4211, %v4204
    %v4870 = vpack.c.b16 %v4212, %v4205
    %v4871 = vpack.c.b16 %v4213, %v4206
    %v4872 = vpack.c.b16 %v4214, %v4207
    %v4873 = vpack.c.b16 %v4215, %v4208
    %v4874 = vpack.c.b16 %v4223, %v4216
    %v4875 = vpack.c.b16 %v4224, %v4217
    %v4876 = vpack.c.b16 %v4225, %v4218
    %v4877 = vpack.c.b16 %v4226, %v4219
    %v4878 = vpack.c.b16 %v4227, %v4220
    %v4879 = vpack.c.b16 %v4228, %v4221
    %v4880 = vpack.c.b16 %v4229, %v4222
    %v4881 = vpack.c.b16 %v4237, %v4230
    %v4882 = vpack.c.b16 %v4238, %v4231
    %v4883 = vpack.c.b16 %v4239, %v4232
    %v4884 = vpack.c.b16 %v4240, %v4233
    %v4885 = vpack.c.b16 %v4241, %v4234
    %v4886 = vpack.c.b16 %v4242, %v4235
    %v4887 = vpack.c.b16 %v4243, %v4236
    %v4888 = vpack.c.b16 %v4251, %v4244
    %v4889 = vpack.c.b16 %v4252, %v4245
    %v4890 = vpack.c.b16 %v4253, %v4246
    %v4891 = vpack.c.b16 %v4254, %v4247
    %v4892 = vpack.c.b16 %v4255, %v4248
    %v4893 = vpack.c.b16 %v4256, %v4249
    %v4894 = vpack.c.b16 %v4257, %v4250
    %v4895 = vpack.c.b16 %v4265, %v4258
    %v4896 = vpack.c.b16 %v4266, %v4259
    %v4897 = vpack.c.b16 %v4267, %v4260
    %v4898 = vpack.c.b16 %v4268, %v4261
    %v4899 = vpack.c.b16 %v4269, %v4262
    %v4900 = vpack.c.b16 %v4270, %v4263
    %v4901 = vpack.c.b16 %v4271, %v4264
    %v4902 = vpack.c.b16 %v4279, %v4272
    %v4903 = vpack.c.b16 %v4280, %v4273
    %v4904 = vpack.c.b16 %v4281, %v4274
    %v4905 = vpack.c.b16 %v4282, %v4275
    %v4906 = vpack.c.b16 %v4283, %v4276
    %v4907 = vpack.c.b16 %v4284, %v4277
    %v4908 = vpack.c.b16 %v4285, %v4278
    %v4909 = vpack.c.b16 %v4293, %v4286
    %v4910 = vpack.c.b16 %v4294, %v4287
    %v4911 = vpack.c.b16 %v4295, %v4288
    %v4912 = vpack.c.b16 %v4296, %v4289
    %v4913 = vpack.c.b16 %v4297, %v4290
    %v4914 = vpack.c.b16 %v4298, %v4291
    %v4915 = vpack.c.b16 %v4299, %v4292
    %v4916 = vpack.c.b16 %v4307, %v4300
    %v4917 = vpack.c.b16 %v4308, %v4301
    %v4918 = vpack.c.b16 %v4309, %v4302
    %v4919 = vpack.c.b16 %v4310, %v4303
    %v4920 = vpack.c.b16 %v4311, %v4304
    %v4921 = vpack.c.b16 %v4312, %v4305
    %v4922 = vpack.c.b16 %v4313, %v4306
    %v4923 = vpack.c.b16 %v4321, %v4314
    %v4924 = vpack.c.b16 %v4322, %v4315
    %v4925 = vpack.c.b16 %v4323, %v4316
    %v4926 = vpack.c.b16 %v4324, %v4317
    %v4927 = vpack.c.b16 %v4325, %v4318
    %v4928 = vpack.c.b16 %v4326, %v4319
    %v4929 = vpack.c.b16 %v4327, %v4320
    %v4930 = vpack.c.b16 %v4335, %v4328
    %v4931 = vpack.c.b16 %v4336, %v4329
    %v4932 = vpack.c.b16 %v4337, %v4330
    %v4933 = vpack.c.b16 %v4338, %v4331
    %v4934 = vpack.c.b16 %v4339, %v4332
    %v4935 = vpack.c.b16 %v4340, %v4333
    %v4936 = vpack.c.b16 %v4341, %v4334
    %v4937 = vpack.c.b16 %v4349, %v4342
    %v4938 = vpack.c.b16 %v4350, %v4343
    %v4939 = vpack.c.b16 %v4351, %v4344
    %v4940 = vpack.c.b16 %v4352, %v4345
    %v4941 = vpack.c.b16 %v4353, %v4346
    %v4942 = vpack.c.b16 %v4354, %v4347
    %v4943 = vpack.c.b16 %v4355, %v4348
    %v4944 = vpack.c.b16 %v4363, %v4356
    %v4945 = vpack.c.b16 %v4364, %v4357
    %v4946 = vpack.c.b16 %v4365, %v4358
    %v4947 = vpack.c.b16 %v4366, %v4359
    %v4948 = vpack.c.b16 %v4367, %v4360
    %v4949 = vpack.c.b16 %v4368, %v4361
    %v4950 = vpack.c.b16 %v4369, %v4362
    %v4951 = vpack.c.b16 %v4377, %v4370
    %v4952 = vpack.c.b16 %v4378, %v4371
    %v4953 = vpack.c.b16 %v4379, %v4372
    %v4954 = vpack.c.b16 %v4380, %v4373
    %v4955 = vpack.c.b16 %v4381, %v4374
    %v4956 = vpack.c.b16 %v4382, %v4375
    %v4957 = vpack.c.b16 %v4383, %v4376
    %v4958 = vpack.c.b16 %v4391, %v4384
    %v4959 = vpack.c.b16 %v4392, %v4385
    %v4960 = vpack.c.b16 %v4393, %v4386
    %v4961 = vpack.c.b16 %v4394, %v4387
    %v4962 = vpack.c.b16 %v4395, %v4388
    %v4963 = vpack.c.b16 %v4396, %v4389
    %v4964 = vpack.c.b16 %v4397, %v4390
    %v4965 = vpack.c.b16 %v4405, %v4398
    %v4966 = vpack.c.b16 %v4406, %v4399
    %v4967 = vpack.c.b16 %v4407, %v4400
    %v4968 = vpack.c.b16 %v4408, %v4401
    %v4969 = vpack.c.b16 %v4409, %v4402
    %v4970 = vpack.c.b16 %v4410, %v4403
    %v4971 = vpack.c.b16 %v4411, %v4404
    %v4972 = vpack.c.b16 %v4419, %v4412
    %v4973 = vpack.c.b16 %v4420, %v4413
    %v4974 = vpack.c.b16 %v4421, %v4414
    %v4975 = vpack.c.b16 %v4422, %v4415
    %v4976 = vpack.c.b16 %v4423, %v4416
    %v4977 = vpack.c.b16 %v4424, %v4417
    %v4978 = vpack.c.b16 %v4425, %v4418
    %v4979 = vpack.c.b16 %v4433, %v4426
    %v4980 = vpack.c.b16 %v4434, %v4427
    %v4981 = vpack.c.b16 %v4435, %v4428
    %v4982 = vpack.c.b16 %v4436, %v4429
    %v4983 = vpack.c.b16 %v4437, %v4430
    %v4984 = vpack.c.b16 %v4438, %v4431
    %v4985 = vpack.c.b16 %v4439, %v4432
    %v4986 = vpack.c.b16 %v4447, %v4440
    %v4987 = vpack.c.b16 %v4448, %v4441
    %v4988 = vpack.c.b16 %v4449, %v4442
    %v4989 = vpack.c.b16 %v4450, %v4443
    %v4990 = vpack.c.b16 %v4451, %v4444
    %v4991 = vpack.c.b16 %v4452, %v4445
    %v4992 = vpack.c.b16 %v4453, %v4446
    %v4993 = vpack.c.b16 %v4461, %v4454
    %v4994 = vpack.c.b16 %v4462, %v4455
    %v4995 = vpack.c.b16 %v4463, %v4456
    %v4996 = vpack.c.b16 %v4464, %v4457
    %v4997 = vpack.c.b16 %v4465, %v4458
    %v4998 = vpack.c.b16 %v4466, %v4459
    %v4999 = vpack.c.b16 %v4467, %v4460
    %v5000 = vpack.c.b16 %v4475, %v4468
    %v5001 = vpack.c.b16 %v4476, %v4469
    %v5002 = vpack.c.b16 %v4477, %v4470
    %v5003 = vpack.c.b16 %v4478, %v4471
    %v5004 = vpack.c.b16 %v4479, %v4472
    %v5005 = vpack.c.b16 %v4480, %v4473
    %v5006 = vpack.c.b16 %v4481, %v4474
    %v5007 = vpack.c.b16 %v4489, %v4482
    %v5008 = vpack.c.b16 %v4490, %v4483
    %v5009 = vpack.c.b16 %v4491, %v4484
    %v5010 = vpack.c.b16 %v4492, %v4485
    %v5011 = vpack.c.b16 %v4493, %v4486
    %v5012 = vpack.c.b16 %v4494, %v4487
    %v5013 = vpack.c.b16 %v4495, %v4488
    %v5014 = vpack.c.b16 %v4503, %v4496
    %v5015 = vpack.c.b16 %v4504, %v4497
    %v5016 = vpack.c.b16 %v4505, %v4498
    %v5017 = vpack.c.b16 %v4506, %v4499
    %v5018 = vpack.c.b16 %v4507, %v4500
    %v5019 = vpack.c.b16 %v4508, %v4501
    %v5020 = vpack.c.b16 %v4509, %v4502
    %v5021 = vpack.c.b16 %v4517, %v4510
    %v5022 = vpack.c.b16 %v4518, %v4511
    %v5023 = vpack.c.b16 %v4519, %v4512
    %v5024 = vpack.c.b16 %v4520, %v4513
    %v5025 = vpack.c.b16 %v4521, %v4514
    %v5026 = vpack.c.b16 %v4522, %v4515
    %v5027 = vpack.c.b16 %v4523, %v4516
    %v5028 = vpack.c.b16 %v4531, %v4524
    %v5029 = vpack.c.b16 %v4532, %v4525
    %v5030 = vpack.c.b16 %v4533, %v4526
    %v5031 = vpack.c.b16 %v4534, %v4527
    %v5032 = vpack.c.b16 %v4535, %v4528
    %v5033 = vpack.c.b16 %v4536, %v4529
    %v5034 = vpack.c.b16 %v4537, %v4530
    %v5035 = vpack.c.b16 %v4545, %v4538
    %v5036 = vpack.c.b16 %v4546, %v4539
    %v5037 = vpack.c.b16 %v4547, %v4540
    %v5038 = vpack.c.b16 %v4548, %v4541
    %v5039 = vpack.c.b16 %v4549, %v4542
    %v5040 = vpack.c.b16 %v4550, %v4543
    %v5041 = vpack.c.b16 %v4551, %v4544
    %v5042 = vpack.c.b16 %v4559, %v4552
    %v5043 = vpack.c.b16 %v4560, %v4553
    %v5044 = vpack.c.b16 %v4561, %v4554
    %v5045 = vpack.c.b16 %v4562, %v4555
    %v5046 = vpack.c.b16 %v4563, %v4556
    %v5047 = vpack.c.b16 %v4564, %v4557
    %v5048 = vpack.c.b16 %v4565, %v4558
    %v5049 = vpack.c.b16 %v4573, %v4566
    %v5050 = vpack.c.b16 %v4574, %v4567
    %v5051 = vpack.c.b16 %v4575, %v4568
    %v5052 = vpack.c.b16 %v4576, %v4569
    %v5053 = vpack.c.b16 %v4577, %v4570
    %v5054 = vpack.c.b16 %v4578, %v4571
    %v5055 = vpack.c.b16 %v4579, %v4572
    %v5056 = vpack.c.b16 %v4587, %v4580
    %v5057 = vpack.c.b16 %v4588, %v4581
    %v5058 = vpack.c.b16 %v4589, %v4582
    %v5059 = vpack.c.b16 %v4590, %v4583
    %v5060 = vpack.c.b16 %v4591, %v4584
    %v5061 = vpack.c.b16 %v4592, %v4585
    %v5062 = vpack.c.b16 %v4593, %v4586
    %v5063 = vpack.c.b16 %v4601, %v4594
    %v5064 = vpack.c.b16 %v4602, %v4595
    %v5065 = vpack.c.b16 %v4603, %v4596
    %v5066 = vpack.c.b16 %v4604, %v4597
    %v5067 = vpack.c.b16 %v4605, %v4598
    %v5068 = vpack.c.b16 %v4606, %v4599
    %v5069 = vpack.c.b16 %v4607, %v4600
    %v5070 = vpack.c.b16 %v4615, %v4608
    %v5071 = vpack.c.b16 %v4616, %v4609
    %v5072 = vpack.c.b16 %v4617, %v4610
    %v5073 = vpack.c.b16 %v4618, %v4611
    %v5074 = vpack.c.b16 %v4619, %v4612
    %v5075 = vpack.c.b16 %v4620, %v4613
    %v5076 = vpack.c.b16 %v4621, %v4614
    %v5077 = vpack.c.b16 %v4629, %v4622
    %v5078 = vpack.c.b16 %v4630, %v4623
    %v5079 = vpack.c.b16 %v4631, %v4624
    %v5080 = vpack.c.b16 %v4632, %v4625
    %v5081 = vpack.c.b16 %v4633, %v4626
    %v5082 = vpack.c.b16 %v4634, %v4627
    %v5083 = vpack.c.b16 %v4635, %v4628
    %5532 = vmatprep.subr.bf16.mxu0 %v4686
    %5533 = vmatpush1.bf16.msra.mxu0 %v4685
    %5534 = vmatprep.subr.bf16.mxu0 %v4679
    %5535 = vmatpush1.bf16.msra.mxu0 %v4678
    %5536 = vmatprep.subr.bf16.mxu0 %v4672
    %5537 = vmatpush1.bf16.msra.mxu0 %v4671
    %5538 = vmatprep.subr.bf16.mxu0 %v4665
    %5539 = vmatpush1.bf16.msra.mxu0 %v4664
    %5540 = vmatprep.subr.bf16.mxu0 %v4658
    %5541 = vmatpush1.bf16.msra.mxu0 %v4657
    %5542 = vmatprep.subr.bf16.mxu0 %v4651
    %5543 = vmatpush1.bf16.msra.mxu0 %v4650
    %5544 = vmatprep.subr.bf16.mxu0 %v4644
    %5545 = vmatpush1.bf16.msra.mxu0 %v4643
    %5546 = vmatprep.subr.bf16.mxu0 %v4637
    %5547 = vmatpush1.bf16.msra.mxu0 %v4636
    %5548 = vmatprep.subr.bf16.mxu0 %v4742
    %5549 = vmatpush2.bf16.msra.mxu0 %v4741
    %5550 = vmatprep.subr.bf16.mxu0 %v4735
    %5551 = vmatpush2.bf16.msra.mxu0 %v4734
    %5552 = vmatprep.subr.bf16.mxu0 %v4728
    %5553 = vmatpush2.bf16.msra.mxu0 %v4727
    %5554 = vmatprep.subr.bf16.mxu0 %v4721
    %5555 = vmatpush2.bf16.msra.mxu0 %v4720
    %5556 = vmatprep.subr.bf16.mxu0 %v4714
    %5557 = vmatpush2.bf16.msra.mxu0 %v4713
    %5558 = vmatprep.subr.bf16.mxu0 %v4707
    %5559 = vmatpush2.bf16.msra.mxu0 %v4706
    %5560 = vmatprep.subr.bf16.mxu0 %v4700
    %5561 = vmatpush2.bf16.msra.mxu0 %v4699
    %5562 = vmatprep.subr.bf16.mxu0 %v4693
    %5563 = vmatpush2.bf16.msra.mxu0 %v4692
    %5564 = vmatprep.mubr.bf16.mxu0 %v2672
    %5565 = vmatmul.mubr.bf16.gmra.mxu0 %v2671
    %v5566 = vpop.f32.mrf.mxu0
    %v5567 = vadd.f32 %v3196, %v5566
    %v5568 = vpop.f32.mrf.mxu0
    %v5569 = vadd.f32 %v3200, %v5568
    %v5570 = vpop.f32.mrf.mxu0
    %v5571 = vpop.f32.mrf.mxu0
    %5572 = vdwg.mxu0
    %5573 = vmatprep.subr.bf16.mxu0 %v4798
    %5574 = vmatpush1.bf16.msra.mxu0 %v4797
    %5575 = vmatprep.subr.bf16.mxu0 %v4791
    %5576 = vmatpush1.bf16.msra.mxu0 %v4790
    %5577 = vmatprep.subr.bf16.mxu0 %v4784
    %5578 = vmatpush1.bf16.msra.mxu0 %v4783
    %5579 = vmatprep.subr.bf16.mxu0 %v4777
    %5580 = vmatpush1.bf16.msra.mxu0 %v4776
    %5581 = vmatprep.subr.bf16.mxu0 %v4770
    %5582 = vmatpush1.bf16.msra.mxu0 %v4769
    %5583 = vmatprep.subr.bf16.mxu0 %v4763
    %5584 = vmatpush1.bf16.msra.mxu0 %v4762
    %5585 = vmatprep.subr.bf16.mxu0 %v4756
    %5586 = vmatpush1.bf16.msra.mxu0 %v4755
    %5587 = vmatprep.subr.bf16.mxu0 %v4749
    %5588 = vmatpush1.bf16.msra.mxu0 %v4748
    %5589 = vmatprep.subr.bf16.mxu0 %v4854
    %5590 = vmatpush2.bf16.msra.mxu0 %v4853
    %5591 = vmatprep.subr.bf16.mxu0 %v4847
    %5592 = vmatpush2.bf16.msra.mxu0 %v4846
    %5593 = vmatprep.subr.bf16.mxu0 %v4840
    %5594 = vmatpush2.bf16.msra.mxu0 %v4839
    %5595 = vmatprep.subr.bf16.mxu0 %v4833
    %5596 = vmatpush2.bf16.msra.mxu0 %v4832
    %5597 = vmatprep.subr.bf16.mxu0 %v4826
    %5598 = vmatpush2.bf16.msra.mxu0 %v4825
    %5599 = vmatprep.subr.bf16.mxu0 %v4819
    %5600 = vmatpush2.bf16.msra.mxu0 %v4818
    %5601 = vmatprep.subr.bf16.mxu0 %v4812
    %5602 = vmatpush2.bf16.msra.mxu0 %v4811
    %5603 = vmatprep.subr.bf16.mxu0 %v4805
    %5604 = vmatpush2.bf16.msra.mxu0 %v4804
    %5605 = vmatprep.mubr.bf16.mxu0 %v2674
    %5606 = vmatmul.mubr.bf16.gmra.mxu0 %v2673
    %v5607 = vpop.f32.mrf.mxu0
    %v5608 = vadd.f32 %v5567, %v5607
    %v5609 = vpop.f32.mrf.mxu0
    %v5610 = vadd.f32 %v5569, %v5609
    %v5611 = vpop.f32.mrf.mxu0
    %v5612 = vpop.f32.mrf.mxu0
    %5613 = vdwg.mxu0
    %5614 = vmatprep.subr.bf16.mxu0 %v4910
    %5615 = vmatpush1.bf16.msra.mxu0 %v4909
    %5616 = vmatprep.subr.bf16.mxu0 %v4903
    %5617 = vmatpush1.bf16.msra.mxu0 %v4902
    %5618 = vmatprep.subr.bf16.mxu0 %v4896
    %5619 = vmatpush1.bf16.msra.mxu0 %v4895
    %5620 = vmatprep.subr.bf16.mxu0 %v4889
    %5621 = vmatpush1.bf16.msra.mxu0 %v4888
    %5622 = vmatprep.subr.bf16.mxu0 %v4882
    %5623 = vmatpush1.bf16.msra.mxu0 %v4881
    %5624 = vmatprep.subr.bf16.mxu0 %v4875
    %5625 = vmatpush1.bf16.msra.mxu0 %v4874
    %5626 = vmatprep.subr.bf16.mxu0 %v4868
    %5627 = vmatpush1.bf16.msra.mxu0 %v4867
    %5628 = vmatprep.subr.bf16.mxu0 %v4861
    %5629 = vmatpush1.bf16.msra.mxu0 %v4860
    %5630 = vmatprep.subr.bf16.mxu0 %v4966
    %5631 = vmatpush2.bf16.msra.mxu0 %v4965
    %5632 = vmatprep.subr.bf16.mxu0 %v4959
    %5633 = vmatpush2.bf16.msra.mxu0 %v4958
    %5634 = vmatprep.subr.bf16.mxu0 %v4952
    %5635 = vmatpush2.bf16.msra.mxu0 %v4951
    %5636 = vmatprep.subr.bf16.mxu0 %v4945
    %5637 = vmatpush2.bf16.msra.mxu0 %v4944
    %5638 = vmatprep.subr.bf16.mxu0 %v4938
    %5639 = vmatpush2.bf16.msra.mxu0 %v4937
    %5640 = vmatprep.subr.bf16.mxu0 %v4931
    %5641 = vmatpush2.bf16.msra.mxu0 %v4930
    %5642 = vmatprep.subr.bf16.mxu0 %v4924
    %5643 = vmatpush2.bf16.msra.mxu0 %v4923
    %5644 = vmatprep.subr.bf16.mxu0 %v4917
    %5645 = vmatpush2.bf16.msra.mxu0 %v4916
    %5646 = vmatprep.mubr.bf16.mxu0 %v2676
    %5647 = vmatmul.mubr.bf16.gmra.mxu0 %v2675
    %v5648 = vpop.f32.mrf.mxu0
    %v5649 = vadd.f32 %v5608, %v5648
    %v5650 = vpop.f32.mrf.mxu0
    %v5651 = vadd.f32 %v5610, %v5650
    %v5652 = vpop.f32.mrf.mxu0
    %v5653 = vpop.f32.mrf.mxu0
    %5654 = vdwg.mxu0
    %5655 = vmatprep.subr.bf16.mxu0 %v5022
    %5656 = vmatpush1.bf16.msra.mxu0 %v5021
    %5657 = vmatprep.subr.bf16.mxu0 %v5015
    %5658 = vmatpush1.bf16.msra.mxu0 %v5014
    %5659 = vmatprep.subr.bf16.mxu0 %v5008
    %5660 = vmatpush1.bf16.msra.mxu0 %v5007
    %5661 = vmatprep.subr.bf16.mxu0 %v5001
    %5662 = vmatpush1.bf16.msra.mxu0 %v5000
    %5663 = vmatprep.subr.bf16.mxu0 %v4994
    %5664 = vmatpush1.bf16.msra.mxu0 %v4993
    %5665 = vmatprep.subr.bf16.mxu0 %v4987
    %5666 = vmatpush1.bf16.msra.mxu0 %v4986
    %5667 = vmatprep.subr.bf16.mxu0 %v4980
    %5668 = vmatpush1.bf16.msra.mxu0 %v4979
    %5669 = vmatprep.subr.bf16.mxu0 %v4973
    %5670 = vmatpush1.bf16.msra.mxu0 %v4972
    %5671 = vmatprep.subr.bf16.mxu0 %v5078
    %5672 = vmatpush2.bf16.msra.mxu0 %v5077
    %5673 = vmatprep.subr.bf16.mxu0 %v5071
    %5674 = vmatpush2.bf16.msra.mxu0 %v5070
    %5675 = vmatprep.subr.bf16.mxu0 %v5064
    %5676 = vmatpush2.bf16.msra.mxu0 %v5063
    %5677 = vmatprep.subr.bf16.mxu0 %v5057
    %5678 = vmatpush2.bf16.msra.mxu0 %v5056
    %5679 = vmatprep.subr.bf16.mxu0 %v5050
    %5680 = vmatpush2.bf16.msra.mxu0 %v5049
    %5681 = vmatprep.subr.bf16.mxu0 %v5043
    %5682 = vmatpush2.bf16.msra.mxu0 %v5042
    %5683 = vmatprep.subr.bf16.mxu0 %v5036
    %5684 = vmatpush2.bf16.msra.mxu0 %v5035
    %5685 = vmatprep.subr.bf16.mxu0 %v5029
    %5686 = vmatpush2.bf16.msra.mxu0 %v5028
    %5687 = vmatprep.mubr.bf16.mxu0 %v2678
    %5688 = vmatmul.mubr.bf16.gmra.mxu0 %v2677
    %v5689 = vpop.f32.mrf.mxu0
    %v5690 = vadd.f32 %v5649, %v5689
    %v5691 = vpop.f32.mrf.mxu0
    %v5692 = vadd.f32 %v5651, %v5691
    %v5693 = vpop.f32.mrf.mxu0
    %v5694 = vpop.f32.mrf.mxu0
    %5695 = vdwg.mxu0
    %5696 = vmatprep.subr.bf16.mxu0 %v4688
    %5697 = vmatpush1.bf16.msra.mxu0 %v4687
    %5698 = vmatprep.subr.bf16.mxu0 %v4681
    %5699 = vmatpush1.bf16.msra.mxu0 %v4680
    %5700 = vmatprep.subr.bf16.mxu0 %v4674
    %5701 = vmatpush1.bf16.msra.mxu0 %v4673
    %5702 = vmatprep.subr.bf16.mxu0 %v4667
    %5703 = vmatpush1.bf16.msra.mxu0 %v4666
    %5704 = vmatprep.subr.bf16.mxu0 %v4660
    %5705 = vmatpush1.bf16.msra.mxu0 %v4659
    %5706 = vmatprep.subr.bf16.mxu0 %v4653
    %5707 = vmatpush1.bf16.msra.mxu0 %v4652
    %5708 = vmatprep.subr.bf16.mxu0 %v4646
    %5709 = vmatpush1.bf16.msra.mxu0 %v4645
    %5710 = vmatprep.subr.bf16.mxu0 %v4639
    %5711 = vmatpush1.bf16.msra.mxu0 %v4638
    %5712 = vmatprep.subr.bf16.mxu0 %v4744
    %5713 = vmatpush2.bf16.msra.mxu0 %v4743
    %5714 = vmatprep.subr.bf16.mxu0 %v4737
    %5715 = vmatpush2.bf16.msra.mxu0 %v4736
    %5716 = vmatprep.subr.bf16.mxu0 %v4730
    %5717 = vmatpush2.bf16.msra.mxu0 %v4729
    %5718 = vmatprep.subr.bf16.mxu0 %v4723
    %5719 = vmatpush2.bf16.msra.mxu0 %v4722
    %5720 = vmatprep.subr.bf16.mxu0 %v4716
    %5721 = vmatpush2.bf16.msra.mxu0 %v4715
    %5722 = vmatprep.subr.bf16.mxu0 %v4709
    %5723 = vmatpush2.bf16.msra.mxu0 %v4708
    %5724 = vmatprep.subr.bf16.mxu0 %v4702
    %5725 = vmatpush2.bf16.msra.mxu0 %v4701
    %5726 = vmatprep.subr.bf16.mxu0 %v4695
    %5727 = vmatpush2.bf16.msra.mxu0 %v4694
    %5728 = vmatprep.mubr.bf16.mxu0 %v2672
    %5729 = vmatmul.mubr.bf16.gmra.mxu0 %v2671
    %v5730 = vpop.f32.mrf.mxu0
    %v5731 = vadd.f32 %v3204, %v5730
    %v5732 = vpop.f32.mrf.mxu0
    %v5733 = vadd.f32 %v3208, %v5732
    %v5734 = vpop.f32.mrf.mxu0
    %v5735 = vpop.f32.mrf.mxu0
    %5736 = vdwg.mxu0
    %5737 = vmatprep.subr.bf16.mxu0 %v4800
    %5738 = vmatpush1.bf16.msra.mxu0 %v4799
    %5739 = vmatprep.subr.bf16.mxu0 %v4793
    %5740 = vmatpush1.bf16.msra.mxu0 %v4792
    %5741 = vmatprep.subr.bf16.mxu0 %v4786
    %5742 = vmatpush1.bf16.msra.mxu0 %v4785
    %5743 = vmatprep.subr.bf16.mxu0 %v4779
    %5744 = vmatpush1.bf16.msra.mxu0 %v4778
    %5745 = vmatprep.subr.bf16.mxu0 %v4772
    %5746 = vmatpush1.bf16.msra.mxu0 %v4771
    %5747 = vmatprep.subr.bf16.mxu0 %v4765
    %5748 = vmatpush1.bf16.msra.mxu0 %v4764
    %5749 = vmatprep.subr.bf16.mxu0 %v4758
    %5750 = vmatpush1.bf16.msra.mxu0 %v4757
    %5751 = vmatprep.subr.bf16.mxu0 %v4751
    %5752 = vmatpush1.bf16.msra.mxu0 %v4750
    %5753 = vmatprep.subr.bf16.mxu0 %v4856
    %5754 = vmatpush2.bf16.msra.mxu0 %v4855
    %5755 = vmatprep.subr.bf16.mxu0 %v4849
    %5756 = vmatpush2.bf16.msra.mxu0 %v4848
    %5757 = vmatprep.subr.bf16.mxu0 %v4842
    %5758 = vmatpush2.bf16.msra.mxu0 %v4841
    %5759 = vmatprep.subr.bf16.mxu0 %v4835
    %5760 = vmatpush2.bf16.msra.mxu0 %v4834
    %5761 = vmatprep.subr.bf16.mxu0 %v4828
    %5762 = vmatpush2.bf16.msra.mxu0 %v4827
    %5763 = vmatprep.subr.bf16.mxu0 %v4821
    %5764 = vmatpush2.bf16.msra.mxu0 %v4820
    %5765 = vmatprep.subr.bf16.mxu0 %v4814
    %5766 = vmatpush2.bf16.msra.mxu0 %v4813
    %5767 = vmatprep.subr.bf16.mxu0 %v4807
    %5768 = vmatpush2.bf16.msra.mxu0 %v4806
    %5769 = vmatprep.mubr.bf16.mxu0 %v2674
    %5770 = vmatmul.mubr.bf16.gmra.mxu0 %v2673
    %v5771 = vpop.f32.mrf.mxu0
    %v5772 = vadd.f32 %v5731, %v5771
    %v5773 = vpop.f32.mrf.mxu0
    %v5774 = vadd.f32 %v5733, %v5773
    %v5775 = vpop.f32.mrf.mxu0
    %v5776 = vpop.f32.mrf.mxu0
    %5777 = vdwg.mxu0
    %5778 = vmatprep.subr.bf16.mxu0 %v4912
    %5779 = vmatpush1.bf16.msra.mxu0 %v4911
    %5780 = vmatprep.subr.bf16.mxu0 %v4905
    %5781 = vmatpush1.bf16.msra.mxu0 %v4904
    %5782 = vmatprep.subr.bf16.mxu0 %v4898
    %5783 = vmatpush1.bf16.msra.mxu0 %v4897
    %5784 = vmatprep.subr.bf16.mxu0 %v4891
    %5785 = vmatpush1.bf16.msra.mxu0 %v4890
    %5786 = vmatprep.subr.bf16.mxu0 %v4884
    %5787 = vmatpush1.bf16.msra.mxu0 %v4883
    %5788 = vmatprep.subr.bf16.mxu0 %v4877
    %5789 = vmatpush1.bf16.msra.mxu0 %v4876
    %5790 = vmatprep.subr.bf16.mxu0 %v4870
    %5791 = vmatpush1.bf16.msra.mxu0 %v4869
    %5792 = vmatprep.subr.bf16.mxu0 %v4863
    %5793 = vmatpush1.bf16.msra.mxu0 %v4862
    %5794 = vmatprep.subr.bf16.mxu0 %v4968
    %5795 = vmatpush2.bf16.msra.mxu0 %v4967
    %5796 = vmatprep.subr.bf16.mxu0 %v4961
    %5797 = vmatpush2.bf16.msra.mxu0 %v4960
    %5798 = vmatprep.subr.bf16.mxu0 %v4954
    %5799 = vmatpush2.bf16.msra.mxu0 %v4953
    %5800 = vmatprep.subr.bf16.mxu0 %v4947
    %5801 = vmatpush2.bf16.msra.mxu0 %v4946
    %5802 = vmatprep.subr.bf16.mxu0 %v4940
    %5803 = vmatpush2.bf16.msra.mxu0 %v4939
    %5804 = vmatprep.subr.bf16.mxu0 %v4933
    %5805 = vmatpush2.bf16.msra.mxu0 %v4932
    %5806 = vmatprep.subr.bf16.mxu0 %v4926
    %5807 = vmatpush2.bf16.msra.mxu0 %v4925
    %5808 = vmatprep.subr.bf16.mxu0 %v4919
    %5809 = vmatpush2.bf16.msra.mxu0 %v4918
    %5810 = vmatprep.mubr.bf16.mxu0 %v2676
    %5811 = vmatmul.mubr.bf16.gmra.mxu0 %v2675
    %v5812 = vpop.f32.mrf.mxu0
    %v5813 = vadd.f32 %v5772, %v5812
    %v5814 = vpop.f32.mrf.mxu0
    %v5815 = vadd.f32 %v5774, %v5814
    %v5816 = vpop.f32.mrf.mxu0
    %v5817 = vpop.f32.mrf.mxu0
    %5818 = vdwg.mxu0
    %5819 = vmatprep.subr.bf16.mxu0 %v5024
    %5820 = vmatpush1.bf16.msra.mxu0 %v5023
    %5821 = vmatprep.subr.bf16.mxu0 %v5017
    %5822 = vmatpush1.bf16.msra.mxu0 %v5016
    %5823 = vmatprep.subr.bf16.mxu0 %v5010
    %5824 = vmatpush1.bf16.msra.mxu0 %v5009
    %5825 = vmatprep.subr.bf16.mxu0 %v5003
    %5826 = vmatpush1.bf16.msra.mxu0 %v5002
    %5827 = vmatprep.subr.bf16.mxu0 %v4996
    %5828 = vmatpush1.bf16.msra.mxu0 %v4995
    %5829 = vmatprep.subr.bf16.mxu0 %v4989
    %5830 = vmatpush1.bf16.msra.mxu0 %v4988
    %5831 = vmatprep.subr.bf16.mxu0 %v4982
    %5832 = vmatpush1.bf16.msra.mxu0 %v4981
    %5833 = vmatprep.subr.bf16.mxu0 %v4975
    %5834 = vmatpush1.bf16.msra.mxu0 %v4974
    %5835 = vmatprep.subr.bf16.mxu0 %v5080
    %5836 = vmatpush2.bf16.msra.mxu0 %v5079
    %5837 = vmatprep.subr.bf16.mxu0 %v5073
    %5838 = vmatpush2.bf16.msra.mxu0 %v5072
    %5839 = vmatprep.subr.bf16.mxu0 %v5066
    %5840 = vmatpush2.bf16.msra.mxu0 %v5065
    %5841 = vmatprep.subr.bf16.mxu0 %v5059
    %5842 = vmatpush2.bf16.msra.mxu0 %v5058
    %5843 = vmatprep.subr.bf16.mxu0 %v5052
    %5844 = vmatpush2.bf16.msra.mxu0 %v5051
    %5845 = vmatprep.subr.bf16.mxu0 %v5045
    %5846 = vmatpush2.bf16.msra.mxu0 %v5044
    %5847 = vmatprep.subr.bf16.mxu0 %v5038
    %5848 = vmatpush2.bf16.msra.mxu0 %v5037
    %5849 = vmatprep.subr.bf16.mxu0 %v5031
    %5850 = vmatpush2.bf16.msra.mxu0 %v5030
    %5851 = vmatprep.mubr.bf16.mxu0 %v2678
    %5852 = vmatmul.mubr.bf16.gmra.mxu0 %v2677
    %v5853 = vpop.f32.mrf.mxu0
    %v5854 = vadd.f32 %v5813, %v5853
    %v5855 = vpop.f32.mrf.mxu0
    %v5856 = vadd.f32 %v5815, %v5855
    %v5857 = vpop.f32.mrf.mxu0
    %v5858 = vpop.f32.mrf.mxu0
    %5859 = vdwg.mxu0
    %5860 = vmatprep.subr.bf16.mxu0 %v4690
    %5861 = vmatpush1.bf16.msra.mxu0 %v4689
    %5862 = vmatprep.subr.bf16.mxu0 %v4683
    %5863 = vmatpush1.bf16.msra.mxu0 %v4682
    %5864 = vmatprep.subr.bf16.mxu0 %v4676
    %5865 = vmatpush1.bf16.msra.mxu0 %v4675
    %5866 = vmatprep.subr.bf16.mxu0 %v4669
    %5867 = vmatpush1.bf16.msra.mxu0 %v4668
    %5868 = vmatprep.subr.bf16.mxu0 %v4662
    %5869 = vmatpush1.bf16.msra.mxu0 %v4661
    %5870 = vmatprep.subr.bf16.mxu0 %v4655
    %5871 = vmatpush1.bf16.msra.mxu0 %v4654
    %5872 = vmatprep.subr.bf16.mxu0 %v4648
    %5873 = vmatpush1.bf16.msra.mxu0 %v4647
    %5874 = vmatprep.subr.bf16.mxu0 %v4641
    %5875 = vmatpush1.bf16.msra.mxu0 %v4640
    %5876 = vmatprep.subr.bf16.mxu0 %v4746
    %5877 = vmatpush2.bf16.msra.mxu0 %v4745
    %5878 = vmatprep.subr.bf16.mxu0 %v4739
    %5879 = vmatpush2.bf16.msra.mxu0 %v4738
    %5880 = vmatprep.subr.bf16.mxu0 %v4732
    %5881 = vmatpush2.bf16.msra.mxu0 %v4731
    %5882 = vmatprep.subr.bf16.mxu0 %v4725
    %5883 = vmatpush2.bf16.msra.mxu0 %v4724
    %5884 = vmatprep.subr.bf16.mxu0 %v4718
    %5885 = vmatpush2.bf16.msra.mxu0 %v4717
    %5886 = vmatprep.subr.bf16.mxu0 %v4711
    %5887 = vmatpush2.bf16.msra.mxu0 %v4710
    %5888 = vmatprep.subr.bf16.mxu0 %v4704
    %5889 = vmatpush2.bf16.msra.mxu0 %v4703
    %5890 = vmatprep.subr.bf16.mxu0 %v4697
    %5891 = vmatpush2.bf16.msra.mxu0 %v4696
    %5892 = vmatprep.mubr.bf16.mxu0 %v2672
    %5893 = vmatmul.mubr.bf16.gmra.mxu0 %v2671
    %v5894 = vpop.f32.mrf.mxu0
    %v5895 = vadd.f32 %v3212, %v5894
    %v5896 = vpop.f32.mrf.mxu0
    %v5897 = vadd.f32 %v3216, %v5896
    %v5898 = vpop.f32.mrf.mxu0
    %v5899 = vpop.f32.mrf.mxu0
    %5900 = vdwg.mxu0
    %5901 = vmatprep.subr.bf16.mxu0 %v4802
    %5902 = vmatpush1.bf16.msra.mxu0 %v4801
    %5903 = vmatprep.subr.bf16.mxu0 %v4795
    %5904 = vmatpush1.bf16.msra.mxu0 %v4794
    %5905 = vmatprep.subr.bf16.mxu0 %v4788
    %5906 = vmatpush1.bf16.msra.mxu0 %v4787
    %5907 = vmatprep.subr.bf16.mxu0 %v4781
    %5908 = vmatpush1.bf16.msra.mxu0 %v4780
    %5909 = vmatprep.subr.bf16.mxu0 %v4774
    %5910 = vmatpush1.bf16.msra.mxu0 %v4773
    %5911 = vmatprep.subr.bf16.mxu0 %v4767
    %5912 = vmatpush1.bf16.msra.mxu0 %v4766
    %5913 = vmatprep.subr.bf16.mxu0 %v4760
    %5914 = vmatpush1.bf16.msra.mxu0 %v4759
    %5915 = vmatprep.subr.bf16.mxu0 %v4753
    %5916 = vmatpush1.bf16.msra.mxu0 %v4752
    %5917 = vmatprep.subr.bf16.mxu0 %v4858
    %5918 = vmatpush2.bf16.msra.mxu0 %v4857
    %5919 = vmatprep.subr.bf16.mxu0 %v4851
    %5920 = vmatpush2.bf16.msra.mxu0 %v4850
    %5921 = vmatprep.subr.bf16.mxu0 %v4844
    %5922 = vmatpush2.bf16.msra.mxu0 %v4843
    %5923 = vmatprep.subr.bf16.mxu0 %v4837
    %5924 = vmatpush2.bf16.msra.mxu0 %v4836
    %5925 = vmatprep.subr.bf16.mxu0 %v4830
    %5926 = vmatpush2.bf16.msra.mxu0 %v4829
    %5927 = vmatprep.subr.bf16.mxu0 %v4823
    %5928 = vmatpush2.bf16.msra.mxu0 %v4822
    %5929 = vmatprep.subr.bf16.mxu0 %v4816
    %5930 = vmatpush2.bf16.msra.mxu0 %v4815
    %5931 = vmatprep.subr.bf16.mxu0 %v4809
    %5932 = vmatpush2.bf16.msra.mxu0 %v4808
    %5933 = vmatprep.mubr.bf16.mxu0 %v2674
    %5934 = vmatmul.mubr.bf16.gmra.mxu0 %v2673
    %v5935 = vpop.f32.mrf.mxu0
    %v5936 = vadd.f32 %v5895, %v5935
    %v5937 = vpop.f32.mrf.mxu0
    %v5938 = vadd.f32 %v5897, %v5937
    %v5939 = vpop.f32.mrf.mxu0
    %v5940 = vpop.f32.mrf.mxu0
    %5941 = vdwg.mxu0
    %5942 = vmatprep.subr.bf16.mxu0 %v4914
    %5943 = vmatpush1.bf16.msra.mxu0 %v4913
    %5944 = vmatprep.subr.bf16.mxu0 %v4907
    %5945 = vmatpush1.bf16.msra.mxu0 %v4906
    %5946 = vmatprep.subr.bf16.mxu0 %v4900
    %5947 = vmatpush1.bf16.msra.mxu0 %v4899
    %5948 = vmatprep.subr.bf16.mxu0 %v4893
    %5949 = vmatpush1.bf16.msra.mxu0 %v4892
    %5950 = vmatprep.subr.bf16.mxu0 %v4886
    %5951 = vmatpush1.bf16.msra.mxu0 %v4885
    %5952 = vmatprep.subr.bf16.mxu0 %v4879
    %5953 = vmatpush1.bf16.msra.mxu0 %v4878
    %5954 = vmatprep.subr.bf16.mxu0 %v4872
    %5955 = vmatpush1.bf16.msra.mxu0 %v4871
    %5956 = vmatprep.subr.bf16.mxu0 %v4865
    %5957 = vmatpush1.bf16.msra.mxu0 %v4864
    %5958 = vmatprep.subr.bf16.mxu0 %v4970
    %5959 = vmatpush2.bf16.msra.mxu0 %v4969
    %5960 = vmatprep.subr.bf16.mxu0 %v4963
    %5961 = vmatpush2.bf16.msra.mxu0 %v4962
    %5962 = vmatprep.subr.bf16.mxu0 %v4956
    %5963 = vmatpush2.bf16.msra.mxu0 %v4955
    %5964 = vmatprep.subr.bf16.mxu0 %v4949
    %5965 = vmatpush2.bf16.msra.mxu0 %v4948
    %5966 = vmatprep.subr.bf16.mxu0 %v4942
    %5967 = vmatpush2.bf16.msra.mxu0 %v4941
    %5968 = vmatprep.subr.bf16.mxu0 %v4935
    %5969 = vmatpush2.bf16.msra.mxu0 %v4934
    %5970 = vmatprep.subr.bf16.mxu0 %v4928
    %5971 = vmatpush2.bf16.msra.mxu0 %v4927
    %5972 = vmatprep.subr.bf16.mxu0 %v4921
    %5973 = vmatpush2.bf16.msra.mxu0 %v4920
    %5974 = vmatprep.mubr.bf16.mxu0 %v2676
    %5975 = vmatmul.mubr.bf16.gmra.mxu0 %v2675
    %v5976 = vpop.f32.mrf.mxu0
    %v5977 = vadd.f32 %v5936, %v5976
    %v5978 = vpop.f32.mrf.mxu0
    %v5979 = vadd.f32 %v5938, %v5978
    %v5980 = vpop.f32.mrf.mxu0
    %v5981 = vpop.f32.mrf.mxu0
    %5982 = vdwg.mxu0
    %5983 = vmatprep.subr.bf16.mxu0 %v5026
    %5984 = vmatpush1.bf16.msra.mxu0 %v5025
    %5985 = vmatprep.subr.bf16.mxu0 %v5019
    %5986 = vmatpush1.bf16.msra.mxu0 %v5018
    %5987 = vmatprep.subr.bf16.mxu0 %v5012
    %5988 = vmatpush1.bf16.msra.mxu0 %v5011
    %5989 = vmatprep.subr.bf16.mxu0 %v5005
    %5990 = vmatpush1.bf16.msra.mxu0 %v5004
    %5991 = vmatprep.subr.bf16.mxu0 %v4998
    %5992 = vmatpush1.bf16.msra.mxu0 %v4997
    %5993 = vmatprep.subr.bf16.mxu0 %v4991
    %5994 = vmatpush1.bf16.msra.mxu0 %v4990
    %5995 = vmatprep.subr.bf16.mxu0 %v4984
    %5996 = vmatpush1.bf16.msra.mxu0 %v4983
    %5997 = vmatprep.subr.bf16.mxu0 %v4977
    %5998 = vmatpush1.bf16.msra.mxu0 %v4976
    %5999 = vmatprep.subr.bf16.mxu0 %v5082
    %6000 = vmatpush2.bf16.msra.mxu0 %v5081
    %6001 = vmatprep.subr.bf16.mxu0 %v5075
    %6002 = vmatpush2.bf16.msra.mxu0 %v5074
    %6003 = vmatprep.subr.bf16.mxu0 %v5068
    %6004 = vmatpush2.bf16.msra.mxu0 %v5067
    %6005 = vmatprep.subr.bf16.mxu0 %v5061
    %6006 = vmatpush2.bf16.msra.mxu0 %v5060
    %6007 = vmatprep.subr.bf16.mxu0 %v5054
    %6008 = vmatpush2.bf16.msra.mxu0 %v5053
    %6009 = vmatprep.subr.bf16.mxu0 %v5047
    %6010 = vmatpush2.bf16.msra.mxu0 %v5046
    %6011 = vmatprep.subr.bf16.mxu0 %v5040
    %6012 = vmatpush2.bf16.msra.mxu0 %v5039
    %6013 = vmatprep.subr.bf16.mxu0 %v5033
    %6014 = vmatpush2.bf16.msra.mxu0 %v5032
    %6015 = vmatprep.mubr.bf16.mxu0 %v2678
    %6016 = vmatmul.mubr.bf16.gmra.mxu0 %v2677
    %v6017 = vpop.f32.mrf.mxu0
    %v6018 = vadd.f32 %v5977, %v6017
    %v6019 = vpop.f32.mrf.mxu0
    %v6020 = vadd.f32 %v5979, %v6019
    %v6021 = vpop.f32.mrf.mxu0
    %v6022 = vpop.f32.mrf.mxu0
    %6023 = vdwg.mxu0
    %6024 = vmatprep.subr.bf16.mxu0 0
    %6025 = vmatpush1.bf16.msra.mxu0 %v4691
    %6026 = vmatprep.subr.bf16.mxu0 0
    %6027 = vmatpush1.bf16.msra.mxu0 %v4684
    %6028 = vmatprep.subr.bf16.mxu0 0
    %6029 = vmatpush1.bf16.msra.mxu0 %v4677
    %6030 = vmatprep.subr.bf16.mxu0 0
    %6031 = vmatpush1.bf16.msra.mxu0 %v4670
    %6032 = vmatprep.subr.bf16.mxu0 0
    %6033 = vmatpush1.bf16.msra.mxu0 %v4663
    %6034 = vmatprep.subr.bf16.mxu0 0
    %6035 = vmatpush1.bf16.msra.mxu0 %v4656
    %6036 = vmatprep.subr.bf16.mxu0 0
    %6037 = vmatpush1.bf16.msra.mxu0 %v4649
    %6038 = vmatprep.subr.bf16.mxu0 0
    %6039 = vmatpush1.bf16.msra.mxu0 %v4642
    %6040 = vmatprep.subr.bf16.mxu0 0
    %6041 = vmatpush2.bf16.msra.mxu0 %v4747
    %6042 = vmatprep.subr.bf16.mxu0 0
    %6043 = vmatpush2.bf16.msra.mxu0 %v4740
    %6044 = vmatprep.subr.bf16.mxu0 0
    %6045 = vmatpush2.bf16.msra.mxu0 %v4733
    %6046 = vmatprep.subr.bf16.mxu0 0
    %6047 = vmatpush2.bf16.msra.mxu0 %v4726
    %6048 = vmatprep.subr.bf16.mxu0 0
    %6049 = vmatpush2.bf16.msra.mxu0 %v4719
    %6050 = vmatprep.subr.bf16.mxu0 0
    %6051 = vmatpush2.bf16.msra.mxu0 %v4712
    %6052 = vmatprep.subr.bf16.mxu0 0
    %6053 = vmatpush2.bf16.msra.mxu0 %v4705
    %6054 = vmatprep.subr.bf16.mxu0 0
    %6055 = vmatpush2.bf16.msra.mxu0 %v4698
    %6056 = vmatprep.mubr.bf16.mxu0 %v2672
    %6057 = vmatmul.mubr.bf16.gmra.mxu0 %v2671
    %v6058 = vpop.f32.mrf.mxu0
    %v6059 = vadd.f32 %v3220, %v6058
    %v6060 = vpop.f32.mrf.mxu0
    %v6061 = vpop.f32.mrf.mxu0
    %v6062 = vpop.f32.mrf.mxu0
    %6063 = vdwg.mxu0
    %6064 = vmatprep.subr.bf16.mxu0 0
    %6065 = vmatpush1.bf16.msra.mxu0 %v4803
    %6066 = vmatprep.subr.bf16.mxu0 0
    %6067 = vmatpush1.bf16.msra.mxu0 %v4796
    %6068 = vmatprep.subr.bf16.mxu0 0
    %6069 = vmatpush1.bf16.msra.mxu0 %v4789
    %6070 = vmatprep.subr.bf16.mxu0 0
    %6071 = vmatpush1.bf16.msra.mxu0 %v4782
    %6072 = vmatprep.subr.bf16.mxu0 0
    %6073 = vmatpush1.bf16.msra.mxu0 %v4775
    %6074 = vmatprep.subr.bf16.mxu0 0
    %6075 = vmatpush1.bf16.msra.mxu0 %v4768
    %6076 = vmatprep.subr.bf16.mxu0 0
    %6077 = vmatpush1.bf16.msra.mxu0 %v4761
    %6078 = vmatprep.subr.bf16.mxu0 0
    %6079 = vmatpush1.bf16.msra.mxu0 %v4754
    %6080 = vmatprep.subr.bf16.mxu0 0
    %6081 = vmatpush2.bf16.msra.mxu0 %v4859
    %6082 = vmatprep.subr.bf16.mxu0 0
    %6083 = vmatpush2.bf16.msra.mxu0 %v4852
    %6084 = vmatprep.subr.bf16.mxu0 0
    %6085 = vmatpush2.bf16.msra.mxu0 %v4845
    %6086 = vmatprep.subr.bf16.mxu0 0
    %6087 = vmatpush2.bf16.msra.mxu0 %v4838
    %6088 = vmatprep.subr.bf16.mxu0 0
    %6089 = vmatpush2.bf16.msra.mxu0 %v4831
    %6090 = vmatprep.subr.bf16.mxu0 0
    %6091 = vmatpush2.bf16.msra.mxu0 %v4824
    %6092 = vmatprep.subr.bf16.mxu0 0
    %6093 = vmatpush2.bf16.msra.mxu0 %v4817
    %6094 = vmatprep.subr.bf16.mxu0 0
    %6095 = vmatpush2.bf16.msra.mxu0 %v4810
    %6096 = vmatprep.mubr.bf16.mxu0 %v2674
    %6097 = vmatmul.mubr.bf16.gmra.mxu0 %v2673
    %v6098 = vpop.f32.mrf.mxu0
    %v6099 = vadd.f32 %v6059, %v6098
    %v6100 = vpop.f32.mrf.mxu0
    %v6101 = vpop.f32.mrf.mxu0
    %v6102 = vpop.f32.mrf.mxu0
    %6103 = vdwg.mxu0
    %6104 = vmatprep.subr.bf16.mxu0 0
    %6105 = vmatpush1.bf16.msra.mxu0 %v4915
    %6106 = vmatprep.subr.bf16.mxu0 0
    %6107 = vmatpush1.bf16.msra.mxu0 %v4908
    %6108 = vmatprep.subr.bf16.mxu0 0
    %6109 = vmatpush1.bf16.msra.mxu0 %v4901
    %6110 = vmatprep.subr.bf16.mxu0 0
    %6111 = vmatpush1.bf16.msra.mxu0 %v4894
    %6112 = vmatprep.subr.bf16.mxu0 0
    %6113 = vmatpush1.bf16.msra.mxu0 %v4887
    %6114 = vmatprep.subr.bf16.mxu0 0
    %6115 = vmatpush1.bf16.msra.mxu0 %v4880
    %6116 = vmatprep.subr.bf16.mxu0 0
    %6117 = vmatpush1.bf16.msra.mxu0 %v4873
    %6118 = vmatprep.subr.bf16.mxu0 0
    %6119 = vmatpush1.bf16.msra.mxu0 %v4866
    %6120 = vmatprep.subr.bf16.mxu0 0
    %6121 = vmatpush2.bf16.msra.mxu0 %v4971
    %6122 = vmatprep.subr.bf16.mxu0 0
    %6123 = vmatpush2.bf16.msra.mxu0 %v4964
    %6124 = vmatprep.subr.bf16.mxu0 0
    %6125 = vmatpush2.bf16.msra.mxu0 %v4957
    %6126 = vmatprep.subr.bf16.mxu0 0
    %6127 = vmatpush2.bf16.msra.mxu0 %v4950
    %6128 = vmatprep.subr.bf16.mxu0 0
    %6129 = vmatpush2.bf16.msra.mxu0 %v4943
    %6130 = vmatprep.subr.bf16.mxu0 0
    %6131 = vmatpush2.bf16.msra.mxu0 %v4936
    %6132 = vmatprep.subr.bf16.mxu0 0
    %6133 = vmatpush2.bf16.msra.mxu0 %v4929
    %6134 = vmatprep.subr.bf16.mxu0 0
    %6135 = vmatpush2.bf16.msra.mxu0 %v4922
    %6136 = vmatprep.mubr.bf16.mxu0 %v2676
    %6137 = vmatmul.mubr.bf16.gmra.mxu0 %v2675
    %v6138 = vpop.f32.mrf.mxu0
    %v6139 = vadd.f32 %v6099, %v6138
    %v6140 = vpop.f32.mrf.mxu0
    %v6141 = vpop.f32.mrf.mxu0
    %v6142 = vpop.f32.mrf.mxu0
    %6143 = vdwg.mxu0
    %6144 = vmatprep.subr.bf16.mxu0 0
    %6145 = vmatpush1.bf16.msra.mxu0 %v5027
    %6146 = vmatprep.subr.bf16.mxu0 0
    %6147 = vmatpush1.bf16.msra.mxu0 %v5020
    %6148 = vmatprep.subr.bf16.mxu0 0
    %6149 = vmatpush1.bf16.msra.mxu0 %v5013
    %6150 = vmatprep.subr.bf16.mxu0 0
    %6151 = vmatpush1.bf16.msra.mxu0 %v5006
    %6152 = vmatprep.subr.bf16.mxu0 0
    %6153 = vmatpush1.bf16.msra.mxu0 %v4999
    %6154 = vmatprep.subr.bf16.mxu0 0
    %6155 = vmatpush1.bf16.msra.mxu0 %v4992
    %6156 = vmatprep.subr.bf16.mxu0 0
    %6157 = vmatpush1.bf16.msra.mxu0 %v4985
    %6158 = vmatprep.subr.bf16.mxu0 0
    %6159 = vmatpush1.bf16.msra.mxu0 %v4978
    %6160 = vmatprep.subr.bf16.mxu0 0
    %6161 = vmatpush2.bf16.msra.mxu0 %v5083
    %6162 = vmatprep.subr.bf16.mxu0 0
    %6163 = vmatpush2.bf16.msra.mxu0 %v5076
    %6164 = vmatprep.subr.bf16.mxu0 0
    %6165 = vmatpush2.bf16.msra.mxu0 %v5069
    %6166 = vmatprep.subr.bf16.mxu0 0
    %6167 = vmatpush2.bf16.msra.mxu0 %v5062
    %6168 = vmatprep.subr.bf16.mxu0 0
    %6169 = vmatpush2.bf16.msra.mxu0 %v5055
    %6170 = vmatprep.subr.bf16.mxu0 0
    %6171 = vmatpush2.bf16.msra.mxu0 %v5048
    %6172 = vmatprep.subr.bf16.mxu0 0
    %6173 = vmatpush2.bf16.msra.mxu0 %v5041
    %6174 = vmatprep.subr.bf16.mxu0 0
    %6175 = vmatpush2.bf16.msra.mxu0 %v5034
    %6176 = vmatprep.mubr.bf16.mxu0 %v2678
    %6177 = vmatmul.mubr.bf16.gmra.mxu0 %v2677
    %v6178 = vpop.f32.mrf.mxu0
    %v6179 = vadd.f32 %v6139, %v6178
    %v6180 = vpop.f32.mrf.mxu0
    %v6181 = vpop.f32.mrf.mxu0
    %v6182 = vpop.f32.mrf.mxu0
    %6183 = vdwg.mxu0
    %v6184 = vtanh.pop %v5690
    %v6185 = vtanh.pop %v5692
    %v6186 = vtanh.pop %v5854
    %v6187 = vtanh.pop %v5856
    %v6188 = vtanh.pop %v6018
    %v6189 = vtanh.pop %v6020
    %v6190 = vtanh.pop %v6179
    %6191 = vst [vmem:[#allocation17] sm:$0xff] %v6184
    %6192 = vst [vmem:[#allocation17 + $0x8] sm:$0xff] %v6185
    %6193 = vst [vmem:[#allocation17 + $0x10] sm:$0xff] %v6186
    %6194 = vst [vmem:[#allocation17 + $0x18] sm:$0xff] %v6187
    %6195 = vst [vmem:[#allocation17 + $0x20] sm:$0xff] %v6188
    %6196 = vst [vmem:[#allocation17 + $0x28] sm:$0xff] %v6189
    %6197 = vst [vmem:[#allocation17 + $0x30] sm:$0xff] %v6190
    // Predicated region
    $region74: #{tpu_custom_call.1} parent=1 // pred_check
      _
    $region75: #{tpu_custom_call.1} parent=1 // pred_check_branch
      %6199 = sbr.rel (0) target = $region77
    $region76: #{tpu_custom_call.1} parent=1 // pred_region
      %s6201 = ssub.s32 896, 896
      %6202 = vsyncadd [#allocation4], %s6201
      %s6204 = sshll.u32 [#allocation17], 4
      %s6205 = int_to_ptr.vmem [resolvable:$true] %s6204
      %6207 = dma.vmem_to_hbm [thread:$0]  %s6205, 896, %s9, [#allocation4]
    $region77: #{tpu_custom_call.1} parent=1 // pred_fallthru
      _
    // Predicated region
    $region78: #{tpu_custom_call.1} parent=1 // pred_check
      _
    $region79: #{tpu_custom_call.1} parent=1 // pred_check_branch
      %6209 = sbr.rel (0) target = $region81
    $region80: #{tpu_custom_call.1} parent=1 // pred_region
      %6210 = dma.done [#allocation4], 896
    $region81: #{tpu_custom_call.1} parent=1 // pred_fallthru
      _
    %6211 = vsyncpa [#allocation3], 1
    %6212 = vsyncpa [#allocation6], 1
    %6213 = vsyncpa [#allocation9], 1
    %6214 = vsyncpa [#allocation12], 1
    %6215 = vsyncpa [#allocation15], 1
    %6216 = vsyncpa [#allocation4], 1

</llo_original>
